<compile_context>
chip_gen: v6e
topology: v6e:2x2x1
jax: 0.10.0
libtpu: 0.0.40
codegen_flags: <defaults>
</compile_context>

<pallas_src>
import functools

import jax
import jax.numpy as jnp
from jax import lax
from jax.experimental import pallas as pl
from jax.experimental.pallas import tpu as pltpu

EPS = 1e-5
OUT_CHANNELS = 256
POS_CHANNELS = 8                           # Box8 position embedding
IN_CHANNELS_LIST = (256, 512, 1024, 2048)  # resnet50 layer1..layer4
_PALLAS_MIN_ROWS = 512                     # below this a pallas_call is pure overhead


def _round_up(x, m):
    return (x + m - 1) // m * m


@functools.lru_cache(maxsize=1)
def _vmem_limit_bytes():
    """Generation-aware scoped-VMEM limit: 64 MiB on 128 MiB parts (v5e/v6e),
    ~48 MiB on v7x (64 MiB physical), conservative 32 MiB if the query fails."""
    try:
        cap = int(pltpu.get_tpu_info().vmem_capacity_bytes)
    except Exception:
        return 32 * 1024 * 1024
    return min(64 * 1024 * 1024, (cap * 3) // 4)


# ---------------------------------------------------------------------------
# Pallas kernel 1: row-tiled 1x1 conv   y = [relu](x @ W + b)
# ---------------------------------------------------------------------------
def _matmul_bias_kernel(x_ref, w_ref, b_ref, o_ref, *, relu):
    y = jnp.dot(x_ref[...], w_ref[...], preferred_element_type=jnp.float32)
    y = y + b_ref[...]
    if relu:
        y = jnp.maximum(y, 0.0)
    o_ref[...] = y.astype(o_ref.dtype)


def _choose_tm(n, k, c, out_itemsize, vmem_limit):
    """Largest row tile in {256, 512, 1024} that keeps >=2 grid steps and fits VMEM."""
    budget = int(vmem_limit * 0.75)
    tm = 256
    for cand in (512, 1024):
        if pl.cdiv(n, cand) < 2:
            break
        need = (2 * cand * k * 2                 # x tile, double-buffered, bf16
                + 2 * cand * c * out_itemsize    # out tile, double-buffered
                + k * c * 2 + 8 * c * 4)         # resident Buffered(1) weight + bias
        if need > budget:
            break
        tm = cand
    return tm


def _conv1x1_pallas(x2d, w, bias, *, relu, out_dtype):
    n, k = x2d.shape
    c = w.shape[1]
    x2d = x2d.astype(jnp.bfloat16)
    w = w.astype(jnp.bfloat16)
    bias = bias.reshape(1, c).astype(jnp.float32)

    limit = _vmem_limit_bytes()
    out_isz = jnp.dtype(out_dtype).itemsize
    tm = _choose_tm(n, k, c, out_isz, limit)
    grid = pl.cdiv(n, tm)          # partial last block: garbage rows discarded on store

    cost = pl.CostEstimate(
        flops=2 * n * k * c,
        transcendentals=0,
        bytes_accessed=n * k * 2 + k * c * 2 + c * 4 + n * c * out_isz,
    )
    return pl.pallas_call(
        functools.partial(_matmul_bias_kernel, relu=relu),
        out_shape=jax.ShapeDtypeStruct((n, c), out_dtype),
        grid_spec=pltpu.PrefetchScalarGridSpec(
            num_scalar_prefetch=0,
            grid=(grid,),
            in_specs=[
                pl.BlockSpec((tm, k), lambda i: (i, 0)),             # pixel-row tile
                pl.BlockSpec((k, c), lambda i: (0, 0),
                             pipeline_mode=pl.Buffered(1)),          # resident weight
                pl.BlockSpec((1, c), lambda i: (0, 0),
                             pipeline_mode=pl.Buffered(1)),          # resident bias
            ],
            out_specs=pl.BlockSpec((tm, c), lambda i: (i, 0)),
        ),
        compiler_params=pltpu.CompilerParams(
            dimension_semantics=("parallel",),
            vmem_limit_bytes=limit,
        ),
        cost_estimate=cost,
    )(x2d, w, bias)


def _conv1x1_jnp(x2d, w, bias, *, relu, out_dtype):
    y = jnp.dot(x2d.astype(jnp.bfloat16), w.astype(jnp.bfloat16),
                preferred_element_type=jnp.float32)
    y = y + bias.reshape(1, -1).astype(jnp.float32)
    if relu:
        y = jnp.maximum(y, 0.0)
    return y.astype(out_dtype)


def conv1x1(x_nhwc, w, bias, *, relu=False, out_dtype=jnp.bfloat16, use_pallas=True):
    b, h, wd, cin = x_nhwc.shape
    n = b * h * wd
    x2d = x_nhwc.reshape(n, cin)
    if use_pallas and n >= _PALLAS_MIN_ROWS:
        y = _conv1x1_pallas(x2d, w, bias, relu=relu, out_dtype=out_dtype)
    else:
        # Tiny levels: grid would be 1, MXU M-dim < tile -> XLA fuses these better.
        y = _conv1x1_jnp(x2d, w, bias, relu=relu, out_dtype=out_dtype)
    return y.reshape(b, h, wd, w.shape[1])


# ---------------------------------------------------------------------------
# Pallas kernel 2: proj head GroupNorm statistics
#   y = fmap @ W1 + pos @ W2 (never materialized in HBM); accumulate per-sample
#   sum / sum-of-squares over a (batch, hw-tile) grid.
# ---------------------------------------------------------------------------
def _proj_stats_kernel(x_ref, pos_ref, w1_ref, w2_ref, sum_ref, ssq_ref, *,
                       hw_total, need_mask):
    t = pl.program_id(1)

    @pl.when(t == 0)
    def _():
        sum_ref[...] = jnp.zeros_like(sum_ref)
        ssq_ref[...] = jnp.zeros_like(ssq_ref)

    y = jnp.dot(x_ref[0], w1_ref[...], preferred_element_type=jnp.float32)
    y = y + jnp.dot(pos_ref[...], w2_ref[...], preferred_element_type=jnp.float32)
    if need_mask:                      # partial last hw tile: keep garbage rows out
        thw = y.shape[0]
        rows = t * thw + lax.broadcasted_iota(jnp.int32, (thw, 1), 0)
        y = jnp.where(rows < hw_total, y, 0.0)
    sum_ref[0] += jnp.sum(y, axis=0, keepdims=True)
    ssq_ref[0] += jnp.sum(y * y, axis=0, keepdims=True)


def _choose_proj_tile(b, hw):
    cap = 2048
    if b == 1:
        # guarantee >=2 grid steps so both v7x TensorCores get work
        cap = min(cap, max(_round_up(pl.cdiv(hw, 2), 8), 8))
    if hw <= cap:
        return hw          # full extent (always a legal block dim)
    return cap             # multiple of 8


def _proj_stats_pallas(x3, pos2, w1, w2):
    b, hw, cin = x3.shape
    c = w1.shape[1]
    limit = _vmem_limit_bytes()
    thw = _choose_proj_tile(b, hw)
    grid = (b, pl.cdiv(hw, thw))

    cost = pl.CostEstimate(
        flops=2 * b * hw * (cin + POS_CHANNELS) * c,
        transcendentals=0,
        bytes_accessed=(b * hw * cin * 2 + hw * POS_CHANNELS * 2
                        + cin * c * 2 + POS_CHANNELS * c * 2 + 2 * b * c * 4),
    )
    sums, ssqs = pl.pallas_call(
        functools.partial(_proj_stats_kernel, hw_total=hw,
                          need_mask=(hw % thw != 0)),
        out_shape=(jax.ShapeDtypeStruct((b, 1, c), jnp.float32),
                   jax.ShapeDtypeStruct((b, 1, c), jnp.float32)),
        grid_spec=pltpu.PrefetchScalarGridSpec(
            num_scalar_prefetch=0,
            grid=grid,
            in_specs=[
                pl.BlockSpec((1, thw, cin), lambda i, t: (i, t, 0)),
                pl.BlockSpec((thw, POS_CHANNELS), lambda i, t: (t, 0)),
                pl.BlockSpec((cin, c), lambda i, t: (0, 0),
                             pipeline_mode=pl.Buffered(1)),
                pl.BlockSpec((POS_CHANNELS, c), lambda i, t: (0, 0),
                             pipeline_mode=pl.Buffered(1)),
            ],
            out_specs=(pl.BlockSpec((1, 1, c), lambda i, t: (i, 0, 0)),
                       pl.BlockSpec((1, 1, c), lambda i, t: (i, 0, 0))),
        ),
        compiler_params=pltpu.CompilerParams(
            dimension_semantics=("parallel", "arbitrary"),
            vmem_limit_bytes=limit,
        ),
        cost_estimate=cost,
    )(x3, pos2, w1, w2)
    return jnp.sum(sums, axis=(1, 2)), jnp.sum(ssqs, axis=(1, 2))


def proj_level(fmap, pos, w1, w2, gamma, beta, rh, rw, ht, wt, *, use_pallas):
    """proj (1x1 conv, no bias) + GroupNorm(1) + nearest downsample to (ht, wt).

    The 1x1 conv commutes with the strided nearest downsample, so GN stats are
    taken over the full-resolution map (Pallas stats kernel: only per-sample
    sums hit HBM) and the normalized output is only computed on kept pixels.
    """
    b, h, w, _ = fmap.shape
    hw = h * w
    x3 = fmap.reshape(b, hw, OUT_CHANNELS).astype(jnp.bfloat16)
    pos2 = pos.reshape(hw, POS_CHANNELS).astype(jnp.bfloat16)
    w1b = w1.astype(jnp.bfloat16)
    w2b = w2.astype(jnp.bfloat16)

    if use_pallas and b * hw >= _PALLAS_MIN_ROWS:
        s1, s2 = _proj_stats_pallas(x3, pos2, w1b, w2b)
    else:
        y = (jnp.einsum("bhk,kc->bhc", x3, w1b, preferred_element_type=jnp.float32)
             + jnp.einsum("hk,kc->hc", pos2, w2b,
                          preferred_element_type=jnp.float32)[None])
        s1 = jnp.sum(y, axis=(1, 2))
        s2 = jnp.sum(y * y, axis=(1, 2))

    n_elems = hw * OUT_CHANNELS
    mean = s1 / n_elems
    var = jnp.maximum(s2 / n_elems - mean * mean, 0.0)   # clamp one-pass variance
    inv = lax.rsqrt(var + EPS)

    # Downsampled (commuted) projection + normalization -- tiny, stays in XLA.
    fd = fmap[:, ::rh, ::rw, :][:, :ht, :wt, :].astype(jnp.bfloat16)
    pd = pos[::rh, ::rw, :][:ht, :wt, :].astype(jnp.bfloat16)
    yd = (jnp.einsum("bhwk,kc->bhwc", fd, w1b, preferred_element_type=jnp.float32)
          + jnp.einsum("hwk,kc->hwc", pd, w2b,
                       preferred_element_type=jnp.float32)[None])
    scale = gamma[None, None, None, :] * inv[:, None, None, None]
    shift = beta[None, None, None, :] - mean[:, None, None, None] * scale
    return yd * scale + shift                            # (B, ht, wt, 256) f32


def proj_level_ref(fmap, pos, w1, w2, gamma, beta, rh, rw, ht, wt):
    """Torch-faithful reference: concat -> 1x1 conv -> GroupNorm -> downsample."""
    b, h, w, _ = fmap.shape
    posb = jnp.broadcast_to(pos[None], (b, h, w, POS_CHANNELS))
    x = jnp.concatenate([fmap.astype(jnp.bfloat16), posb.astype(jnp.bfloat16)],
                        axis=-1)
    wcat = jnp.concatenate([w1, w2], axis=0).astype(jnp.bfloat16)
    y = jnp.einsum("bhwk,kc->bhwc", x, wcat, preferred_element_type=jnp.float32)
    mean = jnp.mean(y, axis=(1, 2, 3), keepdims=True)
    var = jnp.mean((y - mean) ** 2, axis=(1, 2, 3), keepdims=True)
    y = (y - mean) * lax.rsqrt(var + EPS)
    y = y * gamma[None, None, None, :] + beta[None, None, None, :]
    return y[:, ::rh, ::rw, :][:, :ht, :wt, :]


# ---------------------------------------------------------------------------
# Plain-JAX glue
# ---------------------------------------------------------------------------
def space_to_depth(x, r):
    b, h, w, c = x.shape
    x = x.reshape(b, h // r, r, w // r, r, c)
    x = jnp.transpose(x, (0, 1, 3, 2, 4, 5))
    return x.reshape(b, h // r, w // r, r * r * c)


def avg_pool_2x(x):
    b, h, w, c = x.shape
    x = x.reshape(b, h // 2, 2, w // 2, 2, c).astype(jnp.float32)
    return x.mean(axis=(2, 4)).astype(jnp.bfloat16)


def upsample_nearest_2x(x):
    return jnp.repeat(jnp.repeat(x, 2, axis=1), 2, axis=2)


def conv3x3_same(x, w, bias):
    # TODO(synk): FPN 3x3 smoothing convs stay on lax.conv (XLA), not a Pallas kernel.
    y = lax.conv_general_dilated(
        x.astype(jnp.bfloat16), w.astype(jnp.bfloat16),
        window_strides=(1, 1), padding=((1, 1), (1, 1)),
        dimension_numbers=("NHWC", "HWIO", "NHWC"),
        preferred_element_type=jnp.float32)
    return (y + bias.reshape(1, 1, 1, -1)).astype(jnp.bfloat16)


def box8_position_embedding(h, w):
    # TODO(synk): Box8PositionEmbedding2D source not provided; normalized per-cell
    # box coordinates (x0, y0, x1, y1, cx, cy, w, h) stand in for it.
    ys = jnp.arange(h, dtype=jnp.float32)
    xs = jnp.arange(w, dtype=jnp.float32)
    y0 = jnp.broadcast_to((ys / h)[:, None], (h, w))
    y1 = jnp.broadcast_to(((ys + 1.0) / h)[:, None], (h, w))
    x0 = jnp.broadcast_to((xs / w)[None, :], (h, w))
    x1 = jnp.broadcast_to(((xs + 1.0) / w)[None, :], (h, w))
    return jnp.stack([x0, y0, x1, y1, 0.5 * (x0 + x1), 0.5 * (y0 + y1),
                      x1 - x0, y1 - y0], axis=-1)                     # (h, w, 8)


def bilinear_resize_nchw(x, out_hw):
    # PyTorch F.interpolate(mode='bilinear', align_corners=False) semantics.
    _, _, h, w = x.shape
    oh, ow = out_hw

    def axis_coords(out_n, in_n):
        t = (jnp.arange(out_n, dtype=jnp.float32) + 0.5) * (in_n / out_n) - 0.5
        t = jnp.clip(t, 0.0, in_n - 1.0)
        lo = jnp.floor(t).astype(jnp.int32)
        hi = jnp.minimum(lo + 1, in_n - 1)
        return lo, hi, t - lo.astype(jnp.float32)

    ylo, yhi, yf = axis_coords(oh, h)
    xlo, xhi, xf = axis_coords(ow, w)
    rows = (x[:, :, ylo, :] * (1.0 - yf)[None, None, :, None]
            + x[:, :, yhi, :] * yf[None, None, :, None])
    out = (rows[:, :, :, xlo] * (1.0 - xf)[None, None, None, :]
           + rows[:, :, :, xhi] * xf[None, None, None, :])
    return out


# ---------------------------------------------------------------------------
# Backbone stand-in + FPN + encoder forward
# ---------------------------------------------------------------------------
def backbone_standin(img_nchw, p, *, use_pallas=True):
    # TODO(synk): pretrained ResNet-50 weights cannot be loaded in-script; this is a
    # random-weight patchify/pool stand-in producing the same {stride, channel}
    # pyramid (256/512/1024/2048 at strides 4/8/16/32); its big 1x1 convs run in Pallas.
    x = jnp.transpose(img_nchw, (0, 2, 3, 1)).astype(jnp.bfloat16)    # NHWC
    feats = []
    x = space_to_depth(x, 4)                                          # 4x4 stride-4 patchify
    x = conv1x1(x, p["bb_w"][0], p["bb_b"][0], relu=True, use_pallas=use_pallas)
    feats.append(x)
    for lvl in range(1, 4):
        x = avg_pool_2x(x)
        x = conv1x1(x, p["bb_w"][lvl], p["bb_b"][lvl], relu=True, use_pallas=use_pallas)
        feats.append(x)
    return feats


def fpn_forward(feats, p, *, use_pallas=True):
    # TODO(synk): lateral conv + top-down add could be fused into one 2-D-blocked
    # Pallas kernel (saves one [B,H,W,256] HBM round trip per level).
    laterals = [conv1x1(f, p["lat_w"][i], p["lat_b"][i], use_pallas=use_pallas)
                for i, f in enumerate(feats)]
    outs = [None] * 4
    inner = laterals[3]
    outs[3] = conv3x3_same(inner, p["out_w"][3], p["out_b"][3])
    for i in (2, 1, 0):
        inner = laterals[i] + upsample_nearest_2x(inner)
        outs[i] = conv3x3_same(inner, p["out_w"][i], p["out_b"][i])
    return outs


def fpn_image_encoder_forward(x, params, mask=None, *, use_pallas=True):
    feats = backbone_standin(x, params, use_pallas=use_pallas)
    pyramid = fpn_forward(feats, params, use_pallas=use_pallas)
    ht, wt = pyramid[-1].shape[1], pyramid[-1].shape[2]

    x_out = None
    for lvl, fmap in enumerate(pyramid):
        h, w = fmap.shape[1], fmap.shape[2]
        pos = box8_position_embedding(h, w)
        rh, rw = h // ht, w // wt        # nearest downsample ratios (integer)
        w1 = params["proj_w"][lvl][:OUT_CHANNELS]      # fmap part of the 1x1 conv
        w2 = params["proj_w"][lvl][OUT_CHANNELS:]      # pos  part of the 1x1 conv
        if use_pallas:
            y = proj_level(fmap, pos, w1, w2, params["gn_gamma"][lvl],
                           params["gn_beta"][lvl], rh, rw, ht, wt, use_pallas=True)
        else:
            y = proj_level_ref(fmap, pos, w1, w2, params["gn_gamma"][lvl],
                               params["gn_beta"][lvl], rh, rw, ht, wt)
        x_out = y if x_out is None else x_out + y

    x_out = jnp.transpose(x_out, (0, 3, 1, 2))                        # NCHW [B,256,H,W]
    x_mask = None
    if mask is not None:
        m = bilinear_resize_nchw(mask.astype(jnp.float32), (ht, wt))
        x_mask = (m > 0.5).astype(jnp.int32)                          # TODO(synk): torch uses int64
    return x_out, x_mask


# ---------------------------------------------------------------------------
# Parameter init (module-specified init for proj; stand-in init elsewhere)
# ---------------------------------------------------------------------------
def init_params(key):
    bb_in = (3 * 4 * 4, 256, 512, 1024)
    bb_out = IN_CHANNELS_LIST
    keys = iter(jax.random.split(key, 32))

    def he(k, fan_in, shape):
        return jax.random.normal(k, shape, jnp.float32) * (2.0 / fan_in) ** 0.5

    p = {"bb_w": [], "bb_b": [], "lat_w": [], "lat_b": [],
         "out_w": [], "out_b": [], "proj_w": [], "gn_gamma": [], "gn_beta": []}
    for cin, cout in zip(bb_in, bb_out):
        p["bb_w"].append(he(next(keys), cin, (cin, cout)))
        p["bb_b"].append(jnp.zeros((cout,), jnp.float32))
    for cin in IN_CHANNELS_LIST:
        p["lat_w"].append(he(next(keys), cin, (cin, OUT_CHANNELS)))
        p["lat_b"].append(jnp.zeros((OUT_CHANNELS,), jnp.float32))
        p["out_w"].append(he(next(keys), 9 * OUT_CHANNELS,
                             (3, 3, OUT_CHANNELS, OUT_CHANNELS)))
        p["out_b"].append(jnp.zeros((OUT_CHANNELS,), jnp.float32))
        # proj: Conv2d(264, 256, 1, bias=False) xavier_normal_(gain=sqrt(2)) + GroupNorm(1, 256)
        fan_in = OUT_CHANNELS + POS_CHANNELS
        std = (2.0 ** 0.5) * (2.0 / (fan_in + OUT_CHANNELS)) ** 0.5
        p["proj_w"].append(jax.random.normal(next(keys), (fan_in, OUT_CHANNELS),
                                             jnp.float32) * std)
        p["gn_gamma"].append(jnp.ones((OUT_CHANNELS,), jnp.float32))
        p["gn_beta"].append(jnp.zeros((OUT_CHANNELS,), jnp.float32))
    return p


if __name__ == "__main__":
    key = jax.random.PRNGKey(0)
    kp, kx, km = jax.random.split(key, 3)
    params = init_params(kp)

    batch, height, width = 2, 64, 64   # smallest input giving a 2x2 top level (stride 32)
    x = jax.random.normal(kx, (batch, 3, height, width), dtype=jnp.float32)
    mask = (jax.random.uniform(km, (batch, 1, height, width)) > 0.4).astype(jnp.float32)

    fwd = jax.jit(functools.partial(fpn_image_encoder_forward, use_pallas=True))
    ref = jax.jit(functools.partial(fpn_image_encoder_forward, use_pallas=False))

    x_out, x_mask = fwd(x, params, mask)
    jax.block_until_ready(x_out)
    jax.block_until_ready(x_mask)

    r_out, r_mask = ref(x, params, mask)
    jax.block_until_ready(r_out)

    assert x_out.shape == (batch, OUT_CHANNELS, height // 32, width // 32)
    assert x_mask.shape == (batch, 1, height // 32, width // 32)
    max_err = float(jnp.max(jnp.abs(x_out - r_out)))
    assert jnp.allclose(x_out, r_out, atol=3e-2, rtol=3e-2), max_err
    assert jnp.array_equal(x_mask, r_mask)
    print("KERNEL_OK")
</pallas_src>

<mosaic_0001>
module attributes {stable_mosaic.version = 11 : i64} {
  func.func @_matmul_bias_kernel(%arg0: i32, %arg1: memref<256x48xbf16, #tpu.memory_space<vmem>>, %arg2: memref<48x256xbf16, #tpu.memory_space<vmem>>, %arg3: memref<1x256xf32, #tpu.memory_space<vmem>>, %arg4: memref<256x256xbf16, #tpu.memory_space<vmem>>) attributes {dimension_semantics = [#tpu.dimension_semantics<parallel>], iteration_bounds = array<i64: 2>, scalar_prefetch = 0 : i64, scratch_operands = 0 : i64, tpu.core_type = #tpu.core_type<tc>, window_params = [{transform_indices = @transform_0, window_bounds = array<i64: 256, 48>}, {pipeline_mode = #tpu.pipeline_mode<synchronous>, transform_indices = @transform_1, window_bounds = array<i64: 48, 256>}, {pipeline_mode = #tpu.pipeline_mode<synchronous>, transform_indices = @transform_2, window_bounds = array<i64: 1, 256>}, {transform_indices = @transform_3, window_bounds = array<i64: 256, 256>}]} {
    %c0 = arith.constant 0 : index
    %c0_0 = arith.constant 0 : index
    %0 = vector.load %arg1[%c0, %c0_0] : memref<256x48xbf16, #tpu.memory_space<vmem>>, vector<256x48xbf16>
    %c0_1 = arith.constant 0 : index
    %c0_2 = arith.constant 0 : index
    %1 = vector.load %arg2[%c0_1, %c0_2] : memref<48x256xbf16, #tpu.memory_space<vmem>>, vector<48x256xbf16>
    %cst = arith.constant dense<0.000000e+00> : vector<256x256xf32>
    %2 = tpu.matmul %0, %1, %cst {dimension_numbers = #tpu.dot_dimension_numbers<[1], [0], [0], [1], [0, 0, 1, 1], [], []>} : vector<256x48xbf16>, vector<48x256xbf16>, vector<256x256xf32> -> vector<256x256xf32>
    %c0_3 = arith.constant 0 : index
    %c0_4 = arith.constant 0 : index
    %3 = vector.load %arg3[%c0_3, %c0_4] : memref<1x256xf32, #tpu.memory_space<vmem>>, vector<1x256xf32>
    %4 = vector.broadcast %3 : vector<1x256xf32> to vector<256x256xf32>
    %5 = arith.addf %2, %4 : vector<256x256xf32>
    %cst_5 = arith.constant 0.000000e+00 : f32
    %6 = vector.broadcast %cst_5 : f32 to vector<256x256xf32>
    %7 = arith.maximumf %5, %6 : vector<256x256xf32>
    %8 = arith.truncf %7 : vector<256x256xf32> to vector<256x256xbf16>
    %c0_6 = arith.constant 0 : index
    %c0_7 = arith.constant 0 : index
    %9 = vector.load %arg4[%c0_6, %c0_7] : memref<256x256xbf16, #tpu.memory_space<vmem>>, vector<256x256xbf16>
    tpu.vector_store %arg4[%c0_6, %c0_7], %8 {strides = array<i32>} : memref<256x256xbf16, #tpu.memory_space<vmem>>, vector<256x256xbf16>,
    return
  }
  func.func @transform_0(%arg0: i32) -> (i32, i32) {
    %c0_i32 = arith.constant 0 : i32
    %c0_i32_0 = arith.constant 0 : i32
    return %arg0, %c0_i32 : i32, i32
  }
  func.func @transform_1(%arg0: i32) -> (i32, i32) {
    %c0_i32 = arith.constant 0 : i32
    %c0_i32_0 = arith.constant 0 : i32
    %c0_i32_1 = arith.constant 0 : i32
    return %c0_i32, %c0_i32_0 : i32, i32
  }
  func.func @transform_2(%arg0: i32) -> (i32, i32) {
    %c0_i32 = arith.constant 0 : i32
    %c0_i32_0 = arith.constant 0 : i32
    %c0_i32_1 = arith.constant 0 : i32
    return %c0_i32, %c0_i32_0 : i32, i32
  }
  func.func @transform_3(%arg0: i32) -> (i32, i32) {
    %c0_i32 = arith.constant 0 : i32
    %c0_i32_0 = arith.constant 0 : i32
    return %arg0, %c0_i32 : i32, i32
  }
}

module attributes {stable_mosaic.version = 11 : i64} {
  func.func @_matmul_bias_kernel(%arg0: i32, %arg1: memref<256x256xbf16, #tpu.memory_space<vmem>>, %arg2: memref<256x256xbf16, #tpu.memory_space<vmem>>, %arg3: memref<1x256xf32, #tpu.memory_space<vmem>>, %arg4: memref<256x256xbf16, #tpu.memory_space<vmem>>) attributes {dimension_semantics = [#tpu.dimension_semantics<parallel>], iteration_bounds = array<i64: 2>, scalar_prefetch = 0 : i64, scratch_operands = 0 : i64, tpu.core_type = #tpu.core_type<tc>, window_params = [{transform_indices = @transform_0, window_bounds = array<i64: 256, 256>}, {pipeline_mode = #tpu.pipeline_mode<synchronous>, transform_indices = @transform_1, window_bounds = array<i64: 256, 256>}, {pipeline_mode = #tpu.pipeline_mode<synchronous>, transform_indices = @transform_2, window_bounds = array<i64: 1, 256>}, {transform_indices = @transform_3, window_bounds = array<i64: 256, 256>}]} {
    %c0 = arith.constant 0 : index
    %c0_0 = arith.constant 0 : index
    %0 = vector.load %arg1[%c0, %c0_0] : memref<256x256xbf16, #tpu.memory_space<vmem>>, vector<256x256xbf16>
    %c0_1 = arith.constant 0 : index
    %c0_2 = arith.constant 0 : index
    %1 = vector.load %arg2[%c0_1, %c0_2] : memref<256x256xbf16, #tpu.memory_space<vmem>>, vector<256x256xbf16>
    %cst = arith.constant dense<0.000000e+00> : vector<256x256xf32>
    %2 = tpu.matmul %0, %1, %cst {dimension_numbers = #tpu.dot_dimension_numbers<[1], [0], [0], [1], [0, 0, 1, 1], [], []>} : vector<256x256xbf16>, vector<256x256xbf16>, vector<256x256xf32> -> vector<256x256xf32>
    %c0_3 = arith.constant 0 : index
    %c0_4 = arith.constant 0 : index
    %3 = vector.load %arg3[%c0_3, %c0_4] : memref<1x256xf32, #tpu.memory_space<vmem>>, vector<1x256xf32>
    %4 = vector.broadcast %3 : vector<1x256xf32> to vector<256x256xf32>
    %5 = arith.addf %2, %4 : vector<256x256xf32>
    %6 = arith.truncf %5 : vector<256x256xf32> to vector<256x256xbf16>
    %c0_5 = arith.constant 0 : index
    %c0_6 = arith.constant 0 : index
    %7 = vector.load %arg4[%c0_5, %c0_6] : memref<256x256xbf16, #tpu.memory_space<vmem>>, vector<256x256xbf16>
    tpu.vector_store %arg4[%c0_5, %c0_6], %6 {strides = array<i32>} : memref<256x256xbf16, #tpu.memory_space<vmem>>, vector<256x256xbf16>,
    return
  }
  func.func @transform_0(%arg0: i32) -> (i32, i32) {
    %c0_i32 = arith.constant 0 : i32
    %c0_i32_0 = arith.constant 0 : i32
    return %arg0, %c0_i32 : i32, i32
  }
  func.func @transform_1(%arg0: i32) -> (i32, i32) {
    %c0_i32 = arith.constant 0 : i32
    %c0_i32_0 = arith.constant 0 : i32
    %c0_i32_1 = arith.constant 0 : i32
    return %c0_i32, %c0_i32_0 : i32, i32
  }
  func.func @transform_2(%arg0: i32) -> (i32, i32) {
    %c0_i32 = arith.constant 0 : i32
    %c0_i32_0 = arith.constant 0 : i32
    %c0_i32_1 = arith.constant 0 : i32
    return %c0_i32, %c0_i32_0 : i32, i32
  }
  func.func @transform_3(%arg0: i32) -> (i32, i32) {
    %c0_i32 = arith.constant 0 : i32
    %c0_i32_0 = arith.constant 0 : i32
    return %arg0, %c0_i32 : i32, i32
  }
}

module attributes {stable_mosaic.version = 11 : i64} {
  func.func @_proj_stats_kernel(%arg0: i32, %arg1: i32, %arg2: memref<1x256x256xbf16, #tpu.memory_space<vmem>>, %arg3: memref<256x8xbf16, #tpu.memory_space<vmem>>, %arg4: memref<256x256xbf16, #tpu.memory_space<vmem>>, %arg5: memref<8x256xbf16, #tpu.memory_space<vmem>>, %arg6: memref<1x1x256xf32, #tpu.memory_space<vmem>>, %arg7: memref<1x1x256xf32, #tpu.memory_space<vmem>>) attributes {dimension_semantics = [#tpu.dimension_semantics<parallel>, #tpu.dimension_semantics<arbitrary>], iteration_bounds = array<i64: 2, 1>, scalar_prefetch = 0 : i64, scratch_operands = 0 : i64, tpu.core_type = #tpu.core_type<tc>, window_params = [{transform_indices = @transform_0, window_bounds = array<i64: 1, 256, 256>}, {transform_indices = @transform_1, window_bounds = array<i64: 256, 8>}, {pipeline_mode = #tpu.pipeline_mode<synchronous>, transform_indices = @transform_2, window_bounds = array<i64: 256, 256>}, {pipeline_mode = #tpu.pipeline_mode<synchronous>, transform_indices = @transform_3, window_bounds = array<i64: 8, 256>}, {transform_indices = @transform_4, window_bounds = array<i64: 1, 1, 256>}, {transform_indices = @transform_5, window_bounds = array<i64: 1, 1, 256>}]} {
    %c0_i32 = arith.constant 0 : i32
    %0 = arith.cmpi eq, %arg1, %c0_i32 : i32
    %1 = arith.extui %0 : i1 to i32
    %c0_i32_0 = arith.constant 0 : i32
    %2 = arith.cmpi ne, %1, %c0_i32_0 : i32
    scf.if %2 {
      %cst_24 = arith.constant 0.000000e+00 : f32
      %28 = vector.broadcast %cst_24 : f32 to vector<1x1x256xf32>
      %c0_25 = arith.constant 0 : index
      %c0_26 = arith.constant 0 : index
      %c0_27 = arith.constant 0 : index
      %29 = vector.load %arg6[%c0_25, %c0_26, %c0_27] : memref<1x1x256xf32, #tpu.memory_space<vmem>>, vector<1x1x256xf32>
      tpu.vector_store %arg6[%c0_25, %c0_26, %c0_27], %28 {strides = array<i32>} : memref<1x1x256xf32, #tpu.memory_space<vmem>>, vector<1x1x256xf32>,
      %cst_28 = arith.constant 0.000000e+00 : f32
      %30 = vector.broadcast %cst_28 : f32 to vector<1x1x256xf32>
      %c0_29 = arith.constant 0 : index
      %c0_30 = arith.constant 0 : index
      %c0_31 = arith.constant 0 : index
      %31 = vector.load %arg7[%c0_29, %c0_30, %c0_31] : memref<1x1x256xf32, #tpu.memory_space<vmem>>, vector<1x1x256xf32>
      tpu.vector_store %arg7[%c0_29, %c0_30, %c0_31], %30 {strides = array<i32>} : memref<1x1x256xf32, #tpu.memory_space<vmem>>, vector<1x1x256xf32>,
    } else {
    }
    %c0 = arith.constant 0 : index
    %c0_1 = arith.constant 0 : index
    %c0_2 = arith.constant 0 : index
    %3 = vector.load %arg2[%c0, %c0_1, %c0_2] : memref<1x256x256xbf16, #tpu.memory_space<vmem>>, vector<1x256x256xbf16>
    %4 = vector.shape_cast %3 : vector<1x256x256xbf16> to vector<256x256xbf16>
    %c0_3 = arith.constant 0 : index
    %c0_4 = arith.constant 0 : index
    %5 = vector.load %arg4[%c0_3, %c0_4] : memref<256x256xbf16, #tpu.memory_space<vmem>>, vector<256x256xbf16>
    %cst = arith.constant dense<0.000000e+00> : vector<256x256xf32>
    %6 = tpu.matmul %4, %5, %cst {dimension_numbers = #tpu.dot_dimension_numbers<[1], [0], [0], [1], [0, 0, 1, 1], [], []>} : vector<256x256xbf16>, vector<256x256xbf16>, vector<256x256xf32> -> vector<256x256xf32>
    %c0_5 = arith.constant 0 : index
    %c0_6 = arith.constant 0 : index
    %7 = vector.load %arg3[%c0_5, %c0_6] : memref<256x8xbf16, #tpu.memory_space<vmem>>, vector<256x8xbf16>
    %c0_7 = arith.constant 0 : index
    %c0_8 = arith.constant 0 : index
    %8 = vector.load %arg5[%c0_7, %c0_8] : memref<8x256xbf16, #tpu.memory_space<vmem>>, vector<8x256xbf16>
    %cst_9 = arith.constant dense<0.000000e+00> : vector<256x256xf32>
    %9 = tpu.matmul %7, %8, %cst_9 {dimension_numbers = #tpu.dot_dimension_numbers<[1], [0], [0], [1], [0, 0, 1, 1], [], []>} : vector<256x8xbf16>, vector<8x256xbf16>, vector<256x256xf32> -> vector<256x256xf32>
    %10 = arith.addf %6, %9 : vector<256x256xf32>
    %c0_10 = arith.constant 0 : index
    %c0_11 = arith.constant 0 : index
    %c0_12 = arith.constant 0 : index
    %11 = vector.load %arg6[%c0_10, %c0_11, %c0_12] : memref<1x1x256xf32, #tpu.memory_space<vmem>>, vector<1x1x256xf32>
    %12 = vector.shape_cast %11 : vector<1x1x256xf32> to vector<1x256xf32>
    %cst_13 = arith.constant dense<0.000000e+00> : vector<256xf32>
    %13 = vector.multi_reduction <add>, %10, %cst_13 [0] : vector<256x256xf32> to vector<256xf32>
    %14 = vector.shape_cast %13 : vector<256xf32> to vector<1x256xf32>
    %15 = arith.addf %12, %14 : vector<1x256xf32>
    %c0_14 = arith.constant 0 : index
    %c0_15 = arith.constant 0 : index
    %c0_16 = arith.constant 0 : index
    %16 = vector.load %arg6[%c0_14, %c0_15, %c0_16] : memref<1x1x256xf32, #tpu.memory_space<vmem>>, vector<1x1x256xf32>
    %17 = vector.shape_cast %16 : vector<1x1x256xf32> to vector<1x256xf32>
    %18 = vector.shape_cast %15 : vector<1x256xf32> to vector<1x1x256xf32>
    tpu.vector_store %arg6[%c0_14, %c0_15, %c0_16], %18 {strides = array<i32>} : memref<1x1x256xf32, #tpu.memory_space<vmem>>, vector<1x1x256xf32>,
    %c0_17 = arith.constant 0 : index
    %c0_18 = arith.constant 0 : index
    %c0_19 = arith.constant 0 : index
    %19 = vector.load %arg7[%c0_17, %c0_18, %c0_19] : memref<1x1x256xf32, #tpu.memory_space<vmem>>, vector<1x1x256xf32>
    %20 = vector.shape_cast %19 : vector<1x1x256xf32> to vector<1x256xf32>
    %21 = arith.mulf %10, %10 : vector<256x256xf32>
    %cst_20 = arith.constant dense<0.000000e+00> : vector<256xf32>
    %22 = vector.multi_reduction <add>, %21, %cst_20 [0] : vector<256x256xf32> to vector<256xf32>
    %23 = vector.shape_cast %22 : vector<256xf32> to vector<1x256xf32>
    %24 = arith.addf %20, %23 : vector<1x256xf32>
    %c0_21 = arith.constant 0 : index
    %c0_22 = arith.constant 0 : index
    %c0_23 = arith.constant 0 : index
    %25 = vector.load %arg7[%c0_21, %c0_22, %c0_23] : memref<1x1x256xf32, #tpu.memory_space<vmem>>, vector<1x1x256xf32>
    %26 = vector.shape_cast %25 : vector<1x1x256xf32> to vector<1x256xf32>
    %27 = vector.shape_cast %24 : vector<1x256xf32> to vector<1x1x256xf32>
    tpu.vector_store %arg7[%c0_21, %c0_22, %c0_23], %27 {strides = array<i32>} : memref<1x1x256xf32, #tpu.memory_space<vmem>>, vector<1x1x256xf32>,
    return
  }
  func.func @transform_0(%arg0: i32, %arg1: i32) -> (i32, i32, i32) {
    %c0_i32 = arith.constant 0 : i32
    %c0_i32_0 = arith.constant 0 : i32
    return %arg0, %arg1, %c0_i32 : i32, i32, i32
  }
  func.func @transform_1(%arg0: i32, %arg1: i32) -> (i32, i32) {
    %c0_i32 = arith.constant 0 : i32
    %c0_i32_0 = arith.constant 0 : i32
    return %arg1, %c0_i32 : i32, i32
  }
  func.func @transform_2(%arg0: i32, %arg1: i32) -> (i32, i32) {
    %c0_i32 = arith.constant 0 : i32
    %c0_i32_0 = arith.constant 0 : i32
    %c0_i32_1 = arith.constant 0 : i32
    return %c0_i32, %c0_i32_0 : i32, i32
  }
  func.func @transform_3(%arg0: i32, %arg1: i32) -> (i32, i32) {
    %c0_i32 = arith.constant 0 : i32
    %c0_i32_0 = arith.constant 0 : i32
    %c0_i32_1 = arith.constant 0 : i32
    return %c0_i32, %c0_i32_0 : i32, i32
  }
  func.func @transform_4(%arg0: i32, %arg1: i32) -> (i32, i32, i32) {
    %c0_i32 = arith.constant 0 : i32
    %c0_i32_0 = arith.constant 0 : i32
    %c0_i32_1 = arith.constant 0 : i32
    return %arg0, %c0_i32, %c0_i32_0 : i32, i32, i32
  }
  func.func @transform_5(%arg0: i32, %arg1: i32) -> (i32, i32, i32) {
    %c0_i32 = arith.constant 0 : i32
    %c0_i32_0 = arith.constant 0 : i32
    %c0_i32_1 = arith.constant 0 : i32
    return %arg0, %c0_i32, %c0_i32_0 : i32, i32, i32
  }
}

</mosaic_0001>

<llo_original>
// kernel: fpn_image_encoder_forward.3
$region0: #{fpn_image_encoder_forward.3}
  #allocation0 [shape = 'u32[]', space=smem, size = 0x4, offset = 0x4, fixed_abs, tag = 'smem constant byte address 0x4 - core index']
  #allocation1 [shape = 'u32[144,128]{1,0:T(1,128)}', space=vmem, size = 0x12000, scoped, tag = 'internal scratch']
  %s0 = inlined_call_operand.vmem [shape: bf16[512,48], index: 0, kind: input, shape index: {}]
  %s1 = inlined_call_operand.vmem [shape: bf16[48,256], index: 1, kind: input, shape index: {}]
  %s2 = inlined_call_operand.vmem [shape: f32[1,256], index: 2, kind: input, shape index: {}]
  %s3 = inlined_call_operand.vmem [shape: bf16[512,256], index: 3, kind: output, shape index: {}]
  %s4 = sld [smem:[#allocation0]]
  $region45: #{fpn_image_encoder_forward.3} parent=0
    _
  %s6 = ssub.s32 1, %s4
  %s7 = scalar_select 0, %s6, %s4
  loop: start=0, step=1, limit=4
  $region2: #{fpn_image_encoder_forward.3} parent=0 // loop_pre_header
    _
  $region3: #{fpn_image_encoder_forward.3} parent=0 // loop_header
    %s9 = sphi 0, %s13
    %p10 = scmp.ge.s32.totalorder %s9, 4
    %s19 = sphi 0, %s21
    %s22 = sphi 0, %s19
    %s23 = sphi 0, %s22
    %s39 = sphi 0, %s23
    %s43 = sphi 0, %s43
    %s45 = sphi 0, %s43
    %s46 = sphi 0, %s45
    %s60 = sphi 0, %s46
    %s64 = sphi 0, %s64
    %s66 = sphi 0, %s64
    %s67 = sphi 0, %s66
    %s81 = sphi 0, %s67
    %s87 = sphi 0, %s89
    %s90 = sphi 0, %s87
    %s91 = sphi 0, %s90
    %s107 = sphi 0, %s91
  $region4: #{fpn_image_encoder_forward.3} parent=0 // loop_header_branch
    %12 = sbr.rel (%p10) target = $region8
  $region5: #{fpn_image_encoder_forward.3} parent=0 // loop_body
    %s14 = ssub.s32 %s9, 1
    %s15 = ssub.s32 %s9, 2
    %s16 = sadd.s32 %s9, 1
    %s17 = ssub.s32 %s9, %s16
    %p18 = scmp.eq.s32.totalorder %s17, 0
    %s20 = sadd.s32 %s19, 1
    %s21 = scalar_select %p18, %s19, %s20
    %p24 = pneg %p18
    %p25 = scmp.eq.s32.totalorder %s9, 1
    %p26 = por %p24, %p25
    %p27 = scmp.ne.s32.totalorder %s19, %s22
    %p28 = scmp.eq.s32.totalorder %s9, 0
    %p29 = por %p27, %p28
    %p30 = scmp.ne.s32.totalorder %s19, %s22
    %p31 = scmp.eq.s32.totalorder %s14, 1
    %p32 = por %p30, %p31
    %p33 = scmp.ne.s32.totalorder %s22, %s23
    %p34 = scmp.eq.s32.totalorder %s14, 0
    %p35 = por %p33, %p34
    %p36 = scmp.ne.s32.totalorder %s22, %s23
    %p37 = scmp.eq.s32.totalorder %s15, 1
    %p38 = por %p36, %p37
    %p40 = scmp.ne.s32.totalorder %s23, %s39
    %p41 = scmp.eq.s32.totalorder %s15, 0
    %p42 = por %p40, %p41
    %s44 = sadd.s32 %s43, 1
    %p47 = scmp.eq.s32.totalorder %s9, 1
    %p48 = scmp.ne.s32.totalorder %s43, %s45
    %p49 = scmp.eq.s32.totalorder %s9, 0
    %p50 = por %p48, %p49
    %p51 = scmp.ne.s32.totalorder %s43, %s45
    %p52 = scmp.eq.s32.totalorder %s14, 1
    %p53 = por %p51, %p52
    %p54 = scmp.ne.s32.totalorder %s45, %s46
    %p55 = scmp.eq.s32.totalorder %s14, 0
    %p56 = por %p54, %p55
    %p57 = scmp.ne.s32.totalorder %s45, %s46
    %p58 = scmp.eq.s32.totalorder %s15, 1
    %p59 = por %p57, %p58
    %p61 = scmp.ne.s32.totalorder %s46, %s60
    %p62 = scmp.eq.s32.totalorder %s15, 0
    %p63 = por %p61, %p62
    %s65 = sadd.s32 %s64, 1
    %p68 = scmp.eq.s32.totalorder %s9, 1
    %p69 = scmp.ne.s32.totalorder %s64, %s66
    %p70 = scmp.eq.s32.totalorder %s9, 0
    %p71 = por %p69, %p70
    %p72 = scmp.ne.s32.totalorder %s64, %s66
    %p73 = scmp.eq.s32.totalorder %s14, 1
    %p74 = por %p72, %p73
    %p75 = scmp.ne.s32.totalorder %s66, %s67
    %p76 = scmp.eq.s32.totalorder %s14, 0
    %p77 = por %p75, %p76
    %p78 = scmp.ne.s32.totalorder %s66, %s67
    %p79 = scmp.eq.s32.totalorder %s15, 1
    %p80 = por %p78, %p79
    %p82 = scmp.ne.s32.totalorder %s67, %s81
    %p83 = scmp.eq.s32.totalorder %s15, 0
    %p84 = por %p82, %p83
    %s85 = ssub.s32 %s9, %s16
    %p86 = scmp.eq.s32.totalorder %s85, 0
    %s88 = sadd.s32 %s87, 1
    %s89 = scalar_select %p86, %s87, %s88
    %p92 = pneg %p86
    %p93 = scmp.eq.s32.totalorder %s9, 1
    %p94 = por %p92, %p93
    %p95 = scmp.ne.s32.totalorder %s87, %s90
    %p96 = scmp.eq.s32.totalorder %s9, 0
    %p97 = por %p95, %p96
    %p98 = scmp.ne.s32.totalorder %s87, %s90
    %p99 = scmp.eq.s32.totalorder %s14, 1
    %p100 = por %p98, %p99
    %p101 = scmp.ne.s32.totalorder %s90, %s91
    %p102 = scmp.eq.s32.totalorder %s14, 0
    %p103 = por %p101, %p102
    %p104 = scmp.ne.s32.totalorder %s90, %s91
    %p105 = scmp.eq.s32.totalorder %s15, 1
    %p106 = por %p104, %p105
    %p108 = scmp.ne.s32.totalorder %s91, %s107
    %p109 = scmp.eq.s32.totalorder %s15, 0
    %p110 = por %p108, %p109
    %p111 = scmp.le.s32.totalorder 1, %s9
    %p112 = scmp.lt.s32.totalorder %s9, 3
    %p113 = pnand %p111, %p112
    %p114 = pneg %p113
    // Predicated region
    $region9: #{fpn_image_encoder_forward.3} parent=5 // pred_check
      _
    $region10: #{fpn_image_encoder_forward.3} parent=5 // pred_check_branch
      %116 = sbr.rel (%p113) target = $region12
    $region11: #{fpn_image_encoder_forward.3} parent=5 // pred_region
      %s117 = ssub.s32 %s9, 1
      // Predicated region
      $region13: #{fpn_image_encoder_forward.3} parent=11 // pred_check
        %p118 = pneg %p56
      $region14: #{fpn_image_encoder_forward.3} parent=11 // pred_check_branch
        %120 = sbr.rel (%p118) target = $region16
      $region15: #{fpn_image_encoder_forward.3} parent=11 // pred_region
        _
      $region16: #{fpn_image_encoder_forward.3} parent=11 // pred_fallthru
        _
      // Predicated region
      $region17: #{fpn_image_encoder_forward.3} parent=11 // pred_check
        %p121 = pneg %p77
      $region18: #{fpn_image_encoder_forward.3} parent=11 // pred_check_branch
        %123 = sbr.rel (%p121) target = $region20
      $region19: #{fpn_image_encoder_forward.3} parent=11 // pred_region
        _
      $region20: #{fpn_image_encoder_forward.3} parent=11 // pred_fallthru
        _
    $region12: #{fpn_image_encoder_forward.3} parent=5 // pred_fallthru
      _
    %p124 = scmp.lt.s32.totalorder %s9, 2
    // Predicated region
    $region21: #{fpn_image_encoder_forward.3} parent=5 // pred_check
      %p125 = pneg %p124
    $region22: #{fpn_image_encoder_forward.3} parent=5 // pred_check_branch
      %127 = sbr.rel (%p125) target = $region24
    $region23: #{fpn_image_encoder_forward.3} parent=5 // pred_region
      // Predicated region
      $region25: #{fpn_image_encoder_forward.3} parent=23 // pred_check
        %p128 = pneg %p29
      $region26: #{fpn_image_encoder_forward.3} parent=23 // pred_check_branch
        %130 = sbr.rel (%p128) target = $region28
      $region27: #{fpn_image_encoder_forward.3} parent=23 // pred_region
        %s131 = smul.u32 32, %s9
        %p132 = scmp.lt.s32.totalorder %s131, 63
        %s133 = scalar_select %p132, %s131, 63
        %s134 = smul.addr %s133, 4
        %s135 = scalar_lea.vmem %s0, %s134
        %s136 = smul.u32 32, %s9
      $region28: #{fpn_image_encoder_forward.3} parent=23 // pred_fallthru
        _
    $region24: #{fpn_image_encoder_forward.3} parent=5 // pred_fallthru
      _
    %p137 = scmp.le.s32.totalorder 1, %s9
    %p138 = scmp.lt.s32.totalorder %s9, 3
    %p139 = pnand %p137, %p138
    %p140 = pneg %p139
    // Predicated region
    $region29: #{fpn_image_encoder_forward.3} parent=5 // pred_check
      _
    $region30: #{fpn_image_encoder_forward.3} parent=5 // pred_check_branch
      %142 = sbr.rel (%p139) target = $region32
    $region31: #{fpn_image_encoder_forward.3} parent=5 // pred_region
      %s143 = ssub.s32 %s9, 1
      %s144 = smul.u32 32, %s14
      %p145 = scmp.lt.s32.totalorder %s144, 63
      %s146 = scalar_select %p145, %s144, 63
      %s147 = smul.addr %s146, 4
      %s148 = scalar_lea.vmem %s0, %s147
      %p149 = pneg %p35
      %p150 = pneg %p32
      %p151 = pneg %p56
      %p152 = pneg %p53
      %p153 = pneg %p77
      %p154 = pneg %p74
      %p155 = pneg %p103
      %p156 = pneg %p100
      %s157 = smul.u32 32, %s14
      %p158 = scmp.lt.s32.totalorder %s157, 63
      %s159 = scalar_select %p158, %s157, 63
      %s160 = smul.addr %s159, 2
      %s161 = smul.addr %s160, 4
      %s162 = scalar_lea.vmem %s3, %s161
      %s163 = smul.u32 32, %s14
      %p164 = scmp.lt.s32.totalorder %s163, 63
      %s165 = scalar_select %p164, %s163, 63
      %s166 = smul.addr %s165, 4
      %s167 = scalar_lea.vmem %s0, %s166
      %s168 = smul.u32 32, %s14
      %s169 = smul.u32 32, %s14
      %p170 = scmp.lt.s32.totalorder %s169, 63
      %s171 = scalar_select %p170, %s169, 63
      %s172 = smul.addr %s171, 2
      %s173 = smul.addr %s172, 4
      %s174 = scalar_lea.vmem %s3, %s173
      %s175 = smul.u32 32, %s14
      %v177 = vld [vmem:[%s167] sm:$0xf]
      %v178 = vld [vmem:[%s167 + $0x4] sm:$0xf]
      %v179 = vld [vmem:[%s167 + $0x8] sm:$0xf]
      %v180 = vld [vmem:[%s167 + $0xc] sm:$0xf]
      %v181 = vld [vmem:[%s167 + $0x10] sm:$0xf]
      %v182 = vld [vmem:[%s167 + $0x14] sm:$0xf]
      %v183 = vld [vmem:[%s167 + $0x18] sm:$0xf]
      %v184 = vld [vmem:[%s167 + $0x1c] sm:$0xf]
      %v185 = vld [vmem:[%s167 + $0x20] sm:$0xf]
      %v186 = vld [vmem:[%s167 + $0x24] sm:$0xf]
      %v187 = vld [vmem:[%s167 + $0x28] sm:$0xf]
      %v188 = vld [vmem:[%s167 + $0x2c] sm:$0xf]
      %v189 = vld [vmem:[%s167 + $0x30] sm:$0xf]
      %v190 = vld [vmem:[%s167 + $0x34] sm:$0xf]
      %v191 = vld [vmem:[%s167 + $0x38] sm:$0xf]
      %v192 = vld [vmem:[%s167 + $0x3c] sm:$0xf]
      %v193 = vld [vmem:[%s167 + $0x40] sm:$0xf]
      %v194 = vld [vmem:[%s167 + $0x44] sm:$0xf]
      %v195 = vld [vmem:[%s167 + $0x48] sm:$0xf]
      %v196 = vld [vmem:[%s167 + $0x4c] sm:$0xf]
      %v197 = vld [vmem:[%s167 + $0x50] sm:$0xf]
      %v198 = vld [vmem:[%s167 + $0x54] sm:$0xf]
      %v199 = vld [vmem:[%s167 + $0x58] sm:$0xf]
      %v200 = vld [vmem:[%s167 + $0x5c] sm:$0xf]
      %v201 = vld [vmem:[%s167 + $0x60] sm:$0xf]
      %v202 = vld [vmem:[%s167 + $0x64] sm:$0xf]
      %v203 = vld [vmem:[%s167 + $0x68] sm:$0xf]
      %v204 = vld [vmem:[%s167 + $0x6c] sm:$0xf]
      %v205 = vld [vmem:[%s167 + $0x70] sm:$0xf]
      %v206 = vld [vmem:[%s167 + $0x74] sm:$0xf]
      %v207 = vld [vmem:[%s167 + $0x78] sm:$0xf]
      %v208 = vld [vmem:[%s167 + $0x7c] sm:$0xf]
      %v209 = vld [vmem:[%s1] sm:$0xff]
      %v210 = vld [vmem:[%s1 + $0x8] sm:$0xff]
      %v211 = vld [vmem:[%s1 + $0x10] sm:$0xff]
      %v212 = vld [vmem:[%s1 + $0x18] sm:$0xff]
      %v213 = vld [vmem:[%s1 + $0x20] sm:$0xff]
      %v214 = vld [vmem:[%s1 + $0x28] sm:$0xff]
      %v215 = vld [vmem:[%s2] sm:$0x3]
      %v217 = vlaneseq
      %v218 = vshrl.u32 %v217, 7
      %v219 = vsub.s32 0, %v218
      %v220 = vrot.slane %v215, %v219
      %v221 = vlaneseq
      %v222 = vshrl.u32 %v221, 7
      %v223 = vsub.s32 1, %v222
      %v224 = vrot.slane %v215, %v223
      %v259 = vunpack.c.l.b16 %v177
      %v260 = vunpack.c.l.b16 %v178
      %v261 = vunpack.c.l.b16 %v179
      %v262 = vunpack.c.l.b16 %v180
      %v263 = vunpack.c.l.b16 %v181
      %v264 = vunpack.c.l.b16 %v182
      %v265 = vunpack.c.l.b16 %v183
      %v266 = vunpack.c.l.b16 %v184
      %v267 = vunpack.c.l.b16 %v185
      %v268 = vunpack.c.l.b16 %v186
      %v269 = vunpack.c.l.b16 %v187
      %v270 = vunpack.c.l.b16 %v188
      %v271 = vunpack.c.l.b16 %v189
      %v272 = vunpack.c.l.b16 %v190
      %v273 = vunpack.c.l.b16 %v191
      %v274 = vunpack.c.l.b16 %v192
      %v275 = vunpack.c.l.b16 %v193
      %v276 = vunpack.c.l.b16 %v194
      %v277 = vunpack.c.l.b16 %v195
      %v278 = vunpack.c.l.b16 %v196
      %v279 = vunpack.c.l.b16 %v197
      %v280 = vunpack.c.l.b16 %v198
      %v281 = vunpack.c.l.b16 %v199
      %v282 = vunpack.c.l.b16 %v200
      %v283 = vunpack.c.l.b16 %v201
      %v284 = vunpack.c.l.b16 %v202
      %v285 = vunpack.c.l.b16 %v203
      %v286 = vunpack.c.l.b16 %v204
      %v287 = vunpack.c.l.b16 %v205
      %v288 = vunpack.c.l.b16 %v206
      %v289 = vunpack.c.l.b16 %v207
      %v290 = vunpack.c.l.b16 %v208
      %v291 = vpack.c.b16 %v260, %v259
      %v292 = vpack.c.b16 %v262, %v261
      %v293 = vpack.c.b16 %v264, %v263
      %v294 = vpack.c.b16 %v266, %v265
      %v295 = vpack.c.b16 %v268, %v267
      %v296 = vpack.c.b16 %v270, %v269
      %v297 = vpack.c.b16 %v272, %v271
      %v298 = vpack.c.b16 %v274, %v273
      %v299 = vpack.c.b16 %v276, %v275
      %v300 = vpack.c.b16 %v278, %v277
      %v301 = vpack.c.b16 %v280, %v279
      %v302 = vpack.c.b16 %v282, %v281
      %v303 = vpack.c.b16 %v284, %v283
      %v304 = vpack.c.b16 %v286, %v285
      %v305 = vpack.c.b16 %v288, %v287
      %v306 = vpack.c.b16 %v290, %v289
      %v313 = vunpack.c.l.b16 %v209
      %v314 = vunpack.c.h.b16 %v209
      %v315 = vunpack.c.l.b16 %v210
      %v316 = vunpack.c.h.b16 %v210
      %v317 = vunpack.c.l.b16 %v211
      %v318 = vunpack.c.h.b16 %v211
      %v319 = vunpack.c.l.b16 %v212
      %v320 = vunpack.c.h.b16 %v212
      %v321 = vunpack.c.l.b16 %v213
      %v322 = vunpack.c.h.b16 %v213
      %v323 = vunpack.c.l.b16 %v214
      %v324 = vunpack.c.h.b16 %v214
      %v325 = vpack.c.b16 %v315, %v313
      %v326 = vpack.c.b16 %v316, %v314
      %v327 = vpack.c.b16 %v319, %v317
      %v328 = vpack.c.b16 %v320, %v318
      %v329 = vpack.c.b16 %v323, %v321
      %v330 = vpack.c.b16 %v324, %v322
      %vm337 = vcmask 392192
      %v339 = vsel %vm337, %v291, 0
      %v342 = vsel %vm337, %v292, 0
      %v345 = vsel %vm337, %v293, 0
      %v348 = vsel %vm337, %v294, 0
      %v351 = vsel %vm337, %v295, 0
      %v354 = vsel %vm337, %v296, 0
      %v357 = vsel %vm337, %v297, 0
      %v360 = vsel %vm337, %v298, 0
      %v363 = vsel %vm337, %v299, 0
      %v366 = vsel %vm337, %v300, 0
      %v369 = vsel %vm337, %v301, 0
      %v372 = vsel %vm337, %v302, 0
      %v375 = vsel %vm337, %v303, 0
      %v378 = vsel %vm337, %v304, 0
      %v381 = vsel %vm337, %v305, 0
      %v384 = vsel %vm337, %v306, 0
      %386 = vmatprep.subr.bf16.mxu0 0
      %387 = vmatpush1.bf16.msra.mxu0 0
      %388 = vmatprep.subr.bf16.mxu0 0
      %389 = vmatpush1.bf16.msra.mxu0 0
      %390 = vmatprep.subr.bf16.mxu0 0
      %391 = vmatpush1.bf16.msra.mxu0 0
      %392 = vmatprep.subr.bf16.mxu0 0
      %393 = vmatpush1.bf16.msra.mxu0 0
      %394 = vmatprep.subr.bf16.mxu0 0
      %395 = vmatpush1.bf16.msra.mxu0 0
      %396 = vmatprep.subr.bf16.mxu0 %v330
      %397 = vmatpush1.bf16.msra.mxu0 %v329
      %398 = vmatprep.subr.bf16.mxu0 %v328
      %399 = vmatpush1.bf16.msra.mxu0 %v327
      %400 = vmatprep.subr.bf16.mxu0 %v326
      %401 = vmatpush1.bf16.msra.mxu0 %v325
      %402 = vmatprep.subr.bf16.mxu0 0
      %403 = vmatpush2.bf16.msra.mxu0 0
      %404 = vmatprep.subr.bf16.mxu0 0
      %405 = vmatpush2.bf16.msra.mxu0 0
      %406 = vmatprep.subr.bf16.mxu0 0
      %407 = vmatpush2.bf16.msra.mxu0 0
      %408 = vmatprep.subr.bf16.mxu0 0
      %409 = vmatpush2.bf16.msra.mxu0 0
      %410 = vmatprep.subr.bf16.mxu0 0
      %411 = vmatpush2.bf16.msra.mxu0 0
      %412 = vmatprep.subr.bf16.mxu0 0
      %413 = vmatpush2.bf16.msra.mxu0 0
      %414 = vmatprep.subr.bf16.mxu0 0
      %415 = vmatpush2.bf16.msra.mxu0 0
      %416 = vmatprep.subr.bf16.mxu0 0
      %417 = vmatpush2.bf16.msra.mxu0 0
      %418 = vmatprep.mubr.bf16.mxu0 0
      %419 = vmatmul.mubr.bf16.gmra.mxu0 %v339
      %v420 = vpop.f32.mrf.mxu0
      %v421 = vadd.f32 %v220, %v420
      %v422 = vpop.f32.mrf.mxu0
      %v423 = vadd.f32 %v224, %v422
      %v424 = vpop.f32.mrf.mxu0
      %v425 = vadd.f32 %v220, %v424
      %v426 = vpop.f32.mrf.mxu0
      %v427 = vadd.f32 %v224, %v426
      %428 = vmatprep.mubr.bf16.mxu0 0
      %429 = vmatmul.mubr.bf16.gmra.mxu0 %v342
      %v430 = vpop.f32.mrf.mxu0
      %v431 = vadd.f32 %v220, %v430
      %v432 = vpop.f32.mrf.mxu0
      %v433 = vadd.f32 %v224, %v432
      %v434 = vpop.f32.mrf.mxu0
      %v435 = vadd.f32 %v220, %v434
      %v436 = vpop.f32.mrf.mxu0
      %v437 = vadd.f32 %v224, %v436
      %438 = vmatprep.mubr.bf16.mxu0 0
      %439 = vmatmul.mubr.bf16.gmra.mxu0 %v345
      %v440 = vpop.f32.mrf.mxu0
      %v441 = vadd.f32 %v220, %v440
      %v442 = vpop.f32.mrf.mxu0
      %v443 = vadd.f32 %v224, %v442
      %v444 = vpop.f32.mrf.mxu0
      %v445 = vadd.f32 %v220, %v444
      %v446 = vpop.f32.mrf.mxu0
      %v447 = vadd.f32 %v224, %v446
      %448 = vmatprep.mubr.bf16.mxu0 0
      %449 = vmatmul.mubr.bf16.gmra.mxu0 %v348
      %v450 = vpop.f32.mrf.mxu0
      %v451 = vadd.f32 %v220, %v450
      %v452 = vpop.f32.mrf.mxu0
      %v453 = vadd.f32 %v224, %v452
      %v454 = vpop.f32.mrf.mxu0
      %v455 = vadd.f32 %v220, %v454
      %v456 = vpop.f32.mrf.mxu0
      %v457 = vadd.f32 %v224, %v456
      %458 = vmatprep.mubr.bf16.mxu0 0
      %459 = vmatmul.mubr.bf16.gmra.mxu0 %v351
      %v460 = vpop.f32.mrf.mxu0
      %v461 = vadd.f32 %v220, %v460
      %v462 = vpop.f32.mrf.mxu0
      %v463 = vadd.f32 %v224, %v462
      %v464 = vpop.f32.mrf.mxu0
      %v465 = vadd.f32 %v220, %v464
      %v466 = vpop.f32.mrf.mxu0
      %v467 = vadd.f32 %v224, %v466
      %468 = vmatprep.mubr.bf16.mxu0 0
      %469 = vmatmul.mubr.bf16.gmra.mxu0 %v354
      %v470 = vpop.f32.mrf.mxu0
      %v471 = vadd.f32 %v220, %v470
      %v472 = vpop.f32.mrf.mxu0
      %v473 = vadd.f32 %v224, %v472
      %v474 = vpop.f32.mrf.mxu0
      %v475 = vadd.f32 %v220, %v474
      %v476 = vpop.f32.mrf.mxu0
      %v477 = vadd.f32 %v224, %v476
      %478 = vmatprep.mubr.bf16.mxu0 0
      %479 = vmatmul.mubr.bf16.gmra.mxu0 %v357
      %v480 = vpop.f32.mrf.mxu0
      %v481 = vadd.f32 %v220, %v480
      %v482 = vpop.f32.mrf.mxu0
      %v483 = vadd.f32 %v224, %v482
      %v484 = vpop.f32.mrf.mxu0
      %v485 = vadd.f32 %v220, %v484
      %v486 = vpop.f32.mrf.mxu0
      %v487 = vadd.f32 %v224, %v486
      %488 = vmatprep.mubr.bf16.mxu0 0
      %489 = vmatmul.mubr.bf16.gmra.mxu0 %v360
      %v490 = vpop.f32.mrf.mxu0
      %v491 = vadd.f32 %v220, %v490
      %v492 = vpop.f32.mrf.mxu0
      %v493 = vadd.f32 %v224, %v492
      %v494 = vpop.f32.mrf.mxu0
      %v495 = vadd.f32 %v220, %v494
      %v496 = vpop.f32.mrf.mxu0
      %v497 = vadd.f32 %v224, %v496
      %498 = vmatprep.mubr.bf16.mxu0 0
      %499 = vmatmul.mubr.bf16.gmra.mxu0 %v363
      %v500 = vpop.f32.mrf.mxu0
      %v501 = vadd.f32 %v220, %v500
      %v502 = vpop.f32.mrf.mxu0
      %v503 = vadd.f32 %v224, %v502
      %v504 = vpop.f32.mrf.mxu0
      %v505 = vadd.f32 %v220, %v504
      %v506 = vpop.f32.mrf.mxu0
      %v507 = vadd.f32 %v224, %v506
      %508 = vmatprep.mubr.bf16.mxu0 0
      %509 = vmatmul.mubr.bf16.gmra.mxu0 %v366
      %v510 = vpop.f32.mrf.mxu0
      %v511 = vadd.f32 %v220, %v510
      %v512 = vpop.f32.mrf.mxu0
      %v513 = vadd.f32 %v224, %v512
      %v514 = vpop.f32.mrf.mxu0
      %v515 = vadd.f32 %v220, %v514
      %v516 = vpop.f32.mrf.mxu0
      %v517 = vadd.f32 %v224, %v516
      %518 = vmatprep.mubr.bf16.mxu0 0
      %519 = vmatmul.mubr.bf16.gmra.mxu0 %v369
      %v520 = vpop.f32.mrf.mxu0
      %v521 = vadd.f32 %v220, %v520
      %v522 = vpop.f32.mrf.mxu0
      %v523 = vadd.f32 %v224, %v522
      %v524 = vpop.f32.mrf.mxu0
      %v525 = vadd.f32 %v220, %v524
      %v526 = vpop.f32.mrf.mxu0
      %v527 = vadd.f32 %v224, %v526
      %528 = vmatprep.mubr.bf16.mxu0 0
      %529 = vmatmul.mubr.bf16.gmra.mxu0 %v372
      %v530 = vpop.f32.mrf.mxu0
      %v531 = vadd.f32 %v220, %v530
      %v532 = vpop.f32.mrf.mxu0
      %v533 = vadd.f32 %v224, %v532
      %v534 = vpop.f32.mrf.mxu0
      %v535 = vadd.f32 %v220, %v534
      %v536 = vpop.f32.mrf.mxu0
      %v537 = vadd.f32 %v224, %v536
      %538 = vmatprep.mubr.bf16.mxu0 0
      %539 = vmatmul.mubr.bf16.gmra.mxu0 %v375
      %v540 = vpop.f32.mrf.mxu0
      %v541 = vadd.f32 %v220, %v540
      %v542 = vpop.f32.mrf.mxu0
      %v543 = vadd.f32 %v224, %v542
      %v544 = vpop.f32.mrf.mxu0
      %v545 = vadd.f32 %v220, %v544
      %v546 = vpop.f32.mrf.mxu0
      %v547 = vadd.f32 %v224, %v546
      %548 = vmatprep.mubr.bf16.mxu0 0
      %549 = vmatmul.mubr.bf16.gmra.mxu0 %v378
      %v550 = vpop.f32.mrf.mxu0
      %v551 = vadd.f32 %v220, %v550
      %v552 = vpop.f32.mrf.mxu0
      %v553 = vadd.f32 %v224, %v552
      %v554 = vpop.f32.mrf.mxu0
      %v555 = vadd.f32 %v220, %v554
      %v556 = vpop.f32.mrf.mxu0
      %v557 = vadd.f32 %v224, %v556
      %558 = vmatprep.mubr.bf16.mxu0 0
      %559 = vmatmul.mubr.bf16.gmra.mxu0 %v381
      %v560 = vpop.f32.mrf.mxu0
      %v561 = vadd.f32 %v220, %v560
      %v562 = vpop.f32.mrf.mxu0
      %v563 = vadd.f32 %v224, %v562
      %v564 = vpop.f32.mrf.mxu0
      %v565 = vadd.f32 %v220, %v564
      %v566 = vpop.f32.mrf.mxu0
      %v567 = vadd.f32 %v224, %v566
      %568 = vmatprep.mubr.bf16.mxu0 0
      %569 = vmatmul.mubr.bf16.gmra.mxu0 %v384
      %v570 = vpop.f32.mrf.mxu0
      %v571 = vadd.f32 %v220, %v570
      %v572 = vpop.f32.mrf.mxu0
      %v573 = vadd.f32 %v224, %v572
      %v574 = vpop.f32.mrf.mxu0
      %v575 = vadd.f32 %v220, %v574
      %v576 = vpop.f32.mrf.mxu0
      %v577 = vadd.f32 %v224, %v576
      %578 = vdwg.mxu0
      %v579 = vmax.f32 %v421, 0.0
      %v580 = vmax.f32 %v423, 0.0
      %v581 = vmax.f32 %v425, 0.0
      %v582 = vmax.f32 %v427, 0.0
      %v583 = vmax.f32 %v431, 0.0
      %v584 = vmax.f32 %v433, 0.0
      %v585 = vmax.f32 %v435, 0.0
      %v586 = vmax.f32 %v437, 0.0
      %v587 = vmax.f32 %v441, 0.0
      %v588 = vmax.f32 %v443, 0.0
      %v589 = vmax.f32 %v445, 0.0
      %v590 = vmax.f32 %v447, 0.0
      %v591 = vmax.f32 %v451, 0.0
      %v592 = vmax.f32 %v453, 0.0
      %v593 = vmax.f32 %v455, 0.0
      %v594 = vmax.f32 %v457, 0.0
      %v595 = vmax.f32 %v461, 0.0
      %v596 = vmax.f32 %v463, 0.0
      %v597 = vmax.f32 %v465, 0.0
      %v598 = vmax.f32 %v467, 0.0
      %v599 = vmax.f32 %v471, 0.0
      %v600 = vmax.f32 %v473, 0.0
      %v601 = vmax.f32 %v475, 0.0
      %v602 = vmax.f32 %v477, 0.0
      %v603 = vmax.f32 %v481, 0.0
      %v604 = vmax.f32 %v483, 0.0
      %v605 = vmax.f32 %v485, 0.0
      %v606 = vmax.f32 %v487, 0.0
      %v607 = vmax.f32 %v491, 0.0
      %v608 = vmax.f32 %v493, 0.0
      %v609 = vmax.f32 %v495, 0.0
      %v610 = vmax.f32 %v497, 0.0
      %v611 = vmax.f32 %v501, 0.0
      %v612 = vmax.f32 %v503, 0.0
      %v613 = vmax.f32 %v505, 0.0
      %v614 = vmax.f32 %v507, 0.0
      %v615 = vmax.f32 %v511, 0.0
      %v616 = vmax.f32 %v513, 0.0
      %v617 = vmax.f32 %v515, 0.0
      %v618 = vmax.f32 %v517, 0.0
      %v619 = vmax.f32 %v521, 0.0
      %v620 = vmax.f32 %v523, 0.0
      %v621 = vmax.f32 %v525, 0.0
      %v622 = vmax.f32 %v527, 0.0
      %v623 = vmax.f32 %v531, 0.0
      %v624 = vmax.f32 %v533, 0.0
      %v625 = vmax.f32 %v535, 0.0
      %v626 = vmax.f32 %v537, 0.0
      %v627 = vmax.f32 %v541, 0.0
      %v628 = vmax.f32 %v543, 0.0
      %v629 = vmax.f32 %v545, 0.0
      %v630 = vmax.f32 %v547, 0.0
      %v631 = vmax.f32 %v551, 0.0
      %v632 = vmax.f32 %v553, 0.0
      %v633 = vmax.f32 %v555, 0.0
      %v634 = vmax.f32 %v557, 0.0
      %v635 = vmax.f32 %v561, 0.0
      %v636 = vmax.f32 %v563, 0.0
      %v637 = vmax.f32 %v565, 0.0
      %v638 = vmax.f32 %v567, 0.0
      %v639 = vmax.f32 %v571, 0.0
      %v640 = vmax.f32 %v573, 0.0
      %v641 = vmax.f32 %v575, 0.0
      %v642 = vmax.f32 %v577, 0.0
      %v643 = vpack.c.bf16 %v581, %v579
      %v644 = vpack.c.bf16 %v582, %v580
      %v645 = vpack.c.bf16 %v585, %v583
      %v646 = vpack.c.bf16 %v586, %v584
      %v647 = vpack.c.bf16 %v589, %v587
      %v648 = vpack.c.bf16 %v590, %v588
      %v649 = vpack.c.bf16 %v593, %v591
      %v650 = vpack.c.bf16 %v594, %v592
      %v651 = vpack.c.bf16 %v597, %v595
      %v652 = vpack.c.bf16 %v598, %v596
      %v653 = vpack.c.bf16 %v601, %v599
      %v654 = vpack.c.bf16 %v602, %v600
      %v655 = vpack.c.bf16 %v605, %v603
      %v656 = vpack.c.bf16 %v606, %v604
      %v657 = vpack.c.bf16 %v609, %v607
      %v658 = vpack.c.bf16 %v610, %v608
      %v659 = vpack.c.bf16 %v613, %v611
      %v660 = vpack.c.bf16 %v614, %v612
      %v661 = vpack.c.bf16 %v617, %v615
      %v662 = vpack.c.bf16 %v618, %v616
      %v663 = vpack.c.bf16 %v621, %v619
      %v664 = vpack.c.bf16 %v622, %v620
      %v665 = vpack.c.bf16 %v625, %v623
      %v666 = vpack.c.bf16 %v626, %v624
      %v667 = vpack.c.bf16 %v629, %v627
      %v668 = vpack.c.bf16 %v630, %v628
      %v669 = vpack.c.bf16 %v633, %v631
      %v670 = vpack.c.bf16 %v634, %v632
      %v671 = vpack.c.bf16 %v637, %v635
      %v672 = vpack.c.bf16 %v638, %v636
      %v673 = vpack.c.bf16 %v641, %v639
      %v674 = vpack.c.bf16 %v642, %v640
      %v707 = vunpack.c.l.b16 %v643
      %v708 = vunpack.c.l.b16 %v644
      %v709 = vunpack.c.h.b16 %v643
      %v710 = vunpack.c.h.b16 %v644
      %v711 = vunpack.c.l.b16 %v645
      %v712 = vunpack.c.l.b16 %v646
      %v713 = vunpack.c.h.b16 %v645
      %v714 = vunpack.c.h.b16 %v646
      %v715 = vunpack.c.l.b16 %v647
      %v716 = vunpack.c.l.b16 %v648
      %v717 = vunpack.c.h.b16 %v647
      %v718 = vunpack.c.h.b16 %v648
      %v719 = vunpack.c.l.b16 %v649
      %v720 = vunpack.c.l.b16 %v650
      %v721 = vunpack.c.h.b16 %v649
      %v722 = vunpack.c.h.b16 %v650
      %v723 = vunpack.c.l.b16 %v651
      %v724 = vunpack.c.l.b16 %v652
      %v725 = vunpack.c.h.b16 %v651
      %v726 = vunpack.c.h.b16 %v652
      %v727 = vunpack.c.l.b16 %v653
      %v728 = vunpack.c.l.b16 %v654
      %v729 = vunpack.c.h.b16 %v653
      %v730 = vunpack.c.h.b16 %v654
      %v731 = vunpack.c.l.b16 %v655
      %v732 = vunpack.c.l.b16 %v656
      %v733 = vunpack.c.h.b16 %v655
      %v734 = vunpack.c.h.b16 %v656
      %v735 = vunpack.c.l.b16 %v657
      %v736 = vunpack.c.l.b16 %v658
      %v737 = vunpack.c.h.b16 %v657
      %v738 = vunpack.c.h.b16 %v658
      %v739 = vunpack.c.l.b16 %v659
      %v740 = vunpack.c.l.b16 %v660
      %v741 = vunpack.c.h.b16 %v659
      %v742 = vunpack.c.h.b16 %v660
      %v743 = vunpack.c.l.b16 %v661
      %v744 = vunpack.c.l.b16 %v662
      %v745 = vunpack.c.h.b16 %v661
      %v746 = vunpack.c.h.b16 %v662
      %v747 = vunpack.c.l.b16 %v663
      %v748 = vunpack.c.l.b16 %v664
      %v749 = vunpack.c.h.b16 %v663
      %v750 = vunpack.c.h.b16 %v664
      %v751 = vunpack.c.l.b16 %v665
      %v752 = vunpack.c.l.b16 %v666
      %v753 = vunpack.c.h.b16 %v665
      %v754 = vunpack.c.h.b16 %v666
      %v755 = vunpack.c.l.b16 %v667
      %v756 = vunpack.c.l.b16 %v668
      %v757 = vunpack.c.h.b16 %v667
      %v758 = vunpack.c.h.b16 %v668
      %v759 = vunpack.c.l.b16 %v669
      %v760 = vunpack.c.l.b16 %v670
      %v761 = vunpack.c.h.b16 %v669
      %v762 = vunpack.c.h.b16 %v670
      %v763 = vunpack.c.l.b16 %v671
      %v764 = vunpack.c.l.b16 %v672
      %v765 = vunpack.c.h.b16 %v671
      %v766 = vunpack.c.h.b16 %v672
      %v767 = vunpack.c.l.b16 %v673
      %v768 = vunpack.c.l.b16 %v674
      %v769 = vunpack.c.h.b16 %v673
      %v770 = vunpack.c.h.b16 %v674
      %v771 = vpack.c.b16 %v708, %v707
      %v772 = vpack.c.b16 %v710, %v709
      %v773 = vpack.c.b16 %v712, %v711
      %v774 = vpack.c.b16 %v714, %v713
      %v775 = vpack.c.b16 %v716, %v715
      %v776 = vpack.c.b16 %v718, %v717
      %v777 = vpack.c.b16 %v720, %v719
      %v778 = vpack.c.b16 %v722, %v721
      %v779 = vpack.c.b16 %v724, %v723
      %v780 = vpack.c.b16 %v726, %v725
      %v781 = vpack.c.b16 %v728, %v727
      %v782 = vpack.c.b16 %v730, %v729
      %v783 = vpack.c.b16 %v732, %v731
      %v784 = vpack.c.b16 %v734, %v733
      %v785 = vpack.c.b16 %v736, %v735
      %v786 = vpack.c.b16 %v738, %v737
      %v787 = vpack.c.b16 %v740, %v739
      %v788 = vpack.c.b16 %v742, %v741
      %v789 = vpack.c.b16 %v744, %v743
      %v790 = vpack.c.b16 %v746, %v745
      %v791 = vpack.c.b16 %v748, %v747
      %v792 = vpack.c.b16 %v750, %v749
      %v793 = vpack.c.b16 %v752, %v751
      %v794 = vpack.c.b16 %v754, %v753
      %v795 = vpack.c.b16 %v756, %v755
      %v796 = vpack.c.b16 %v758, %v757
      %v797 = vpack.c.b16 %v760, %v759
      %v798 = vpack.c.b16 %v762, %v761
      %v799 = vpack.c.b16 %v764, %v763
      %v800 = vpack.c.b16 %v766, %v765
      %v801 = vpack.c.b16 %v768, %v767
      %v802 = vpack.c.b16 %v770, %v769
      %835 = vst [vmem:[%s174] sm:$0xff] %v771
      %836 = vst [vmem:[%s174 + $0x8] sm:$0xff] %v772
      %837 = vst [vmem:[%s174 + $0x10] sm:$0xff] %v773
      %838 = vst [vmem:[%s174 + $0x18] sm:$0xff] %v774
      %839 = vst [vmem:[%s174 + $0x20] sm:$0xff] %v775
      %840 = vst [vmem:[%s174 + $0x28] sm:$0xff] %v776
      %841 = vst [vmem:[%s174 + $0x30] sm:$0xff] %v777
      %842 = vst [vmem:[%s174 + $0x38] sm:$0xff] %v778
      %843 = vst [vmem:[%s174 + $0x40] sm:$0xff] %v779
      %844 = vst [vmem:[%s174 + $0x48] sm:$0xff] %v780
      %845 = vst [vmem:[%s174 + $0x50] sm:$0xff] %v781
      %846 = vst [vmem:[%s174 + $0x58] sm:$0xff] %v782
      %847 = vst [vmem:[%s174 + $0x60] sm:$0xff] %v783
      %848 = vst [vmem:[%s174 + $0x68] sm:$0xff] %v784
      %849 = vst [vmem:[%s174 + $0x70] sm:$0xff] %v785
      %850 = vst [vmem:[%s174 + $0x78] sm:$0xff] %v786
      %851 = vst [vmem:[%s174 + $0x80] sm:$0xff] %v787
      %852 = vst [vmem:[%s174 + $0x88] sm:$0xff] %v788
      %853 = vst [vmem:[%s174 + $0x90] sm:$0xff] %v789
      %854 = vst [vmem:[%s174 + $0x98] sm:$0xff] %v790
      %855 = vst [vmem:[%s174 + $0xa0] sm:$0xff] %v791
      %856 = vst [vmem:[%s174 + $0xa8] sm:$0xff] %v792
      %857 = vst [vmem:[%s174 + $0xb0] sm:$0xff] %v793
      %858 = vst [vmem:[%s174 + $0xb8] sm:$0xff] %v794
      %859 = vst [vmem:[%s174 + $0xc0] sm:$0xff] %v795
      %860 = vst [vmem:[%s174 + $0xc8] sm:$0xff] %v796
      %861 = vst [vmem:[%s174 + $0xd0] sm:$0xff] %v797
      %862 = vst [vmem:[%s174 + $0xd8] sm:$0xff] %v798
      %863 = vst [vmem:[%s174 + $0xe0] sm:$0xff] %v799
      %864 = vst [vmem:[%s174 + $0xe8] sm:$0xff] %v800
      %865 = vst [vmem:[%s174 + $0xf0] sm:$0xff] %v801
      %866 = vst [vmem:[%s174 + $0xf8] sm:$0xff] %v802
      %s867 = smul.u32 32, %s14
      %p868 = scmp.lt.s32.totalorder %s867, 63
      %s869 = scalar_select %p868, %s867, 63
      %s870 = smul.addr %s869, 2
      %s871 = smul.addr %s870, 4
      %s872 = scalar_lea.vmem %s3, %s871
      // Predicated region
      $region33: #{fpn_image_encoder_forward.3} parent=31 // pred_check
        %p873 = pneg %p100
      $region34: #{fpn_image_encoder_forward.3} parent=31 // pred_check_branch
        %875 = sbr.rel (%p873) target = $region36
      $region35: #{fpn_image_encoder_forward.3} parent=31 // pred_region
        %s876 = smul.u32 32, %s14
      $region36: #{fpn_image_encoder_forward.3} parent=31 // pred_fallthru
        _
    $region32: #{fpn_image_encoder_forward.3} parent=5 // pred_fallthru
      _
    %p877 = scmp.le.s32.totalorder 2, %s9
    // Predicated region
    $region37: #{fpn_image_encoder_forward.3} parent=5 // pred_check
      %p878 = pneg %p877
    $region38: #{fpn_image_encoder_forward.3} parent=5 // pred_check_branch
      %880 = sbr.rel (%p878) target = $region40
    $region39: #{fpn_image_encoder_forward.3} parent=5 // pred_region
      %s881 = ssub.s32 %s9, 2
      // Predicated region
      $region41: #{fpn_image_encoder_forward.3} parent=39 // pred_check
        %p882 = pneg %p106
      $region42: #{fpn_image_encoder_forward.3} parent=39 // pred_check_branch
        %884 = sbr.rel (%p882) target = $region44
      $region43: #{fpn_image_encoder_forward.3} parent=39 // pred_region
        %s885 = smul.u32 32, %s15
        %p886 = scmp.lt.s32.totalorder %s885, 63
        %s887 = scalar_select %p886, %s885, 63
        %s888 = smul.addr %s887, 2
        %s889 = smul.addr %s888, 4
        %s890 = scalar_lea.vmem %s3, %s889
      $region44: #{fpn_image_encoder_forward.3} parent=39 // pred_fallthru
        _
    $region40: #{fpn_image_encoder_forward.3} parent=5 // pred_fallthru
      _
  $region6: #{fpn_image_encoder_forward.3} parent=0 // loop_footer
    %s13 = sadd.s32 1, %s9
  $region7: #{fpn_image_encoder_forward.3} parent=0 // loop_footer_branch
    %8 = sbr.rel target = $region3
  $region8: #{fpn_image_encoder_forward.3} parent=0 // loop_exit
    _

// kernel: reverse
$region0: #{reverse}
  #allocation0 [shape = 's32[1]{0}', space=sflag, size = 0x4, scoped, tag = 'scoped memory for reverse']
  %s0 = inlined_call_operand.vmem [shape: bf16[3,3,256,256], index: 0, kind: input, shape index: {}]
  %s1 = inlined_call_operand.vmem [shape: bf16[3,3,256,256], index: 1, kind: output, shape index: {}]
  %s2 = scalar_lea.vmem %s0, 2048
  %v3 = vld [vmem:[%s2] sm:$0xf]
  %v4 = vunpack.c.l.bf16 %v3
  %v5 = vunpack.c.h.bf16 %v3
  %s6 = scalar_lea.vmem %s0, 1280
  %v7 = vld [vmem:[%s6] sm:$0xf]
  %v8 = vunpack.c.l.bf16 %v7
  %v9 = vunpack.c.h.bf16 %v7
  %s10 = scalar_lea.vmem %s1, 768
  %s11 = scalar_lea.vmem %s0, 512
  %v12 = vld [vmem:[%s11] sm:$0xf]
  %v13 = vunpack.c.l.bf16 %v12
  %v14 = vunpack.c.h.bf16 %v12
  %s15 = scalar_lea.vmem %s1, 1536
  %s16 = scalar_lea.vmem %s0, 1792
  %v17 = vld [vmem:[%s16] sm:$0xf]
  %v18 = vunpack.c.l.bf16 %v17
  %v19 = vunpack.c.h.bf16 %v17
  %s20 = scalar_lea.vmem %s1, 256
  %s21 = scalar_lea.vmem %s0, 1024
  %v22 = vld [vmem:[%s21] sm:$0xf]
  %v23 = vunpack.c.l.bf16 %v22
  %v24 = vunpack.c.h.bf16 %v22
  %s25 = scalar_lea.vmem %s1, 1024
  %s26 = scalar_lea.vmem %s0, 256
  %v27 = vld [vmem:[%s26] sm:$0xf]
  %v28 = vunpack.c.l.bf16 %v27
  %v29 = vunpack.c.h.bf16 %v27
  %s30 = scalar_lea.vmem %s1, 1792
  %s31 = scalar_lea.vmem %s0, 1536
  %v32 = vld [vmem:[%s31] sm:$0xf]
  %v33 = vunpack.c.l.bf16 %v32
  %v34 = vunpack.c.h.bf16 %v32
  %s35 = scalar_lea.vmem %s1, 512
  %s36 = scalar_lea.vmem %s0, 768
  %v37 = vld [vmem:[%s36] sm:$0xf]
  %v38 = vunpack.c.l.bf16 %v37
  %v39 = vunpack.c.h.bf16 %v37
  %s40 = scalar_lea.vmem %s1, 1280
  %v41 = vld [vmem:[%s0] sm:$0xf]
  %v42 = vunpack.c.l.bf16 %v41
  %v43 = vunpack.c.h.bf16 %v41
  %s44 = scalar_lea.vmem %s1, 2048
  %s45 = scalar_lea.vmem %s0, 2056
  %v46 = vld [vmem:[%s45] sm:$0xf]
  %v47 = vunpack.c.l.bf16 %v46
  %v48 = vunpack.c.h.bf16 %v46
  %s49 = scalar_lea.vmem %s1, 8
  %s50 = scalar_lea.vmem %s0, 1288
  %v51 = vld [vmem:[%s50] sm:$0xf]
  %v52 = vunpack.c.l.bf16 %v51
  %v53 = vunpack.c.h.bf16 %v51
  %s54 = scalar_lea.vmem %s1, 776
  %s55 = scalar_lea.vmem %s0, 520
  %v56 = vld [vmem:[%s55] sm:$0xf]
  %v57 = vunpack.c.l.bf16 %v56
  %v58 = vunpack.c.h.bf16 %v56
  %s59 = scalar_lea.vmem %s1, 1544
  %s60 = scalar_lea.vmem %s0, 1800
  %v61 = vld [vmem:[%s60] sm:$0xf]
  %v62 = vunpack.c.l.bf16 %v61
  %v63 = vunpack.c.h.bf16 %v61
  %s64 = scalar_lea.vmem %s1, 264
  %s65 = scalar_lea.vmem %s0, 1032
  %v66 = vld [vmem:[%s65] sm:$0xf]
  %v67 = vunpack.c.l.bf16 %v66
  %v68 = vunpack.c.h.bf16 %v66
  %s69 = scalar_lea.vmem %s1, 1032
  %s70 = scalar_lea.vmem %s0, 264
  %v71 = vld [vmem:[%s70] sm:$0xf]
  %v72 = vunpack.c.l.bf16 %v71
  %v73 = vunpack.c.h.bf16 %v71
  %s74 = scalar_lea.vmem %s1, 1800
  %s75 = scalar_lea.vmem %s0, 1544
  %v76 = vld [vmem:[%s75] sm:$0xf]
  %v77 = vunpack.c.l.bf16 %v76
  %v78 = vunpack.c.h.bf16 %v76
  %s79 = scalar_lea.vmem %s1, 520
  %s80 = scalar_lea.vmem %s0, 776
  %v81 = vld [vmem:[%s80] sm:$0xf]
  %v82 = vunpack.c.l.bf16 %v81
  %v83 = vunpack.c.h.bf16 %v81
  %s84 = scalar_lea.vmem %s1, 1288
  %s85 = scalar_lea.vmem %s0, 8
  %v86 = vld [vmem:[%s85] sm:$0xf]
  %v87 = vunpack.c.l.bf16 %v86
  %v88 = vunpack.c.h.bf16 %v86
  %s89 = scalar_lea.vmem %s1, 2056
  %s90 = scalar_lea.vmem %s0, 2064
  %v91 = vld [vmem:[%s90] sm:$0xf]
  %v92 = vunpack.c.l.bf16 %v91
  %v93 = vunpack.c.h.bf16 %v91
  %s94 = scalar_lea.vmem %s1, 16
  %s95 = scalar_lea.vmem %s0, 1296
  %v96 = vld [vmem:[%s95] sm:$0xf]
  %v97 = vunpack.c.l.bf16 %v96
  %v98 = vunpack.c.h.bf16 %v96
  %s99 = scalar_lea.vmem %s1, 784
  %s100 = scalar_lea.vmem %s0, 528
  %v101 = vld [vmem:[%s100] sm:$0xf]
  %v102 = vunpack.c.l.bf16 %v101
  %v103 = vunpack.c.h.bf16 %v101
  %s104 = scalar_lea.vmem %s1, 1552
  %s105 = scalar_lea.vmem %s0, 1808
  %v106 = vld [vmem:[%s105] sm:$0xf]
  %v107 = vunpack.c.l.bf16 %v106
  %v108 = vunpack.c.h.bf16 %v106
  %s109 = scalar_lea.vmem %s1, 272
  %s110 = scalar_lea.vmem %s0, 1040
  %v111 = vld [vmem:[%s110] sm:$0xf]
  %v112 = vunpack.c.l.bf16 %v111
  %v113 = vunpack.c.h.bf16 %v111
  %s114 = scalar_lea.vmem %s1, 1040
  %s115 = scalar_lea.vmem %s0, 272
  %v116 = vld [vmem:[%s115] sm:$0xf]
  %v117 = vunpack.c.l.bf16 %v116
  %v118 = vunpack.c.h.bf16 %v116
  %s119 = scalar_lea.vmem %s1, 1808
  %s120 = scalar_lea.vmem %s0, 1552
  %v121 = vld [vmem:[%s120] sm:$0xf]
  %v122 = vunpack.c.l.bf16 %v121
  %v123 = vunpack.c.h.bf16 %v121
  %s124 = scalar_lea.vmem %s1, 528
  %s125 = scalar_lea.vmem %s0, 784
  %v126 = vld [vmem:[%s125] sm:$0xf]
  %v127 = vunpack.c.l.bf16 %v126
  %v128 = vunpack.c.h.bf16 %v126
  %s129 = scalar_lea.vmem %s1, 1296
  %s130 = scalar_lea.vmem %s0, 16
  %v131 = vld [vmem:[%s130] sm:$0xf]
  %v132 = vunpack.c.l.bf16 %v131
  %v133 = vunpack.c.h.bf16 %v131
  %s134 = scalar_lea.vmem %s1, 2064
  %s135 = scalar_lea.vmem %s0, 2072
  %v136 = vld [vmem:[%s135] sm:$0xf]
  %v137 = vunpack.c.l.bf16 %v136
  %v138 = vunpack.c.h.bf16 %v136
  %s139 = scalar_lea.vmem %s1, 24
  %s140 = scalar_lea.vmem %s0, 1304
  %v141 = vld [vmem:[%s140] sm:$0xf]
  %v142 = vunpack.c.l.bf16 %v141
  %v143 = vunpack.c.h.bf16 %v141
  %s144 = scalar_lea.vmem %s1, 792
  %s145 = scalar_lea.vmem %s0, 536
  %v146 = vld [vmem:[%s145] sm:$0xf]
  %v147 = vunpack.c.l.bf16 %v146
  %v148 = vunpack.c.h.bf16 %v146
  %s149 = scalar_lea.vmem %s1, 1560
  %s150 = scalar_lea.vmem %s0, 1816
  %v151 = vld [vmem:[%s150] sm:$0xf]
  %v152 = vunpack.c.l.bf16 %v151
  %v153 = vunpack.c.h.bf16 %v151
  %s154 = scalar_lea.vmem %s1, 280
  %s155 = scalar_lea.vmem %s0, 1048
  %v156 = vld [vmem:[%s155] sm:$0xf]
  %v157 = vunpack.c.l.bf16 %v156
  %v158 = vunpack.c.h.bf16 %v156
  %s159 = scalar_lea.vmem %s1, 1048
  %s160 = scalar_lea.vmem %s0, 280
  %v161 = vld [vmem:[%s160] sm:$0xf]
  %v162 = vunpack.c.l.bf16 %v161
  %v163 = vunpack.c.h.bf16 %v161
  %s164 = scalar_lea.vmem %s1, 1816
  %s165 = scalar_lea.vmem %s0, 1560
  %v166 = vld [vmem:[%s165] sm:$0xf]
  %v167 = vunpack.c.l.bf16 %v166
  %v168 = vunpack.c.h.bf16 %v166
  %s169 = scalar_lea.vmem %s1, 536
  %s170 = scalar_lea.vmem %s0, 792
  %v171 = vld [vmem:[%s170] sm:$0xf]
  %v172 = vunpack.c.l.bf16 %v171
  %v173 = vunpack.c.h.bf16 %v171
  %s174 = scalar_lea.vmem %s1, 1304
  %s175 = scalar_lea.vmem %s0, 24
  %v176 = vld [vmem:[%s175] sm:$0xf]
  %v177 = vunpack.c.l.bf16 %v176
  %v178 = vunpack.c.h.bf16 %v176
  %s179 = scalar_lea.vmem %s1, 2072
  %s180 = scalar_lea.vmem %s0, 2080
  %v181 = vld [vmem:[%s180] sm:$0xf]
  %v182 = vunpack.c.l.bf16 %v181
  %v183 = vunpack.c.h.bf16 %v181
  %s184 = scalar_lea.vmem %s1, 32
  %s185 = scalar_lea.vmem %s0, 1312
  %v186 = vld [vmem:[%s185] sm:$0xf]
  %v187 = vunpack.c.l.bf16 %v186
  %v188 = vunpack.c.h.bf16 %v186
  %s189 = scalar_lea.vmem %s1, 800
  %s190 = scalar_lea.vmem %s0, 544
  %v191 = vld [vmem:[%s190] sm:$0xf]
  %v192 = vunpack.c.l.bf16 %v191
  %v193 = vunpack.c.h.bf16 %v191
  %s194 = scalar_lea.vmem %s1, 1568
  %s195 = scalar_lea.vmem %s0, 1824
  %v196 = vld [vmem:[%s195] sm:$0xf]
  %v197 = vunpack.c.l.bf16 %v196
  %v198 = vunpack.c.h.bf16 %v196
  %s199 = scalar_lea.vmem %s1, 288
  %s200 = scalar_lea.vmem %s0, 1056
  %v201 = vld [vmem:[%s200] sm:$0xf]
  %v202 = vunpack.c.l.bf16 %v201
  %v203 = vunpack.c.h.bf16 %v201
  %s204 = scalar_lea.vmem %s1, 1056
  %s205 = scalar_lea.vmem %s0, 288
  %v206 = vld [vmem:[%s205] sm:$0xf]
  %v207 = vunpack.c.l.bf16 %v206
  %v208 = vunpack.c.h.bf16 %v206
  %s209 = scalar_lea.vmem %s1, 1824
  %s210 = scalar_lea.vmem %s0, 1568
  %v211 = vld [vmem:[%s210] sm:$0xf]
  %v212 = vunpack.c.l.bf16 %v211
  %v213 = vunpack.c.h.bf16 %v211
  %s214 = scalar_lea.vmem %s1, 544
  %s215 = scalar_lea.vmem %s0, 800
  %v216 = vld [vmem:[%s215] sm:$0xf]
  %v217 = vunpack.c.l.bf16 %v216
  %v218 = vunpack.c.h.bf16 %v216
  %s219 = scalar_lea.vmem %s1, 1312
  %s220 = scalar_lea.vmem %s0, 32
  %v221 = vld [vmem:[%s220] sm:$0xf]
  %v222 = vunpack.c.l.bf16 %v221
  %v223 = vunpack.c.h.bf16 %v221
  %s224 = scalar_lea.vmem %s1, 2080
  %s225 = scalar_lea.vmem %s0, 2088
  %v226 = vld [vmem:[%s225] sm:$0xf]
  %v227 = vunpack.c.l.bf16 %v226
  %v228 = vunpack.c.h.bf16 %v226
  %s229 = scalar_lea.vmem %s1, 40
  %s230 = scalar_lea.vmem %s0, 1320
  %v231 = vld [vmem:[%s230] sm:$0xf]
  %v232 = vunpack.c.l.bf16 %v231
  %v233 = vunpack.c.h.bf16 %v231
  %s234 = scalar_lea.vmem %s1, 808
  %s235 = scalar_lea.vmem %s0, 552
  %v236 = vld [vmem:[%s235] sm:$0xf]
  %v237 = vunpack.c.l.bf16 %v236
  %v238 = vunpack.c.h.bf16 %v236
  %s239 = scalar_lea.vmem %s1, 1576
  %s240 = scalar_lea.vmem %s0, 1832
  %v241 = vld [vmem:[%s240] sm:$0xf]
  %v242 = vunpack.c.l.bf16 %v241
  %v243 = vunpack.c.h.bf16 %v241
  %s244 = scalar_lea.vmem %s1, 296
  %s245 = scalar_lea.vmem %s0, 1064
  %v246 = vld [vmem:[%s245] sm:$0xf]
  %v247 = vunpack.c.l.bf16 %v246
  %v248 = vunpack.c.h.bf16 %v246
  %s249 = scalar_lea.vmem %s1, 1064
  %s250 = scalar_lea.vmem %s0, 296
  %v251 = vld [vmem:[%s250] sm:$0xf]
  %v252 = vunpack.c.l.bf16 %v251
  %v253 = vunpack.c.h.bf16 %v251
  %s254 = scalar_lea.vmem %s1, 1832
  %s255 = scalar_lea.vmem %s0, 1576
  %v256 = vld [vmem:[%s255] sm:$0xf]
  %v257 = vunpack.c.l.bf16 %v256
  %v258 = vunpack.c.h.bf16 %v256
  %s259 = scalar_lea.vmem %s1, 552
  %s260 = scalar_lea.vmem %s0, 808
  %v261 = vld [vmem:[%s260] sm:$0xf]
  %v262 = vunpack.c.l.bf16 %v261
  %v263 = vunpack.c.h.bf16 %v261
  %s264 = scalar_lea.vmem %s1, 1320
  %s265 = scalar_lea.vmem %s0, 40
  %v266 = vld [vmem:[%s265] sm:$0xf]
  %v267 = vunpack.c.l.bf16 %v266
  %v268 = vunpack.c.h.bf16 %v266
  %s269 = scalar_lea.vmem %s1, 2088
  %s270 = scalar_lea.vmem %s0, 2096
  %v271 = vld [vmem:[%s270] sm:$0xf]
  %v272 = vunpack.c.l.bf16 %v271
  %v273 = vunpack.c.h.bf16 %v271
  %s274 = scalar_lea.vmem %s1, 48
  %s275 = scalar_lea.vmem %s0, 1328
  %v276 = vld [vmem:[%s275] sm:$0xf]
  %v277 = vunpack.c.l.bf16 %v276
  %v278 = vunpack.c.h.bf16 %v276
  %s279 = scalar_lea.vmem %s1, 816
  %s280 = scalar_lea.vmem %s0, 560
  %v281 = vld [vmem:[%s280] sm:$0xf]
  %v282 = vunpack.c.l.bf16 %v281
  %v283 = vunpack.c.h.bf16 %v281
  %s284 = scalar_lea.vmem %s1, 1584
  %s285 = scalar_lea.vmem %s0, 1840
  %v286 = vld [vmem:[%s285] sm:$0xf]
  %v287 = vunpack.c.l.bf16 %v286
  %v288 = vunpack.c.h.bf16 %v286
  %s289 = scalar_lea.vmem %s1, 304
  %s290 = scalar_lea.vmem %s0, 1072
  %v291 = vld [vmem:[%s290] sm:$0xf]
  %v292 = vunpack.c.l.bf16 %v291
  %v293 = vunpack.c.h.bf16 %v291
  %s294 = scalar_lea.vmem %s1, 1072
  %s295 = scalar_lea.vmem %s0, 304
  %v296 = vld [vmem:[%s295] sm:$0xf]
  %v297 = vunpack.c.l.bf16 %v296
  %v298 = vunpack.c.h.bf16 %v296
  %s299 = scalar_lea.vmem %s1, 1840
  %s300 = scalar_lea.vmem %s0, 1584
  %v301 = vld [vmem:[%s300] sm:$0xf]
  %v302 = vunpack.c.l.bf16 %v301
  %v303 = vunpack.c.h.bf16 %v301
  %s304 = scalar_lea.vmem %s1, 560
  %s305 = scalar_lea.vmem %s0, 816
  %v306 = vld [vmem:[%s305] sm:$0xf]
  %v307 = vunpack.c.l.bf16 %v306
  %v308 = vunpack.c.h.bf16 %v306
  %s309 = scalar_lea.vmem %s1, 1328
  %s310 = scalar_lea.vmem %s0, 48
  %v311 = vld [vmem:[%s310] sm:$0xf]
  %v312 = vunpack.c.l.bf16 %v311
  %v313 = vunpack.c.h.bf16 %v311
  %s314 = scalar_lea.vmem %s1, 2096
  %s315 = scalar_lea.vmem %s0, 2104
  %v316 = vld [vmem:[%s315] sm:$0xf]
  %v317 = vunpack.c.l.bf16 %v316
  %v318 = vunpack.c.h.bf16 %v316
  %s319 = scalar_lea.vmem %s1, 56
  %s320 = scalar_lea.vmem %s0, 1336
  %v321 = vld [vmem:[%s320] sm:$0xf]
  %v322 = vunpack.c.l.bf16 %v321
  %v323 = vunpack.c.h.bf16 %v321
  %s324 = scalar_lea.vmem %s1, 824
  %s325 = scalar_lea.vmem %s0, 568
  %v326 = vld [vmem:[%s325] sm:$0xf]
  %v327 = vunpack.c.l.bf16 %v326
  %v328 = vunpack.c.h.bf16 %v326
  %s329 = scalar_lea.vmem %s1, 1592
  %s330 = scalar_lea.vmem %s0, 1848
  %v331 = vld [vmem:[%s330] sm:$0xf]
  %v332 = vunpack.c.l.bf16 %v331
  %v333 = vunpack.c.h.bf16 %v331
  %s334 = scalar_lea.vmem %s1, 312
  %s335 = scalar_lea.vmem %s0, 1080
  %v336 = vld [vmem:[%s335] sm:$0xf]
  %v337 = vunpack.c.l.bf16 %v336
  %v338 = vunpack.c.h.bf16 %v336
  %s339 = scalar_lea.vmem %s1, 1080
  %s340 = scalar_lea.vmem %s0, 312
  %v341 = vld [vmem:[%s340] sm:$0xf]
  %v342 = vunpack.c.l.bf16 %v341
  %v343 = vunpack.c.h.bf16 %v341
  %s344 = scalar_lea.vmem %s1, 1848
  %s345 = scalar_lea.vmem %s0, 1592
  %v346 = vld [vmem:[%s345] sm:$0xf]
  %v347 = vunpack.c.l.bf16 %v346
  %v348 = vunpack.c.h.bf16 %v346
  %s349 = scalar_lea.vmem %s1, 568
  %s350 = scalar_lea.vmem %s0, 824
  %v351 = vld [vmem:[%s350] sm:$0xf]
  %v352 = vunpack.c.l.bf16 %v351
  %v353 = vunpack.c.h.bf16 %v351
  %s354 = scalar_lea.vmem %s1, 1336
  %s355 = scalar_lea.vmem %s0, 56
  %v356 = vld [vmem:[%s355] sm:$0xf]
  %v357 = vunpack.c.l.bf16 %v356
  %v358 = vunpack.c.h.bf16 %v356
  %s359 = scalar_lea.vmem %s1, 2104
  %s360 = scalar_lea.vmem %s0, 2112
  %v361 = vld [vmem:[%s360] sm:$0xf]
  %v362 = vunpack.c.l.bf16 %v361
  %v363 = vunpack.c.h.bf16 %v361
  %s364 = scalar_lea.vmem %s1, 64
  %s365 = scalar_lea.vmem %s0, 1344
  %v366 = vld [vmem:[%s365] sm:$0xf]
  %v367 = vunpack.c.l.bf16 %v366
  %v368 = vunpack.c.h.bf16 %v366
  %s369 = scalar_lea.vmem %s1, 832
  %s370 = scalar_lea.vmem %s0, 576
  %v371 = vld [vmem:[%s370] sm:$0xf]
  %v372 = vunpack.c.l.bf16 %v371
  %v373 = vunpack.c.h.bf16 %v371
  %s374 = scalar_lea.vmem %s1, 1600
  %s375 = scalar_lea.vmem %s0, 1856
  %v376 = vld [vmem:[%s375] sm:$0xf]
  %v377 = vunpack.c.l.bf16 %v376
  %v378 = vunpack.c.h.bf16 %v376
  %s379 = scalar_lea.vmem %s1, 320
  %s380 = scalar_lea.vmem %s0, 1088
  %v381 = vld [vmem:[%s380] sm:$0xf]
  %v382 = vunpack.c.l.bf16 %v381
  %v383 = vunpack.c.h.bf16 %v381
  %s384 = scalar_lea.vmem %s1, 1088
  %s385 = scalar_lea.vmem %s0, 320
  %v386 = vld [vmem:[%s385] sm:$0xf]
  %v387 = vunpack.c.l.bf16 %v386
  %v388 = vunpack.c.h.bf16 %v386
  %s389 = scalar_lea.vmem %s1, 1856
  %s390 = scalar_lea.vmem %s0, 1600
  %v391 = vld [vmem:[%s390] sm:$0xf]
  %v392 = vunpack.c.l.bf16 %v391
  %v393 = vunpack.c.h.bf16 %v391
  %s394 = scalar_lea.vmem %s1, 576
  %s395 = scalar_lea.vmem %s0, 832
  %v396 = vld [vmem:[%s395] sm:$0xf]
  %v397 = vunpack.c.l.bf16 %v396
  %v398 = vunpack.c.h.bf16 %v396
  %s399 = scalar_lea.vmem %s1, 1344
  %s400 = scalar_lea.vmem %s0, 64
  %v401 = vld [vmem:[%s400] sm:$0xf]
  %v402 = vunpack.c.l.bf16 %v401
  %v403 = vunpack.c.h.bf16 %v401
  %s404 = scalar_lea.vmem %s1, 2112
  %s405 = scalar_lea.vmem %s0, 2120
  %v406 = vld [vmem:[%s405] sm:$0xf]
  %v407 = vunpack.c.l.bf16 %v406
  %v408 = vunpack.c.h.bf16 %v406
  %s409 = scalar_lea.vmem %s1, 72
  %s410 = scalar_lea.vmem %s0, 1352
  %v411 = vld [vmem:[%s410] sm:$0xf]
  %v412 = vunpack.c.l.bf16 %v411
  %v413 = vunpack.c.h.bf16 %v411
  %s414 = scalar_lea.vmem %s1, 840
  %s415 = scalar_lea.vmem %s0, 584
  %v416 = vld [vmem:[%s415] sm:$0xf]
  %v417 = vunpack.c.l.bf16 %v416
  %v418 = vunpack.c.h.bf16 %v416
  %s419 = scalar_lea.vmem %s1, 1608
  %s420 = scalar_lea.vmem %s0, 1864
  %v421 = vld [vmem:[%s420] sm:$0xf]
  %v422 = vunpack.c.l.bf16 %v421
  %v423 = vunpack.c.h.bf16 %v421
  %s424 = scalar_lea.vmem %s1, 328
  %s425 = scalar_lea.vmem %s0, 1096
  %v426 = vld [vmem:[%s425] sm:$0xf]
  %v427 = vunpack.c.l.bf16 %v426
  %v428 = vunpack.c.h.bf16 %v426
  %s429 = scalar_lea.vmem %s1, 1096
  %s430 = scalar_lea.vmem %s0, 328
  %v431 = vld [vmem:[%s430] sm:$0xf]
  %v432 = vunpack.c.l.bf16 %v431
  %v433 = vunpack.c.h.bf16 %v431
  %s434 = scalar_lea.vmem %s1, 1864
  %s435 = scalar_lea.vmem %s0, 1608
  %v436 = vld [vmem:[%s435] sm:$0xf]
  %v437 = vunpack.c.l.bf16 %v436
  %v438 = vunpack.c.h.bf16 %v436
  %s439 = scalar_lea.vmem %s1, 584
  %s440 = scalar_lea.vmem %s0, 840
  %v441 = vld [vmem:[%s440] sm:$0xf]
  %v442 = vunpack.c.l.bf16 %v441
  %v443 = vunpack.c.h.bf16 %v441
  %s444 = scalar_lea.vmem %s1, 1352
  %s445 = scalar_lea.vmem %s0, 72
  %v446 = vld [vmem:[%s445] sm:$0xf]
  %v447 = vunpack.c.l.bf16 %v446
  %v448 = vunpack.c.h.bf16 %v446
  %s449 = scalar_lea.vmem %s1, 2120
  %s450 = scalar_lea.vmem %s0, 2128
  %v451 = vld [vmem:[%s450] sm:$0xf]
  %v452 = vunpack.c.l.bf16 %v451
  %v453 = vunpack.c.h.bf16 %v451
  %s454 = scalar_lea.vmem %s1, 80
  %s455 = scalar_lea.vmem %s0, 1360
  %v456 = vld [vmem:[%s455] sm:$0xf]
  %v457 = vunpack.c.l.bf16 %v456
  %v458 = vunpack.c.h.bf16 %v456
  %s459 = scalar_lea.vmem %s1, 848
  %s460 = scalar_lea.vmem %s0, 592
  %v461 = vld [vmem:[%s460] sm:$0xf]
  %v462 = vunpack.c.l.bf16 %v461
  %v463 = vunpack.c.h.bf16 %v461
  %s464 = scalar_lea.vmem %s1, 1616
  %s465 = scalar_lea.vmem %s0, 1872
  %v466 = vld [vmem:[%s465] sm:$0xf]
  %v467 = vunpack.c.l.bf16 %v466
  %v468 = vunpack.c.h.bf16 %v466
  %s469 = scalar_lea.vmem %s1, 336
  %s470 = scalar_lea.vmem %s0, 1104
  %v471 = vld [vmem:[%s470] sm:$0xf]
  %v472 = vunpack.c.l.bf16 %v471
  %v473 = vunpack.c.h.bf16 %v471
  %s474 = scalar_lea.vmem %s1, 1104
  %s475 = scalar_lea.vmem %s0, 336
  %v476 = vld [vmem:[%s475] sm:$0xf]
  %v477 = vunpack.c.l.bf16 %v476
  %v478 = vunpack.c.h.bf16 %v476
  %s479 = scalar_lea.vmem %s1, 1872
  %s480 = scalar_lea.vmem %s0, 1616
  %v481 = vld [vmem:[%s480] sm:$0xf]
  %v482 = vunpack.c.l.bf16 %v481
  %v483 = vunpack.c.h.bf16 %v481
  %s484 = scalar_lea.vmem %s1, 592
  %s485 = scalar_lea.vmem %s0, 848
  %v486 = vld [vmem:[%s485] sm:$0xf]
  %v487 = vunpack.c.l.bf16 %v486
  %v488 = vunpack.c.h.bf16 %v486
  %s489 = scalar_lea.vmem %s1, 1360
  %s490 = scalar_lea.vmem %s0, 80
  %v491 = vld [vmem:[%s490] sm:$0xf]
  %v492 = vunpack.c.l.bf16 %v491
  %v493 = vunpack.c.h.bf16 %v491
  %s494 = scalar_lea.vmem %s1, 2128
  %s495 = scalar_lea.vmem %s0, 2136
  %v496 = vld [vmem:[%s495] sm:$0xf]
  %v497 = vunpack.c.l.bf16 %v496
  %v498 = vunpack.c.h.bf16 %v496
  %s499 = scalar_lea.vmem %s1, 88
  %s500 = scalar_lea.vmem %s0, 1368
  %v501 = vld [vmem:[%s500] sm:$0xf]
  %v502 = vunpack.c.l.bf16 %v501
  %v503 = vunpack.c.h.bf16 %v501
  %s504 = scalar_lea.vmem %s1, 856
  %s505 = scalar_lea.vmem %s0, 600
  %v506 = vld [vmem:[%s505] sm:$0xf]
  %v507 = vunpack.c.l.bf16 %v506
  %v508 = vunpack.c.h.bf16 %v506
  %s509 = scalar_lea.vmem %s1, 1624
  %s510 = scalar_lea.vmem %s0, 1880
  %v511 = vld [vmem:[%s510] sm:$0xf]
  %v512 = vunpack.c.l.bf16 %v511
  %v513 = vunpack.c.h.bf16 %v511
  %s514 = scalar_lea.vmem %s1, 344
  %s515 = scalar_lea.vmem %s0, 1112
  %v516 = vld [vmem:[%s515] sm:$0xf]
  %v517 = vunpack.c.l.bf16 %v516
  %v518 = vunpack.c.h.bf16 %v516
  %s519 = scalar_lea.vmem %s1, 1112
  %s520 = scalar_lea.vmem %s0, 344
  %v521 = vld [vmem:[%s520] sm:$0xf]
  %v522 = vunpack.c.l.bf16 %v521
  %v523 = vunpack.c.h.bf16 %v521
  %s524 = scalar_lea.vmem %s1, 1880
  %s525 = scalar_lea.vmem %s0, 1624
  %v526 = vld [vmem:[%s525] sm:$0xf]
  %v527 = vunpack.c.l.bf16 %v526
  %v528 = vunpack.c.h.bf16 %v526
  %s529 = scalar_lea.vmem %s1, 600
  %s530 = scalar_lea.vmem %s0, 856
  %v531 = vld [vmem:[%s530] sm:$0xf]
  %v532 = vunpack.c.l.bf16 %v531
  %v533 = vunpack.c.h.bf16 %v531
  %s534 = scalar_lea.vmem %s1, 1368
  %s535 = scalar_lea.vmem %s0, 88
  %v536 = vld [vmem:[%s535] sm:$0xf]
  %v537 = vunpack.c.l.bf16 %v536
  %v538 = vunpack.c.h.bf16 %v536
  %s539 = scalar_lea.vmem %s1, 2136
  %s540 = scalar_lea.vmem %s0, 2144
  %v541 = vld [vmem:[%s540] sm:$0xf]
  %v542 = vunpack.c.l.bf16 %v541
  %v543 = vunpack.c.h.bf16 %v541
  %s544 = scalar_lea.vmem %s1, 96
  %s545 = scalar_lea.vmem %s0, 1376
  %v546 = vld [vmem:[%s545] sm:$0xf]
  %v547 = vunpack.c.l.bf16 %v546
  %v548 = vunpack.c.h.bf16 %v546
  %s549 = scalar_lea.vmem %s1, 864
  %s550 = scalar_lea.vmem %s0, 608
  %v551 = vld [vmem:[%s550] sm:$0xf]
  %v552 = vunpack.c.l.bf16 %v551
  %v553 = vunpack.c.h.bf16 %v551
  %s554 = scalar_lea.vmem %s1, 1632
  %s555 = scalar_lea.vmem %s0, 1888
  %v556 = vld [vmem:[%s555] sm:$0xf]
  %v557 = vunpack.c.l.bf16 %v556
  %v558 = vunpack.c.h.bf16 %v556
  %s559 = scalar_lea.vmem %s1, 352
  %s560 = scalar_lea.vmem %s0, 1120
  %v561 = vld [vmem:[%s560] sm:$0xf]
  %v562 = vunpack.c.l.bf16 %v561
  %v563 = vunpack.c.h.bf16 %v561
  %s564 = scalar_lea.vmem %s1, 1120
  %s565 = scalar_lea.vmem %s0, 352
  %v566 = vld [vmem:[%s565] sm:$0xf]
  %v567 = vunpack.c.l.bf16 %v566
  %v568 = vunpack.c.h.bf16 %v566
  %s569 = scalar_lea.vmem %s1, 1888
  %s570 = scalar_lea.vmem %s0, 1632
  %v571 = vld [vmem:[%s570] sm:$0xf]
  %v572 = vunpack.c.l.bf16 %v571
  %v573 = vunpack.c.h.bf16 %v571
  %s574 = scalar_lea.vmem %s1, 608
  %s575 = scalar_lea.vmem %s0, 864
  %v576 = vld [vmem:[%s575] sm:$0xf]
  %v577 = vunpack.c.l.bf16 %v576
  %v578 = vunpack.c.h.bf16 %v576
  %s579 = scalar_lea.vmem %s1, 1376
  %s580 = scalar_lea.vmem %s0, 96
  %v581 = vld [vmem:[%s580] sm:$0xf]
  %v582 = vunpack.c.l.bf16 %v581
  %v583 = vunpack.c.h.bf16 %v581
  %s584 = scalar_lea.vmem %s1, 2144
  %s585 = scalar_lea.vmem %s0, 2152
  %v586 = vld [vmem:[%s585] sm:$0xf]
  %v587 = vunpack.c.l.bf16 %v586
  %v588 = vunpack.c.h.bf16 %v586
  %s589 = scalar_lea.vmem %s1, 104
  %s590 = scalar_lea.vmem %s0, 1384
  %v591 = vld [vmem:[%s590] sm:$0xf]
  %v592 = vunpack.c.l.bf16 %v591
  %v593 = vunpack.c.h.bf16 %v591
  %s594 = scalar_lea.vmem %s1, 872
  %s595 = scalar_lea.vmem %s0, 616
  %v596 = vld [vmem:[%s595] sm:$0xf]
  %v597 = vunpack.c.l.bf16 %v596
  %v598 = vunpack.c.h.bf16 %v596
  %s599 = scalar_lea.vmem %s1, 1640
  %s600 = scalar_lea.vmem %s0, 1896
  %v601 = vld [vmem:[%s600] sm:$0xf]
  %v602 = vunpack.c.l.bf16 %v601
  %v603 = vunpack.c.h.bf16 %v601
  %s604 = scalar_lea.vmem %s1, 360
  %s605 = scalar_lea.vmem %s0, 1128
  %v606 = vld [vmem:[%s605] sm:$0xf]
  %v607 = vunpack.c.l.bf16 %v606
  %v608 = vunpack.c.h.bf16 %v606
  %s609 = scalar_lea.vmem %s1, 1128
  %s610 = scalar_lea.vmem %s0, 360
  %v611 = vld [vmem:[%s610] sm:$0xf]
  %v612 = vunpack.c.l.bf16 %v611
  %v613 = vunpack.c.h.bf16 %v611
  %s614 = scalar_lea.vmem %s1, 1896
  %s615 = scalar_lea.vmem %s0, 1640
  %v616 = vld [vmem:[%s615] sm:$0xf]
  %v617 = vunpack.c.l.bf16 %v616
  %v618 = vunpack.c.h.bf16 %v616
  %s619 = scalar_lea.vmem %s1, 616
  %s620 = scalar_lea.vmem %s0, 872
  %v621 = vld [vmem:[%s620] sm:$0xf]
  %v622 = vunpack.c.l.bf16 %v621
  %v623 = vunpack.c.h.bf16 %v621
  %s624 = scalar_lea.vmem %s1, 1384
  %s625 = scalar_lea.vmem %s0, 104
  %v626 = vld [vmem:[%s625] sm:$0xf]
  %v627 = vunpack.c.l.bf16 %v626
  %v628 = vunpack.c.h.bf16 %v626
  %s629 = scalar_lea.vmem %s1, 2152
  %s630 = scalar_lea.vmem %s0, 2160
  %v631 = vld [vmem:[%s630] sm:$0xf]
  %v632 = vunpack.c.l.bf16 %v631
  %v633 = vunpack.c.h.bf16 %v631
  %s634 = scalar_lea.vmem %s1, 112
  %s635 = scalar_lea.vmem %s0, 1392
  %v636 = vld [vmem:[%s635] sm:$0xf]
  %v637 = vunpack.c.l.bf16 %v636
  %v638 = vunpack.c.h.bf16 %v636
  %s639 = scalar_lea.vmem %s1, 880
  %s640 = scalar_lea.vmem %s0, 624
  %v641 = vld [vmem:[%s640] sm:$0xf]
  %v642 = vunpack.c.l.bf16 %v641
  %v643 = vunpack.c.h.bf16 %v641
  %s644 = scalar_lea.vmem %s1, 1648
  %s645 = scalar_lea.vmem %s0, 1904
  %v646 = vld [vmem:[%s645] sm:$0xf]
  %v647 = vunpack.c.l.bf16 %v646
  %v648 = vunpack.c.h.bf16 %v646
  %s649 = scalar_lea.vmem %s1, 368
  %s650 = scalar_lea.vmem %s0, 1136
  %v651 = vld [vmem:[%s650] sm:$0xf]
  %v652 = vunpack.c.l.bf16 %v651
  %v653 = vunpack.c.h.bf16 %v651
  %s654 = scalar_lea.vmem %s1, 1136
  %s655 = scalar_lea.vmem %s0, 368
  %v656 = vld [vmem:[%s655] sm:$0xf]
  %v657 = vunpack.c.l.bf16 %v656
  %v658 = vunpack.c.h.bf16 %v656
  %s659 = scalar_lea.vmem %s1, 1904
  %s660 = scalar_lea.vmem %s0, 1648
  %v661 = vld [vmem:[%s660] sm:$0xf]
  %v662 = vunpack.c.l.bf16 %v661
  %v663 = vunpack.c.h.bf16 %v661
  %s664 = scalar_lea.vmem %s1, 624
  %s665 = scalar_lea.vmem %s0, 880
  %v666 = vld [vmem:[%s665] sm:$0xf]
  %v667 = vunpack.c.l.bf16 %v666
  %v668 = vunpack.c.h.bf16 %v666
  %s669 = scalar_lea.vmem %s1, 1392
  %s670 = scalar_lea.vmem %s0, 112
  %v671 = vld [vmem:[%s670] sm:$0xf]
  %v672 = vunpack.c.l.bf16 %v671
  %v673 = vunpack.c.h.bf16 %v671
  %s674 = scalar_lea.vmem %s1, 2160
  %s675 = scalar_lea.vmem %s0, 2168
  %v676 = vld [vmem:[%s675] sm:$0xf]
  %v677 = vunpack.c.l.bf16 %v676
  %v678 = vunpack.c.h.bf16 %v676
  %s679 = scalar_lea.vmem %s1, 120
  %s680 = scalar_lea.vmem %s0, 1400
  %v681 = vld [vmem:[%s680] sm:$0xf]
  %v682 = vunpack.c.l.bf16 %v681
  %v683 = vunpack.c.h.bf16 %v681
  %s684 = scalar_lea.vmem %s1, 888
  %s685 = scalar_lea.vmem %s0, 632
  %v686 = vld [vmem:[%s685] sm:$0xf]
  %v687 = vunpack.c.l.bf16 %v686
  %v688 = vunpack.c.h.bf16 %v686
  %s689 = scalar_lea.vmem %s1, 1656
  %s690 = scalar_lea.vmem %s0, 1912
  %v691 = vld [vmem:[%s690] sm:$0xf]
  %v692 = vunpack.c.l.bf16 %v691
  %v693 = vunpack.c.h.bf16 %v691
  %s694 = scalar_lea.vmem %s1, 376
  %s695 = scalar_lea.vmem %s0, 1144
  %v696 = vld [vmem:[%s695] sm:$0xf]
  %v697 = vunpack.c.l.bf16 %v696
  %v698 = vunpack.c.h.bf16 %v696
  %s699 = scalar_lea.vmem %s1, 1144
  %s700 = scalar_lea.vmem %s0, 376
  %v701 = vld [vmem:[%s700] sm:$0xf]
  %v702 = vunpack.c.l.bf16 %v701
  %v703 = vunpack.c.h.bf16 %v701
  %s704 = scalar_lea.vmem %s1, 1912
  %s705 = scalar_lea.vmem %s0, 1656
  %v706 = vld [vmem:[%s705] sm:$0xf]
  %v707 = vunpack.c.l.bf16 %v706
  %v708 = vunpack.c.h.bf16 %v706
  %s709 = scalar_lea.vmem %s1, 632
  %s710 = scalar_lea.vmem %s0, 888
  %v711 = vld [vmem:[%s710] sm:$0xf]
  %v712 = vunpack.c.l.bf16 %v711
  %v713 = vunpack.c.h.bf16 %v711
  %s714 = scalar_lea.vmem %s1, 1400
  %s715 = scalar_lea.vmem %s0, 120
  %v716 = vld [vmem:[%s715] sm:$0xf]
  %v717 = vunpack.c.l.bf16 %v716
  %v718 = vunpack.c.h.bf16 %v716
  %s719 = scalar_lea.vmem %s1, 2168
  %s720 = scalar_lea.vmem %s0, 2176
  %v721 = vld [vmem:[%s720] sm:$0xf]
  %v722 = vunpack.c.l.bf16 %v721
  %v723 = vunpack.c.h.bf16 %v721
  %s724 = scalar_lea.vmem %s1, 128
  %s725 = scalar_lea.vmem %s0, 1408
  %v726 = vld [vmem:[%s725] sm:$0xf]
  %v727 = vunpack.c.l.bf16 %v726
  %v728 = vunpack.c.h.bf16 %v726
  %s729 = scalar_lea.vmem %s1, 896
  %s730 = scalar_lea.vmem %s0, 640
  %v731 = vld [vmem:[%s730] sm:$0xf]
  %v732 = vunpack.c.l.bf16 %v731
  %v733 = vunpack.c.h.bf16 %v731
  %s734 = scalar_lea.vmem %s1, 1664
  %s735 = scalar_lea.vmem %s0, 1920
  %v736 = vld [vmem:[%s735] sm:$0xf]
  %v737 = vunpack.c.l.bf16 %v736
  %v738 = vunpack.c.h.bf16 %v736
  %s739 = scalar_lea.vmem %s1, 384
  %s740 = scalar_lea.vmem %s0, 1152
  %v741 = vld [vmem:[%s740] sm:$0xf]
  %v742 = vunpack.c.l.bf16 %v741
  %v743 = vunpack.c.h.bf16 %v741
  %s744 = scalar_lea.vmem %s1, 1152
  %s745 = scalar_lea.vmem %s0, 384
  %v746 = vld [vmem:[%s745] sm:$0xf]
  %v747 = vunpack.c.l.bf16 %v746
  %v748 = vunpack.c.h.bf16 %v746
  %s749 = scalar_lea.vmem %s1, 1920
  %s750 = scalar_lea.vmem %s0, 1664
  %v751 = vld [vmem:[%s750] sm:$0xf]
  %v752 = vunpack.c.l.bf16 %v751
  %v753 = vunpack.c.h.bf16 %v751
  %s754 = scalar_lea.vmem %s1, 640
  %s755 = scalar_lea.vmem %s0, 896
  %v756 = vld [vmem:[%s755] sm:$0xf]
  %v757 = vunpack.c.l.bf16 %v756
  %v758 = vunpack.c.h.bf16 %v756
  %s759 = scalar_lea.vmem %s1, 1408
  %s760 = scalar_lea.vmem %s0, 128
  %v761 = vld [vmem:[%s760] sm:$0xf]
  %v762 = vunpack.c.l.bf16 %v761
  %v763 = vunpack.c.h.bf16 %v761
  %s764 = scalar_lea.vmem %s1, 2176
  %s765 = scalar_lea.vmem %s0, 2184
  %v766 = vld [vmem:[%s765] sm:$0xf]
  %v767 = vunpack.c.l.bf16 %v766
  %v768 = vunpack.c.h.bf16 %v766
  %s769 = scalar_lea.vmem %s1, 136
  %s770 = scalar_lea.vmem %s0, 1416
  %v771 = vld [vmem:[%s770] sm:$0xf]
  %v772 = vunpack.c.l.bf16 %v771
  %v773 = vunpack.c.h.bf16 %v771
  %s774 = scalar_lea.vmem %s1, 904
  %s775 = scalar_lea.vmem %s0, 648
  %v776 = vld [vmem:[%s775] sm:$0xf]
  %v777 = vunpack.c.l.bf16 %v776
  %v778 = vunpack.c.h.bf16 %v776
  %s779 = scalar_lea.vmem %s1, 1672
  %s780 = scalar_lea.vmem %s0, 1928
  %v781 = vld [vmem:[%s780] sm:$0xf]
  %v782 = vunpack.c.l.bf16 %v781
  %v783 = vunpack.c.h.bf16 %v781
  %s784 = scalar_lea.vmem %s1, 392
  %s785 = scalar_lea.vmem %s0, 1160
  %v786 = vld [vmem:[%s785] sm:$0xf]
  %v787 = vunpack.c.l.bf16 %v786
  %v788 = vunpack.c.h.bf16 %v786
  %s789 = scalar_lea.vmem %s1, 1160
  %s790 = scalar_lea.vmem %s0, 392
  %v791 = vld [vmem:[%s790] sm:$0xf]
  %v792 = vunpack.c.l.bf16 %v791
  %v793 = vunpack.c.h.bf16 %v791
  %s794 = scalar_lea.vmem %s1, 1928
  %s795 = scalar_lea.vmem %s0, 1672
  %v796 = vld [vmem:[%s795] sm:$0xf]
  %v797 = vunpack.c.l.bf16 %v796
  %v798 = vunpack.c.h.bf16 %v796
  %s799 = scalar_lea.vmem %s1, 648
  %s800 = scalar_lea.vmem %s0, 904
  %v801 = vld [vmem:[%s800] sm:$0xf]
  %v802 = vunpack.c.l.bf16 %v801
  %v803 = vunpack.c.h.bf16 %v801
  %s804 = scalar_lea.vmem %s1, 1416
  %s805 = scalar_lea.vmem %s0, 136
  %v806 = vld [vmem:[%s805] sm:$0xf]
  %v807 = vunpack.c.l.bf16 %v806
  %v808 = vunpack.c.h.bf16 %v806
  %s809 = scalar_lea.vmem %s1, 2184
  %s810 = scalar_lea.vmem %s0, 2192
  %v811 = vld [vmem:[%s810] sm:$0xf]
  %v812 = vunpack.c.l.bf16 %v811
  %v813 = vunpack.c.h.bf16 %v811
  %s814 = scalar_lea.vmem %s1, 144
  %s815 = scalar_lea.vmem %s0, 1424
  %v816 = vld [vmem:[%s815] sm:$0xf]
  %v817 = vunpack.c.l.bf16 %v816
  %v818 = vunpack.c.h.bf16 %v816
  %s819 = scalar_lea.vmem %s1, 912
  %s820 = scalar_lea.vmem %s0, 656
  %v821 = vld [vmem:[%s820] sm:$0xf]
  %v822 = vunpack.c.l.bf16 %v821
  %v823 = vunpack.c.h.bf16 %v821
  %s824 = scalar_lea.vmem %s1, 1680
  %s825 = scalar_lea.vmem %s0, 1936
  %v826 = vld [vmem:[%s825] sm:$0xf]
  %v827 = vunpack.c.l.bf16 %v826
  %v828 = vunpack.c.h.bf16 %v826
  %s829 = scalar_lea.vmem %s1, 400
  %s830 = scalar_lea.vmem %s0, 1168
  %v831 = vld [vmem:[%s830] sm:$0xf]
  %v832 = vunpack.c.l.bf16 %v831
  %v833 = vunpack.c.h.bf16 %v831
  %s834 = scalar_lea.vmem %s1, 1168
  %s835 = scalar_lea.vmem %s0, 400
  %v836 = vld [vmem:[%s835] sm:$0xf]
  %v837 = vunpack.c.l.bf16 %v836
  %v838 = vunpack.c.h.bf16 %v836
  %s839 = scalar_lea.vmem %s1, 1936
  %s840 = scalar_lea.vmem %s0, 1680
  %v841 = vld [vmem:[%s840] sm:$0xf]
  %v842 = vunpack.c.l.bf16 %v841
  %v843 = vunpack.c.h.bf16 %v841
  %s844 = scalar_lea.vmem %s1, 656
  %s845 = scalar_lea.vmem %s0, 912
  %v846 = vld [vmem:[%s845] sm:$0xf]
  %v847 = vunpack.c.l.bf16 %v846
  %v848 = vunpack.c.h.bf16 %v846
  %s849 = scalar_lea.vmem %s1, 1424
  %s850 = scalar_lea.vmem %s0, 144
  %v851 = vld [vmem:[%s850] sm:$0xf]
  %v852 = vunpack.c.l.bf16 %v851
  %v853 = vunpack.c.h.bf16 %v851
  %s854 = scalar_lea.vmem %s1, 2192
  %s855 = scalar_lea.vmem %s0, 2200
  %v856 = vld [vmem:[%s855] sm:$0xf]
  %v857 = vunpack.c.l.bf16 %v856
  %v858 = vunpack.c.h.bf16 %v856
  %s859 = scalar_lea.vmem %s1, 152
  %s860 = scalar_lea.vmem %s0, 1432
  %v861 = vld [vmem:[%s860] sm:$0xf]
  %v862 = vunpack.c.l.bf16 %v861
  %v863 = vunpack.c.h.bf16 %v861
  %s864 = scalar_lea.vmem %s1, 920
  %s865 = scalar_lea.vmem %s0, 664
  %v866 = vld [vmem:[%s865] sm:$0xf]
  %v867 = vunpack.c.l.bf16 %v866
  %v868 = vunpack.c.h.bf16 %v866
  %s869 = scalar_lea.vmem %s1, 1688
  %s870 = scalar_lea.vmem %s0, 1944
  %v871 = vld [vmem:[%s870] sm:$0xf]
  %v872 = vunpack.c.l.bf16 %v871
  %v873 = vunpack.c.h.bf16 %v871
  %s874 = scalar_lea.vmem %s1, 408
  %s875 = scalar_lea.vmem %s0, 1176
  %v876 = vld [vmem:[%s875] sm:$0xf]
  %v877 = vunpack.c.l.bf16 %v876
  %v878 = vunpack.c.h.bf16 %v876
  %s879 = scalar_lea.vmem %s1, 1176
  %s880 = scalar_lea.vmem %s0, 408
  %v881 = vld [vmem:[%s880] sm:$0xf]
  %v882 = vunpack.c.l.bf16 %v881
  %v883 = vunpack.c.h.bf16 %v881
  %s884 = scalar_lea.vmem %s1, 1944
  %s885 = scalar_lea.vmem %s0, 1688
  %v886 = vld [vmem:[%s885] sm:$0xf]
  %v887 = vunpack.c.l.bf16 %v886
  %v888 = vunpack.c.h.bf16 %v886
  %s889 = scalar_lea.vmem %s1, 664
  %s890 = scalar_lea.vmem %s0, 920
  %v891 = vld [vmem:[%s890] sm:$0xf]
  %v892 = vunpack.c.l.bf16 %v891
  %v893 = vunpack.c.h.bf16 %v891
  %s894 = scalar_lea.vmem %s1, 1432
  %s895 = scalar_lea.vmem %s0, 152
  %v896 = vld [vmem:[%s895] sm:$0xf]
  %v897 = vunpack.c.l.bf16 %v896
  %v898 = vunpack.c.h.bf16 %v896
  %s899 = scalar_lea.vmem %s1, 2200
  %s900 = scalar_lea.vmem %s0, 2208
  %v901 = vld [vmem:[%s900] sm:$0xf]
  %v902 = vunpack.c.l.bf16 %v901
  %v903 = vunpack.c.h.bf16 %v901
  %s904 = scalar_lea.vmem %s1, 160
  %s905 = scalar_lea.vmem %s0, 1440
  %v906 = vld [vmem:[%s905] sm:$0xf]
  %v907 = vunpack.c.l.bf16 %v906
  %v908 = vunpack.c.h.bf16 %v906
  %s909 = scalar_lea.vmem %s1, 928
  %s910 = scalar_lea.vmem %s0, 672
  %v911 = vld [vmem:[%s910] sm:$0xf]
  %v912 = vunpack.c.l.bf16 %v911
  %v913 = vunpack.c.h.bf16 %v911
  %s914 = scalar_lea.vmem %s1, 1696
  %s915 = scalar_lea.vmem %s0, 1952
  %v916 = vld [vmem:[%s915] sm:$0xf]
  %v917 = vunpack.c.l.bf16 %v916
  %v918 = vunpack.c.h.bf16 %v916
  %s919 = scalar_lea.vmem %s1, 416
  %s920 = scalar_lea.vmem %s0, 1184
  %v921 = vld [vmem:[%s920] sm:$0xf]
  %v922 = vunpack.c.l.bf16 %v921
  %v923 = vunpack.c.h.bf16 %v921
  %s924 = scalar_lea.vmem %s1, 1184
  %s925 = scalar_lea.vmem %s0, 416
  %v926 = vld [vmem:[%s925] sm:$0xf]
  %v927 = vunpack.c.l.bf16 %v926
  %v928 = vunpack.c.h.bf16 %v926
  %s929 = scalar_lea.vmem %s1, 1952
  %s930 = scalar_lea.vmem %s0, 1696
  %v931 = vld [vmem:[%s930] sm:$0xf]
  %v932 = vunpack.c.l.bf16 %v931
  %v933 = vunpack.c.h.bf16 %v931
  %s934 = scalar_lea.vmem %s1, 672
  %s935 = scalar_lea.vmem %s0, 928
  %v936 = vld [vmem:[%s935] sm:$0xf]
  %v937 = vunpack.c.l.bf16 %v936
  %v938 = vunpack.c.h.bf16 %v936
  %s939 = scalar_lea.vmem %s1, 1440
  %s940 = scalar_lea.vmem %s0, 160
  %v941 = vld [vmem:[%s940] sm:$0xf]
  %v942 = vunpack.c.l.bf16 %v941
  %v943 = vunpack.c.h.bf16 %v941
  %s944 = scalar_lea.vmem %s1, 2208
  %s945 = scalar_lea.vmem %s0, 2216
  %v946 = vld [vmem:[%s945] sm:$0xf]
  %v947 = vunpack.c.l.bf16 %v946
  %v948 = vunpack.c.h.bf16 %v946
  %s949 = scalar_lea.vmem %s1, 168
  %s950 = scalar_lea.vmem %s0, 1448
  %v951 = vld [vmem:[%s950] sm:$0xf]
  %v952 = vunpack.c.l.bf16 %v951
  %v953 = vunpack.c.h.bf16 %v951
  %s954 = scalar_lea.vmem %s1, 936
  %s955 = scalar_lea.vmem %s0, 680
  %v956 = vld [vmem:[%s955] sm:$0xf]
  %v957 = vunpack.c.l.bf16 %v956
  %v958 = vunpack.c.h.bf16 %v956
  %s959 = scalar_lea.vmem %s1, 1704
  %s960 = scalar_lea.vmem %s0, 1960
  %v961 = vld [vmem:[%s960] sm:$0xf]
  %v962 = vunpack.c.l.bf16 %v961
  %v963 = vunpack.c.h.bf16 %v961
  %s964 = scalar_lea.vmem %s1, 424
  %s965 = scalar_lea.vmem %s0, 1192
  %v966 = vld [vmem:[%s965] sm:$0xf]
  %v967 = vunpack.c.l.bf16 %v966
  %v968 = vunpack.c.h.bf16 %v966
  %s969 = scalar_lea.vmem %s1, 1192
  %s970 = scalar_lea.vmem %s0, 424
  %v971 = vld [vmem:[%s970] sm:$0xf]
  %v972 = vunpack.c.l.bf16 %v971
  %v973 = vunpack.c.h.bf16 %v971
  %s974 = scalar_lea.vmem %s1, 1960
  %s975 = scalar_lea.vmem %s0, 1704
  %v976 = vld [vmem:[%s975] sm:$0xf]
  %v977 = vunpack.c.l.bf16 %v976
  %v978 = vunpack.c.h.bf16 %v976
  %s979 = scalar_lea.vmem %s1, 680
  %s980 = scalar_lea.vmem %s0, 936
  %v981 = vld [vmem:[%s980] sm:$0xf]
  %v982 = vunpack.c.l.bf16 %v981
  %v983 = vunpack.c.h.bf16 %v981
  %s984 = scalar_lea.vmem %s1, 1448
  %s985 = scalar_lea.vmem %s0, 168
  %v986 = vld [vmem:[%s985] sm:$0xf]
  %v987 = vunpack.c.l.bf16 %v986
  %v988 = vunpack.c.h.bf16 %v986
  %s989 = scalar_lea.vmem %s1, 2216
  %s990 = scalar_lea.vmem %s0, 2224
  %v991 = vld [vmem:[%s990] sm:$0xf]
  %v992 = vunpack.c.l.bf16 %v991
  %v993 = vunpack.c.h.bf16 %v991
  %s994 = scalar_lea.vmem %s1, 176
  %s995 = scalar_lea.vmem %s0, 1456
  %v996 = vld [vmem:[%s995] sm:$0xf]
  %v997 = vunpack.c.l.bf16 %v996
  %v998 = vunpack.c.h.bf16 %v996
  %s999 = scalar_lea.vmem %s1, 944
  %s1000 = scalar_lea.vmem %s0, 688
  %v1001 = vld [vmem:[%s1000] sm:$0xf]
  %v1002 = vunpack.c.l.bf16 %v1001
  %v1003 = vunpack.c.h.bf16 %v1001
  %s1004 = scalar_lea.vmem %s1, 1712
  %s1005 = scalar_lea.vmem %s0, 1968
  %v1006 = vld [vmem:[%s1005] sm:$0xf]
  %v1007 = vunpack.c.l.bf16 %v1006
  %v1008 = vunpack.c.h.bf16 %v1006
  %s1009 = scalar_lea.vmem %s1, 432
  %s1010 = scalar_lea.vmem %s0, 1200
  %v1011 = vld [vmem:[%s1010] sm:$0xf]
  %v1012 = vunpack.c.l.bf16 %v1011
  %v1013 = vunpack.c.h.bf16 %v1011
  %s1014 = scalar_lea.vmem %s1, 1200
  %s1015 = scalar_lea.vmem %s0, 432
  %v1016 = vld [vmem:[%s1015] sm:$0xf]
  %v1017 = vunpack.c.l.bf16 %v1016
  %v1018 = vunpack.c.h.bf16 %v1016
  %s1019 = scalar_lea.vmem %s1, 1968
  %s1020 = scalar_lea.vmem %s0, 1712
  %v1021 = vld [vmem:[%s1020] sm:$0xf]
  %v1022 = vunpack.c.l.bf16 %v1021
  %v1023 = vunpack.c.h.bf16 %v1021
  %s1024 = scalar_lea.vmem %s1, 688
  %s1025 = scalar_lea.vmem %s0, 944
  %v1026 = vld [vmem:[%s1025] sm:$0xf]
  %v1027 = vunpack.c.l.bf16 %v1026
  %v1028 = vunpack.c.h.bf16 %v1026
  %s1029 = scalar_lea.vmem %s1, 1456
  %s1030 = scalar_lea.vmem %s0, 176
  %v1031 = vld [vmem:[%s1030] sm:$0xf]
  %v1032 = vunpack.c.l.bf16 %v1031
  %v1033 = vunpack.c.h.bf16 %v1031
  %s1034 = scalar_lea.vmem %s1, 2224
  %s1035 = scalar_lea.vmem %s0, 2232
  %v1036 = vld [vmem:[%s1035] sm:$0xf]
  %v1037 = vunpack.c.l.bf16 %v1036
  %v1038 = vunpack.c.h.bf16 %v1036
  %s1039 = scalar_lea.vmem %s1, 184
  %s1040 = scalar_lea.vmem %s0, 1464
  %v1041 = vld [vmem:[%s1040] sm:$0xf]
  %v1042 = vunpack.c.l.bf16 %v1041
  %v1043 = vunpack.c.h.bf16 %v1041
  %s1044 = scalar_lea.vmem %s1, 952
  %s1045 = scalar_lea.vmem %s0, 696
  %v1046 = vld [vmem:[%s1045] sm:$0xf]
  %v1047 = vunpack.c.l.bf16 %v1046
  %v1048 = vunpack.c.h.bf16 %v1046
  %s1049 = scalar_lea.vmem %s1, 1720
  %s1050 = scalar_lea.vmem %s0, 1976
  %v1051 = vld [vmem:[%s1050] sm:$0xf]
  %v1052 = vunpack.c.l.bf16 %v1051
  %v1053 = vunpack.c.h.bf16 %v1051
  %s1054 = scalar_lea.vmem %s1, 440
  %s1055 = scalar_lea.vmem %s0, 1208
  %v1056 = vld [vmem:[%s1055] sm:$0xf]
  %v1057 = vunpack.c.l.bf16 %v1056
  %v1058 = vunpack.c.h.bf16 %v1056
  %s1059 = scalar_lea.vmem %s1, 1208
  %s1060 = scalar_lea.vmem %s0, 440
  %v1061 = vld [vmem:[%s1060] sm:$0xf]
  %v1062 = vunpack.c.l.bf16 %v1061
  %v1063 = vunpack.c.h.bf16 %v1061
  %s1064 = scalar_lea.vmem %s1, 1976
  %s1065 = scalar_lea.vmem %s0, 1720
  %v1066 = vld [vmem:[%s1065] sm:$0xf]
  %v1067 = vunpack.c.l.bf16 %v1066
  %v1068 = vunpack.c.h.bf16 %v1066
  %s1069 = scalar_lea.vmem %s1, 696
  %s1070 = scalar_lea.vmem %s0, 952
  %v1071 = vld [vmem:[%s1070] sm:$0xf]
  %v1072 = vunpack.c.l.bf16 %v1071
  %v1073 = vunpack.c.h.bf16 %v1071
  %s1074 = scalar_lea.vmem %s1, 1464
  %s1075 = scalar_lea.vmem %s0, 184
  %v1076 = vld [vmem:[%s1075] sm:$0xf]
  %v1077 = vunpack.c.l.bf16 %v1076
  %v1078 = vunpack.c.h.bf16 %v1076
  %s1079 = scalar_lea.vmem %s1, 2232
  %s1080 = scalar_lea.vmem %s0, 2240
  %v1081 = vld [vmem:[%s1080] sm:$0xf]
  %v1082 = vunpack.c.l.bf16 %v1081
  %v1083 = vunpack.c.h.bf16 %v1081
  %s1084 = scalar_lea.vmem %s1, 192
  %s1085 = scalar_lea.vmem %s0, 1472
  %v1086 = vld [vmem:[%s1085] sm:$0xf]
  %v1087 = vunpack.c.l.bf16 %v1086
  %v1088 = vunpack.c.h.bf16 %v1086
  %s1089 = scalar_lea.vmem %s1, 960
  %s1090 = scalar_lea.vmem %s0, 704
  %v1091 = vld [vmem:[%s1090] sm:$0xf]
  %v1092 = vunpack.c.l.bf16 %v1091
  %v1093 = vunpack.c.h.bf16 %v1091
  %s1094 = scalar_lea.vmem %s1, 1728
  %s1095 = scalar_lea.vmem %s0, 1984
  %v1096 = vld [vmem:[%s1095] sm:$0xf]
  %v1097 = vunpack.c.l.bf16 %v1096
  %v1098 = vunpack.c.h.bf16 %v1096
  %s1099 = scalar_lea.vmem %s1, 448
  %s1100 = scalar_lea.vmem %s0, 1216
  %v1101 = vld [vmem:[%s1100] sm:$0xf]
  %v1102 = vunpack.c.l.bf16 %v1101
  %v1103 = vunpack.c.h.bf16 %v1101
  %s1104 = scalar_lea.vmem %s1, 1216
  %s1105 = scalar_lea.vmem %s0, 448
  %v1106 = vld [vmem:[%s1105] sm:$0xf]
  %v1107 = vunpack.c.l.bf16 %v1106
  %v1108 = vunpack.c.h.bf16 %v1106
  %s1109 = scalar_lea.vmem %s1, 1984
  %s1110 = scalar_lea.vmem %s0, 1728
  %v1111 = vld [vmem:[%s1110] sm:$0xf]
  %v1112 = vunpack.c.l.bf16 %v1111
  %v1113 = vunpack.c.h.bf16 %v1111
  %s1114 = scalar_lea.vmem %s1, 704
  %s1115 = scalar_lea.vmem %s0, 960
  %v1116 = vld [vmem:[%s1115] sm:$0xf]
  %v1117 = vunpack.c.l.bf16 %v1116
  %v1118 = vunpack.c.h.bf16 %v1116
  %s1119 = scalar_lea.vmem %s1, 1472
  %s1120 = scalar_lea.vmem %s0, 192
  %v1121 = vld [vmem:[%s1120] sm:$0xf]
  %v1122 = vunpack.c.l.bf16 %v1121
  %v1123 = vunpack.c.h.bf16 %v1121
  %s1124 = scalar_lea.vmem %s1, 2240
  %s1125 = scalar_lea.vmem %s0, 2248
  %v1126 = vld [vmem:[%s1125] sm:$0xf]
  %v1127 = vunpack.c.l.bf16 %v1126
  %v1128 = vunpack.c.h.bf16 %v1126
  %s1129 = scalar_lea.vmem %s1, 200
  %s1130 = scalar_lea.vmem %s0, 1480
  %v1131 = vld [vmem:[%s1130] sm:$0xf]
  %v1132 = vunpack.c.l.bf16 %v1131
  %v1133 = vunpack.c.h.bf16 %v1131
  %s1134 = scalar_lea.vmem %s1, 968
  %s1135 = scalar_lea.vmem %s0, 712
  %v1136 = vld [vmem:[%s1135] sm:$0xf]
  %v1137 = vunpack.c.l.bf16 %v1136
  %v1138 = vunpack.c.h.bf16 %v1136
  %s1139 = scalar_lea.vmem %s1, 1736
  %s1140 = scalar_lea.vmem %s0, 1992
  %v1141 = vld [vmem:[%s1140] sm:$0xf]
  %v1142 = vunpack.c.l.bf16 %v1141
  %v1143 = vunpack.c.h.bf16 %v1141
  %s1144 = scalar_lea.vmem %s1, 456
  %s1145 = scalar_lea.vmem %s0, 1224
  %v1146 = vld [vmem:[%s1145] sm:$0xf]
  %v1147 = vunpack.c.l.bf16 %v1146
  %v1148 = vunpack.c.h.bf16 %v1146
  %s1149 = scalar_lea.vmem %s1, 1224
  %s1150 = scalar_lea.vmem %s0, 456
  %v1151 = vld [vmem:[%s1150] sm:$0xf]
  %v1152 = vunpack.c.l.bf16 %v1151
  %v1153 = vunpack.c.h.bf16 %v1151
  %s1154 = scalar_lea.vmem %s1, 1992
  %s1155 = scalar_lea.vmem %s0, 1736
  %v1156 = vld [vmem:[%s1155] sm:$0xf]
  %v1157 = vunpack.c.l.bf16 %v1156
  %v1158 = vunpack.c.h.bf16 %v1156
  %s1159 = scalar_lea.vmem %s1, 712
  %s1160 = scalar_lea.vmem %s0, 968
  %v1161 = vld [vmem:[%s1160] sm:$0xf]
  %v1162 = vunpack.c.l.bf16 %v1161
  %v1163 = vunpack.c.h.bf16 %v1161
  %s1164 = scalar_lea.vmem %s1, 1480
  %s1165 = scalar_lea.vmem %s0, 200
  %v1166 = vld [vmem:[%s1165] sm:$0xf]
  %v1167 = vunpack.c.l.bf16 %v1166
  %v1168 = vunpack.c.h.bf16 %v1166
  %s1169 = scalar_lea.vmem %s1, 2248
  %s1170 = scalar_lea.vmem %s0, 2256
  %v1171 = vld [vmem:[%s1170] sm:$0xf]
  %v1172 = vunpack.c.l.bf16 %v1171
  %v1173 = vunpack.c.h.bf16 %v1171
  %s1174 = scalar_lea.vmem %s1, 208
  %s1175 = scalar_lea.vmem %s0, 1488
  %v1176 = vld [vmem:[%s1175] sm:$0xf]
  %v1177 = vunpack.c.l.bf16 %v1176
  %v1178 = vunpack.c.h.bf16 %v1176
  %s1179 = scalar_lea.vmem %s1, 976
  %s1180 = scalar_lea.vmem %s0, 720
  %v1181 = vld [vmem:[%s1180] sm:$0xf]
  %v1182 = vunpack.c.l.bf16 %v1181
  %v1183 = vunpack.c.h.bf16 %v1181
  %s1184 = scalar_lea.vmem %s1, 1744
  %s1185 = scalar_lea.vmem %s0, 2000
  %v1186 = vld [vmem:[%s1185] sm:$0xf]
  %v1187 = vunpack.c.l.bf16 %v1186
  %v1188 = vunpack.c.h.bf16 %v1186
  %s1189 = scalar_lea.vmem %s1, 464
  %s1190 = scalar_lea.vmem %s0, 1232
  %v1191 = vld [vmem:[%s1190] sm:$0xf]
  %v1192 = vunpack.c.l.bf16 %v1191
  %v1193 = vunpack.c.h.bf16 %v1191
  %s1194 = scalar_lea.vmem %s1, 1232
  %s1195 = scalar_lea.vmem %s0, 464
  %v1196 = vld [vmem:[%s1195] sm:$0xf]
  %v1197 = vunpack.c.l.bf16 %v1196
  %v1198 = vunpack.c.h.bf16 %v1196
  %s1199 = scalar_lea.vmem %s1, 2000
  %s1200 = scalar_lea.vmem %s0, 1744
  %v1201 = vld [vmem:[%s1200] sm:$0xf]
  %v1202 = vunpack.c.l.bf16 %v1201
  %v1203 = vunpack.c.h.bf16 %v1201
  %s1204 = scalar_lea.vmem %s1, 720
  %s1205 = scalar_lea.vmem %s0, 976
  %v1206 = vld [vmem:[%s1205] sm:$0xf]
  %v1207 = vunpack.c.l.bf16 %v1206
  %v1208 = vunpack.c.h.bf16 %v1206
  %s1209 = scalar_lea.vmem %s1, 1488
  %s1210 = scalar_lea.vmem %s0, 208
  %v1211 = vld [vmem:[%s1210] sm:$0xf]
  %v1212 = vunpack.c.l.bf16 %v1211
  %v1213 = vunpack.c.h.bf16 %v1211
  %s1214 = scalar_lea.vmem %s1, 2256
  %s1215 = scalar_lea.vmem %s0, 2264
  %v1216 = vld [vmem:[%s1215] sm:$0xf]
  %v1217 = vunpack.c.l.bf16 %v1216
  %v1218 = vunpack.c.h.bf16 %v1216
  %s1219 = scalar_lea.vmem %s1, 216
  %s1220 = scalar_lea.vmem %s0, 1496
  %v1221 = vld [vmem:[%s1220] sm:$0xf]
  %v1222 = vunpack.c.l.bf16 %v1221
  %v1223 = vunpack.c.h.bf16 %v1221
  %s1224 = scalar_lea.vmem %s1, 984
  %s1225 = scalar_lea.vmem %s0, 728
  %v1226 = vld [vmem:[%s1225] sm:$0xf]
  %v1227 = vunpack.c.l.bf16 %v1226
  %v1228 = vunpack.c.h.bf16 %v1226
  %s1229 = scalar_lea.vmem %s1, 1752
  %s1230 = scalar_lea.vmem %s0, 2008
  %v1231 = vld [vmem:[%s1230] sm:$0xf]
  %v1232 = vunpack.c.l.bf16 %v1231
  %v1233 = vunpack.c.h.bf16 %v1231
  %s1234 = scalar_lea.vmem %s1, 472
  %s1235 = scalar_lea.vmem %s0, 1240
  %v1236 = vld [vmem:[%s1235] sm:$0xf]
  %v1237 = vunpack.c.l.bf16 %v1236
  %v1238 = vunpack.c.h.bf16 %v1236
  %s1239 = scalar_lea.vmem %s1, 1240
  %s1240 = scalar_lea.vmem %s0, 472
  %v1241 = vld [vmem:[%s1240] sm:$0xf]
  %v1242 = vunpack.c.l.bf16 %v1241
  %v1243 = vunpack.c.h.bf16 %v1241
  %s1244 = scalar_lea.vmem %s1, 2008
  %s1245 = scalar_lea.vmem %s0, 1752
  %v1246 = vld [vmem:[%s1245] sm:$0xf]
  %v1247 = vunpack.c.l.bf16 %v1246
  %v1248 = vunpack.c.h.bf16 %v1246
  %s1249 = scalar_lea.vmem %s1, 728
  %s1250 = scalar_lea.vmem %s0, 984
  %v1251 = vld [vmem:[%s1250] sm:$0xf]
  %v1252 = vunpack.c.l.bf16 %v1251
  %v1253 = vunpack.c.h.bf16 %v1251
  %s1254 = scalar_lea.vmem %s1, 1496
  %s1255 = scalar_lea.vmem %s0, 216
  %v1256 = vld [vmem:[%s1255] sm:$0xf]
  %v1257 = vunpack.c.l.bf16 %v1256
  %v1258 = vunpack.c.h.bf16 %v1256
  %s1259 = scalar_lea.vmem %s1, 2264
  %s1260 = scalar_lea.vmem %s0, 2272
  %v1261 = vld [vmem:[%s1260] sm:$0xf]
  %v1262 = vunpack.c.l.bf16 %v1261
  %v1263 = vunpack.c.h.bf16 %v1261
  %s1264 = scalar_lea.vmem %s1, 224
  %s1265 = scalar_lea.vmem %s0, 1504
  %v1266 = vld [vmem:[%s1265] sm:$0xf]
  %v1267 = vunpack.c.l.bf16 %v1266
  %v1268 = vunpack.c.h.bf16 %v1266
  %s1269 = scalar_lea.vmem %s1, 992
  %s1270 = scalar_lea.vmem %s0, 736
  %v1271 = vld [vmem:[%s1270] sm:$0xf]
  %v1272 = vunpack.c.l.bf16 %v1271
  %v1273 = vunpack.c.h.bf16 %v1271
  %s1274 = scalar_lea.vmem %s1, 1760
  %s1275 = scalar_lea.vmem %s0, 2016
  %v1276 = vld [vmem:[%s1275] sm:$0xf]
  %v1277 = vunpack.c.l.bf16 %v1276
  %v1278 = vunpack.c.h.bf16 %v1276
  %s1279 = scalar_lea.vmem %s1, 480
  %s1280 = scalar_lea.vmem %s0, 1248
  %v1281 = vld [vmem:[%s1280] sm:$0xf]
  %v1282 = vunpack.c.l.bf16 %v1281
  %v1283 = vunpack.c.h.bf16 %v1281
  %s1284 = scalar_lea.vmem %s1, 1248
  %s1285 = scalar_lea.vmem %s0, 480
  %v1286 = vld [vmem:[%s1285] sm:$0xf]
  %v1287 = vunpack.c.l.bf16 %v1286
  %v1288 = vunpack.c.h.bf16 %v1286
  %s1289 = scalar_lea.vmem %s1, 2016
  %s1290 = scalar_lea.vmem %s0, 1760
  %v1291 = vld [vmem:[%s1290] sm:$0xf]
  %v1292 = vunpack.c.l.bf16 %v1291
  %v1293 = vunpack.c.h.bf16 %v1291
  %s1294 = scalar_lea.vmem %s1, 736
  %s1295 = scalar_lea.vmem %s0, 992
  %v1296 = vld [vmem:[%s1295] sm:$0xf]
  %v1297 = vunpack.c.l.bf16 %v1296
  %v1298 = vunpack.c.h.bf16 %v1296
  %s1299 = scalar_lea.vmem %s1, 1504
  %s1300 = scalar_lea.vmem %s0, 224
  %v1301 = vld [vmem:[%s1300] sm:$0xf]
  %v1302 = vunpack.c.l.bf16 %v1301
  %v1303 = vunpack.c.h.bf16 %v1301
  %s1304 = scalar_lea.vmem %s1, 2272
  %s1305 = scalar_lea.vmem %s0, 2280
  %v1306 = vld [vmem:[%s1305] sm:$0xf]
  %v1307 = vunpack.c.l.bf16 %v1306
  %v1308 = vunpack.c.h.bf16 %v1306
  %s1309 = scalar_lea.vmem %s1, 232
  %s1310 = scalar_lea.vmem %s0, 1512
  %v1311 = vld [vmem:[%s1310] sm:$0xf]
  %v1312 = vunpack.c.l.bf16 %v1311
  %v1313 = vunpack.c.h.bf16 %v1311
  %s1314 = scalar_lea.vmem %s1, 1000
  %s1315 = scalar_lea.vmem %s0, 744
  %v1316 = vld [vmem:[%s1315] sm:$0xf]
  %v1317 = vunpack.c.l.bf16 %v1316
  %v1318 = vunpack.c.h.bf16 %v1316
  %s1319 = scalar_lea.vmem %s1, 1768
  %s1320 = scalar_lea.vmem %s0, 2024
  %v1321 = vld [vmem:[%s1320] sm:$0xf]
  %v1322 = vunpack.c.l.bf16 %v1321
  %v1323 = vunpack.c.h.bf16 %v1321
  %s1324 = scalar_lea.vmem %s1, 488
  %s1325 = scalar_lea.vmem %s0, 1256
  %v1326 = vld [vmem:[%s1325] sm:$0xf]
  %v1327 = vunpack.c.l.bf16 %v1326
  %v1328 = vunpack.c.h.bf16 %v1326
  %s1329 = scalar_lea.vmem %s1, 1256
  %s1330 = scalar_lea.vmem %s0, 488
  %v1331 = vld [vmem:[%s1330] sm:$0xf]
  %v1332 = vunpack.c.l.bf16 %v1331
  %v1333 = vunpack.c.h.bf16 %v1331
  %s1334 = scalar_lea.vmem %s1, 2024
  %s1335 = scalar_lea.vmem %s0, 1768
  %v1336 = vld [vmem:[%s1335] sm:$0xf]
  %v1337 = vunpack.c.l.bf16 %v1336
  %v1338 = vunpack.c.h.bf16 %v1336
  %s1339 = scalar_lea.vmem %s1, 744
  %s1340 = scalar_lea.vmem %s0, 1000
  %v1341 = vld [vmem:[%s1340] sm:$0xf]
  %v1342 = vunpack.c.l.bf16 %v1341
  %v1343 = vunpack.c.h.bf16 %v1341
  %s1344 = scalar_lea.vmem %s1, 1512
  %s1345 = scalar_lea.vmem %s0, 232
  %v1346 = vld [vmem:[%s1345] sm:$0xf]
  %v1347 = vunpack.c.l.bf16 %v1346
  %v1348 = vunpack.c.h.bf16 %v1346
  %s1349 = scalar_lea.vmem %s1, 2280
  %s1350 = scalar_lea.vmem %s0, 2288
  %v1351 = vld [vmem:[%s1350] sm:$0xf]
  %v1352 = vunpack.c.l.bf16 %v1351
  %v1353 = vunpack.c.h.bf16 %v1351
  %s1354 = scalar_lea.vmem %s1, 240
  %s1355 = scalar_lea.vmem %s0, 1520
  %v1356 = vld [vmem:[%s1355] sm:$0xf]
  %v1357 = vunpack.c.l.bf16 %v1356
  %v1358 = vunpack.c.h.bf16 %v1356
  %s1359 = scalar_lea.vmem %s1, 1008
  %s1360 = scalar_lea.vmem %s0, 752
  %v1361 = vld [vmem:[%s1360] sm:$0xf]
  %v1362 = vunpack.c.l.bf16 %v1361
  %v1363 = vunpack.c.h.bf16 %v1361
  %s1364 = scalar_lea.vmem %s1, 1776
  %s1365 = scalar_lea.vmem %s0, 2032
  %v1366 = vld [vmem:[%s1365] sm:$0xf]
  %v1367 = vunpack.c.l.bf16 %v1366
  %v1368 = vunpack.c.h.bf16 %v1366
  %s1369 = scalar_lea.vmem %s1, 496
  %s1370 = scalar_lea.vmem %s0, 1264
  %v1371 = vld [vmem:[%s1370] sm:$0xf]
  %v1372 = vunpack.c.l.bf16 %v1371
  %v1373 = vunpack.c.h.bf16 %v1371
  %s1374 = scalar_lea.vmem %s1, 1264
  %s1375 = scalar_lea.vmem %s0, 496
  %v1376 = vld [vmem:[%s1375] sm:$0xf]
  %v1377 = vunpack.c.l.bf16 %v1376
  %v1378 = vunpack.c.h.bf16 %v1376
  %s1379 = scalar_lea.vmem %s1, 2032
  %s1380 = scalar_lea.vmem %s0, 1776
  %v1381 = vld [vmem:[%s1380] sm:$0xf]
  %v1382 = vunpack.c.l.bf16 %v1381
  %v1383 = vunpack.c.h.bf16 %v1381
  %s1384 = scalar_lea.vmem %s1, 752
  %s1385 = scalar_lea.vmem %s0, 1008
  %v1386 = vld [vmem:[%s1385] sm:$0xf]
  %v1387 = vunpack.c.l.bf16 %v1386
  %v1388 = vunpack.c.h.bf16 %v1386
  %s1389 = scalar_lea.vmem %s1, 1520
  %s1390 = scalar_lea.vmem %s0, 240
  %v1391 = vld [vmem:[%s1390] sm:$0xf]
  %v1392 = vunpack.c.l.bf16 %v1391
  %v1393 = vunpack.c.h.bf16 %v1391
  %s1394 = scalar_lea.vmem %s1, 2288
  %s1395 = scalar_lea.vmem %s0, 2296
  %v1396 = vld [vmem:[%s1395] sm:$0xf]
  %v1397 = vunpack.c.l.bf16 %v1396
  %v1398 = vunpack.c.h.bf16 %v1396
  %s1399 = scalar_lea.vmem %s1, 248
  %s1400 = scalar_lea.vmem %s0, 1528
  %v1401 = vld [vmem:[%s1400] sm:$0xf]
  %v1402 = vunpack.c.l.bf16 %v1401
  %v1403 = vunpack.c.h.bf16 %v1401
  %s1404 = scalar_lea.vmem %s1, 1016
  %s1405 = scalar_lea.vmem %s0, 760
  %v1406 = vld [vmem:[%s1405] sm:$0xf]
  %v1407 = vunpack.c.l.bf16 %v1406
  %v1408 = vunpack.c.h.bf16 %v1406
  %s1409 = scalar_lea.vmem %s1, 1784
  %s1410 = scalar_lea.vmem %s0, 2040
  %v1411 = vld [vmem:[%s1410] sm:$0xf]
  %v1412 = vunpack.c.l.bf16 %v1411
  %v1413 = vunpack.c.h.bf16 %v1411
  %s1414 = scalar_lea.vmem %s1, 504
  %s1415 = scalar_lea.vmem %s0, 1272
  %v1416 = vld [vmem:[%s1415] sm:$0xf]
  %v1417 = vunpack.c.l.bf16 %v1416
  %v1418 = vunpack.c.h.bf16 %v1416
  %s1419 = scalar_lea.vmem %s1, 1272
  %s1420 = scalar_lea.vmem %s0, 504
  %v1421 = vld [vmem:[%s1420] sm:$0xf]
  %v1422 = vunpack.c.l.bf16 %v1421
  %v1423 = vunpack.c.h.bf16 %v1421
  %s1424 = scalar_lea.vmem %s1, 2040
  %s1425 = scalar_lea.vmem %s0, 1784
  %v1426 = vld [vmem:[%s1425] sm:$0xf]
  %v1427 = vunpack.c.l.bf16 %v1426
  %v1428 = vunpack.c.h.bf16 %v1426
  %s1429 = scalar_lea.vmem %s1, 760
  %s1430 = scalar_lea.vmem %s0, 1016
  %v1431 = vld [vmem:[%s1430] sm:$0xf]
  %v1432 = vunpack.c.l.bf16 %v1431
  %v1433 = vunpack.c.h.bf16 %v1431
  %s1434 = scalar_lea.vmem %s1, 1528
  %s1435 = scalar_lea.vmem %s0, 248
  %v1436 = vld [vmem:[%s1435] sm:$0xf]
  %v1437 = vunpack.c.l.bf16 %v1436
  %v1438 = vunpack.c.h.bf16 %v1436
  %s1439 = scalar_lea.vmem %s1, 2296
  %s1440 = scalar_lea.vmem %s0, 2052
  %v1441 = vld [vmem:[%s1440] sm:$0xf]
  %v1442 = vunpack.c.l.bf16 %v1441
  %v1443 = vunpack.c.h.bf16 %v1441
  %s1444 = scalar_lea.vmem %s1, 4
  %s1446 = ssub.s32 0, 4
  %s1447 = scalar_lea.vmem %s1444, %s1446
  %v1448 = vpack.c.bf16 %v1442, %v4
  %1449 = vst [vmem:[%s1447] sm:$0xff] %v1448
  %s1450 = scalar_lea.vmem %s0, 1284
  %v1451 = vld [vmem:[%s1450] sm:$0xf]
  %v1452 = vunpack.c.l.bf16 %v1451
  %v1453 = vunpack.c.h.bf16 %v1451
  %s1454 = scalar_lea.vmem %s1, 772
  %s1456 = ssub.s32 0, 4
  %s1457 = scalar_lea.vmem %s1454, %s1456
  %v1458 = vpack.c.bf16 %v1452, %v8
  %1459 = vst [vmem:[%s1457] sm:$0xff] %v1458
  %s1460 = scalar_lea.vmem %s0, 516
  %v1461 = vld [vmem:[%s1460] sm:$0xf]
  %v1462 = vunpack.c.l.bf16 %v1461
  %v1463 = vunpack.c.h.bf16 %v1461
  %s1464 = scalar_lea.vmem %s1, 1540
  %s1466 = ssub.s32 0, 4
  %s1467 = scalar_lea.vmem %s1464, %s1466
  %v1468 = vpack.c.bf16 %v1462, %v13
  %1469 = vst [vmem:[%s1467] sm:$0xff] %v1468
  %s1470 = scalar_lea.vmem %s0, 1796
  %v1471 = vld [vmem:[%s1470] sm:$0xf]
  %v1472 = vunpack.c.l.bf16 %v1471
  %v1473 = vunpack.c.h.bf16 %v1471
  %s1474 = scalar_lea.vmem %s1, 260
  %s1476 = ssub.s32 0, 4
  %s1477 = scalar_lea.vmem %s1474, %s1476
  %v1478 = vpack.c.bf16 %v1472, %v18
  %1479 = vst [vmem:[%s1477] sm:$0xff] %v1478
  %s1480 = scalar_lea.vmem %s0, 1028
  %v1481 = vld [vmem:[%s1480] sm:$0xf]
  %v1482 = vunpack.c.l.bf16 %v1481
  %v1483 = vunpack.c.h.bf16 %v1481
  %s1484 = scalar_lea.vmem %s1, 1028
  %s1486 = ssub.s32 0, 4
  %s1487 = scalar_lea.vmem %s1484, %s1486
  %v1488 = vpack.c.bf16 %v1482, %v23
  %1489 = vst [vmem:[%s1487] sm:$0xff] %v1488
  %s1490 = scalar_lea.vmem %s0, 260
  %v1491 = vld [vmem:[%s1490] sm:$0xf]
  %v1492 = vunpack.c.l.bf16 %v1491
  %v1493 = vunpack.c.h.bf16 %v1491
  %s1494 = scalar_lea.vmem %s1, 1796
  %s1496 = ssub.s32 0, 4
  %s1497 = scalar_lea.vmem %s1494, %s1496
  %v1498 = vpack.c.bf16 %v1492, %v28
  %1499 = vst [vmem:[%s1497] sm:$0xff] %v1498
  %s1500 = scalar_lea.vmem %s0, 1540
  %v1501 = vld [vmem:[%s1500] sm:$0xf]
  %v1502 = vunpack.c.l.bf16 %v1501
  %v1503 = vunpack.c.h.bf16 %v1501
  %s1504 = scalar_lea.vmem %s1, 516
  %s1506 = ssub.s32 0, 4
  %s1507 = scalar_lea.vmem %s1504, %s1506
  %v1508 = vpack.c.bf16 %v1502, %v33
  %1509 = vst [vmem:[%s1507] sm:$0xff] %v1508
  %s1510 = scalar_lea.vmem %s0, 772
  %v1511 = vld [vmem:[%s1510] sm:$0xf]
  %v1512 = vunpack.c.l.bf16 %v1511
  %v1513 = vunpack.c.h.bf16 %v1511
  %s1514 = scalar_lea.vmem %s1, 1284
  %s1516 = ssub.s32 0, 4
  %s1517 = scalar_lea.vmem %s1514, %s1516
  %v1518 = vpack.c.bf16 %v1512, %v38
  %1519 = vst [vmem:[%s1517] sm:$0xff] %v1518
  %s1520 = scalar_lea.vmem %s0, 4
  %v1521 = vld [vmem:[%s1520] sm:$0xf]
  %v1522 = vunpack.c.l.bf16 %v1521
  %v1523 = vunpack.c.h.bf16 %v1521
  %s1524 = scalar_lea.vmem %s1, 2052
  %s1526 = ssub.s32 0, 4
  %s1527 = scalar_lea.vmem %s1524, %s1526
  %v1528 = vpack.c.bf16 %v1522, %v42
  %1529 = vst [vmem:[%s1527] sm:$0xff] %v1528
  %s1530 = scalar_lea.vmem %s0, 2060
  %v1531 = vld [vmem:[%s1530] sm:$0xf]
  %v1532 = vunpack.c.l.bf16 %v1531
  %v1533 = vunpack.c.h.bf16 %v1531
  %s1534 = scalar_lea.vmem %s1, 12
  %s1536 = ssub.s32 0, 4
  %s1537 = scalar_lea.vmem %s1534, %s1536
  %v1538 = vpack.c.bf16 %v1532, %v47
  %1539 = vst [vmem:[%s1537] sm:$0xff] %v1538
  %s1540 = scalar_lea.vmem %s0, 1292
  %v1541 = vld [vmem:[%s1540] sm:$0xf]
  %v1542 = vunpack.c.l.bf16 %v1541
  %v1543 = vunpack.c.h.bf16 %v1541
  %s1544 = scalar_lea.vmem %s1, 780
  %s1546 = ssub.s32 0, 4
  %s1547 = scalar_lea.vmem %s1544, %s1546
  %v1548 = vpack.c.bf16 %v1542, %v52
  %1549 = vst [vmem:[%s1547] sm:$0xff] %v1548
  %s1550 = scalar_lea.vmem %s0, 524
  %v1551 = vld [vmem:[%s1550] sm:$0xf]
  %v1552 = vunpack.c.l.bf16 %v1551
  %v1553 = vunpack.c.h.bf16 %v1551
  %s1554 = scalar_lea.vmem %s1, 1548
  %s1556 = ssub.s32 0, 4
  %s1557 = scalar_lea.vmem %s1554, %s1556
  %v1558 = vpack.c.bf16 %v1552, %v57
  %1559 = vst [vmem:[%s1557] sm:$0xff] %v1558
  %s1560 = scalar_lea.vmem %s0, 1804
  %v1561 = vld [vmem:[%s1560] sm:$0xf]
  %v1562 = vunpack.c.l.bf16 %v1561
  %v1563 = vunpack.c.h.bf16 %v1561
  %s1564 = scalar_lea.vmem %s1, 268
  %s1566 = ssub.s32 0, 4
  %s1567 = scalar_lea.vmem %s1564, %s1566
  %v1568 = vpack.c.bf16 %v1562, %v62
  %1569 = vst [vmem:[%s1567] sm:$0xff] %v1568
  %s1570 = scalar_lea.vmem %s0, 1036
  %v1571 = vld [vmem:[%s1570] sm:$0xf]
  %v1572 = vunpack.c.l.bf16 %v1571
  %v1573 = vunpack.c.h.bf16 %v1571
  %s1574 = scalar_lea.vmem %s1, 1036
  %s1576 = ssub.s32 0, 4
  %s1577 = scalar_lea.vmem %s1574, %s1576
  %v1578 = vpack.c.bf16 %v1572, %v67
  %1579 = vst [vmem:[%s1577] sm:$0xff] %v1578
  %s1580 = scalar_lea.vmem %s0, 268
  %v1581 = vld [vmem:[%s1580] sm:$0xf]
  %v1582 = vunpack.c.l.bf16 %v1581
  %v1583 = vunpack.c.h.bf16 %v1581
  %s1584 = scalar_lea.vmem %s1, 1804
  %s1586 = ssub.s32 0, 4
  %s1587 = scalar_lea.vmem %s1584, %s1586
  %v1588 = vpack.c.bf16 %v1582, %v72
  %1589 = vst [vmem:[%s1587] sm:$0xff] %v1588
  %s1590 = scalar_lea.vmem %s0, 1548
  %v1591 = vld [vmem:[%s1590] sm:$0xf]
  %v1592 = vunpack.c.l.bf16 %v1591
  %v1593 = vunpack.c.h.bf16 %v1591
  %s1594 = scalar_lea.vmem %s1, 524
  %s1596 = ssub.s32 0, 4
  %s1597 = scalar_lea.vmem %s1594, %s1596
  %v1598 = vpack.c.bf16 %v1592, %v77
  %1599 = vst [vmem:[%s1597] sm:$0xff] %v1598
  %s1600 = scalar_lea.vmem %s0, 780
  %v1601 = vld [vmem:[%s1600] sm:$0xf]
  %v1602 = vunpack.c.l.bf16 %v1601
  %v1603 = vunpack.c.h.bf16 %v1601
  %s1604 = scalar_lea.vmem %s1, 1292
  %s1606 = ssub.s32 0, 4
  %s1607 = scalar_lea.vmem %s1604, %s1606
  %v1608 = vpack.c.bf16 %v1602, %v82
  %1609 = vst [vmem:[%s1607] sm:$0xff] %v1608
  %s1610 = scalar_lea.vmem %s0, 12
  %v1611 = vld [vmem:[%s1610] sm:$0xf]
  %v1612 = vunpack.c.l.bf16 %v1611
  %v1613 = vunpack.c.h.bf16 %v1611
  %s1614 = scalar_lea.vmem %s1, 2060
  %s1616 = ssub.s32 0, 4
  %s1617 = scalar_lea.vmem %s1614, %s1616
  %v1618 = vpack.c.bf16 %v1612, %v87
  %1619 = vst [vmem:[%s1617] sm:$0xff] %v1618
  %s1620 = scalar_lea.vmem %s0, 2068
  %v1621 = vld [vmem:[%s1620] sm:$0xf]
  %v1622 = vunpack.c.l.bf16 %v1621
  %v1623 = vunpack.c.h.bf16 %v1621
  %s1624 = scalar_lea.vmem %s1, 20
  %s1626 = ssub.s32 0, 4
  %s1627 = scalar_lea.vmem %s1624, %s1626
  %v1628 = vpack.c.bf16 %v1622, %v92
  %1629 = vst [vmem:[%s1627] sm:$0xff] %v1628
  %s1630 = scalar_lea.vmem %s0, 1300
  %v1631 = vld [vmem:[%s1630] sm:$0xf]
  %v1632 = vunpack.c.l.bf16 %v1631
  %v1633 = vunpack.c.h.bf16 %v1631
  %s1634 = scalar_lea.vmem %s1, 788
  %s1636 = ssub.s32 0, 4
  %s1637 = scalar_lea.vmem %s1634, %s1636
  %v1638 = vpack.c.bf16 %v1632, %v97
  %1639 = vst [vmem:[%s1637] sm:$0xff] %v1638
  %s1640 = scalar_lea.vmem %s0, 532
  %v1641 = vld [vmem:[%s1640] sm:$0xf]
  %v1642 = vunpack.c.l.bf16 %v1641
  %v1643 = vunpack.c.h.bf16 %v1641
  %s1644 = scalar_lea.vmem %s1, 1556
  %s1646 = ssub.s32 0, 4
  %s1647 = scalar_lea.vmem %s1644, %s1646
  %v1648 = vpack.c.bf16 %v1642, %v102
  %1649 = vst [vmem:[%s1647] sm:$0xff] %v1648
  %s1650 = scalar_lea.vmem %s0, 1812
  %v1651 = vld [vmem:[%s1650] sm:$0xf]
  %v1652 = vunpack.c.l.bf16 %v1651
  %v1653 = vunpack.c.h.bf16 %v1651
  %s1654 = scalar_lea.vmem %s1, 276
  %s1656 = ssub.s32 0, 4
  %s1657 = scalar_lea.vmem %s1654, %s1656
  %v1658 = vpack.c.bf16 %v1652, %v107
  %1659 = vst [vmem:[%s1657] sm:$0xff] %v1658
  %s1660 = scalar_lea.vmem %s0, 1044
  %v1661 = vld [vmem:[%s1660] sm:$0xf]
  %v1662 = vunpack.c.l.bf16 %v1661
  %v1663 = vunpack.c.h.bf16 %v1661
  %s1664 = scalar_lea.vmem %s1, 1044
  %s1666 = ssub.s32 0, 4
  %s1667 = scalar_lea.vmem %s1664, %s1666
  %v1668 = vpack.c.bf16 %v1662, %v112
  %1669 = vst [vmem:[%s1667] sm:$0xff] %v1668
  %s1670 = scalar_lea.vmem %s0, 276
  %v1671 = vld [vmem:[%s1670] sm:$0xf]
  %v1672 = vunpack.c.l.bf16 %v1671
  %v1673 = vunpack.c.h.bf16 %v1671
  %s1674 = scalar_lea.vmem %s1, 1812
  %s1676 = ssub.s32 0, 4
  %s1677 = scalar_lea.vmem %s1674, %s1676
  %v1678 = vpack.c.bf16 %v1672, %v117
  %1679 = vst [vmem:[%s1677] sm:$0xff] %v1678
  %s1680 = scalar_lea.vmem %s0, 1556
  %v1681 = vld [vmem:[%s1680] sm:$0xf]
  %v1682 = vunpack.c.l.bf16 %v1681
  %v1683 = vunpack.c.h.bf16 %v1681
  %s1684 = scalar_lea.vmem %s1, 532
  %s1686 = ssub.s32 0, 4
  %s1687 = scalar_lea.vmem %s1684, %s1686
  %v1688 = vpack.c.bf16 %v1682, %v122
  %1689 = vst [vmem:[%s1687] sm:$0xff] %v1688
  %s1690 = scalar_lea.vmem %s0, 788
  %v1691 = vld [vmem:[%s1690] sm:$0xf]
  %v1692 = vunpack.c.l.bf16 %v1691
  %v1693 = vunpack.c.h.bf16 %v1691
  %s1694 = scalar_lea.vmem %s1, 1300
  %s1696 = ssub.s32 0, 4
  %s1697 = scalar_lea.vmem %s1694, %s1696
  %v1698 = vpack.c.bf16 %v1692, %v127
  %1699 = vst [vmem:[%s1697] sm:$0xff] %v1698
  %s1700 = scalar_lea.vmem %s0, 20
  %v1701 = vld [vmem:[%s1700] sm:$0xf]
  %v1702 = vunpack.c.l.bf16 %v1701
  %v1703 = vunpack.c.h.bf16 %v1701
  %s1704 = scalar_lea.vmem %s1, 2068
  %s1706 = ssub.s32 0, 4
  %s1707 = scalar_lea.vmem %s1704, %s1706
  %v1708 = vpack.c.bf16 %v1702, %v132
  %1709 = vst [vmem:[%s1707] sm:$0xff] %v1708
  %s1710 = scalar_lea.vmem %s0, 2076
  %v1711 = vld [vmem:[%s1710] sm:$0xf]
  %v1712 = vunpack.c.l.bf16 %v1711
  %v1713 = vunpack.c.h.bf16 %v1711
  %s1714 = scalar_lea.vmem %s1, 28
  %s1716 = ssub.s32 0, 4
  %s1717 = scalar_lea.vmem %s1714, %s1716
  %v1718 = vpack.c.bf16 %v1712, %v137
  %1719 = vst [vmem:[%s1717] sm:$0xff] %v1718
  %s1720 = scalar_lea.vmem %s0, 1308
  %v1721 = vld [vmem:[%s1720] sm:$0xf]
  %v1722 = vunpack.c.l.bf16 %v1721
  %v1723 = vunpack.c.h.bf16 %v1721
  %s1724 = scalar_lea.vmem %s1, 796
  %s1726 = ssub.s32 0, 4
  %s1727 = scalar_lea.vmem %s1724, %s1726
  %v1728 = vpack.c.bf16 %v1722, %v142
  %1729 = vst [vmem:[%s1727] sm:$0xff] %v1728
  %s1730 = scalar_lea.vmem %s0, 540
  %v1731 = vld [vmem:[%s1730] sm:$0xf]
  %v1732 = vunpack.c.l.bf16 %v1731
  %v1733 = vunpack.c.h.bf16 %v1731
  %s1734 = scalar_lea.vmem %s1, 1564
  %s1736 = ssub.s32 0, 4
  %s1737 = scalar_lea.vmem %s1734, %s1736
  %v1738 = vpack.c.bf16 %v1732, %v147
  %1739 = vst [vmem:[%s1737] sm:$0xff] %v1738
  %s1740 = scalar_lea.vmem %s0, 1820
  %v1741 = vld [vmem:[%s1740] sm:$0xf]
  %v1742 = vunpack.c.l.bf16 %v1741
  %v1743 = vunpack.c.h.bf16 %v1741
  %s1744 = scalar_lea.vmem %s1, 284
  %s1746 = ssub.s32 0, 4
  %s1747 = scalar_lea.vmem %s1744, %s1746
  %v1748 = vpack.c.bf16 %v1742, %v152
  %1749 = vst [vmem:[%s1747] sm:$0xff] %v1748
  %s1750 = scalar_lea.vmem %s0, 1052
  %v1751 = vld [vmem:[%s1750] sm:$0xf]
  %v1752 = vunpack.c.l.bf16 %v1751
  %v1753 = vunpack.c.h.bf16 %v1751
  %s1754 = scalar_lea.vmem %s1, 1052
  %s1756 = ssub.s32 0, 4
  %s1757 = scalar_lea.vmem %s1754, %s1756
  %v1758 = vpack.c.bf16 %v1752, %v157
  %1759 = vst [vmem:[%s1757] sm:$0xff] %v1758
  %s1760 = scalar_lea.vmem %s0, 284
  %v1761 = vld [vmem:[%s1760] sm:$0xf]
  %v1762 = vunpack.c.l.bf16 %v1761
  %v1763 = vunpack.c.h.bf16 %v1761
  %s1764 = scalar_lea.vmem %s1, 1820
  %s1766 = ssub.s32 0, 4
  %s1767 = scalar_lea.vmem %s1764, %s1766
  %v1768 = vpack.c.bf16 %v1762, %v162
  %1769 = vst [vmem:[%s1767] sm:$0xff] %v1768
  %s1770 = scalar_lea.vmem %s0, 1564
  %v1771 = vld [vmem:[%s1770] sm:$0xf]
  %v1772 = vunpack.c.l.bf16 %v1771
  %v1773 = vunpack.c.h.bf16 %v1771
  %s1774 = scalar_lea.vmem %s1, 540
  %s1776 = ssub.s32 0, 4
  %s1777 = scalar_lea.vmem %s1774, %s1776
  %v1778 = vpack.c.bf16 %v1772, %v167
  %1779 = vst [vmem:[%s1777] sm:$0xff] %v1778
  %s1780 = scalar_lea.vmem %s0, 796
  %v1781 = vld [vmem:[%s1780] sm:$0xf]
  %v1782 = vunpack.c.l.bf16 %v1781
  %v1783 = vunpack.c.h.bf16 %v1781
  %s1784 = scalar_lea.vmem %s1, 1308
  %s1786 = ssub.s32 0, 4
  %s1787 = scalar_lea.vmem %s1784, %s1786
  %v1788 = vpack.c.bf16 %v1782, %v172
  %1789 = vst [vmem:[%s1787] sm:$0xff] %v1788
  %s1790 = scalar_lea.vmem %s0, 28
  %v1791 = vld [vmem:[%s1790] sm:$0xf]
  %v1792 = vunpack.c.l.bf16 %v1791
  %v1793 = vunpack.c.h.bf16 %v1791
  %s1794 = scalar_lea.vmem %s1, 2076
  %s1796 = ssub.s32 0, 4
  %s1797 = scalar_lea.vmem %s1794, %s1796
  %v1798 = vpack.c.bf16 %v1792, %v177
  %1799 = vst [vmem:[%s1797] sm:$0xff] %v1798
  %s1800 = scalar_lea.vmem %s0, 2084
  %v1801 = vld [vmem:[%s1800] sm:$0xf]
  %v1802 = vunpack.c.l.bf16 %v1801
  %v1803 = vunpack.c.h.bf16 %v1801
  %s1804 = scalar_lea.vmem %s1, 36
  %s1806 = ssub.s32 0, 4
  %s1807 = scalar_lea.vmem %s1804, %s1806
  %v1808 = vpack.c.bf16 %v1802, %v182
  %1809 = vst [vmem:[%s1807] sm:$0xff] %v1808
  %s1810 = scalar_lea.vmem %s0, 1316
  %v1811 = vld [vmem:[%s1810] sm:$0xf]
  %v1812 = vunpack.c.l.bf16 %v1811
  %v1813 = vunpack.c.h.bf16 %v1811
  %s1814 = scalar_lea.vmem %s1, 804
  %s1816 = ssub.s32 0, 4
  %s1817 = scalar_lea.vmem %s1814, %s1816
  %v1818 = vpack.c.bf16 %v1812, %v187
  %1819 = vst [vmem:[%s1817] sm:$0xff] %v1818
  %s1820 = scalar_lea.vmem %s0, 548
  %v1821 = vld [vmem:[%s1820] sm:$0xf]
  %v1822 = vunpack.c.l.bf16 %v1821
  %v1823 = vunpack.c.h.bf16 %v1821
  %s1824 = scalar_lea.vmem %s1, 1572
  %s1826 = ssub.s32 0, 4
  %s1827 = scalar_lea.vmem %s1824, %s1826
  %v1828 = vpack.c.bf16 %v1822, %v192
  %1829 = vst [vmem:[%s1827] sm:$0xff] %v1828
  %s1830 = scalar_lea.vmem %s0, 1828
  %v1831 = vld [vmem:[%s1830] sm:$0xf]
  %v1832 = vunpack.c.l.bf16 %v1831
  %v1833 = vunpack.c.h.bf16 %v1831
  %s1834 = scalar_lea.vmem %s1, 292
  %s1836 = ssub.s32 0, 4
  %s1837 = scalar_lea.vmem %s1834, %s1836
  %v1838 = vpack.c.bf16 %v1832, %v197
  %1839 = vst [vmem:[%s1837] sm:$0xff] %v1838
  %s1840 = scalar_lea.vmem %s0, 1060
  %v1841 = vld [vmem:[%s1840] sm:$0xf]
  %v1842 = vunpack.c.l.bf16 %v1841
  %v1843 = vunpack.c.h.bf16 %v1841
  %s1844 = scalar_lea.vmem %s1, 1060
  %s1846 = ssub.s32 0, 4
  %s1847 = scalar_lea.vmem %s1844, %s1846
  %v1848 = vpack.c.bf16 %v1842, %v202
  %1849 = vst [vmem:[%s1847] sm:$0xff] %v1848
  %s1850 = scalar_lea.vmem %s0, 292
  %v1851 = vld [vmem:[%s1850] sm:$0xf]
  %v1852 = vunpack.c.l.bf16 %v1851
  %v1853 = vunpack.c.h.bf16 %v1851
  %s1854 = scalar_lea.vmem %s1, 1828
  %s1856 = ssub.s32 0, 4
  %s1857 = scalar_lea.vmem %s1854, %s1856
  %v1858 = vpack.c.bf16 %v1852, %v207
  %1859 = vst [vmem:[%s1857] sm:$0xff] %v1858
  %s1860 = scalar_lea.vmem %s0, 1572
  %v1861 = vld [vmem:[%s1860] sm:$0xf]
  %v1862 = vunpack.c.l.bf16 %v1861
  %v1863 = vunpack.c.h.bf16 %v1861
  %s1864 = scalar_lea.vmem %s1, 548
  %s1866 = ssub.s32 0, 4
  %s1867 = scalar_lea.vmem %s1864, %s1866
  %v1868 = vpack.c.bf16 %v1862, %v212
  %1869 = vst [vmem:[%s1867] sm:$0xff] %v1868
  %s1870 = scalar_lea.vmem %s0, 804
  %v1871 = vld [vmem:[%s1870] sm:$0xf]
  %v1872 = vunpack.c.l.bf16 %v1871
  %v1873 = vunpack.c.h.bf16 %v1871
  %s1874 = scalar_lea.vmem %s1, 1316
  %s1876 = ssub.s32 0, 4
  %s1877 = scalar_lea.vmem %s1874, %s1876
  %v1878 = vpack.c.bf16 %v1872, %v217
  %1879 = vst [vmem:[%s1877] sm:$0xff] %v1878
  %s1880 = scalar_lea.vmem %s0, 36
  %v1881 = vld [vmem:[%s1880] sm:$0xf]
  %v1882 = vunpack.c.l.bf16 %v1881
  %v1883 = vunpack.c.h.bf16 %v1881
  %s1884 = scalar_lea.vmem %s1, 2084
  %s1886 = ssub.s32 0, 4
  %s1887 = scalar_lea.vmem %s1884, %s1886
  %v1888 = vpack.c.bf16 %v1882, %v222
  %1889 = vst [vmem:[%s1887] sm:$0xff] %v1888
  %s1890 = scalar_lea.vmem %s0, 2092
  %v1891 = vld [vmem:[%s1890] sm:$0xf]
  %v1892 = vunpack.c.l.bf16 %v1891
  %v1893 = vunpack.c.h.bf16 %v1891
  %s1894 = scalar_lea.vmem %s1, 44
  %s1896 = ssub.s32 0, 4
  %s1897 = scalar_lea.vmem %s1894, %s1896
  %v1898 = vpack.c.bf16 %v1892, %v227
  %1899 = vst [vmem:[%s1897] sm:$0xff] %v1898
  %s1900 = scalar_lea.vmem %s0, 1324
  %v1901 = vld [vmem:[%s1900] sm:$0xf]
  %v1902 = vunpack.c.l.bf16 %v1901
  %v1903 = vunpack.c.h.bf16 %v1901
  %s1904 = scalar_lea.vmem %s1, 812
  %s1906 = ssub.s32 0, 4
  %s1907 = scalar_lea.vmem %s1904, %s1906
  %v1908 = vpack.c.bf16 %v1902, %v232
  %1909 = vst [vmem:[%s1907] sm:$0xff] %v1908
  %s1910 = scalar_lea.vmem %s0, 556
  %v1911 = vld [vmem:[%s1910] sm:$0xf]
  %v1912 = vunpack.c.l.bf16 %v1911
  %v1913 = vunpack.c.h.bf16 %v1911
  %s1914 = scalar_lea.vmem %s1, 1580
  %s1916 = ssub.s32 0, 4
  %s1917 = scalar_lea.vmem %s1914, %s1916
  %v1918 = vpack.c.bf16 %v1912, %v237
  %1919 = vst [vmem:[%s1917] sm:$0xff] %v1918
  %s1920 = scalar_lea.vmem %s0, 1836
  %v1921 = vld [vmem:[%s1920] sm:$0xf]
  %v1922 = vunpack.c.l.bf16 %v1921
  %v1923 = vunpack.c.h.bf16 %v1921
  %s1924 = scalar_lea.vmem %s1, 300
  %s1926 = ssub.s32 0, 4
  %s1927 = scalar_lea.vmem %s1924, %s1926
  %v1928 = vpack.c.bf16 %v1922, %v242
  %1929 = vst [vmem:[%s1927] sm:$0xff] %v1928
  %s1930 = scalar_lea.vmem %s0, 1068
  %v1931 = vld [vmem:[%s1930] sm:$0xf]
  %v1932 = vunpack.c.l.bf16 %v1931
  %v1933 = vunpack.c.h.bf16 %v1931
  %s1934 = scalar_lea.vmem %s1, 1068
  %s1936 = ssub.s32 0, 4
  %s1937 = scalar_lea.vmem %s1934, %s1936
  %v1938 = vpack.c.bf16 %v1932, %v247
  %1939 = vst [vmem:[%s1937] sm:$0xff] %v1938
  %s1940 = scalar_lea.vmem %s0, 300
  %v1941 = vld [vmem:[%s1940] sm:$0xf]
  %v1942 = vunpack.c.l.bf16 %v1941
  %v1943 = vunpack.c.h.bf16 %v1941
  %s1944 = scalar_lea.vmem %s1, 1836
  %s1946 = ssub.s32 0, 4
  %s1947 = scalar_lea.vmem %s1944, %s1946
  %v1948 = vpack.c.bf16 %v1942, %v252
  %1949 = vst [vmem:[%s1947] sm:$0xff] %v1948
  %s1950 = scalar_lea.vmem %s0, 1580
  %v1951 = vld [vmem:[%s1950] sm:$0xf]
  %v1952 = vunpack.c.l.bf16 %v1951
  %v1953 = vunpack.c.h.bf16 %v1951
  %s1954 = scalar_lea.vmem %s1, 556
  %s1956 = ssub.s32 0, 4
  %s1957 = scalar_lea.vmem %s1954, %s1956
  %v1958 = vpack.c.bf16 %v1952, %v257
  %1959 = vst [vmem:[%s1957] sm:$0xff] %v1958
  %s1960 = scalar_lea.vmem %s0, 812
  %v1961 = vld [vmem:[%s1960] sm:$0xf]
  %v1962 = vunpack.c.l.bf16 %v1961
  %v1963 = vunpack.c.h.bf16 %v1961
  %s1964 = scalar_lea.vmem %s1, 1324
  %s1966 = ssub.s32 0, 4
  %s1967 = scalar_lea.vmem %s1964, %s1966
  %v1968 = vpack.c.bf16 %v1962, %v262
  %1969 = vst [vmem:[%s1967] sm:$0xff] %v1968
  %s1970 = scalar_lea.vmem %s0, 44
  %v1971 = vld [vmem:[%s1970] sm:$0xf]
  %v1972 = vunpack.c.l.bf16 %v1971
  %v1973 = vunpack.c.h.bf16 %v1971
  %s1974 = scalar_lea.vmem %s1, 2092
  %s1976 = ssub.s32 0, 4
  %s1977 = scalar_lea.vmem %s1974, %s1976
  %v1978 = vpack.c.bf16 %v1972, %v267
  %1979 = vst [vmem:[%s1977] sm:$0xff] %v1978
  %s1980 = scalar_lea.vmem %s0, 2100
  %v1981 = vld [vmem:[%s1980] sm:$0xf]
  %v1982 = vunpack.c.l.bf16 %v1981
  %v1983 = vunpack.c.h.bf16 %v1981
  %s1984 = scalar_lea.vmem %s1, 52
  %s1986 = ssub.s32 0, 4
  %s1987 = scalar_lea.vmem %s1984, %s1986
  %v1988 = vpack.c.bf16 %v1982, %v272
  %1989 = vst [vmem:[%s1987] sm:$0xff] %v1988
  %s1990 = scalar_lea.vmem %s0, 1332
  %v1991 = vld [vmem:[%s1990] sm:$0xf]
  %v1992 = vunpack.c.l.bf16 %v1991
  %v1993 = vunpack.c.h.bf16 %v1991
  %s1994 = scalar_lea.vmem %s1, 820
  %s1996 = ssub.s32 0, 4
  %s1997 = scalar_lea.vmem %s1994, %s1996
  %v1998 = vpack.c.bf16 %v1992, %v277
  %1999 = vst [vmem:[%s1997] sm:$0xff] %v1998
  %s2000 = scalar_lea.vmem %s0, 564
  %v2001 = vld [vmem:[%s2000] sm:$0xf]
  %v2002 = vunpack.c.l.bf16 %v2001
  %v2003 = vunpack.c.h.bf16 %v2001
  %s2004 = scalar_lea.vmem %s1, 1588
  %s2006 = ssub.s32 0, 4
  %s2007 = scalar_lea.vmem %s2004, %s2006
  %v2008 = vpack.c.bf16 %v2002, %v282
  %2009 = vst [vmem:[%s2007] sm:$0xff] %v2008
  %s2010 = scalar_lea.vmem %s0, 1844
  %v2011 = vld [vmem:[%s2010] sm:$0xf]
  %v2012 = vunpack.c.l.bf16 %v2011
  %v2013 = vunpack.c.h.bf16 %v2011
  %s2014 = scalar_lea.vmem %s1, 308
  %s2016 = ssub.s32 0, 4
  %s2017 = scalar_lea.vmem %s2014, %s2016
  %v2018 = vpack.c.bf16 %v2012, %v287
  %2019 = vst [vmem:[%s2017] sm:$0xff] %v2018
  %s2020 = scalar_lea.vmem %s0, 1076
  %v2021 = vld [vmem:[%s2020] sm:$0xf]
  %v2022 = vunpack.c.l.bf16 %v2021
  %v2023 = vunpack.c.h.bf16 %v2021
  %s2024 = scalar_lea.vmem %s1, 1076
  %s2026 = ssub.s32 0, 4
  %s2027 = scalar_lea.vmem %s2024, %s2026
  %v2028 = vpack.c.bf16 %v2022, %v292
  %2029 = vst [vmem:[%s2027] sm:$0xff] %v2028
  %s2030 = scalar_lea.vmem %s0, 308
  %v2031 = vld [vmem:[%s2030] sm:$0xf]
  %v2032 = vunpack.c.l.bf16 %v2031
  %v2033 = vunpack.c.h.bf16 %v2031
  %s2034 = scalar_lea.vmem %s1, 1844
  %s2036 = ssub.s32 0, 4
  %s2037 = scalar_lea.vmem %s2034, %s2036
  %v2038 = vpack.c.bf16 %v2032, %v297
  %2039 = vst [vmem:[%s2037] sm:$0xff] %v2038
  %s2040 = scalar_lea.vmem %s0, 1588
  %v2041 = vld [vmem:[%s2040] sm:$0xf]
  %v2042 = vunpack.c.l.bf16 %v2041
  %v2043 = vunpack.c.h.bf16 %v2041
  %s2044 = scalar_lea.vmem %s1, 564
  %s2046 = ssub.s32 0, 4
  %s2047 = scalar_lea.vmem %s2044, %s2046
  %v2048 = vpack.c.bf16 %v2042, %v302
  %2049 = vst [vmem:[%s2047] sm:$0xff] %v2048
  %s2050 = scalar_lea.vmem %s0, 820
  %v2051 = vld [vmem:[%s2050] sm:$0xf]
  %v2052 = vunpack.c.l.bf16 %v2051
  %v2053 = vunpack.c.h.bf16 %v2051
  %s2054 = scalar_lea.vmem %s1, 1332
  %s2056 = ssub.s32 0, 4
  %s2057 = scalar_lea.vmem %s2054, %s2056
  %v2058 = vpack.c.bf16 %v2052, %v307
  %2059 = vst [vmem:[%s2057] sm:$0xff] %v2058
  %s2060 = scalar_lea.vmem %s0, 52
  %v2061 = vld [vmem:[%s2060] sm:$0xf]
  %v2062 = vunpack.c.l.bf16 %v2061
  %v2063 = vunpack.c.h.bf16 %v2061
  %s2064 = scalar_lea.vmem %s1, 2100
  %s2066 = ssub.s32 0, 4
  %s2067 = scalar_lea.vmem %s2064, %s2066
  %v2068 = vpack.c.bf16 %v2062, %v312
  %2069 = vst [vmem:[%s2067] sm:$0xff] %v2068
  %s2070 = scalar_lea.vmem %s0, 2108
  %v2071 = vld [vmem:[%s2070] sm:$0xf]
  %v2072 = vunpack.c.l.bf16 %v2071
  %v2073 = vunpack.c.h.bf16 %v2071
  %s2074 = scalar_lea.vmem %s1, 60
  %s2076 = ssub.s32 0, 4
  %s2077 = scalar_lea.vmem %s2074, %s2076
  %v2078 = vpack.c.bf16 %v2072, %v317
  %2079 = vst [vmem:[%s2077] sm:$0xff] %v2078
  %s2080 = scalar_lea.vmem %s0, 1340
  %v2081 = vld [vmem:[%s2080] sm:$0xf]
  %v2082 = vunpack.c.l.bf16 %v2081
  %v2083 = vunpack.c.h.bf16 %v2081
  %s2084 = scalar_lea.vmem %s1, 828
  %s2086 = ssub.s32 0, 4
  %s2087 = scalar_lea.vmem %s2084, %s2086
  %v2088 = vpack.c.bf16 %v2082, %v322
  %2089 = vst [vmem:[%s2087] sm:$0xff] %v2088
  %s2090 = scalar_lea.vmem %s0, 572
  %v2091 = vld [vmem:[%s2090] sm:$0xf]
  %v2092 = vunpack.c.l.bf16 %v2091
  %v2093 = vunpack.c.h.bf16 %v2091
  %s2094 = scalar_lea.vmem %s1, 1596
  %s2096 = ssub.s32 0, 4
  %s2097 = scalar_lea.vmem %s2094, %s2096
  %v2098 = vpack.c.bf16 %v2092, %v327
  %2099 = vst [vmem:[%s2097] sm:$0xff] %v2098
  %s2100 = scalar_lea.vmem %s0, 1852
  %v2101 = vld [vmem:[%s2100] sm:$0xf]
  %v2102 = vunpack.c.l.bf16 %v2101
  %v2103 = vunpack.c.h.bf16 %v2101
  %s2104 = scalar_lea.vmem %s1, 316
  %s2106 = ssub.s32 0, 4
  %s2107 = scalar_lea.vmem %s2104, %s2106
  %v2108 = vpack.c.bf16 %v2102, %v332
  %2109 = vst [vmem:[%s2107] sm:$0xff] %v2108
  %s2110 = scalar_lea.vmem %s0, 1084
  %v2111 = vld [vmem:[%s2110] sm:$0xf]
  %v2112 = vunpack.c.l.bf16 %v2111
  %v2113 = vunpack.c.h.bf16 %v2111
  %s2114 = scalar_lea.vmem %s1, 1084
  %s2116 = ssub.s32 0, 4
  %s2117 = scalar_lea.vmem %s2114, %s2116
  %v2118 = vpack.c.bf16 %v2112, %v337
  %2119 = vst [vmem:[%s2117] sm:$0xff] %v2118
  %s2120 = scalar_lea.vmem %s0, 316
  %v2121 = vld [vmem:[%s2120] sm:$0xf]
  %v2122 = vunpack.c.l.bf16 %v2121
  %v2123 = vunpack.c.h.bf16 %v2121
  %s2124 = scalar_lea.vmem %s1, 1852
  %s2126 = ssub.s32 0, 4
  %s2127 = scalar_lea.vmem %s2124, %s2126
  %v2128 = vpack.c.bf16 %v2122, %v342
  %2129 = vst [vmem:[%s2127] sm:$0xff] %v2128
  %s2130 = scalar_lea.vmem %s0, 1596
  %v2131 = vld [vmem:[%s2130] sm:$0xf]
  %v2132 = vunpack.c.l.bf16 %v2131
  %v2133 = vunpack.c.h.bf16 %v2131
  %s2134 = scalar_lea.vmem %s1, 572
  %s2136 = ssub.s32 0, 4
  %s2137 = scalar_lea.vmem %s2134, %s2136
  %v2138 = vpack.c.bf16 %v2132, %v347
  %2139 = vst [vmem:[%s2137] sm:$0xff] %v2138
  %s2140 = scalar_lea.vmem %s0, 828
  %v2141 = vld [vmem:[%s2140] sm:$0xf]
  %v2142 = vunpack.c.l.bf16 %v2141
  %v2143 = vunpack.c.h.bf16 %v2141
  %s2144 = scalar_lea.vmem %s1, 1340
  %s2146 = ssub.s32 0, 4
  %s2147 = scalar_lea.vmem %s2144, %s2146
  %v2148 = vpack.c.bf16 %v2142, %v352
  %2149 = vst [vmem:[%s2147] sm:$0xff] %v2148
  %s2150 = scalar_lea.vmem %s0, 60
  %v2151 = vld [vmem:[%s2150] sm:$0xf]
  %v2152 = vunpack.c.l.bf16 %v2151
  %v2153 = vunpack.c.h.bf16 %v2151
  %s2154 = scalar_lea.vmem %s1, 2108
  %s2156 = ssub.s32 0, 4
  %s2157 = scalar_lea.vmem %s2154, %s2156
  %v2158 = vpack.c.bf16 %v2152, %v357
  %2159 = vst [vmem:[%s2157] sm:$0xff] %v2158
  %s2160 = scalar_lea.vmem %s0, 2116
  %v2161 = vld [vmem:[%s2160] sm:$0xf]
  %v2162 = vunpack.c.l.bf16 %v2161
  %v2163 = vunpack.c.h.bf16 %v2161
  %s2164 = scalar_lea.vmem %s1, 68
  %s2166 = ssub.s32 0, 4
  %s2167 = scalar_lea.vmem %s2164, %s2166
  %v2168 = vpack.c.bf16 %v2162, %v362
  %2169 = vst [vmem:[%s2167] sm:$0xff] %v2168
  %s2170 = scalar_lea.vmem %s0, 1348
  %v2171 = vld [vmem:[%s2170] sm:$0xf]
  %v2172 = vunpack.c.l.bf16 %v2171
  %v2173 = vunpack.c.h.bf16 %v2171
  %s2174 = scalar_lea.vmem %s1, 836
  %s2176 = ssub.s32 0, 4
  %s2177 = scalar_lea.vmem %s2174, %s2176
  %v2178 = vpack.c.bf16 %v2172, %v367
  %2179 = vst [vmem:[%s2177] sm:$0xff] %v2178
  %s2180 = scalar_lea.vmem %s0, 580
  %v2181 = vld [vmem:[%s2180] sm:$0xf]
  %v2182 = vunpack.c.l.bf16 %v2181
  %v2183 = vunpack.c.h.bf16 %v2181
  %s2184 = scalar_lea.vmem %s1, 1604
  %s2186 = ssub.s32 0, 4
  %s2187 = scalar_lea.vmem %s2184, %s2186
  %v2188 = vpack.c.bf16 %v2182, %v372
  %2189 = vst [vmem:[%s2187] sm:$0xff] %v2188
  %s2190 = scalar_lea.vmem %s0, 1860
  %v2191 = vld [vmem:[%s2190] sm:$0xf]
  %v2192 = vunpack.c.l.bf16 %v2191
  %v2193 = vunpack.c.h.bf16 %v2191
  %s2194 = scalar_lea.vmem %s1, 324
  %s2196 = ssub.s32 0, 4
  %s2197 = scalar_lea.vmem %s2194, %s2196
  %v2198 = vpack.c.bf16 %v2192, %v377
  %2199 = vst [vmem:[%s2197] sm:$0xff] %v2198
  %s2200 = scalar_lea.vmem %s0, 1092
  %v2201 = vld [vmem:[%s2200] sm:$0xf]
  %v2202 = vunpack.c.l.bf16 %v2201
  %v2203 = vunpack.c.h.bf16 %v2201
  %s2204 = scalar_lea.vmem %s1, 1092
  %s2206 = ssub.s32 0, 4
  %s2207 = scalar_lea.vmem %s2204, %s2206
  %v2208 = vpack.c.bf16 %v2202, %v382
  %2209 = vst [vmem:[%s2207] sm:$0xff] %v2208
  %s2210 = scalar_lea.vmem %s0, 324
  %v2211 = vld [vmem:[%s2210] sm:$0xf]
  %v2212 = vunpack.c.l.bf16 %v2211
  %v2213 = vunpack.c.h.bf16 %v2211
  %s2214 = scalar_lea.vmem %s1, 1860
  %s2216 = ssub.s32 0, 4
  %s2217 = scalar_lea.vmem %s2214, %s2216
  %v2218 = vpack.c.bf16 %v2212, %v387
  %2219 = vst [vmem:[%s2217] sm:$0xff] %v2218
  %s2220 = scalar_lea.vmem %s0, 1604
  %v2221 = vld [vmem:[%s2220] sm:$0xf]
  %v2222 = vunpack.c.l.bf16 %v2221
  %v2223 = vunpack.c.h.bf16 %v2221
  %s2224 = scalar_lea.vmem %s1, 580
  %s2226 = ssub.s32 0, 4
  %s2227 = scalar_lea.vmem %s2224, %s2226
  %v2228 = vpack.c.bf16 %v2222, %v392
  %2229 = vst [vmem:[%s2227] sm:$0xff] %v2228
  %s2230 = scalar_lea.vmem %s0, 836
  %v2231 = vld [vmem:[%s2230] sm:$0xf]
  %v2232 = vunpack.c.l.bf16 %v2231
  %v2233 = vunpack.c.h.bf16 %v2231
  %s2234 = scalar_lea.vmem %s1, 1348
  %s2236 = ssub.s32 0, 4
  %s2237 = scalar_lea.vmem %s2234, %s2236
  %v2238 = vpack.c.bf16 %v2232, %v397
  %2239 = vst [vmem:[%s2237] sm:$0xff] %v2238
  %s2240 = scalar_lea.vmem %s0, 68
  %v2241 = vld [vmem:[%s2240] sm:$0xf]
  %v2242 = vunpack.c.l.bf16 %v2241
  %v2243 = vunpack.c.h.bf16 %v2241
  %s2244 = scalar_lea.vmem %s1, 2116
  %s2246 = ssub.s32 0, 4
  %s2247 = scalar_lea.vmem %s2244, %s2246
  %v2248 = vpack.c.bf16 %v2242, %v402
  %2249 = vst [vmem:[%s2247] sm:$0xff] %v2248
  %s2250 = scalar_lea.vmem %s0, 2124
  %v2251 = vld [vmem:[%s2250] sm:$0xf]
  %v2252 = vunpack.c.l.bf16 %v2251
  %v2253 = vunpack.c.h.bf16 %v2251
  %s2254 = scalar_lea.vmem %s1, 76
  %s2256 = ssub.s32 0, 4
  %s2257 = scalar_lea.vmem %s2254, %s2256
  %v2258 = vpack.c.bf16 %v2252, %v407
  %2259 = vst [vmem:[%s2257] sm:$0xff] %v2258
  %s2260 = scalar_lea.vmem %s0, 1356
  %v2261 = vld [vmem:[%s2260] sm:$0xf]
  %v2262 = vunpack.c.l.bf16 %v2261
  %v2263 = vunpack.c.h.bf16 %v2261
  %s2264 = scalar_lea.vmem %s1, 844
  %s2266 = ssub.s32 0, 4
  %s2267 = scalar_lea.vmem %s2264, %s2266
  %v2268 = vpack.c.bf16 %v2262, %v412
  %2269 = vst [vmem:[%s2267] sm:$0xff] %v2268
  %s2270 = scalar_lea.vmem %s0, 588
  %v2271 = vld [vmem:[%s2270] sm:$0xf]
  %v2272 = vunpack.c.l.bf16 %v2271
  %v2273 = vunpack.c.h.bf16 %v2271
  %s2274 = scalar_lea.vmem %s1, 1612
  %s2276 = ssub.s32 0, 4
  %s2277 = scalar_lea.vmem %s2274, %s2276
  %v2278 = vpack.c.bf16 %v2272, %v417
  %2279 = vst [vmem:[%s2277] sm:$0xff] %v2278
  %s2280 = scalar_lea.vmem %s0, 1868
  %v2281 = vld [vmem:[%s2280] sm:$0xf]
  %v2282 = vunpack.c.l.bf16 %v2281
  %v2283 = vunpack.c.h.bf16 %v2281
  %s2284 = scalar_lea.vmem %s1, 332
  %s2286 = ssub.s32 0, 4
  %s2287 = scalar_lea.vmem %s2284, %s2286
  %v2288 = vpack.c.bf16 %v2282, %v422
  %2289 = vst [vmem:[%s2287] sm:$0xff] %v2288
  %s2290 = scalar_lea.vmem %s0, 1100
  %v2291 = vld [vmem:[%s2290] sm:$0xf]
  %v2292 = vunpack.c.l.bf16 %v2291
  %v2293 = vunpack.c.h.bf16 %v2291
  %s2294 = scalar_lea.vmem %s1, 1100
  %s2296 = ssub.s32 0, 4
  %s2297 = scalar_lea.vmem %s2294, %s2296
  %v2298 = vpack.c.bf16 %v2292, %v427
  %2299 = vst [vmem:[%s2297] sm:$0xff] %v2298
  %s2300 = scalar_lea.vmem %s0, 332
  %v2301 = vld [vmem:[%s2300] sm:$0xf]
  %v2302 = vunpack.c.l.bf16 %v2301
  %v2303 = vunpack.c.h.bf16 %v2301
  %s2304 = scalar_lea.vmem %s1, 1868
  %s2306 = ssub.s32 0, 4
  %s2307 = scalar_lea.vmem %s2304, %s2306
  %v2308 = vpack.c.bf16 %v2302, %v432
  %2309 = vst [vmem:[%s2307] sm:$0xff] %v2308
  %s2310 = scalar_lea.vmem %s0, 1612
  %v2311 = vld [vmem:[%s2310] sm:$0xf]
  %v2312 = vunpack.c.l.bf16 %v2311
  %v2313 = vunpack.c.h.bf16 %v2311
  %s2314 = scalar_lea.vmem %s1, 588
  %s2316 = ssub.s32 0, 4
  %s2317 = scalar_lea.vmem %s2314, %s2316
  %v2318 = vpack.c.bf16 %v2312, %v437
  %2319 = vst [vmem:[%s2317] sm:$0xff] %v2318
  %s2320 = scalar_lea.vmem %s0, 844
  %v2321 = vld [vmem:[%s2320] sm:$0xf]
  %v2322 = vunpack.c.l.bf16 %v2321
  %v2323 = vunpack.c.h.bf16 %v2321
  %s2324 = scalar_lea.vmem %s1, 1356
  %s2326 = ssub.s32 0, 4
  %s2327 = scalar_lea.vmem %s2324, %s2326
  %v2328 = vpack.c.bf16 %v2322, %v442
  %2329 = vst [vmem:[%s2327] sm:$0xff] %v2328
  %s2330 = scalar_lea.vmem %s0, 76
  %v2331 = vld [vmem:[%s2330] sm:$0xf]
  %v2332 = vunpack.c.l.bf16 %v2331
  %v2333 = vunpack.c.h.bf16 %v2331
  %s2334 = scalar_lea.vmem %s1, 2124
  %s2336 = ssub.s32 0, 4
  %s2337 = scalar_lea.vmem %s2334, %s2336
  %v2338 = vpack.c.bf16 %v2332, %v447
  %2339 = vst [vmem:[%s2337] sm:$0xff] %v2338
  %s2340 = scalar_lea.vmem %s0, 2132
  %v2341 = vld [vmem:[%s2340] sm:$0xf]
  %v2342 = vunpack.c.l.bf16 %v2341
  %v2343 = vunpack.c.h.bf16 %v2341
  %s2344 = scalar_lea.vmem %s1, 84
  %s2346 = ssub.s32 0, 4
  %s2347 = scalar_lea.vmem %s2344, %s2346
  %v2348 = vpack.c.bf16 %v2342, %v452
  %2349 = vst [vmem:[%s2347] sm:$0xff] %v2348
  %s2350 = scalar_lea.vmem %s0, 1364
  %v2351 = vld [vmem:[%s2350] sm:$0xf]
  %v2352 = vunpack.c.l.bf16 %v2351
  %v2353 = vunpack.c.h.bf16 %v2351
  %s2354 = scalar_lea.vmem %s1, 852
  %s2356 = ssub.s32 0, 4
  %s2357 = scalar_lea.vmem %s2354, %s2356
  %v2358 = vpack.c.bf16 %v2352, %v457
  %2359 = vst [vmem:[%s2357] sm:$0xff] %v2358
  %s2360 = scalar_lea.vmem %s0, 596
  %v2361 = vld [vmem:[%s2360] sm:$0xf]
  %v2362 = vunpack.c.l.bf16 %v2361
  %v2363 = vunpack.c.h.bf16 %v2361
  %s2364 = scalar_lea.vmem %s1, 1620
  %s2366 = ssub.s32 0, 4
  %s2367 = scalar_lea.vmem %s2364, %s2366
  %v2368 = vpack.c.bf16 %v2362, %v462
  %2369 = vst [vmem:[%s2367] sm:$0xff] %v2368
  %s2370 = scalar_lea.vmem %s0, 1876
  %v2371 = vld [vmem:[%s2370] sm:$0xf]
  %v2372 = vunpack.c.l.bf16 %v2371
  %v2373 = vunpack.c.h.bf16 %v2371
  %s2374 = scalar_lea.vmem %s1, 340
  %s2376 = ssub.s32 0, 4
  %s2377 = scalar_lea.vmem %s2374, %s2376
  %v2378 = vpack.c.bf16 %v2372, %v467
  %2379 = vst [vmem:[%s2377] sm:$0xff] %v2378
  %s2380 = scalar_lea.vmem %s0, 1108
  %v2381 = vld [vmem:[%s2380] sm:$0xf]
  %v2382 = vunpack.c.l.bf16 %v2381
  %v2383 = vunpack.c.h.bf16 %v2381
  %s2384 = scalar_lea.vmem %s1, 1108
  %s2386 = ssub.s32 0, 4
  %s2387 = scalar_lea.vmem %s2384, %s2386
  %v2388 = vpack.c.bf16 %v2382, %v472
  %2389 = vst [vmem:[%s2387] sm:$0xff] %v2388
  %s2390 = scalar_lea.vmem %s0, 340
  %v2391 = vld [vmem:[%s2390] sm:$0xf]
  %v2392 = vunpack.c.l.bf16 %v2391
  %v2393 = vunpack.c.h.bf16 %v2391
  %s2394 = scalar_lea.vmem %s1, 1876
  %s2396 = ssub.s32 0, 4
  %s2397 = scalar_lea.vmem %s2394, %s2396
  %v2398 = vpack.c.bf16 %v2392, %v477
  %2399 = vst [vmem:[%s2397] sm:$0xff] %v2398
  %s2400 = scalar_lea.vmem %s0, 1620
  %v2401 = vld [vmem:[%s2400] sm:$0xf]
  %v2402 = vunpack.c.l.bf16 %v2401
  %v2403 = vunpack.c.h.bf16 %v2401
  %s2404 = scalar_lea.vmem %s1, 596
  %s2406 = ssub.s32 0, 4
  %s2407 = scalar_lea.vmem %s2404, %s2406
  %v2408 = vpack.c.bf16 %v2402, %v482
  %2409 = vst [vmem:[%s2407] sm:$0xff] %v2408
  %s2410 = scalar_lea.vmem %s0, 852
  %v2411 = vld [vmem:[%s2410] sm:$0xf]
  %v2412 = vunpack.c.l.bf16 %v2411
  %v2413 = vunpack.c.h.bf16 %v2411
  %s2414 = scalar_lea.vmem %s1, 1364
  %s2416 = ssub.s32 0, 4
  %s2417 = scalar_lea.vmem %s2414, %s2416
  %v2418 = vpack.c.bf16 %v2412, %v487
  %2419 = vst [vmem:[%s2417] sm:$0xff] %v2418
  %s2420 = scalar_lea.vmem %s0, 84
  %v2421 = vld [vmem:[%s2420] sm:$0xf]
  %v2422 = vunpack.c.l.bf16 %v2421
  %v2423 = vunpack.c.h.bf16 %v2421
  %s2424 = scalar_lea.vmem %s1, 2132
  %s2426 = ssub.s32 0, 4
  %s2427 = scalar_lea.vmem %s2424, %s2426
  %v2428 = vpack.c.bf16 %v2422, %v492
  %2429 = vst [vmem:[%s2427] sm:$0xff] %v2428
  %s2430 = scalar_lea.vmem %s0, 2140
  %v2431 = vld [vmem:[%s2430] sm:$0xf]
  %v2432 = vunpack.c.l.bf16 %v2431
  %v2433 = vunpack.c.h.bf16 %v2431
  %s2434 = scalar_lea.vmem %s1, 92
  %s2436 = ssub.s32 0, 4
  %s2437 = scalar_lea.vmem %s2434, %s2436
  %v2438 = vpack.c.bf16 %v2432, %v497
  %2439 = vst [vmem:[%s2437] sm:$0xff] %v2438
  %s2440 = scalar_lea.vmem %s0, 1372
  %v2441 = vld [vmem:[%s2440] sm:$0xf]
  %v2442 = vunpack.c.l.bf16 %v2441
  %v2443 = vunpack.c.h.bf16 %v2441
  %s2444 = scalar_lea.vmem %s1, 860
  %s2446 = ssub.s32 0, 4
  %s2447 = scalar_lea.vmem %s2444, %s2446
  %v2448 = vpack.c.bf16 %v2442, %v502
  %2449 = vst [vmem:[%s2447] sm:$0xff] %v2448
  %s2450 = scalar_lea.vmem %s0, 604
  %v2451 = vld [vmem:[%s2450] sm:$0xf]
  %v2452 = vunpack.c.l.bf16 %v2451
  %v2453 = vunpack.c.h.bf16 %v2451
  %s2454 = scalar_lea.vmem %s1, 1628
  %s2456 = ssub.s32 0, 4
  %s2457 = scalar_lea.vmem %s2454, %s2456
  %v2458 = vpack.c.bf16 %v2452, %v507
  %2459 = vst [vmem:[%s2457] sm:$0xff] %v2458
  %s2460 = scalar_lea.vmem %s0, 1884
  %v2461 = vld [vmem:[%s2460] sm:$0xf]
  %v2462 = vunpack.c.l.bf16 %v2461
  %v2463 = vunpack.c.h.bf16 %v2461
  %s2464 = scalar_lea.vmem %s1, 348
  %s2466 = ssub.s32 0, 4
  %s2467 = scalar_lea.vmem %s2464, %s2466
  %v2468 = vpack.c.bf16 %v2462, %v512
  %2469 = vst [vmem:[%s2467] sm:$0xff] %v2468
  %s2470 = scalar_lea.vmem %s0, 1116
  %v2471 = vld [vmem:[%s2470] sm:$0xf]
  %v2472 = vunpack.c.l.bf16 %v2471
  %v2473 = vunpack.c.h.bf16 %v2471
  %s2474 = scalar_lea.vmem %s1, 1116
  %s2476 = ssub.s32 0, 4
  %s2477 = scalar_lea.vmem %s2474, %s2476
  %v2478 = vpack.c.bf16 %v2472, %v517
  %2479 = vst [vmem:[%s2477] sm:$0xff] %v2478
  %s2480 = scalar_lea.vmem %s0, 348
  %v2481 = vld [vmem:[%s2480] sm:$0xf]
  %v2482 = vunpack.c.l.bf16 %v2481
  %v2483 = vunpack.c.h.bf16 %v2481
  %s2484 = scalar_lea.vmem %s1, 1884
  %s2486 = ssub.s32 0, 4
  %s2487 = scalar_lea.vmem %s2484, %s2486
  %v2488 = vpack.c.bf16 %v2482, %v522
  %2489 = vst [vmem:[%s2487] sm:$0xff] %v2488
  %s2490 = scalar_lea.vmem %s0, 1628
  %v2491 = vld [vmem:[%s2490] sm:$0xf]
  %v2492 = vunpack.c.l.bf16 %v2491
  %v2493 = vunpack.c.h.bf16 %v2491
  %s2494 = scalar_lea.vmem %s1, 604
  %s2496 = ssub.s32 0, 4
  %s2497 = scalar_lea.vmem %s2494, %s2496
  %v2498 = vpack.c.bf16 %v2492, %v527
  %2499 = vst [vmem:[%s2497] sm:$0xff] %v2498
  %s2500 = scalar_lea.vmem %s0, 860
  %v2501 = vld [vmem:[%s2500] sm:$0xf]
  %v2502 = vunpack.c.l.bf16 %v2501
  %v2503 = vunpack.c.h.bf16 %v2501
  %s2504 = scalar_lea.vmem %s1, 1372
  %s2506 = ssub.s32 0, 4
  %s2507 = scalar_lea.vmem %s2504, %s2506
  %v2508 = vpack.c.bf16 %v2502, %v532
  %2509 = vst [vmem:[%s2507] sm:$0xff] %v2508
  %s2510 = scalar_lea.vmem %s0, 92
  %v2511 = vld [vmem:[%s2510] sm:$0xf]
  %v2512 = vunpack.c.l.bf16 %v2511
  %v2513 = vunpack.c.h.bf16 %v2511
  %s2514 = scalar_lea.vmem %s1, 2140
  %s2516 = ssub.s32 0, 4
  %s2517 = scalar_lea.vmem %s2514, %s2516
  %v2518 = vpack.c.bf16 %v2512, %v537
  %2519 = vst [vmem:[%s2517] sm:$0xff] %v2518
  %s2520 = scalar_lea.vmem %s0, 2148
  %v2521 = vld [vmem:[%s2520] sm:$0xf]
  %v2522 = vunpack.c.l.bf16 %v2521
  %v2523 = vunpack.c.h.bf16 %v2521
  %s2524 = scalar_lea.vmem %s1, 100
  %s2526 = ssub.s32 0, 4
  %s2527 = scalar_lea.vmem %s2524, %s2526
  %v2528 = vpack.c.bf16 %v2522, %v542
  %2529 = vst [vmem:[%s2527] sm:$0xff] %v2528
  %s2530 = scalar_lea.vmem %s0, 1380
  %v2531 = vld [vmem:[%s2530] sm:$0xf]
  %v2532 = vunpack.c.l.bf16 %v2531
  %v2533 = vunpack.c.h.bf16 %v2531
  %s2534 = scalar_lea.vmem %s1, 868
  %s2536 = ssub.s32 0, 4
  %s2537 = scalar_lea.vmem %s2534, %s2536
  %v2538 = vpack.c.bf16 %v2532, %v547
  %2539 = vst [vmem:[%s2537] sm:$0xff] %v2538
  %s2540 = scalar_lea.vmem %s0, 612
  %v2541 = vld [vmem:[%s2540] sm:$0xf]
  %v2542 = vunpack.c.l.bf16 %v2541
  %v2543 = vunpack.c.h.bf16 %v2541
  %s2544 = scalar_lea.vmem %s1, 1636
  %s2546 = ssub.s32 0, 4
  %s2547 = scalar_lea.vmem %s2544, %s2546
  %v2548 = vpack.c.bf16 %v2542, %v552
  %2549 = vst [vmem:[%s2547] sm:$0xff] %v2548
  %s2550 = scalar_lea.vmem %s0, 1892
  %v2551 = vld [vmem:[%s2550] sm:$0xf]
  %v2552 = vunpack.c.l.bf16 %v2551
  %v2553 = vunpack.c.h.bf16 %v2551
  %s2554 = scalar_lea.vmem %s1, 356
  %s2556 = ssub.s32 0, 4
  %s2557 = scalar_lea.vmem %s2554, %s2556
  %v2558 = vpack.c.bf16 %v2552, %v557
  %2559 = vst [vmem:[%s2557] sm:$0xff] %v2558
  %s2560 = scalar_lea.vmem %s0, 1124
  %v2561 = vld [vmem:[%s2560] sm:$0xf]
  %v2562 = vunpack.c.l.bf16 %v2561
  %v2563 = vunpack.c.h.bf16 %v2561
  %s2564 = scalar_lea.vmem %s1, 1124
  %s2566 = ssub.s32 0, 4
  %s2567 = scalar_lea.vmem %s2564, %s2566
  %v2568 = vpack.c.bf16 %v2562, %v562
  %2569 = vst [vmem:[%s2567] sm:$0xff] %v2568
  %s2570 = scalar_lea.vmem %s0, 356
  %v2571 = vld [vmem:[%s2570] sm:$0xf]
  %v2572 = vunpack.c.l.bf16 %v2571
  %v2573 = vunpack.c.h.bf16 %v2571
  %s2574 = scalar_lea.vmem %s1, 1892
  %s2576 = ssub.s32 0, 4
  %s2577 = scalar_lea.vmem %s2574, %s2576
  %v2578 = vpack.c.bf16 %v2572, %v567
  %2579 = vst [vmem:[%s2577] sm:$0xff] %v2578
  %s2580 = scalar_lea.vmem %s0, 1636
  %v2581 = vld [vmem:[%s2580] sm:$0xf]
  %v2582 = vunpack.c.l.bf16 %v2581
  %v2583 = vunpack.c.h.bf16 %v2581
  %s2584 = scalar_lea.vmem %s1, 612
  %s2586 = ssub.s32 0, 4
  %s2587 = scalar_lea.vmem %s2584, %s2586
  %v2588 = vpack.c.bf16 %v2582, %v572
  %2589 = vst [vmem:[%s2587] sm:$0xff] %v2588
  %s2590 = scalar_lea.vmem %s0, 868
  %v2591 = vld [vmem:[%s2590] sm:$0xf]
  %v2592 = vunpack.c.l.bf16 %v2591
  %v2593 = vunpack.c.h.bf16 %v2591
  %s2594 = scalar_lea.vmem %s1, 1380
  %s2596 = ssub.s32 0, 4
  %s2597 = scalar_lea.vmem %s2594, %s2596
  %v2598 = vpack.c.bf16 %v2592, %v577
  %2599 = vst [vmem:[%s2597] sm:$0xff] %v2598
  %s2600 = scalar_lea.vmem %s0, 100
  %v2601 = vld [vmem:[%s2600] sm:$0xf]
  %v2602 = vunpack.c.l.bf16 %v2601
  %v2603 = vunpack.c.h.bf16 %v2601
  %s2604 = scalar_lea.vmem %s1, 2148
  %s2606 = ssub.s32 0, 4
  %s2607 = scalar_lea.vmem %s2604, %s2606
  %v2608 = vpack.c.bf16 %v2602, %v582
  %2609 = vst [vmem:[%s2607] sm:$0xff] %v2608
  %s2610 = scalar_lea.vmem %s0, 2156
  %v2611 = vld [vmem:[%s2610] sm:$0xf]
  %v2612 = vunpack.c.l.bf16 %v2611
  %v2613 = vunpack.c.h.bf16 %v2611
  %s2614 = scalar_lea.vmem %s1, 108
  %s2616 = ssub.s32 0, 4
  %s2617 = scalar_lea.vmem %s2614, %s2616
  %v2618 = vpack.c.bf16 %v2612, %v587
  %2619 = vst [vmem:[%s2617] sm:$0xff] %v2618
  %s2620 = scalar_lea.vmem %s0, 1388
  %v2621 = vld [vmem:[%s2620] sm:$0xf]
  %v2622 = vunpack.c.l.bf16 %v2621
  %v2623 = vunpack.c.h.bf16 %v2621
  %s2624 = scalar_lea.vmem %s1, 876
  %s2626 = ssub.s32 0, 4
  %s2627 = scalar_lea.vmem %s2624, %s2626
  %v2628 = vpack.c.bf16 %v2622, %v592
  %2629 = vst [vmem:[%s2627] sm:$0xff] %v2628
  %s2630 = scalar_lea.vmem %s0, 620
  %v2631 = vld [vmem:[%s2630] sm:$0xf]
  %v2632 = vunpack.c.l.bf16 %v2631
  %v2633 = vunpack.c.h.bf16 %v2631
  %s2634 = scalar_lea.vmem %s1, 1644
  %s2636 = ssub.s32 0, 4
  %s2637 = scalar_lea.vmem %s2634, %s2636
  %v2638 = vpack.c.bf16 %v2632, %v597
  %2639 = vst [vmem:[%s2637] sm:$0xff] %v2638
  %s2640 = scalar_lea.vmem %s0, 1900
  %v2641 = vld [vmem:[%s2640] sm:$0xf]
  %v2642 = vunpack.c.l.bf16 %v2641
  %v2643 = vunpack.c.h.bf16 %v2641
  %s2644 = scalar_lea.vmem %s1, 364
  %s2646 = ssub.s32 0, 4
  %s2647 = scalar_lea.vmem %s2644, %s2646
  %v2648 = vpack.c.bf16 %v2642, %v602
  %2649 = vst [vmem:[%s2647] sm:$0xff] %v2648
  %s2650 = scalar_lea.vmem %s0, 1132
  %v2651 = vld [vmem:[%s2650] sm:$0xf]
  %v2652 = vunpack.c.l.bf16 %v2651
  %v2653 = vunpack.c.h.bf16 %v2651
  %s2654 = scalar_lea.vmem %s1, 1132
  %s2656 = ssub.s32 0, 4
  %s2657 = scalar_lea.vmem %s2654, %s2656
  %v2658 = vpack.c.bf16 %v2652, %v607
  %2659 = vst [vmem:[%s2657] sm:$0xff] %v2658
  %s2660 = scalar_lea.vmem %s0, 364
  %v2661 = vld [vmem:[%s2660] sm:$0xf]
  %v2662 = vunpack.c.l.bf16 %v2661
  %v2663 = vunpack.c.h.bf16 %v2661
  %s2664 = scalar_lea.vmem %s1, 1900
  %s2666 = ssub.s32 0, 4
  %s2667 = scalar_lea.vmem %s2664, %s2666
  %v2668 = vpack.c.bf16 %v2662, %v612
  %2669 = vst [vmem:[%s2667] sm:$0xff] %v2668
  %s2670 = scalar_lea.vmem %s0, 1644
  %v2671 = vld [vmem:[%s2670] sm:$0xf]
  %v2672 = vunpack.c.l.bf16 %v2671
  %v2673 = vunpack.c.h.bf16 %v2671
  %s2674 = scalar_lea.vmem %s1, 620
  %s2676 = ssub.s32 0, 4
  %s2677 = scalar_lea.vmem %s2674, %s2676
  %v2678 = vpack.c.bf16 %v2672, %v617
  %2679 = vst [vmem:[%s2677] sm:$0xff] %v2678
  %s2680 = scalar_lea.vmem %s0, 876
  %v2681 = vld [vmem:[%s2680] sm:$0xf]
  %v2682 = vunpack.c.l.bf16 %v2681
  %v2683 = vunpack.c.h.bf16 %v2681
  %s2684 = scalar_lea.vmem %s1, 1388
  %s2686 = ssub.s32 0, 4
  %s2687 = scalar_lea.vmem %s2684, %s2686
  %v2688 = vpack.c.bf16 %v2682, %v622
  %2689 = vst [vmem:[%s2687] sm:$0xff] %v2688
  %s2690 = scalar_lea.vmem %s0, 108
  %v2691 = vld [vmem:[%s2690] sm:$0xf]
  %v2692 = vunpack.c.l.bf16 %v2691
  %v2693 = vunpack.c.h.bf16 %v2691
  %s2694 = scalar_lea.vmem %s1, 2156
  %s2696 = ssub.s32 0, 4
  %s2697 = scalar_lea.vmem %s2694, %s2696
  %v2698 = vpack.c.bf16 %v2692, %v627
  %2699 = vst [vmem:[%s2697] sm:$0xff] %v2698
  %s2700 = scalar_lea.vmem %s0, 2164
  %v2701 = vld [vmem:[%s2700] sm:$0xf]
  %v2702 = vunpack.c.l.bf16 %v2701
  %v2703 = vunpack.c.h.bf16 %v2701
  %s2704 = scalar_lea.vmem %s1, 116
  %s2706 = ssub.s32 0, 4
  %s2707 = scalar_lea.vmem %s2704, %s2706
  %v2708 = vpack.c.bf16 %v2702, %v632
  %2709 = vst [vmem:[%s2707] sm:$0xff] %v2708
  %s2710 = scalar_lea.vmem %s0, 1396
  %v2711 = vld [vmem:[%s2710] sm:$0xf]
  %v2712 = vunpack.c.l.bf16 %v2711
  %v2713 = vunpack.c.h.bf16 %v2711
  %s2714 = scalar_lea.vmem %s1, 884
  %s2716 = ssub.s32 0, 4
  %s2717 = scalar_lea.vmem %s2714, %s2716
  %v2718 = vpack.c.bf16 %v2712, %v637
  %2719 = vst [vmem:[%s2717] sm:$0xff] %v2718
  %s2720 = scalar_lea.vmem %s0, 628
  %v2721 = vld [vmem:[%s2720] sm:$0xf]
  %v2722 = vunpack.c.l.bf16 %v2721
  %v2723 = vunpack.c.h.bf16 %v2721
  %s2724 = scalar_lea.vmem %s1, 1652
  %s2726 = ssub.s32 0, 4
  %s2727 = scalar_lea.vmem %s2724, %s2726
  %v2728 = vpack.c.bf16 %v2722, %v642
  %2729 = vst [vmem:[%s2727] sm:$0xff] %v2728
  %s2730 = scalar_lea.vmem %s0, 1908
  %v2731 = vld [vmem:[%s2730] sm:$0xf]
  %v2732 = vunpack.c.l.bf16 %v2731
  %v2733 = vunpack.c.h.bf16 %v2731
  %s2734 = scalar_lea.vmem %s1, 372
  %s2736 = ssub.s32 0, 4
  %s2737 = scalar_lea.vmem %s2734, %s2736
  %v2738 = vpack.c.bf16 %v2732, %v647
  %2739 = vst [vmem:[%s2737] sm:$0xff] %v2738
  %s2740 = scalar_lea.vmem %s0, 1140
  %v2741 = vld [vmem:[%s2740] sm:$0xf]
  %v2742 = vunpack.c.l.bf16 %v2741
  %v2743 = vunpack.c.h.bf16 %v2741
  %s2744 = scalar_lea.vmem %s1, 1140
  %s2746 = ssub.s32 0, 4
  %s2747 = scalar_lea.vmem %s2744, %s2746
  %v2748 = vpack.c.bf16 %v2742, %v652
  %2749 = vst [vmem:[%s2747] sm:$0xff] %v2748
  %s2750 = scalar_lea.vmem %s0, 372
  %v2751 = vld [vmem:[%s2750] sm:$0xf]
  %v2752 = vunpack.c.l.bf16 %v2751
  %v2753 = vunpack.c.h.bf16 %v2751
  %s2754 = scalar_lea.vmem %s1, 1908
  %s2756 = ssub.s32 0, 4
  %s2757 = scalar_lea.vmem %s2754, %s2756
  %v2758 = vpack.c.bf16 %v2752, %v657
  %2759 = vst [vmem:[%s2757] sm:$0xff] %v2758
  %s2760 = scalar_lea.vmem %s0, 1652
  %v2761 = vld [vmem:[%s2760] sm:$0xf]
  %v2762 = vunpack.c.l.bf16 %v2761
  %v2763 = vunpack.c.h.bf16 %v2761
  %s2764 = scalar_lea.vmem %s1, 628
  %s2766 = ssub.s32 0, 4
  %s2767 = scalar_lea.vmem %s2764, %s2766
  %v2768 = vpack.c.bf16 %v2762, %v662
  %2769 = vst [vmem:[%s2767] sm:$0xff] %v2768
  %s2770 = scalar_lea.vmem %s0, 884
  %v2771 = vld [vmem:[%s2770] sm:$0xf]
  %v2772 = vunpack.c.l.bf16 %v2771
  %v2773 = vunpack.c.h.bf16 %v2771
  %s2774 = scalar_lea.vmem %s1, 1396
  %s2776 = ssub.s32 0, 4
  %s2777 = scalar_lea.vmem %s2774, %s2776
  %v2778 = vpack.c.bf16 %v2772, %v667
  %2779 = vst [vmem:[%s2777] sm:$0xff] %v2778
  %s2780 = scalar_lea.vmem %s0, 116
  %v2781 = vld [vmem:[%s2780] sm:$0xf]
  %v2782 = vunpack.c.l.bf16 %v2781
  %v2783 = vunpack.c.h.bf16 %v2781
  %s2784 = scalar_lea.vmem %s1, 2164
  %s2786 = ssub.s32 0, 4
  %s2787 = scalar_lea.vmem %s2784, %s2786
  %v2788 = vpack.c.bf16 %v2782, %v672
  %2789 = vst [vmem:[%s2787] sm:$0xff] %v2788
  %s2790 = scalar_lea.vmem %s0, 2172
  %v2791 = vld [vmem:[%s2790] sm:$0xf]
  %v2792 = vunpack.c.l.bf16 %v2791
  %v2793 = vunpack.c.h.bf16 %v2791
  %s2794 = scalar_lea.vmem %s1, 124
  %s2796 = ssub.s32 0, 4
  %s2797 = scalar_lea.vmem %s2794, %s2796
  %v2798 = vpack.c.bf16 %v2792, %v677
  %2799 = vst [vmem:[%s2797] sm:$0xff] %v2798
  %s2800 = scalar_lea.vmem %s0, 1404
  %v2801 = vld [vmem:[%s2800] sm:$0xf]
  %v2802 = vunpack.c.l.bf16 %v2801
  %v2803 = vunpack.c.h.bf16 %v2801
  %s2804 = scalar_lea.vmem %s1, 892
  %s2806 = ssub.s32 0, 4
  %s2807 = scalar_lea.vmem %s2804, %s2806
  %v2808 = vpack.c.bf16 %v2802, %v682
  %2809 = vst [vmem:[%s2807] sm:$0xff] %v2808
  %s2810 = scalar_lea.vmem %s0, 636
  %v2811 = vld [vmem:[%s2810] sm:$0xf]
  %v2812 = vunpack.c.l.bf16 %v2811
  %v2813 = vunpack.c.h.bf16 %v2811
  %s2814 = scalar_lea.vmem %s1, 1660
  %s2816 = ssub.s32 0, 4
  %s2817 = scalar_lea.vmem %s2814, %s2816
  %v2818 = vpack.c.bf16 %v2812, %v687
  %2819 = vst [vmem:[%s2817] sm:$0xff] %v2818
  %s2820 = scalar_lea.vmem %s0, 1916
  %v2821 = vld [vmem:[%s2820] sm:$0xf]
  %v2822 = vunpack.c.l.bf16 %v2821
  %v2823 = vunpack.c.h.bf16 %v2821
  %s2824 = scalar_lea.vmem %s1, 380
  %s2826 = ssub.s32 0, 4
  %s2827 = scalar_lea.vmem %s2824, %s2826
  %v2828 = vpack.c.bf16 %v2822, %v692
  %2829 = vst [vmem:[%s2827] sm:$0xff] %v2828
  %s2830 = scalar_lea.vmem %s0, 1148
  %v2831 = vld [vmem:[%s2830] sm:$0xf]
  %v2832 = vunpack.c.l.bf16 %v2831
  %v2833 = vunpack.c.h.bf16 %v2831
  %s2834 = scalar_lea.vmem %s1, 1148
  %s2836 = ssub.s32 0, 4
  %s2837 = scalar_lea.vmem %s2834, %s2836
  %v2838 = vpack.c.bf16 %v2832, %v697
  %2839 = vst [vmem:[%s2837] sm:$0xff] %v2838
  %s2840 = scalar_lea.vmem %s0, 380
  %v2841 = vld [vmem:[%s2840] sm:$0xf]
  %v2842 = vunpack.c.l.bf16 %v2841
  %v2843 = vunpack.c.h.bf16 %v2841
  %s2844 = scalar_lea.vmem %s1, 1916
  %s2846 = ssub.s32 0, 4
  %s2847 = scalar_lea.vmem %s2844, %s2846
  %v2848 = vpack.c.bf16 %v2842, %v702
  %2849 = vst [vmem:[%s2847] sm:$0xff] %v2848
  %s2850 = scalar_lea.vmem %s0, 1660
  %v2851 = vld [vmem:[%s2850] sm:$0xf]
  %v2852 = vunpack.c.l.bf16 %v2851
  %v2853 = vunpack.c.h.bf16 %v2851
  %s2854 = scalar_lea.vmem %s1, 636
  %s2856 = ssub.s32 0, 4
  %s2857 = scalar_lea.vmem %s2854, %s2856
  %v2858 = vpack.c.bf16 %v2852, %v707
  %2859 = vst [vmem:[%s2857] sm:$0xff] %v2858
  %s2860 = scalar_lea.vmem %s0, 892
  %v2861 = vld [vmem:[%s2860] sm:$0xf]
  %v2862 = vunpack.c.l.bf16 %v2861
  %v2863 = vunpack.c.h.bf16 %v2861
  %s2864 = scalar_lea.vmem %s1, 1404
  %s2866 = ssub.s32 0, 4
  %s2867 = scalar_lea.vmem %s2864, %s2866
  %v2868 = vpack.c.bf16 %v2862, %v712
  %2869 = vst [vmem:[%s2867] sm:$0xff] %v2868
  %s2870 = scalar_lea.vmem %s0, 124
  %v2871 = vld [vmem:[%s2870] sm:$0xf]
  %v2872 = vunpack.c.l.bf16 %v2871
  %v2873 = vunpack.c.h.bf16 %v2871
  %s2874 = scalar_lea.vmem %s1, 2172
  %s2876 = ssub.s32 0, 4
  %s2877 = scalar_lea.vmem %s2874, %s2876
  %v2878 = vpack.c.bf16 %v2872, %v717
  %2879 = vst [vmem:[%s2877] sm:$0xff] %v2878
  %s2880 = scalar_lea.vmem %s0, 2180
  %v2881 = vld [vmem:[%s2880] sm:$0xf]
  %v2882 = vunpack.c.l.bf16 %v2881
  %v2883 = vunpack.c.h.bf16 %v2881
  %s2884 = scalar_lea.vmem %s1, 132
  %s2886 = ssub.s32 0, 4
  %s2887 = scalar_lea.vmem %s2884, %s2886
  %v2888 = vpack.c.bf16 %v2882, %v722
  %2889 = vst [vmem:[%s2887] sm:$0xff] %v2888
  %s2890 = scalar_lea.vmem %s0, 1412
  %v2891 = vld [vmem:[%s2890] sm:$0xf]
  %v2892 = vunpack.c.l.bf16 %v2891
  %v2893 = vunpack.c.h.bf16 %v2891
  %s2894 = scalar_lea.vmem %s1, 900
  %s2896 = ssub.s32 0, 4
  %s2897 = scalar_lea.vmem %s2894, %s2896
  %v2898 = vpack.c.bf16 %v2892, %v727
  %2899 = vst [vmem:[%s2897] sm:$0xff] %v2898
  %s2900 = scalar_lea.vmem %s0, 644
  %v2901 = vld [vmem:[%s2900] sm:$0xf]
  %v2902 = vunpack.c.l.bf16 %v2901
  %v2903 = vunpack.c.h.bf16 %v2901
  %s2904 = scalar_lea.vmem %s1, 1668
  %s2906 = ssub.s32 0, 4
  %s2907 = scalar_lea.vmem %s2904, %s2906
  %v2908 = vpack.c.bf16 %v2902, %v732
  %2909 = vst [vmem:[%s2907] sm:$0xff] %v2908
  %s2910 = scalar_lea.vmem %s0, 1924
  %v2911 = vld [vmem:[%s2910] sm:$0xf]
  %v2912 = vunpack.c.l.bf16 %v2911
  %v2913 = vunpack.c.h.bf16 %v2911
  %s2914 = scalar_lea.vmem %s1, 388
  %s2916 = ssub.s32 0, 4
  %s2917 = scalar_lea.vmem %s2914, %s2916
  %v2918 = vpack.c.bf16 %v2912, %v737
  %2919 = vst [vmem:[%s2917] sm:$0xff] %v2918
  %s2920 = scalar_lea.vmem %s0, 1156
  %v2921 = vld [vmem:[%s2920] sm:$0xf]
  %v2922 = vunpack.c.l.bf16 %v2921
  %v2923 = vunpack.c.h.bf16 %v2921
  %s2924 = scalar_lea.vmem %s1, 1156
  %s2926 = ssub.s32 0, 4
  %s2927 = scalar_lea.vmem %s2924, %s2926
  %v2928 = vpack.c.bf16 %v2922, %v742
  %2929 = vst [vmem:[%s2927] sm:$0xff] %v2928
  %s2930 = scalar_lea.vmem %s0, 388
  %v2931 = vld [vmem:[%s2930] sm:$0xf]
  %v2932 = vunpack.c.l.bf16 %v2931
  %v2933 = vunpack.c.h.bf16 %v2931
  %s2934 = scalar_lea.vmem %s1, 1924
  %s2936 = ssub.s32 0, 4
  %s2937 = scalar_lea.vmem %s2934, %s2936
  %v2938 = vpack.c.bf16 %v2932, %v747
  %2939 = vst [vmem:[%s2937] sm:$0xff] %v2938
  %s2940 = scalar_lea.vmem %s0, 1668
  %v2941 = vld [vmem:[%s2940] sm:$0xf]
  %v2942 = vunpack.c.l.bf16 %v2941
  %v2943 = vunpack.c.h.bf16 %v2941
  %s2944 = scalar_lea.vmem %s1, 644
  %s2946 = ssub.s32 0, 4
  %s2947 = scalar_lea.vmem %s2944, %s2946
  %v2948 = vpack.c.bf16 %v2942, %v752
  %2949 = vst [vmem:[%s2947] sm:$0xff] %v2948
  %s2950 = scalar_lea.vmem %s0, 900
  %v2951 = vld [vmem:[%s2950] sm:$0xf]
  %v2952 = vunpack.c.l.bf16 %v2951
  %v2953 = vunpack.c.h.bf16 %v2951
  %s2954 = scalar_lea.vmem %s1, 1412
  %s2956 = ssub.s32 0, 4
  %s2957 = scalar_lea.vmem %s2954, %s2956
  %v2958 = vpack.c.bf16 %v2952, %v757
  %2959 = vst [vmem:[%s2957] sm:$0xff] %v2958
  %s2960 = scalar_lea.vmem %s0, 132
  %v2961 = vld [vmem:[%s2960] sm:$0xf]
  %v2962 = vunpack.c.l.bf16 %v2961
  %v2963 = vunpack.c.h.bf16 %v2961
  %s2964 = scalar_lea.vmem %s1, 2180
  %s2966 = ssub.s32 0, 4
  %s2967 = scalar_lea.vmem %s2964, %s2966
  %v2968 = vpack.c.bf16 %v2962, %v762
  %2969 = vst [vmem:[%s2967] sm:$0xff] %v2968
  %s2970 = scalar_lea.vmem %s0, 2188
  %v2971 = vld [vmem:[%s2970] sm:$0xf]
  %v2972 = vunpack.c.l.bf16 %v2971
  %v2973 = vunpack.c.h.bf16 %v2971
  %s2974 = scalar_lea.vmem %s1, 140
  %s2976 = ssub.s32 0, 4
  %s2977 = scalar_lea.vmem %s2974, %s2976
  %v2978 = vpack.c.bf16 %v2972, %v767
  %2979 = vst [vmem:[%s2977] sm:$0xff] %v2978
  %s2980 = scalar_lea.vmem %s0, 1420
  %v2981 = vld [vmem:[%s2980] sm:$0xf]
  %v2982 = vunpack.c.l.bf16 %v2981
  %v2983 = vunpack.c.h.bf16 %v2981
  %s2984 = scalar_lea.vmem %s1, 908
  %s2986 = ssub.s32 0, 4
  %s2987 = scalar_lea.vmem %s2984, %s2986
  %v2988 = vpack.c.bf16 %v2982, %v772
  %2989 = vst [vmem:[%s2987] sm:$0xff] %v2988
  %s2990 = scalar_lea.vmem %s0, 652
  %v2991 = vld [vmem:[%s2990] sm:$0xf]
  %v2992 = vunpack.c.l.bf16 %v2991
  %v2993 = vunpack.c.h.bf16 %v2991
  %s2994 = scalar_lea.vmem %s1, 1676
  %s2996 = ssub.s32 0, 4
  %s2997 = scalar_lea.vmem %s2994, %s2996
  %v2998 = vpack.c.bf16 %v2992, %v777
  %2999 = vst [vmem:[%s2997] sm:$0xff] %v2998
  %s3000 = scalar_lea.vmem %s0, 1932
  %v3001 = vld [vmem:[%s3000] sm:$0xf]
  %v3002 = vunpack.c.l.bf16 %v3001
  %v3003 = vunpack.c.h.bf16 %v3001
  %s3004 = scalar_lea.vmem %s1, 396
  %s3006 = ssub.s32 0, 4
  %s3007 = scalar_lea.vmem %s3004, %s3006
  %v3008 = vpack.c.bf16 %v3002, %v782
  %3009 = vst [vmem:[%s3007] sm:$0xff] %v3008
  %s3010 = scalar_lea.vmem %s0, 1164
  %v3011 = vld [vmem:[%s3010] sm:$0xf]
  %v3012 = vunpack.c.l.bf16 %v3011
  %v3013 = vunpack.c.h.bf16 %v3011
  %s3014 = scalar_lea.vmem %s1, 1164
  %s3016 = ssub.s32 0, 4
  %s3017 = scalar_lea.vmem %s3014, %s3016
  %v3018 = vpack.c.bf16 %v3012, %v787
  %3019 = vst [vmem:[%s3017] sm:$0xff] %v3018
  %s3020 = scalar_lea.vmem %s0, 396
  %v3021 = vld [vmem:[%s3020] sm:$0xf]
  %v3022 = vunpack.c.l.bf16 %v3021
  %v3023 = vunpack.c.h.bf16 %v3021
  %s3024 = scalar_lea.vmem %s1, 1932
  %s3026 = ssub.s32 0, 4
  %s3027 = scalar_lea.vmem %s3024, %s3026
  %v3028 = vpack.c.bf16 %v3022, %v792
  %3029 = vst [vmem:[%s3027] sm:$0xff] %v3028
  %s3030 = scalar_lea.vmem %s0, 1676
  %v3031 = vld [vmem:[%s3030] sm:$0xf]
  %v3032 = vunpack.c.l.bf16 %v3031
  %v3033 = vunpack.c.h.bf16 %v3031
  %s3034 = scalar_lea.vmem %s1, 652
  %s3036 = ssub.s32 0, 4
  %s3037 = scalar_lea.vmem %s3034, %s3036
  %v3038 = vpack.c.bf16 %v3032, %v797
  %3039 = vst [vmem:[%s3037] sm:$0xff] %v3038
  %s3040 = scalar_lea.vmem %s0, 908
  %v3041 = vld [vmem:[%s3040] sm:$0xf]
  %v3042 = vunpack.c.l.bf16 %v3041
  %v3043 = vunpack.c.h.bf16 %v3041
  %s3044 = scalar_lea.vmem %s1, 1420
  %s3046 = ssub.s32 0, 4
  %s3047 = scalar_lea.vmem %s3044, %s3046
  %v3048 = vpack.c.bf16 %v3042, %v802
  %3049 = vst [vmem:[%s3047] sm:$0xff] %v3048
  %s3050 = scalar_lea.vmem %s0, 140
  %v3051 = vld [vmem:[%s3050] sm:$0xf]
  %v3052 = vunpack.c.l.bf16 %v3051
  %v3053 = vunpack.c.h.bf16 %v3051
  %s3054 = scalar_lea.vmem %s1, 2188
  %s3056 = ssub.s32 0, 4
  %s3057 = scalar_lea.vmem %s3054, %s3056
  %v3058 = vpack.c.bf16 %v3052, %v807
  %3059 = vst [vmem:[%s3057] sm:$0xff] %v3058
  %s3060 = scalar_lea.vmem %s0, 2196
  %v3061 = vld [vmem:[%s3060] sm:$0xf]
  %v3062 = vunpack.c.l.bf16 %v3061
  %v3063 = vunpack.c.h.bf16 %v3061
  %s3064 = scalar_lea.vmem %s1, 148
  %s3066 = ssub.s32 0, 4
  %s3067 = scalar_lea.vmem %s3064, %s3066
  %v3068 = vpack.c.bf16 %v3062, %v812
  %3069 = vst [vmem:[%s3067] sm:$0xff] %v3068
  %s3070 = scalar_lea.vmem %s0, 1428
  %v3071 = vld [vmem:[%s3070] sm:$0xf]
  %v3072 = vunpack.c.l.bf16 %v3071
  %v3073 = vunpack.c.h.bf16 %v3071
  %s3074 = scalar_lea.vmem %s1, 916
  %s3076 = ssub.s32 0, 4
  %s3077 = scalar_lea.vmem %s3074, %s3076
  %v3078 = vpack.c.bf16 %v3072, %v817
  %3079 = vst [vmem:[%s3077] sm:$0xff] %v3078
  %s3080 = scalar_lea.vmem %s0, 660
  %v3081 = vld [vmem:[%s3080] sm:$0xf]
  %v3082 = vunpack.c.l.bf16 %v3081
  %v3083 = vunpack.c.h.bf16 %v3081
  %s3084 = scalar_lea.vmem %s1, 1684
  %s3086 = ssub.s32 0, 4
  %s3087 = scalar_lea.vmem %s3084, %s3086
  %v3088 = vpack.c.bf16 %v3082, %v822
  %3089 = vst [vmem:[%s3087] sm:$0xff] %v3088
  %s3090 = scalar_lea.vmem %s0, 1940
  %v3091 = vld [vmem:[%s3090] sm:$0xf]
  %v3092 = vunpack.c.l.bf16 %v3091
  %v3093 = vunpack.c.h.bf16 %v3091
  %s3094 = scalar_lea.vmem %s1, 404
  %s3096 = ssub.s32 0, 4
  %s3097 = scalar_lea.vmem %s3094, %s3096
  %v3098 = vpack.c.bf16 %v3092, %v827
  %3099 = vst [vmem:[%s3097] sm:$0xff] %v3098
  %s3100 = scalar_lea.vmem %s0, 1172
  %v3101 = vld [vmem:[%s3100] sm:$0xf]
  %v3102 = vunpack.c.l.bf16 %v3101
  %v3103 = vunpack.c.h.bf16 %v3101
  %s3104 = scalar_lea.vmem %s1, 1172
  %s3106 = ssub.s32 0, 4
  %s3107 = scalar_lea.vmem %s3104, %s3106
  %v3108 = vpack.c.bf16 %v3102, %v832
  %3109 = vst [vmem:[%s3107] sm:$0xff] %v3108
  %s3110 = scalar_lea.vmem %s0, 404
  %v3111 = vld [vmem:[%s3110] sm:$0xf]
  %v3112 = vunpack.c.l.bf16 %v3111
  %v3113 = vunpack.c.h.bf16 %v3111
  %s3114 = scalar_lea.vmem %s1, 1940
  %s3116 = ssub.s32 0, 4
  %s3117 = scalar_lea.vmem %s3114, %s3116
  %v3118 = vpack.c.bf16 %v3112, %v837
  %3119 = vst [vmem:[%s3117] sm:$0xff] %v3118
  %s3120 = scalar_lea.vmem %s0, 1684
  %v3121 = vld [vmem:[%s3120] sm:$0xf]
  %v3122 = vunpack.c.l.bf16 %v3121
  %v3123 = vunpack.c.h.bf16 %v3121
  %s3124 = scalar_lea.vmem %s1, 660
  %s3126 = ssub.s32 0, 4
  %s3127 = scalar_lea.vmem %s3124, %s3126
  %v3128 = vpack.c.bf16 %v3122, %v842
  %3129 = vst [vmem:[%s3127] sm:$0xff] %v3128
  %s3130 = scalar_lea.vmem %s0, 916
  %v3131 = vld [vmem:[%s3130] sm:$0xf]
  %v3132 = vunpack.c.l.bf16 %v3131
  %v3133 = vunpack.c.h.bf16 %v3131
  %s3134 = scalar_lea.vmem %s1, 1428
  %s3136 = ssub.s32 0, 4
  %s3137 = scalar_lea.vmem %s3134, %s3136
  %v3138 = vpack.c.bf16 %v3132, %v847
  %3139 = vst [vmem:[%s3137] sm:$0xff] %v3138
  %s3140 = scalar_lea.vmem %s0, 148
  %v3141 = vld [vmem:[%s3140] sm:$0xf]
  %v3142 = vunpack.c.l.bf16 %v3141
  %v3143 = vunpack.c.h.bf16 %v3141
  %s3144 = scalar_lea.vmem %s1, 2196
  %s3146 = ssub.s32 0, 4
  %s3147 = scalar_lea.vmem %s3144, %s3146
  %v3148 = vpack.c.bf16 %v3142, %v852
  %3149 = vst [vmem:[%s3147] sm:$0xff] %v3148
  %s3150 = scalar_lea.vmem %s0, 2204
  %v3151 = vld [vmem:[%s3150] sm:$0xf]
  %v3152 = vunpack.c.l.bf16 %v3151
  %v3153 = vunpack.c.h.bf16 %v3151
  %s3154 = scalar_lea.vmem %s1, 156
  %s3156 = ssub.s32 0, 4
  %s3157 = scalar_lea.vmem %s3154, %s3156
  %v3158 = vpack.c.bf16 %v3152, %v857
  %3159 = vst [vmem:[%s3157] sm:$0xff] %v3158
  %s3160 = scalar_lea.vmem %s0, 1436
  %v3161 = vld [vmem:[%s3160] sm:$0xf]
  %v3162 = vunpack.c.l.bf16 %v3161
  %v3163 = vunpack.c.h.bf16 %v3161
  %s3164 = scalar_lea.vmem %s1, 924
  %s3166 = ssub.s32 0, 4
  %s3167 = scalar_lea.vmem %s3164, %s3166
  %v3168 = vpack.c.bf16 %v3162, %v862
  %3169 = vst [vmem:[%s3167] sm:$0xff] %v3168
  %s3170 = scalar_lea.vmem %s0, 668
  %v3171 = vld [vmem:[%s3170] sm:$0xf]
  %v3172 = vunpack.c.l.bf16 %v3171
  %v3173 = vunpack.c.h.bf16 %v3171
  %s3174 = scalar_lea.vmem %s1, 1692
  %s3176 = ssub.s32 0, 4
  %s3177 = scalar_lea.vmem %s3174, %s3176
  %v3178 = vpack.c.bf16 %v3172, %v867
  %3179 = vst [vmem:[%s3177] sm:$0xff] %v3178
  %s3180 = scalar_lea.vmem %s0, 1948
  %v3181 = vld [vmem:[%s3180] sm:$0xf]
  %v3182 = vunpack.c.l.bf16 %v3181
  %v3183 = vunpack.c.h.bf16 %v3181
  %s3184 = scalar_lea.vmem %s1, 412
  %s3186 = ssub.s32 0, 4
  %s3187 = scalar_lea.vmem %s3184, %s3186
  %v3188 = vpack.c.bf16 %v3182, %v872
  %3189 = vst [vmem:[%s3187] sm:$0xff] %v3188
  %s3190 = scalar_lea.vmem %s0, 1180
  %v3191 = vld [vmem:[%s3190] sm:$0xf]
  %v3192 = vunpack.c.l.bf16 %v3191
  %v3193 = vunpack.c.h.bf16 %v3191
  %s3194 = scalar_lea.vmem %s1, 1180
  %s3196 = ssub.s32 0, 4
  %s3197 = scalar_lea.vmem %s3194, %s3196
  %v3198 = vpack.c.bf16 %v3192, %v877
  %3199 = vst [vmem:[%s3197] sm:$0xff] %v3198
  %s3200 = scalar_lea.vmem %s0, 412
  %v3201 = vld [vmem:[%s3200] sm:$0xf]
  %v3202 = vunpack.c.l.bf16 %v3201
  %v3203 = vunpack.c.h.bf16 %v3201
  %s3204 = scalar_lea.vmem %s1, 1948
  %s3206 = ssub.s32 0, 4
  %s3207 = scalar_lea.vmem %s3204, %s3206
  %v3208 = vpack.c.bf16 %v3202, %v882
  %3209 = vst [vmem:[%s3207] sm:$0xff] %v3208
  %s3210 = scalar_lea.vmem %s0, 1692
  %v3211 = vld [vmem:[%s3210] sm:$0xf]
  %v3212 = vunpack.c.l.bf16 %v3211
  %v3213 = vunpack.c.h.bf16 %v3211
  %s3214 = scalar_lea.vmem %s1, 668
  %s3216 = ssub.s32 0, 4
  %s3217 = scalar_lea.vmem %s3214, %s3216
  %v3218 = vpack.c.bf16 %v3212, %v887
  %3219 = vst [vmem:[%s3217] sm:$0xff] %v3218
  %s3220 = scalar_lea.vmem %s0, 924
  %v3221 = vld [vmem:[%s3220] sm:$0xf]
  %v3222 = vunpack.c.l.bf16 %v3221
  %v3223 = vunpack.c.h.bf16 %v3221
  %s3224 = scalar_lea.vmem %s1, 1436
  %s3226 = ssub.s32 0, 4
  %s3227 = scalar_lea.vmem %s3224, %s3226
  %v3228 = vpack.c.bf16 %v3222, %v892
  %3229 = vst [vmem:[%s3227] sm:$0xff] %v3228
  %s3230 = scalar_lea.vmem %s0, 156
  %v3231 = vld [vmem:[%s3230] sm:$0xf]
  %v3232 = vunpack.c.l.bf16 %v3231
  %v3233 = vunpack.c.h.bf16 %v3231
  %s3234 = scalar_lea.vmem %s1, 2204
  %s3236 = ssub.s32 0, 4
  %s3237 = scalar_lea.vmem %s3234, %s3236
  %v3238 = vpack.c.bf16 %v3232, %v897
  %3239 = vst [vmem:[%s3237] sm:$0xff] %v3238
  %s3240 = scalar_lea.vmem %s0, 2212
  %v3241 = vld [vmem:[%s3240] sm:$0xf]
  %v3242 = vunpack.c.l.bf16 %v3241
  %v3243 = vunpack.c.h.bf16 %v3241
  %s3244 = scalar_lea.vmem %s1, 164
  %s3246 = ssub.s32 0, 4
  %s3247 = scalar_lea.vmem %s3244, %s3246
  %v3248 = vpack.c.bf16 %v3242, %v902
  %3249 = vst [vmem:[%s3247] sm:$0xff] %v3248
  %s3250 = scalar_lea.vmem %s0, 1444
  %v3251 = vld [vmem:[%s3250] sm:$0xf]
  %v3252 = vunpack.c.l.bf16 %v3251
  %v3253 = vunpack.c.h.bf16 %v3251
  %s3254 = scalar_lea.vmem %s1, 932
  %s3256 = ssub.s32 0, 4
  %s3257 = scalar_lea.vmem %s3254, %s3256
  %v3258 = vpack.c.bf16 %v3252, %v907
  %3259 = vst [vmem:[%s3257] sm:$0xff] %v3258
  %s3260 = scalar_lea.vmem %s0, 676
  %v3261 = vld [vmem:[%s3260] sm:$0xf]
  %v3262 = vunpack.c.l.bf16 %v3261
  %v3263 = vunpack.c.h.bf16 %v3261
  %s3264 = scalar_lea.vmem %s1, 1700
  %s3266 = ssub.s32 0, 4
  %s3267 = scalar_lea.vmem %s3264, %s3266
  %v3268 = vpack.c.bf16 %v3262, %v912
  %3269 = vst [vmem:[%s3267] sm:$0xff] %v3268
  %s3270 = scalar_lea.vmem %s0, 1956
  %v3271 = vld [vmem:[%s3270] sm:$0xf]
  %v3272 = vunpack.c.l.bf16 %v3271
  %v3273 = vunpack.c.h.bf16 %v3271
  %s3274 = scalar_lea.vmem %s1, 420
  %s3276 = ssub.s32 0, 4
  %s3277 = scalar_lea.vmem %s3274, %s3276
  %v3278 = vpack.c.bf16 %v3272, %v917
  %3279 = vst [vmem:[%s3277] sm:$0xff] %v3278
  %s3280 = scalar_lea.vmem %s0, 1188
  %v3281 = vld [vmem:[%s3280] sm:$0xf]
  %v3282 = vunpack.c.l.bf16 %v3281
  %v3283 = vunpack.c.h.bf16 %v3281
  %s3284 = scalar_lea.vmem %s1, 1188
  %s3286 = ssub.s32 0, 4
  %s3287 = scalar_lea.vmem %s3284, %s3286
  %v3288 = vpack.c.bf16 %v3282, %v922
  %3289 = vst [vmem:[%s3287] sm:$0xff] %v3288
  %s3290 = scalar_lea.vmem %s0, 420
  %v3291 = vld [vmem:[%s3290] sm:$0xf]
  %v3292 = vunpack.c.l.bf16 %v3291
  %v3293 = vunpack.c.h.bf16 %v3291
  %s3294 = scalar_lea.vmem %s1, 1956
  %s3296 = ssub.s32 0, 4
  %s3297 = scalar_lea.vmem %s3294, %s3296
  %v3298 = vpack.c.bf16 %v3292, %v927
  %3299 = vst [vmem:[%s3297] sm:$0xff] %v3298
  %s3300 = scalar_lea.vmem %s0, 1700
  %v3301 = vld [vmem:[%s3300] sm:$0xf]
  %v3302 = vunpack.c.l.bf16 %v3301
  %v3303 = vunpack.c.h.bf16 %v3301
  %s3304 = scalar_lea.vmem %s1, 676
  %s3306 = ssub.s32 0, 4
  %s3307 = scalar_lea.vmem %s3304, %s3306
  %v3308 = vpack.c.bf16 %v3302, %v932
  %3309 = vst [vmem:[%s3307] sm:$0xff] %v3308
  %s3310 = scalar_lea.vmem %s0, 932
  %v3311 = vld [vmem:[%s3310] sm:$0xf]
  %v3312 = vunpack.c.l.bf16 %v3311
  %v3313 = vunpack.c.h.bf16 %v3311
  %s3314 = scalar_lea.vmem %s1, 1444
  %s3316 = ssub.s32 0, 4
  %s3317 = scalar_lea.vmem %s3314, %s3316
  %v3318 = vpack.c.bf16 %v3312, %v937
  %3319 = vst [vmem:[%s3317] sm:$0xff] %v3318
  %s3320 = scalar_lea.vmem %s0, 164
  %v3321 = vld [vmem:[%s3320] sm:$0xf]
  %v3322 = vunpack.c.l.bf16 %v3321
  %v3323 = vunpack.c.h.bf16 %v3321
  %s3324 = scalar_lea.vmem %s1, 2212
  %s3326 = ssub.s32 0, 4
  %s3327 = scalar_lea.vmem %s3324, %s3326
  %v3328 = vpack.c.bf16 %v3322, %v942
  %3329 = vst [vmem:[%s3327] sm:$0xff] %v3328
  %s3330 = scalar_lea.vmem %s0, 2220
  %v3331 = vld [vmem:[%s3330] sm:$0xf]
  %v3332 = vunpack.c.l.bf16 %v3331
  %v3333 = vunpack.c.h.bf16 %v3331
  %s3334 = scalar_lea.vmem %s1, 172
  %s3336 = ssub.s32 0, 4
  %s3337 = scalar_lea.vmem %s3334, %s3336
  %v3338 = vpack.c.bf16 %v3332, %v947
  %3339 = vst [vmem:[%s3337] sm:$0xff] %v3338
  %s3340 = scalar_lea.vmem %s0, 1452
  %v3341 = vld [vmem:[%s3340] sm:$0xf]
  %v3342 = vunpack.c.l.bf16 %v3341
  %v3343 = vunpack.c.h.bf16 %v3341
  %s3344 = scalar_lea.vmem %s1, 940
  %s3346 = ssub.s32 0, 4
  %s3347 = scalar_lea.vmem %s3344, %s3346
  %v3348 = vpack.c.bf16 %v3342, %v952
  %3349 = vst [vmem:[%s3347] sm:$0xff] %v3348
  %s3350 = scalar_lea.vmem %s0, 684
  %v3351 = vld [vmem:[%s3350] sm:$0xf]
  %v3352 = vunpack.c.l.bf16 %v3351
  %v3353 = vunpack.c.h.bf16 %v3351
  %s3354 = scalar_lea.vmem %s1, 1708
  %s3356 = ssub.s32 0, 4
  %s3357 = scalar_lea.vmem %s3354, %s3356
  %v3358 = vpack.c.bf16 %v3352, %v957
  %3359 = vst [vmem:[%s3357] sm:$0xff] %v3358
  %s3360 = scalar_lea.vmem %s0, 1964
  %v3361 = vld [vmem:[%s3360] sm:$0xf]
  %v3362 = vunpack.c.l.bf16 %v3361
  %v3363 = vunpack.c.h.bf16 %v3361
  %s3364 = scalar_lea.vmem %s1, 428
  %s3366 = ssub.s32 0, 4
  %s3367 = scalar_lea.vmem %s3364, %s3366
  %v3368 = vpack.c.bf16 %v3362, %v962
  %3369 = vst [vmem:[%s3367] sm:$0xff] %v3368
  %s3370 = scalar_lea.vmem %s0, 1196
  %v3371 = vld [vmem:[%s3370] sm:$0xf]
  %v3372 = vunpack.c.l.bf16 %v3371
  %v3373 = vunpack.c.h.bf16 %v3371
  %s3374 = scalar_lea.vmem %s1, 1196
  %s3376 = ssub.s32 0, 4
  %s3377 = scalar_lea.vmem %s3374, %s3376
  %v3378 = vpack.c.bf16 %v3372, %v967
  %3379 = vst [vmem:[%s3377] sm:$0xff] %v3378
  %s3380 = scalar_lea.vmem %s0, 428
  %v3381 = vld [vmem:[%s3380] sm:$0xf]
  %v3382 = vunpack.c.l.bf16 %v3381
  %v3383 = vunpack.c.h.bf16 %v3381
  %s3384 = scalar_lea.vmem %s1, 1964
  %s3386 = ssub.s32 0, 4
  %s3387 = scalar_lea.vmem %s3384, %s3386
  %v3388 = vpack.c.bf16 %v3382, %v972
  %3389 = vst [vmem:[%s3387] sm:$0xff] %v3388
  %s3390 = scalar_lea.vmem %s0, 1708
  %v3391 = vld [vmem:[%s3390] sm:$0xf]
  %v3392 = vunpack.c.l.bf16 %v3391
  %v3393 = vunpack.c.h.bf16 %v3391
  %s3394 = scalar_lea.vmem %s1, 684
  %s3396 = ssub.s32 0, 4
  %s3397 = scalar_lea.vmem %s3394, %s3396
  %v3398 = vpack.c.bf16 %v3392, %v977
  %3399 = vst [vmem:[%s3397] sm:$0xff] %v3398
  %s3400 = scalar_lea.vmem %s0, 940
  %v3401 = vld [vmem:[%s3400] sm:$0xf]
  %v3402 = vunpack.c.l.bf16 %v3401
  %v3403 = vunpack.c.h.bf16 %v3401
  %s3404 = scalar_lea.vmem %s1, 1452
  %s3406 = ssub.s32 0, 4
  %s3407 = scalar_lea.vmem %s3404, %s3406
  %v3408 = vpack.c.bf16 %v3402, %v982
  %3409 = vst [vmem:[%s3407] sm:$0xff] %v3408
  %s3410 = scalar_lea.vmem %s0, 172
  %v3411 = vld [vmem:[%s3410] sm:$0xf]
  %v3412 = vunpack.c.l.bf16 %v3411
  %v3413 = vunpack.c.h.bf16 %v3411
  %s3414 = scalar_lea.vmem %s1, 2220
  %s3416 = ssub.s32 0, 4
  %s3417 = scalar_lea.vmem %s3414, %s3416
  %v3418 = vpack.c.bf16 %v3412, %v987
  %3419 = vst [vmem:[%s3417] sm:$0xff] %v3418
  %s3420 = scalar_lea.vmem %s0, 2228
  %v3421 = vld [vmem:[%s3420] sm:$0xf]
  %v3422 = vunpack.c.l.bf16 %v3421
  %v3423 = vunpack.c.h.bf16 %v3421
  %s3424 = scalar_lea.vmem %s1, 180
  %s3426 = ssub.s32 0, 4
  %s3427 = scalar_lea.vmem %s3424, %s3426
  %v3428 = vpack.c.bf16 %v3422, %v992
  %3429 = vst [vmem:[%s3427] sm:$0xff] %v3428
  %s3430 = scalar_lea.vmem %s0, 1460
  %v3431 = vld [vmem:[%s3430] sm:$0xf]
  %v3432 = vunpack.c.l.bf16 %v3431
  %v3433 = vunpack.c.h.bf16 %v3431
  %s3434 = scalar_lea.vmem %s1, 948
  %s3436 = ssub.s32 0, 4
  %s3437 = scalar_lea.vmem %s3434, %s3436
  %v3438 = vpack.c.bf16 %v3432, %v997
  %3439 = vst [vmem:[%s3437] sm:$0xff] %v3438
  %s3440 = scalar_lea.vmem %s0, 692
  %v3441 = vld [vmem:[%s3440] sm:$0xf]
  %v3442 = vunpack.c.l.bf16 %v3441
  %v3443 = vunpack.c.h.bf16 %v3441
  %s3444 = scalar_lea.vmem %s1, 1716
  %s3446 = ssub.s32 0, 4
  %s3447 = scalar_lea.vmem %s3444, %s3446
  %v3448 = vpack.c.bf16 %v3442, %v1002
  %3449 = vst [vmem:[%s3447] sm:$0xff] %v3448
  %s3450 = scalar_lea.vmem %s0, 1972
  %v3451 = vld [vmem:[%s3450] sm:$0xf]
  %v3452 = vunpack.c.l.bf16 %v3451
  %v3453 = vunpack.c.h.bf16 %v3451
  %s3454 = scalar_lea.vmem %s1, 436
  %s3456 = ssub.s32 0, 4
  %s3457 = scalar_lea.vmem %s3454, %s3456
  %v3458 = vpack.c.bf16 %v3452, %v1007
  %3459 = vst [vmem:[%s3457] sm:$0xff] %v3458
  %s3460 = scalar_lea.vmem %s0, 1204
  %v3461 = vld [vmem:[%s3460] sm:$0xf]
  %v3462 = vunpack.c.l.bf16 %v3461
  %v3463 = vunpack.c.h.bf16 %v3461
  %s3464 = scalar_lea.vmem %s1, 1204
  %s3466 = ssub.s32 0, 4
  %s3467 = scalar_lea.vmem %s3464, %s3466
  %v3468 = vpack.c.bf16 %v3462, %v1012
  %3469 = vst [vmem:[%s3467] sm:$0xff] %v3468
  %s3470 = scalar_lea.vmem %s0, 436
  %v3471 = vld [vmem:[%s3470] sm:$0xf]
  %v3472 = vunpack.c.l.bf16 %v3471
  %v3473 = vunpack.c.h.bf16 %v3471
  %s3474 = scalar_lea.vmem %s1, 1972
  %s3476 = ssub.s32 0, 4
  %s3477 = scalar_lea.vmem %s3474, %s3476
  %v3478 = vpack.c.bf16 %v3472, %v1017
  %3479 = vst [vmem:[%s3477] sm:$0xff] %v3478
  %s3480 = scalar_lea.vmem %s0, 1716
  %v3481 = vld [vmem:[%s3480] sm:$0xf]
  %v3482 = vunpack.c.l.bf16 %v3481
  %v3483 = vunpack.c.h.bf16 %v3481
  %s3484 = scalar_lea.vmem %s1, 692
  %s3486 = ssub.s32 0, 4
  %s3487 = scalar_lea.vmem %s3484, %s3486
  %v3488 = vpack.c.bf16 %v3482, %v1022
  %3489 = vst [vmem:[%s3487] sm:$0xff] %v3488
  %s3490 = scalar_lea.vmem %s0, 948
  %v3491 = vld [vmem:[%s3490] sm:$0xf]
  %v3492 = vunpack.c.l.bf16 %v3491
  %v3493 = vunpack.c.h.bf16 %v3491
  %s3494 = scalar_lea.vmem %s1, 1460
  %s3496 = ssub.s32 0, 4
  %s3497 = scalar_lea.vmem %s3494, %s3496
  %v3498 = vpack.c.bf16 %v3492, %v1027
  %3499 = vst [vmem:[%s3497] sm:$0xff] %v3498
  %s3500 = scalar_lea.vmem %s0, 180
  %v3501 = vld [vmem:[%s3500] sm:$0xf]
  %v3502 = vunpack.c.l.bf16 %v3501
  %v3503 = vunpack.c.h.bf16 %v3501
  %s3504 = scalar_lea.vmem %s1, 2228
  %s3506 = ssub.s32 0, 4
  %s3507 = scalar_lea.vmem %s3504, %s3506
  %v3508 = vpack.c.bf16 %v3502, %v1032
  %3509 = vst [vmem:[%s3507] sm:$0xff] %v3508
  %s3510 = scalar_lea.vmem %s0, 2236
  %v3511 = vld [vmem:[%s3510] sm:$0xf]
  %v3512 = vunpack.c.l.bf16 %v3511
  %v3513 = vunpack.c.h.bf16 %v3511
  %s3514 = scalar_lea.vmem %s1, 188
  %s3516 = ssub.s32 0, 4
  %s3517 = scalar_lea.vmem %s3514, %s3516
  %v3518 = vpack.c.bf16 %v3512, %v1037
  %3519 = vst [vmem:[%s3517] sm:$0xff] %v3518
  %s3520 = scalar_lea.vmem %s0, 1468
  %v3521 = vld [vmem:[%s3520] sm:$0xf]
  %v3522 = vunpack.c.l.bf16 %v3521
  %v3523 = vunpack.c.h.bf16 %v3521
  %s3524 = scalar_lea.vmem %s1, 956
  %s3526 = ssub.s32 0, 4
  %s3527 = scalar_lea.vmem %s3524, %s3526
  %v3528 = vpack.c.bf16 %v3522, %v1042
  %3529 = vst [vmem:[%s3527] sm:$0xff] %v3528
  %s3530 = scalar_lea.vmem %s0, 700
  %v3531 = vld [vmem:[%s3530] sm:$0xf]
  %v3532 = vunpack.c.l.bf16 %v3531
  %v3533 = vunpack.c.h.bf16 %v3531
  %s3534 = scalar_lea.vmem %s1, 1724
  %s3536 = ssub.s32 0, 4
  %s3537 = scalar_lea.vmem %s3534, %s3536
  %v3538 = vpack.c.bf16 %v3532, %v1047
  %3539 = vst [vmem:[%s3537] sm:$0xff] %v3538
  %s3540 = scalar_lea.vmem %s0, 1980
  %v3541 = vld [vmem:[%s3540] sm:$0xf]
  %v3542 = vunpack.c.l.bf16 %v3541
  %v3543 = vunpack.c.h.bf16 %v3541
  %s3544 = scalar_lea.vmem %s1, 444
  %s3546 = ssub.s32 0, 4
  %s3547 = scalar_lea.vmem %s3544, %s3546
  %v3548 = vpack.c.bf16 %v3542, %v1052
  %3549 = vst [vmem:[%s3547] sm:$0xff] %v3548
  %s3550 = scalar_lea.vmem %s0, 1212
  %v3551 = vld [vmem:[%s3550] sm:$0xf]
  %v3552 = vunpack.c.l.bf16 %v3551
  %v3553 = vunpack.c.h.bf16 %v3551
  %s3554 = scalar_lea.vmem %s1, 1212
  %s3556 = ssub.s32 0, 4
  %s3557 = scalar_lea.vmem %s3554, %s3556
  %v3558 = vpack.c.bf16 %v3552, %v1057
  %3559 = vst [vmem:[%s3557] sm:$0xff] %v3558
  %s3560 = scalar_lea.vmem %s0, 444
  %v3561 = vld [vmem:[%s3560] sm:$0xf]
  %v3562 = vunpack.c.l.bf16 %v3561
  %v3563 = vunpack.c.h.bf16 %v3561
  %s3564 = scalar_lea.vmem %s1, 1980
  %s3566 = ssub.s32 0, 4
  %s3567 = scalar_lea.vmem %s3564, %s3566
  %v3568 = vpack.c.bf16 %v3562, %v1062
  %3569 = vst [vmem:[%s3567] sm:$0xff] %v3568
  %s3570 = scalar_lea.vmem %s0, 1724
  %v3571 = vld [vmem:[%s3570] sm:$0xf]
  %v3572 = vunpack.c.l.bf16 %v3571
  %v3573 = vunpack.c.h.bf16 %v3571
  %s3574 = scalar_lea.vmem %s1, 700
  %s3576 = ssub.s32 0, 4
  %s3577 = scalar_lea.vmem %s3574, %s3576
  %v3578 = vpack.c.bf16 %v3572, %v1067
  %3579 = vst [vmem:[%s3577] sm:$0xff] %v3578
  %s3580 = scalar_lea.vmem %s0, 956
  %v3581 = vld [vmem:[%s3580] sm:$0xf]
  %v3582 = vunpack.c.l.bf16 %v3581
  %v3583 = vunpack.c.h.bf16 %v3581
  %s3584 = scalar_lea.vmem %s1, 1468
  %s3586 = ssub.s32 0, 4
  %s3587 = scalar_lea.vmem %s3584, %s3586
  %v3588 = vpack.c.bf16 %v3582, %v1072
  %3589 = vst [vmem:[%s3587] sm:$0xff] %v3588
  %s3590 = scalar_lea.vmem %s0, 188
  %v3591 = vld [vmem:[%s3590] sm:$0xf]
  %v3592 = vunpack.c.l.bf16 %v3591
  %v3593 = vunpack.c.h.bf16 %v3591
  %s3594 = scalar_lea.vmem %s1, 2236
  %s3596 = ssub.s32 0, 4
  %s3597 = scalar_lea.vmem %s3594, %s3596
  %v3598 = vpack.c.bf16 %v3592, %v1077
  %3599 = vst [vmem:[%s3597] sm:$0xff] %v3598
  %s3600 = scalar_lea.vmem %s0, 2244
  %v3601 = vld [vmem:[%s3600] sm:$0xf]
  %v3602 = vunpack.c.l.bf16 %v3601
  %v3603 = vunpack.c.h.bf16 %v3601
  %s3604 = scalar_lea.vmem %s1, 196
  %s3606 = ssub.s32 0, 4
  %s3607 = scalar_lea.vmem %s3604, %s3606
  %v3608 = vpack.c.bf16 %v3602, %v1082
  %3609 = vst [vmem:[%s3607] sm:$0xff] %v3608
  %s3610 = scalar_lea.vmem %s0, 1476
  %v3611 = vld [vmem:[%s3610] sm:$0xf]
  %v3612 = vunpack.c.l.bf16 %v3611
  %v3613 = vunpack.c.h.bf16 %v3611
  %s3614 = scalar_lea.vmem %s1, 964
  %s3616 = ssub.s32 0, 4
  %s3617 = scalar_lea.vmem %s3614, %s3616
  %v3618 = vpack.c.bf16 %v3612, %v1087
  %3619 = vst [vmem:[%s3617] sm:$0xff] %v3618
  %s3620 = scalar_lea.vmem %s0, 708
  %v3621 = vld [vmem:[%s3620] sm:$0xf]
  %v3622 = vunpack.c.l.bf16 %v3621
  %v3623 = vunpack.c.h.bf16 %v3621
  %s3624 = scalar_lea.vmem %s1, 1732
  %s3626 = ssub.s32 0, 4
  %s3627 = scalar_lea.vmem %s3624, %s3626
  %v3628 = vpack.c.bf16 %v3622, %v1092
  %3629 = vst [vmem:[%s3627] sm:$0xff] %v3628
  %s3630 = scalar_lea.vmem %s0, 1988
  %v3631 = vld [vmem:[%s3630] sm:$0xf]
  %v3632 = vunpack.c.l.bf16 %v3631
  %v3633 = vunpack.c.h.bf16 %v3631
  %s3634 = scalar_lea.vmem %s1, 452
  %s3636 = ssub.s32 0, 4
  %s3637 = scalar_lea.vmem %s3634, %s3636
  %v3638 = vpack.c.bf16 %v3632, %v1097
  %3639 = vst [vmem:[%s3637] sm:$0xff] %v3638
  %s3640 = scalar_lea.vmem %s0, 1220
  %v3641 = vld [vmem:[%s3640] sm:$0xf]
  %v3642 = vunpack.c.l.bf16 %v3641
  %v3643 = vunpack.c.h.bf16 %v3641
  %s3644 = scalar_lea.vmem %s1, 1220
  %s3646 = ssub.s32 0, 4
  %s3647 = scalar_lea.vmem %s3644, %s3646
  %v3648 = vpack.c.bf16 %v3642, %v1102
  %3649 = vst [vmem:[%s3647] sm:$0xff] %v3648
  %s3650 = scalar_lea.vmem %s0, 452
  %v3651 = vld [vmem:[%s3650] sm:$0xf]
  %v3652 = vunpack.c.l.bf16 %v3651
  %v3653 = vunpack.c.h.bf16 %v3651
  %s3654 = scalar_lea.vmem %s1, 1988
  %s3656 = ssub.s32 0, 4
  %s3657 = scalar_lea.vmem %s3654, %s3656
  %v3658 = vpack.c.bf16 %v3652, %v1107
  %3659 = vst [vmem:[%s3657] sm:$0xff] %v3658
  %s3660 = scalar_lea.vmem %s0, 1732
  %v3661 = vld [vmem:[%s3660] sm:$0xf]
  %v3662 = vunpack.c.l.bf16 %v3661
  %v3663 = vunpack.c.h.bf16 %v3661
  %s3664 = scalar_lea.vmem %s1, 708
  %s3666 = ssub.s32 0, 4
  %s3667 = scalar_lea.vmem %s3664, %s3666
  %v3668 = vpack.c.bf16 %v3662, %v1112
  %3669 = vst [vmem:[%s3667] sm:$0xff] %v3668
  %s3670 = scalar_lea.vmem %s0, 964
  %v3671 = vld [vmem:[%s3670] sm:$0xf]
  %v3672 = vunpack.c.l.bf16 %v3671
  %v3673 = vunpack.c.h.bf16 %v3671
  %s3674 = scalar_lea.vmem %s1, 1476
  %s3676 = ssub.s32 0, 4
  %s3677 = scalar_lea.vmem %s3674, %s3676
  %v3678 = vpack.c.bf16 %v3672, %v1117
  %3679 = vst [vmem:[%s3677] sm:$0xff] %v3678
  %s3680 = scalar_lea.vmem %s0, 196
  %v3681 = vld [vmem:[%s3680] sm:$0xf]
  %v3682 = vunpack.c.l.bf16 %v3681
  %v3683 = vunpack.c.h.bf16 %v3681
  %s3684 = scalar_lea.vmem %s1, 2244
  %s3686 = ssub.s32 0, 4
  %s3687 = scalar_lea.vmem %s3684, %s3686
  %v3688 = vpack.c.bf16 %v3682, %v1122
  %3689 = vst [vmem:[%s3687] sm:$0xff] %v3688
  %s3690 = scalar_lea.vmem %s0, 2252
  %v3691 = vld [vmem:[%s3690] sm:$0xf]
  %v3692 = vunpack.c.l.bf16 %v3691
  %v3693 = vunpack.c.h.bf16 %v3691
  %s3694 = scalar_lea.vmem %s1, 204
  %s3696 = ssub.s32 0, 4
  %s3697 = scalar_lea.vmem %s3694, %s3696
  %v3698 = vpack.c.bf16 %v3692, %v1127
  %3699 = vst [vmem:[%s3697] sm:$0xff] %v3698
  %s3700 = scalar_lea.vmem %s0, 1484
  %v3701 = vld [vmem:[%s3700] sm:$0xf]
  %v3702 = vunpack.c.l.bf16 %v3701
  %v3703 = vunpack.c.h.bf16 %v3701
  %s3704 = scalar_lea.vmem %s1, 972
  %s3706 = ssub.s32 0, 4
  %s3707 = scalar_lea.vmem %s3704, %s3706
  %v3708 = vpack.c.bf16 %v3702, %v1132
  %3709 = vst [vmem:[%s3707] sm:$0xff] %v3708
  %s3710 = scalar_lea.vmem %s0, 716
  %v3711 = vld [vmem:[%s3710] sm:$0xf]
  %v3712 = vunpack.c.l.bf16 %v3711
  %v3713 = vunpack.c.h.bf16 %v3711
  %s3714 = scalar_lea.vmem %s1, 1740
  %s3716 = ssub.s32 0, 4
  %s3717 = scalar_lea.vmem %s3714, %s3716
  %v3718 = vpack.c.bf16 %v3712, %v1137
  %3719 = vst [vmem:[%s3717] sm:$0xff] %v3718
  %s3720 = scalar_lea.vmem %s0, 1996
  %v3721 = vld [vmem:[%s3720] sm:$0xf]
  %v3722 = vunpack.c.l.bf16 %v3721
  %v3723 = vunpack.c.h.bf16 %v3721
  %s3724 = scalar_lea.vmem %s1, 460
  %s3726 = ssub.s32 0, 4
  %s3727 = scalar_lea.vmem %s3724, %s3726
  %v3728 = vpack.c.bf16 %v3722, %v1142
  %3729 = vst [vmem:[%s3727] sm:$0xff] %v3728
  %s3730 = scalar_lea.vmem %s0, 1228
  %v3731 = vld [vmem:[%s3730] sm:$0xf]
  %v3732 = vunpack.c.l.bf16 %v3731
  %v3733 = vunpack.c.h.bf16 %v3731
  %s3734 = scalar_lea.vmem %s1, 1228
  %s3736 = ssub.s32 0, 4
  %s3737 = scalar_lea.vmem %s3734, %s3736
  %v3738 = vpack.c.bf16 %v3732, %v1147
  %3739 = vst [vmem:[%s3737] sm:$0xff] %v3738
  %s3740 = scalar_lea.vmem %s0, 460
  %v3741 = vld [vmem:[%s3740] sm:$0xf]
  %v3742 = vunpack.c.l.bf16 %v3741
  %v3743 = vunpack.c.h.bf16 %v3741
  %s3744 = scalar_lea.vmem %s1, 1996
  %s3746 = ssub.s32 0, 4
  %s3747 = scalar_lea.vmem %s3744, %s3746
  %v3748 = vpack.c.bf16 %v3742, %v1152
  %3749 = vst [vmem:[%s3747] sm:$0xff] %v3748
  %s3750 = scalar_lea.vmem %s0, 1740
  %v3751 = vld [vmem:[%s3750] sm:$0xf]
  %v3752 = vunpack.c.l.bf16 %v3751
  %v3753 = vunpack.c.h.bf16 %v3751
  %s3754 = scalar_lea.vmem %s1, 716
  %s3756 = ssub.s32 0, 4
  %s3757 = scalar_lea.vmem %s3754, %s3756
  %v3758 = vpack.c.bf16 %v3752, %v1157
  %3759 = vst [vmem:[%s3757] sm:$0xff] %v3758
  %s3760 = scalar_lea.vmem %s0, 972
  %v3761 = vld [vmem:[%s3760] sm:$0xf]
  %v3762 = vunpack.c.l.bf16 %v3761
  %v3763 = vunpack.c.h.bf16 %v3761
  %s3764 = scalar_lea.vmem %s1, 1484
  %s3766 = ssub.s32 0, 4
  %s3767 = scalar_lea.vmem %s3764, %s3766
  %v3768 = vpack.c.bf16 %v3762, %v1162
  %3769 = vst [vmem:[%s3767] sm:$0xff] %v3768
  %s3770 = scalar_lea.vmem %s0, 204
  %v3771 = vld [vmem:[%s3770] sm:$0xf]
  %v3772 = vunpack.c.l.bf16 %v3771
  %v3773 = vunpack.c.h.bf16 %v3771
  %s3774 = scalar_lea.vmem %s1, 2252
  %s3776 = ssub.s32 0, 4
  %s3777 = scalar_lea.vmem %s3774, %s3776
  %v3778 = vpack.c.bf16 %v3772, %v1167
  %3779 = vst [vmem:[%s3777] sm:$0xff] %v3778
  %s3780 = scalar_lea.vmem %s0, 2260
  %v3781 = vld [vmem:[%s3780] sm:$0xf]
  %v3782 = vunpack.c.l.bf16 %v3781
  %v3783 = vunpack.c.h.bf16 %v3781
  %s3784 = scalar_lea.vmem %s1, 212
  %s3786 = ssub.s32 0, 4
  %s3787 = scalar_lea.vmem %s3784, %s3786
  %v3788 = vpack.c.bf16 %v3782, %v1172
  %3789 = vst [vmem:[%s3787] sm:$0xff] %v3788
  %s3790 = scalar_lea.vmem %s0, 1492
  %v3791 = vld [vmem:[%s3790] sm:$0xf]
  %v3792 = vunpack.c.l.bf16 %v3791
  %v3793 = vunpack.c.h.bf16 %v3791
  %s3794 = scalar_lea.vmem %s1, 980
  %s3796 = ssub.s32 0, 4
  %s3797 = scalar_lea.vmem %s3794, %s3796
  %v3798 = vpack.c.bf16 %v3792, %v1177
  %3799 = vst [vmem:[%s3797] sm:$0xff] %v3798
  %s3800 = scalar_lea.vmem %s0, 724
  %v3801 = vld [vmem:[%s3800] sm:$0xf]
  %v3802 = vunpack.c.l.bf16 %v3801
  %v3803 = vunpack.c.h.bf16 %v3801
  %s3804 = scalar_lea.vmem %s1, 1748
  %s3806 = ssub.s32 0, 4
  %s3807 = scalar_lea.vmem %s3804, %s3806
  %v3808 = vpack.c.bf16 %v3802, %v1182
  %3809 = vst [vmem:[%s3807] sm:$0xff] %v3808
  %s3810 = scalar_lea.vmem %s0, 2004
  %v3811 = vld [vmem:[%s3810] sm:$0xf]
  %v3812 = vunpack.c.l.bf16 %v3811
  %v3813 = vunpack.c.h.bf16 %v3811
  %s3814 = scalar_lea.vmem %s1, 468
  %s3816 = ssub.s32 0, 4
  %s3817 = scalar_lea.vmem %s3814, %s3816
  %v3818 = vpack.c.bf16 %v3812, %v1187
  %3819 = vst [vmem:[%s3817] sm:$0xff] %v3818
  %s3820 = scalar_lea.vmem %s0, 1236
  %v3821 = vld [vmem:[%s3820] sm:$0xf]
  %v3822 = vunpack.c.l.bf16 %v3821
  %v3823 = vunpack.c.h.bf16 %v3821
  %s3824 = scalar_lea.vmem %s1, 1236
  %s3826 = ssub.s32 0, 4
  %s3827 = scalar_lea.vmem %s3824, %s3826
  %v3828 = vpack.c.bf16 %v3822, %v1192
  %3829 = vst [vmem:[%s3827] sm:$0xff] %v3828
  %s3830 = scalar_lea.vmem %s0, 468
  %v3831 = vld [vmem:[%s3830] sm:$0xf]
  %v3832 = vunpack.c.l.bf16 %v3831
  %v3833 = vunpack.c.h.bf16 %v3831
  %s3834 = scalar_lea.vmem %s1, 2004
  %s3836 = ssub.s32 0, 4
  %s3837 = scalar_lea.vmem %s3834, %s3836
  %v3838 = vpack.c.bf16 %v3832, %v1197
  %3839 = vst [vmem:[%s3837] sm:$0xff] %v3838
  %s3840 = scalar_lea.vmem %s0, 1748
  %v3841 = vld [vmem:[%s3840] sm:$0xf]
  %v3842 = vunpack.c.l.bf16 %v3841
  %v3843 = vunpack.c.h.bf16 %v3841
  %s3844 = scalar_lea.vmem %s1, 724
  %s3846 = ssub.s32 0, 4
  %s3847 = scalar_lea.vmem %s3844, %s3846
  %v3848 = vpack.c.bf16 %v3842, %v1202
  %3849 = vst [vmem:[%s3847] sm:$0xff] %v3848
  %s3850 = scalar_lea.vmem %s0, 980
  %v3851 = vld [vmem:[%s3850] sm:$0xf]
  %v3852 = vunpack.c.l.bf16 %v3851
  %v3853 = vunpack.c.h.bf16 %v3851
  %s3854 = scalar_lea.vmem %s1, 1492
  %s3856 = ssub.s32 0, 4
  %s3857 = scalar_lea.vmem %s3854, %s3856
  %v3858 = vpack.c.bf16 %v3852, %v1207
  %3859 = vst [vmem:[%s3857] sm:$0xff] %v3858
  %s3860 = scalar_lea.vmem %s0, 212
  %v3861 = vld [vmem:[%s3860] sm:$0xf]
  %v3862 = vunpack.c.l.bf16 %v3861
  %v3863 = vunpack.c.h.bf16 %v3861
  %s3864 = scalar_lea.vmem %s1, 2260
  %s3866 = ssub.s32 0, 4
  %s3867 = scalar_lea.vmem %s3864, %s3866
  %v3868 = vpack.c.bf16 %v3862, %v1212
  %3869 = vst [vmem:[%s3867] sm:$0xff] %v3868
  %s3870 = scalar_lea.vmem %s0, 2268
  %v3871 = vld [vmem:[%s3870] sm:$0xf]
  %v3872 = vunpack.c.l.bf16 %v3871
  %v3873 = vunpack.c.h.bf16 %v3871
  %s3874 = scalar_lea.vmem %s1, 220
  %s3876 = ssub.s32 0, 4
  %s3877 = scalar_lea.vmem %s3874, %s3876
  %v3878 = vpack.c.bf16 %v3872, %v1217
  %3879 = vst [vmem:[%s3877] sm:$0xff] %v3878
  %s3880 = scalar_lea.vmem %s0, 1500
  %v3881 = vld [vmem:[%s3880] sm:$0xf]
  %v3882 = vunpack.c.l.bf16 %v3881
  %v3883 = vunpack.c.h.bf16 %v3881
  %s3884 = scalar_lea.vmem %s1, 988
  %s3886 = ssub.s32 0, 4
  %s3887 = scalar_lea.vmem %s3884, %s3886
  %v3888 = vpack.c.bf16 %v3882, %v1222
  %3889 = vst [vmem:[%s3887] sm:$0xff] %v3888
  %s3890 = scalar_lea.vmem %s0, 732
  %v3891 = vld [vmem:[%s3890] sm:$0xf]
  %v3892 = vunpack.c.l.bf16 %v3891
  %v3893 = vunpack.c.h.bf16 %v3891
  %s3894 = scalar_lea.vmem %s1, 1756
  %s3896 = ssub.s32 0, 4
  %s3897 = scalar_lea.vmem %s3894, %s3896
  %v3898 = vpack.c.bf16 %v3892, %v1227
  %3899 = vst [vmem:[%s3897] sm:$0xff] %v3898
  %s3900 = scalar_lea.vmem %s0, 2012
  %v3901 = vld [vmem:[%s3900] sm:$0xf]
  %v3902 = vunpack.c.l.bf16 %v3901
  %v3903 = vunpack.c.h.bf16 %v3901
  %s3904 = scalar_lea.vmem %s1, 476
  %s3906 = ssub.s32 0, 4
  %s3907 = scalar_lea.vmem %s3904, %s3906
  %v3908 = vpack.c.bf16 %v3902, %v1232
  %3909 = vst [vmem:[%s3907] sm:$0xff] %v3908
  %s3910 = scalar_lea.vmem %s0, 1244
  %v3911 = vld [vmem:[%s3910] sm:$0xf]
  %v3912 = vunpack.c.l.bf16 %v3911
  %v3913 = vunpack.c.h.bf16 %v3911
  %s3914 = scalar_lea.vmem %s1, 1244
  %s3916 = ssub.s32 0, 4
  %s3917 = scalar_lea.vmem %s3914, %s3916
  %v3918 = vpack.c.bf16 %v3912, %v1237
  %3919 = vst [vmem:[%s3917] sm:$0xff] %v3918
  %s3920 = scalar_lea.vmem %s0, 476
  %v3921 = vld [vmem:[%s3920] sm:$0xf]
  %v3922 = vunpack.c.l.bf16 %v3921
  %v3923 = vunpack.c.h.bf16 %v3921
  %s3924 = scalar_lea.vmem %s1, 2012
  %s3926 = ssub.s32 0, 4
  %s3927 = scalar_lea.vmem %s3924, %s3926
  %v3928 = vpack.c.bf16 %v3922, %v1242
  %3929 = vst [vmem:[%s3927] sm:$0xff] %v3928
  %s3930 = scalar_lea.vmem %s0, 1756
  %v3931 = vld [vmem:[%s3930] sm:$0xf]
  %v3932 = vunpack.c.l.bf16 %v3931
  %v3933 = vunpack.c.h.bf16 %v3931
  %s3934 = scalar_lea.vmem %s1, 732
  %s3936 = ssub.s32 0, 4
  %s3937 = scalar_lea.vmem %s3934, %s3936
  %v3938 = vpack.c.bf16 %v3932, %v1247
  %3939 = vst [vmem:[%s3937] sm:$0xff] %v3938
  %s3940 = scalar_lea.vmem %s0, 988
  %v3941 = vld [vmem:[%s3940] sm:$0xf]
  %v3942 = vunpack.c.l.bf16 %v3941
  %v3943 = vunpack.c.h.bf16 %v3941
  %s3944 = scalar_lea.vmem %s1, 1500
  %s3946 = ssub.s32 0, 4
  %s3947 = scalar_lea.vmem %s3944, %s3946
  %v3948 = vpack.c.bf16 %v3942, %v1252
  %3949 = vst [vmem:[%s3947] sm:$0xff] %v3948
  %s3950 = scalar_lea.vmem %s0, 220
  %v3951 = vld [vmem:[%s3950] sm:$0xf]
  %v3952 = vunpack.c.l.bf16 %v3951
  %v3953 = vunpack.c.h.bf16 %v3951
  %s3954 = scalar_lea.vmem %s1, 2268
  %s3956 = ssub.s32 0, 4
  %s3957 = scalar_lea.vmem %s3954, %s3956
  %v3958 = vpack.c.bf16 %v3952, %v1257
  %3959 = vst [vmem:[%s3957] sm:$0xff] %v3958
  %s3960 = scalar_lea.vmem %s0, 2276
  %v3961 = vld [vmem:[%s3960] sm:$0xf]
  %v3962 = vunpack.c.l.bf16 %v3961
  %v3963 = vunpack.c.h.bf16 %v3961
  %s3964 = scalar_lea.vmem %s1, 228
  %s3966 = ssub.s32 0, 4
  %s3967 = scalar_lea.vmem %s3964, %s3966
  %v3968 = vpack.c.bf16 %v3962, %v1262
  %3969 = vst [vmem:[%s3967] sm:$0xff] %v3968
  %s3970 = scalar_lea.vmem %s0, 1508
  %v3971 = vld [vmem:[%s3970] sm:$0xf]
  %v3972 = vunpack.c.l.bf16 %v3971
  %v3973 = vunpack.c.h.bf16 %v3971
  %s3974 = scalar_lea.vmem %s1, 996
  %s3976 = ssub.s32 0, 4
  %s3977 = scalar_lea.vmem %s3974, %s3976
  %v3978 = vpack.c.bf16 %v3972, %v1267
  %3979 = vst [vmem:[%s3977] sm:$0xff] %v3978
  %s3980 = scalar_lea.vmem %s0, 740
  %v3981 = vld [vmem:[%s3980] sm:$0xf]
  %v3982 = vunpack.c.l.bf16 %v3981
  %v3983 = vunpack.c.h.bf16 %v3981
  %s3984 = scalar_lea.vmem %s1, 1764
  %s3986 = ssub.s32 0, 4
  %s3987 = scalar_lea.vmem %s3984, %s3986
  %v3988 = vpack.c.bf16 %v3982, %v1272
  %3989 = vst [vmem:[%s3987] sm:$0xff] %v3988
  %s3990 = scalar_lea.vmem %s0, 2020
  %v3991 = vld [vmem:[%s3990] sm:$0xf]
  %v3992 = vunpack.c.l.bf16 %v3991
  %v3993 = vunpack.c.h.bf16 %v3991
  %s3994 = scalar_lea.vmem %s1, 484
  %s3996 = ssub.s32 0, 4
  %s3997 = scalar_lea.vmem %s3994, %s3996
  %v3998 = vpack.c.bf16 %v3992, %v1277
  %3999 = vst [vmem:[%s3997] sm:$0xff] %v3998
  %s4000 = scalar_lea.vmem %s0, 1252
  %v4001 = vld [vmem:[%s4000] sm:$0xf]
  %v4002 = vunpack.c.l.bf16 %v4001
  %v4003 = vunpack.c.h.bf16 %v4001
  %s4004 = scalar_lea.vmem %s1, 1252
  %s4006 = ssub.s32 0, 4
  %s4007 = scalar_lea.vmem %s4004, %s4006
  %v4008 = vpack.c.bf16 %v4002, %v1282
  %4009 = vst [vmem:[%s4007] sm:$0xff] %v4008
  %s4010 = scalar_lea.vmem %s0, 484
  %v4011 = vld [vmem:[%s4010] sm:$0xf]
  %v4012 = vunpack.c.l.bf16 %v4011
  %v4013 = vunpack.c.h.bf16 %v4011
  %s4014 = scalar_lea.vmem %s1, 2020
  %s4016 = ssub.s32 0, 4
  %s4017 = scalar_lea.vmem %s4014, %s4016
  %v4018 = vpack.c.bf16 %v4012, %v1287
  %4019 = vst [vmem:[%s4017] sm:$0xff] %v4018
  %s4020 = scalar_lea.vmem %s0, 1764
  %v4021 = vld [vmem:[%s4020] sm:$0xf]
  %v4022 = vunpack.c.l.bf16 %v4021
  %v4023 = vunpack.c.h.bf16 %v4021
  %s4024 = scalar_lea.vmem %s1, 740
  %s4026 = ssub.s32 0, 4
  %s4027 = scalar_lea.vmem %s4024, %s4026
  %v4028 = vpack.c.bf16 %v4022, %v1292
  %4029 = vst [vmem:[%s4027] sm:$0xff] %v4028
  %s4030 = scalar_lea.vmem %s0, 996
  %v4031 = vld [vmem:[%s4030] sm:$0xf]
  %v4032 = vunpack.c.l.bf16 %v4031
  %v4033 = vunpack.c.h.bf16 %v4031
  %s4034 = scalar_lea.vmem %s1, 1508
  %s4036 = ssub.s32 0, 4
  %s4037 = scalar_lea.vmem %s4034, %s4036
  %v4038 = vpack.c.bf16 %v4032, %v1297
  %4039 = vst [vmem:[%s4037] sm:$0xff] %v4038
  %s4040 = scalar_lea.vmem %s0, 228
  %v4041 = vld [vmem:[%s4040] sm:$0xf]
  %v4042 = vunpack.c.l.bf16 %v4041
  %v4043 = vunpack.c.h.bf16 %v4041
  %s4044 = scalar_lea.vmem %s1, 2276
  %s4046 = ssub.s32 0, 4
  %s4047 = scalar_lea.vmem %s4044, %s4046
  %v4048 = vpack.c.bf16 %v4042, %v1302
  %4049 = vst [vmem:[%s4047] sm:$0xff] %v4048
  %s4050 = scalar_lea.vmem %s0, 2284
  %v4051 = vld [vmem:[%s4050] sm:$0xf]
  %v4052 = vunpack.c.l.bf16 %v4051
  %v4053 = vunpack.c.h.bf16 %v4051
  %s4054 = scalar_lea.vmem %s1, 236
  %s4056 = ssub.s32 0, 4
  %s4057 = scalar_lea.vmem %s4054, %s4056
  %v4058 = vpack.c.bf16 %v4052, %v1307
  %4059 = vst [vmem:[%s4057] sm:$0xff] %v4058
  %s4060 = scalar_lea.vmem %s0, 1516
  %v4061 = vld [vmem:[%s4060] sm:$0xf]
  %v4062 = vunpack.c.l.bf16 %v4061
  %v4063 = vunpack.c.h.bf16 %v4061
  %s4064 = scalar_lea.vmem %s1, 1004
  %s4066 = ssub.s32 0, 4
  %s4067 = scalar_lea.vmem %s4064, %s4066
  %v4068 = vpack.c.bf16 %v4062, %v1312
  %4069 = vst [vmem:[%s4067] sm:$0xff] %v4068
  %s4070 = scalar_lea.vmem %s0, 748
  %v4071 = vld [vmem:[%s4070] sm:$0xf]
  %v4072 = vunpack.c.l.bf16 %v4071
  %v4073 = vunpack.c.h.bf16 %v4071
  %s4074 = scalar_lea.vmem %s1, 1772
  %s4076 = ssub.s32 0, 4
  %s4077 = scalar_lea.vmem %s4074, %s4076
  %v4078 = vpack.c.bf16 %v4072, %v1317
  %4079 = vst [vmem:[%s4077] sm:$0xff] %v4078
  %s4080 = scalar_lea.vmem %s0, 2028
  %v4081 = vld [vmem:[%s4080] sm:$0xf]
  %v4082 = vunpack.c.l.bf16 %v4081
  %v4083 = vunpack.c.h.bf16 %v4081
  %s4084 = scalar_lea.vmem %s1, 492
  %s4086 = ssub.s32 0, 4
  %s4087 = scalar_lea.vmem %s4084, %s4086
  %v4088 = vpack.c.bf16 %v4082, %v1322
  %4089 = vst [vmem:[%s4087] sm:$0xff] %v4088
  %s4090 = scalar_lea.vmem %s0, 1260
  %v4091 = vld [vmem:[%s4090] sm:$0xf]
  %v4092 = vunpack.c.l.bf16 %v4091
  %v4093 = vunpack.c.h.bf16 %v4091
  %s4094 = scalar_lea.vmem %s1, 1260
  %s4096 = ssub.s32 0, 4
  %s4097 = scalar_lea.vmem %s4094, %s4096
  %v4098 = vpack.c.bf16 %v4092, %v1327
  %4099 = vst [vmem:[%s4097] sm:$0xff] %v4098
  %s4100 = scalar_lea.vmem %s0, 492
  %v4101 = vld [vmem:[%s4100] sm:$0xf]
  %v4102 = vunpack.c.l.bf16 %v4101
  %v4103 = vunpack.c.h.bf16 %v4101
  %s4104 = scalar_lea.vmem %s1, 2028
  %s4106 = ssub.s32 0, 4
  %s4107 = scalar_lea.vmem %s4104, %s4106
  %v4108 = vpack.c.bf16 %v4102, %v1332
  %4109 = vst [vmem:[%s4107] sm:$0xff] %v4108
  %s4110 = scalar_lea.vmem %s0, 1772
  %v4111 = vld [vmem:[%s4110] sm:$0xf]
  %v4112 = vunpack.c.l.bf16 %v4111
  %v4113 = vunpack.c.h.bf16 %v4111
  %s4114 = scalar_lea.vmem %s1, 748
  %s4116 = ssub.s32 0, 4
  %s4117 = scalar_lea.vmem %s4114, %s4116
  %v4118 = vpack.c.bf16 %v4112, %v1337
  %4119 = vst [vmem:[%s4117] sm:$0xff] %v4118
  %s4120 = scalar_lea.vmem %s0, 1004
  %v4121 = vld [vmem:[%s4120] sm:$0xf]
  %v4122 = vunpack.c.l.bf16 %v4121
  %v4123 = vunpack.c.h.bf16 %v4121
  %s4124 = scalar_lea.vmem %s1, 1516
  %s4126 = ssub.s32 0, 4
  %s4127 = scalar_lea.vmem %s4124, %s4126
  %v4128 = vpack.c.bf16 %v4122, %v1342
  %4129 = vst [vmem:[%s4127] sm:$0xff] %v4128
  %s4130 = scalar_lea.vmem %s0, 236
  %v4131 = vld [vmem:[%s4130] sm:$0xf]
  %v4132 = vunpack.c.l.bf16 %v4131
  %v4133 = vunpack.c.h.bf16 %v4131
  %s4134 = scalar_lea.vmem %s1, 2284
  %s4136 = ssub.s32 0, 4
  %s4137 = scalar_lea.vmem %s4134, %s4136
  %v4138 = vpack.c.bf16 %v4132, %v1347
  %4139 = vst [vmem:[%s4137] sm:$0xff] %v4138
  %s4140 = scalar_lea.vmem %s0, 2292
  %v4141 = vld [vmem:[%s4140] sm:$0xf]
  %v4142 = vunpack.c.l.bf16 %v4141
  %v4143 = vunpack.c.h.bf16 %v4141
  %s4144 = scalar_lea.vmem %s1, 244
  %s4146 = ssub.s32 0, 4
  %s4147 = scalar_lea.vmem %s4144, %s4146
  %v4148 = vpack.c.bf16 %v4142, %v1352
  %4149 = vst [vmem:[%s4147] sm:$0xff] %v4148
  %s4150 = scalar_lea.vmem %s0, 1524
  %v4151 = vld [vmem:[%s4150] sm:$0xf]
  %v4152 = vunpack.c.l.bf16 %v4151
  %v4153 = vunpack.c.h.bf16 %v4151
  %s4154 = scalar_lea.vmem %s1, 1012
  %s4156 = ssub.s32 0, 4
  %s4157 = scalar_lea.vmem %s4154, %s4156
  %v4158 = vpack.c.bf16 %v4152, %v1357
  %4159 = vst [vmem:[%s4157] sm:$0xff] %v4158
  %s4160 = scalar_lea.vmem %s0, 756
  %v4161 = vld [vmem:[%s4160] sm:$0xf]
  %v4162 = vunpack.c.l.bf16 %v4161
  %v4163 = vunpack.c.h.bf16 %v4161
  %s4164 = scalar_lea.vmem %s1, 1780
  %s4166 = ssub.s32 0, 4
  %s4167 = scalar_lea.vmem %s4164, %s4166
  %v4168 = vpack.c.bf16 %v4162, %v1362
  %4169 = vst [vmem:[%s4167] sm:$0xff] %v4168
  %s4170 = scalar_lea.vmem %s0, 2036
  %v4171 = vld [vmem:[%s4170] sm:$0xf]
  %v4172 = vunpack.c.l.bf16 %v4171
  %v4173 = vunpack.c.h.bf16 %v4171
  %s4174 = scalar_lea.vmem %s1, 500
  %s4176 = ssub.s32 0, 4
  %s4177 = scalar_lea.vmem %s4174, %s4176
  %v4178 = vpack.c.bf16 %v4172, %v1367
  %4179 = vst [vmem:[%s4177] sm:$0xff] %v4178
  %s4180 = scalar_lea.vmem %s0, 1268
  %v4181 = vld [vmem:[%s4180] sm:$0xf]
  %v4182 = vunpack.c.l.bf16 %v4181
  %v4183 = vunpack.c.h.bf16 %v4181
  %s4184 = scalar_lea.vmem %s1, 1268
  %s4186 = ssub.s32 0, 4
  %s4187 = scalar_lea.vmem %s4184, %s4186
  %v4188 = vpack.c.bf16 %v4182, %v1372
  %4189 = vst [vmem:[%s4187] sm:$0xff] %v4188
  %s4190 = scalar_lea.vmem %s0, 500
  %v4191 = vld [vmem:[%s4190] sm:$0xf]
  %v4192 = vunpack.c.l.bf16 %v4191
  %v4193 = vunpack.c.h.bf16 %v4191
  %s4194 = scalar_lea.vmem %s1, 2036
  %s4196 = ssub.s32 0, 4
  %s4197 = scalar_lea.vmem %s4194, %s4196
  %v4198 = vpack.c.bf16 %v4192, %v1377
  %4199 = vst [vmem:[%s4197] sm:$0xff] %v4198
  %s4200 = scalar_lea.vmem %s0, 1780
  %v4201 = vld [vmem:[%s4200] sm:$0xf]
  %v4202 = vunpack.c.l.bf16 %v4201
  %v4203 = vunpack.c.h.bf16 %v4201
  %s4204 = scalar_lea.vmem %s1, 756
  %s4206 = ssub.s32 0, 4
  %s4207 = scalar_lea.vmem %s4204, %s4206
  %v4208 = vpack.c.bf16 %v4202, %v1382
  %4209 = vst [vmem:[%s4207] sm:$0xff] %v4208
  %s4210 = scalar_lea.vmem %s0, 1012
  %v4211 = vld [vmem:[%s4210] sm:$0xf]
  %v4212 = vunpack.c.l.bf16 %v4211
  %v4213 = vunpack.c.h.bf16 %v4211
  %s4214 = scalar_lea.vmem %s1, 1524
  %s4216 = ssub.s32 0, 4
  %s4217 = scalar_lea.vmem %s4214, %s4216
  %v4218 = vpack.c.bf16 %v4212, %v1387
  %4219 = vst [vmem:[%s4217] sm:$0xff] %v4218
  %s4220 = scalar_lea.vmem %s0, 244
  %v4221 = vld [vmem:[%s4220] sm:$0xf]
  %v4222 = vunpack.c.l.bf16 %v4221
  %v4223 = vunpack.c.h.bf16 %v4221
  %s4224 = scalar_lea.vmem %s1, 2292
  %s4226 = ssub.s32 0, 4
  %s4227 = scalar_lea.vmem %s4224, %s4226
  %v4228 = vpack.c.bf16 %v4222, %v1392
  %4229 = vst [vmem:[%s4227] sm:$0xff] %v4228
  %s4230 = scalar_lea.vmem %s0, 2300
  %v4231 = vld [vmem:[%s4230] sm:$0xf]
  %v4232 = vunpack.c.l.bf16 %v4231
  %v4233 = vunpack.c.h.bf16 %v4231
  %s4234 = scalar_lea.vmem %s1, 252
  %s4236 = ssub.s32 0, 4
  %s4237 = scalar_lea.vmem %s4234, %s4236
  %v4238 = vpack.c.bf16 %v4232, %v1397
  %4239 = vst [vmem:[%s4237] sm:$0xff] %v4238
  %s4240 = scalar_lea.vmem %s0, 1532
  %v4241 = vld [vmem:[%s4240] sm:$0xf]
  %v4242 = vunpack.c.l.bf16 %v4241
  %v4243 = vunpack.c.h.bf16 %v4241
  %s4244 = scalar_lea.vmem %s1, 1020
  %s4246 = ssub.s32 0, 4
  %s4247 = scalar_lea.vmem %s4244, %s4246
  %v4248 = vpack.c.bf16 %v4242, %v1402
  %4249 = vst [vmem:[%s4247] sm:$0xff] %v4248
  %s4250 = scalar_lea.vmem %s0, 764
  %v4251 = vld [vmem:[%s4250] sm:$0xf]
  %v4252 = vunpack.c.l.bf16 %v4251
  %v4253 = vunpack.c.h.bf16 %v4251
  %s4254 = scalar_lea.vmem %s1, 1788
  %s4256 = ssub.s32 0, 4
  %s4257 = scalar_lea.vmem %s4254, %s4256
  %v4258 = vpack.c.bf16 %v4252, %v1407
  %4259 = vst [vmem:[%s4257] sm:$0xff] %v4258
  %s4260 = scalar_lea.vmem %s0, 2044
  %v4261 = vld [vmem:[%s4260] sm:$0xf]
  %v4262 = vunpack.c.l.bf16 %v4261
  %v4263 = vunpack.c.h.bf16 %v4261
  %s4264 = scalar_lea.vmem %s1, 508
  %s4266 = ssub.s32 0, 4
  %s4267 = scalar_lea.vmem %s4264, %s4266
  %v4268 = vpack.c.bf16 %v4262, %v1412
  %4269 = vst [vmem:[%s4267] sm:$0xff] %v4268
  %s4270 = scalar_lea.vmem %s0, 1276
  %v4271 = vld [vmem:[%s4270] sm:$0xf]
  %v4272 = vunpack.c.l.bf16 %v4271
  %v4273 = vunpack.c.h.bf16 %v4271
  %s4274 = scalar_lea.vmem %s1, 1276
  %s4276 = ssub.s32 0, 4
  %s4277 = scalar_lea.vmem %s4274, %s4276
  %v4278 = vpack.c.bf16 %v4272, %v1417
  %4279 = vst [vmem:[%s4277] sm:$0xff] %v4278
  %s4280 = scalar_lea.vmem %s0, 508
  %v4281 = vld [vmem:[%s4280] sm:$0xf]
  %v4282 = vunpack.c.l.bf16 %v4281
  %v4283 = vunpack.c.h.bf16 %v4281
  %s4284 = scalar_lea.vmem %s1, 2044
  %s4286 = ssub.s32 0, 4
  %s4287 = scalar_lea.vmem %s4284, %s4286
  %v4288 = vpack.c.bf16 %v4282, %v1422
  %4289 = vst [vmem:[%s4287] sm:$0xff] %v4288
  %s4290 = scalar_lea.vmem %s0, 1788
  %v4291 = vld [vmem:[%s4290] sm:$0xf]
  %v4292 = vunpack.c.l.bf16 %v4291
  %v4293 = vunpack.c.h.bf16 %v4291
  %s4294 = scalar_lea.vmem %s1, 764
  %s4296 = ssub.s32 0, 4
  %s4297 = scalar_lea.vmem %s4294, %s4296
  %v4298 = vpack.c.bf16 %v4292, %v1427
  %4299 = vst [vmem:[%s4297] sm:$0xff] %v4298
  %s4300 = scalar_lea.vmem %s0, 1020
  %v4301 = vld [vmem:[%s4300] sm:$0xf]
  %v4302 = vunpack.c.l.bf16 %v4301
  %v4303 = vunpack.c.h.bf16 %v4301
  %s4304 = scalar_lea.vmem %s1, 1532
  %s4306 = ssub.s32 0, 4
  %s4307 = scalar_lea.vmem %s4304, %s4306
  %v4308 = vpack.c.bf16 %v4302, %v1432
  %4309 = vst [vmem:[%s4307] sm:$0xff] %v4308
  %s4310 = scalar_lea.vmem %s0, 252
  %v4311 = vld [vmem:[%s4310] sm:$0xf]
  %v4312 = vunpack.c.l.bf16 %v4311
  %v4313 = vunpack.c.h.bf16 %v4311
  %s4314 = scalar_lea.vmem %s1, 2300
  %s4316 = ssub.s32 0, 4
  %s4317 = scalar_lea.vmem %s4314, %s4316
  %v4318 = vpack.c.bf16 %v4312, %v1437
  %4319 = vst [vmem:[%s4317] sm:$0xff] %v4318

// kernel: fpn_image_encoder_forward.4
$region0: #{fpn_image_encoder_forward.4}
  #allocation0 [shape = 'u32[]', space=smem, size = 0x4, offset = 0x4, fixed_abs, tag = 'smem constant byte address 0x4 - core index']
  #allocation1 [shape = 'u32[144,128]{1,0:T(1,128)}', space=vmem, size = 0x12000, scoped, tag = 'internal scratch']
  %s0 = inlined_call_operand.vmem [shape: bf16[512,256], index: 0, kind: input, shape index: {}]
  %s1 = inlined_call_operand.vmem [shape: bf16[256,256], index: 1, kind: input, shape index: {}]
  %s2 = inlined_call_operand.vmem [shape: f32[1,256], index: 2, kind: input, shape index: {}]
  %s3 = inlined_call_operand.vmem [shape: bf16[512,256], index: 3, kind: output, shape index: {}]
  %s4 = sld [smem:[#allocation0]]
  $region45: #{fpn_image_encoder_forward.4} parent=0
    _
  %s6 = ssub.s32 1, %s4
  %s7 = scalar_select 0, %s6, %s4
  loop: start=0, step=1, limit=4
  $region2: #{fpn_image_encoder_forward.4} parent=0 // loop_pre_header
    _
  $region3: #{fpn_image_encoder_forward.4} parent=0 // loop_header
    %s9 = sphi 0, %s13
    %p10 = scmp.ge.s32.totalorder %s9, 4
    %s19 = sphi 0, %s21
    %s22 = sphi 0, %s19
    %s23 = sphi 0, %s22
    %s39 = sphi 0, %s23
    %s43 = sphi 0, %s43
    %s45 = sphi 0, %s43
    %s46 = sphi 0, %s45
    %s60 = sphi 0, %s46
    %s64 = sphi 0, %s64
    %s66 = sphi 0, %s64
    %s67 = sphi 0, %s66
    %s81 = sphi 0, %s67
    %s87 = sphi 0, %s89
    %s90 = sphi 0, %s87
    %s91 = sphi 0, %s90
    %s107 = sphi 0, %s91
  $region4: #{fpn_image_encoder_forward.4} parent=0 // loop_header_branch
    %12 = sbr.rel (%p10) target = $region8
  $region5: #{fpn_image_encoder_forward.4} parent=0 // loop_body
    %s14 = ssub.s32 %s9, 1
    %s15 = ssub.s32 %s9, 2
    %s16 = sadd.s32 %s9, 1
    %s17 = ssub.s32 %s9, %s16
    %p18 = scmp.eq.s32.totalorder %s17, 0
    %s20 = sadd.s32 %s19, 1
    %s21 = scalar_select %p18, %s19, %s20
    %p24 = pneg %p18
    %p25 = scmp.eq.s32.totalorder %s9, 1
    %p26 = por %p24, %p25
    %p27 = scmp.ne.s32.totalorder %s19, %s22
    %p28 = scmp.eq.s32.totalorder %s9, 0
    %p29 = por %p27, %p28
    %p30 = scmp.ne.s32.totalorder %s19, %s22
    %p31 = scmp.eq.s32.totalorder %s14, 1
    %p32 = por %p30, %p31
    %p33 = scmp.ne.s32.totalorder %s22, %s23
    %p34 = scmp.eq.s32.totalorder %s14, 0
    %p35 = por %p33, %p34
    %p36 = scmp.ne.s32.totalorder %s22, %s23
    %p37 = scmp.eq.s32.totalorder %s15, 1
    %p38 = por %p36, %p37
    %p40 = scmp.ne.s32.totalorder %s23, %s39
    %p41 = scmp.eq.s32.totalorder %s15, 0
    %p42 = por %p40, %p41
    %s44 = sadd.s32 %s43, 1
    %p47 = scmp.eq.s32.totalorder %s9, 1
    %p48 = scmp.ne.s32.totalorder %s43, %s45
    %p49 = scmp.eq.s32.totalorder %s9, 0
    %p50 = por %p48, %p49
    %p51 = scmp.ne.s32.totalorder %s43, %s45
    %p52 = scmp.eq.s32.totalorder %s14, 1
    %p53 = por %p51, %p52
    %p54 = scmp.ne.s32.totalorder %s45, %s46
    %p55 = scmp.eq.s32.totalorder %s14, 0
    %p56 = por %p54, %p55
    %p57 = scmp.ne.s32.totalorder %s45, %s46
    %p58 = scmp.eq.s32.totalorder %s15, 1
    %p59 = por %p57, %p58
    %p61 = scmp.ne.s32.totalorder %s46, %s60
    %p62 = scmp.eq.s32.totalorder %s15, 0
    %p63 = por %p61, %p62
    %s65 = sadd.s32 %s64, 1
    %p68 = scmp.eq.s32.totalorder %s9, 1
    %p69 = scmp.ne.s32.totalorder %s64, %s66
    %p70 = scmp.eq.s32.totalorder %s9, 0
    %p71 = por %p69, %p70
    %p72 = scmp.ne.s32.totalorder %s64, %s66
    %p73 = scmp.eq.s32.totalorder %s14, 1
    %p74 = por %p72, %p73
    %p75 = scmp.ne.s32.totalorder %s66, %s67
    %p76 = scmp.eq.s32.totalorder %s14, 0
    %p77 = por %p75, %p76
    %p78 = scmp.ne.s32.totalorder %s66, %s67
    %p79 = scmp.eq.s32.totalorder %s15, 1
    %p80 = por %p78, %p79
    %p82 = scmp.ne.s32.totalorder %s67, %s81
    %p83 = scmp.eq.s32.totalorder %s15, 0
    %p84 = por %p82, %p83
    %s85 = ssub.s32 %s9, %s16
    %p86 = scmp.eq.s32.totalorder %s85, 0
    %s88 = sadd.s32 %s87, 1
    %s89 = scalar_select %p86, %s87, %s88
    %p92 = pneg %p86
    %p93 = scmp.eq.s32.totalorder %s9, 1
    %p94 = por %p92, %p93
    %p95 = scmp.ne.s32.totalorder %s87, %s90
    %p96 = scmp.eq.s32.totalorder %s9, 0
    %p97 = por %p95, %p96
    %p98 = scmp.ne.s32.totalorder %s87, %s90
    %p99 = scmp.eq.s32.totalorder %s14, 1
    %p100 = por %p98, %p99
    %p101 = scmp.ne.s32.totalorder %s90, %s91
    %p102 = scmp.eq.s32.totalorder %s14, 0
    %p103 = por %p101, %p102
    %p104 = scmp.ne.s32.totalorder %s90, %s91
    %p105 = scmp.eq.s32.totalorder %s15, 1
    %p106 = por %p104, %p105
    %p108 = scmp.ne.s32.totalorder %s91, %s107
    %p109 = scmp.eq.s32.totalorder %s15, 0
    %p110 = por %p108, %p109
    %p111 = scmp.le.s32.totalorder 1, %s9
    %p112 = scmp.lt.s32.totalorder %s9, 3
    %p113 = pnand %p111, %p112
    %p114 = pneg %p113
    // Predicated region
    $region9: #{fpn_image_encoder_forward.4} parent=5 // pred_check
      _
    $region10: #{fpn_image_encoder_forward.4} parent=5 // pred_check_branch
      %116 = sbr.rel (%p113) target = $region12
    $region11: #{fpn_image_encoder_forward.4} parent=5 // pred_region
      %s117 = ssub.s32 %s9, 1
      // Predicated region
      $region13: #{fpn_image_encoder_forward.4} parent=11 // pred_check
        %p118 = pneg %p56
      $region14: #{fpn_image_encoder_forward.4} parent=11 // pred_check_branch
        %120 = sbr.rel (%p118) target = $region16
      $region15: #{fpn_image_encoder_forward.4} parent=11 // pred_region
        _
      $region16: #{fpn_image_encoder_forward.4} parent=11 // pred_fallthru
        _
      // Predicated region
      $region17: #{fpn_image_encoder_forward.4} parent=11 // pred_check
        %p121 = pneg %p77
      $region18: #{fpn_image_encoder_forward.4} parent=11 // pred_check_branch
        %123 = sbr.rel (%p121) target = $region20
      $region19: #{fpn_image_encoder_forward.4} parent=11 // pred_region
        _
      $region20: #{fpn_image_encoder_forward.4} parent=11 // pred_fallthru
        _
    $region12: #{fpn_image_encoder_forward.4} parent=5 // pred_fallthru
      _
    %p124 = scmp.lt.s32.totalorder %s9, 2
    // Predicated region
    $region21: #{fpn_image_encoder_forward.4} parent=5 // pred_check
      %p125 = pneg %p124
    $region22: #{fpn_image_encoder_forward.4} parent=5 // pred_check_branch
      %127 = sbr.rel (%p125) target = $region24
    $region23: #{fpn_image_encoder_forward.4} parent=5 // pred_region
      // Predicated region
      $region25: #{fpn_image_encoder_forward.4} parent=23 // pred_check
        %p128 = pneg %p29
      $region26: #{fpn_image_encoder_forward.4} parent=23 // pred_check_branch
        %130 = sbr.rel (%p128) target = $region28
      $region27: #{fpn_image_encoder_forward.4} parent=23 // pred_region
        %s131 = smul.u32 32, %s9
        %p132 = scmp.lt.s32.totalorder %s131, 63
        %s133 = scalar_select %p132, %s131, 63
        %s134 = smul.addr %s133, 2
        %s135 = smul.addr %s134, 4
        %s136 = scalar_lea.vmem %s0, %s135
        %s137 = smul.u32 32, %s9
      $region28: #{fpn_image_encoder_forward.4} parent=23 // pred_fallthru
        _
    $region24: #{fpn_image_encoder_forward.4} parent=5 // pred_fallthru
      _
    %p138 = scmp.le.s32.totalorder 1, %s9
    %p139 = scmp.lt.s32.totalorder %s9, 3
    %p140 = pnand %p138, %p139
    %p141 = pneg %p140
    // Predicated region
    $region29: #{fpn_image_encoder_forward.4} parent=5 // pred_check
      _
    $region30: #{fpn_image_encoder_forward.4} parent=5 // pred_check_branch
      %143 = sbr.rel (%p140) target = $region32
    $region31: #{fpn_image_encoder_forward.4} parent=5 // pred_region
      %s144 = ssub.s32 %s9, 1
      %s145 = smul.u32 32, %s14
      %p146 = scmp.lt.s32.totalorder %s145, 63
      %s147 = scalar_select %p146, %s145, 63
      %s148 = smul.addr %s147, 2
      %s149 = smul.addr %s148, 4
      %s150 = scalar_lea.vmem %s0, %s149
      %p151 = pneg %p35
      %p152 = pneg %p32
      %p153 = pneg %p56
      %p154 = pneg %p53
      %p155 = pneg %p77
      %p156 = pneg %p74
      %p157 = pneg %p103
      %p158 = pneg %p100
      %s159 = smul.u32 32, %s14
      %p160 = scmp.lt.s32.totalorder %s159, 63
      %s161 = scalar_select %p160, %s159, 63
      %s162 = smul.addr %s161, 2
      %s163 = smul.addr %s162, 4
      %s164 = scalar_lea.vmem %s3, %s163
      %s165 = smul.u32 32, %s14
      %p166 = scmp.lt.s32.totalorder %s165, 63
      %s167 = scalar_select %p166, %s165, 63
      %s168 = smul.addr %s167, 2
      %s169 = smul.addr %s168, 4
      %s170 = scalar_lea.vmem %s0, %s169
      %s171 = smul.u32 32, %s14
      %s172 = smul.u32 32, %s14
      %p173 = scmp.lt.s32.totalorder %s172, 63
      %s174 = scalar_select %p173, %s172, 63
      %s175 = smul.addr %s174, 2
      %s176 = smul.addr %s175, 4
      %s177 = scalar_lea.vmem %s3, %s176
      %s178 = smul.u32 32, %s14
      %v179 = vld [vmem:[%s170] sm:$0xff]
      %v180 = vld [vmem:[%s170 + $0x8] sm:$0xff]
      %v181 = vld [vmem:[%s170 + $0x10] sm:$0xff]
      %v182 = vld [vmem:[%s170 + $0x18] sm:$0xff]
      %v183 = vld [vmem:[%s170 + $0x20] sm:$0xff]
      %v184 = vld [vmem:[%s170 + $0x28] sm:$0xff]
      %v185 = vld [vmem:[%s170 + $0x30] sm:$0xff]
      %v186 = vld [vmem:[%s170 + $0x38] sm:$0xff]
      %v187 = vld [vmem:[%s170 + $0x40] sm:$0xff]
      %v188 = vld [vmem:[%s170 + $0x48] sm:$0xff]
      %v189 = vld [vmem:[%s170 + $0x50] sm:$0xff]
      %v190 = vld [vmem:[%s170 + $0x58] sm:$0xff]
      %v191 = vld [vmem:[%s170 + $0x60] sm:$0xff]
      %v192 = vld [vmem:[%s170 + $0x68] sm:$0xff]
      %v193 = vld [vmem:[%s170 + $0x70] sm:$0xff]
      %v194 = vld [vmem:[%s170 + $0x78] sm:$0xff]
      %v195 = vld [vmem:[%s170 + $0x80] sm:$0xff]
      %v196 = vld [vmem:[%s170 + $0x88] sm:$0xff]
      %v197 = vld [vmem:[%s170 + $0x90] sm:$0xff]
      %v198 = vld [vmem:[%s170 + $0x98] sm:$0xff]
      %v199 = vld [vmem:[%s170 + $0xa0] sm:$0xff]
      %v200 = vld [vmem:[%s170 + $0xa8] sm:$0xff]
      %v201 = vld [vmem:[%s170 + $0xb0] sm:$0xff]
      %v202 = vld [vmem:[%s170 + $0xb8] sm:$0xff]
      %v203 = vld [vmem:[%s170 + $0xc0] sm:$0xff]
      %v204 = vld [vmem:[%s170 + $0xc8] sm:$0xff]
      %v205 = vld [vmem:[%s170 + $0xd0] sm:$0xff]
      %v206 = vld [vmem:[%s170 + $0xd8] sm:$0xff]
      %v207 = vld [vmem:[%s170 + $0xe0] sm:$0xff]
      %v208 = vld [vmem:[%s170 + $0xe8] sm:$0xff]
      %v209 = vld [vmem:[%s170 + $0xf0] sm:$0xff]
      %v210 = vld [vmem:[%s170 + $0xf8] sm:$0xff]
      %v211 = vld [vmem:[%s1] sm:$0xff]
      %v212 = vld [vmem:[%s1 + $0x8] sm:$0xff]
      %v213 = vld [vmem:[%s1 + $0x10] sm:$0xff]
      %v214 = vld [vmem:[%s1 + $0x18] sm:$0xff]
      %v215 = vld [vmem:[%s1 + $0x20] sm:$0xff]
      %v216 = vld [vmem:[%s1 + $0x28] sm:$0xff]
      %v217 = vld [vmem:[%s1 + $0x30] sm:$0xff]
      %v218 = vld [vmem:[%s1 + $0x38] sm:$0xff]
      %v219 = vld [vmem:[%s1 + $0x40] sm:$0xff]
      %v220 = vld [vmem:[%s1 + $0x48] sm:$0xff]
      %v221 = vld [vmem:[%s1 + $0x50] sm:$0xff]
      %v222 = vld [vmem:[%s1 + $0x58] sm:$0xff]
      %v223 = vld [vmem:[%s1 + $0x60] sm:$0xff]
      %v224 = vld [vmem:[%s1 + $0x68] sm:$0xff]
      %v225 = vld [vmem:[%s1 + $0x70] sm:$0xff]
      %v226 = vld [vmem:[%s1 + $0x78] sm:$0xff]
      %v227 = vld [vmem:[%s1 + $0x80] sm:$0xff]
      %v228 = vld [vmem:[%s1 + $0x88] sm:$0xff]
      %v229 = vld [vmem:[%s1 + $0x90] sm:$0xff]
      %v230 = vld [vmem:[%s1 + $0x98] sm:$0xff]
      %v231 = vld [vmem:[%s1 + $0xa0] sm:$0xff]
      %v232 = vld [vmem:[%s1 + $0xa8] sm:$0xff]
      %v233 = vld [vmem:[%s1 + $0xb0] sm:$0xff]
      %v234 = vld [vmem:[%s1 + $0xb8] sm:$0xff]
      %v235 = vld [vmem:[%s1 + $0xc0] sm:$0xff]
      %v236 = vld [vmem:[%s1 + $0xc8] sm:$0xff]
      %v237 = vld [vmem:[%s1 + $0xd0] sm:$0xff]
      %v238 = vld [vmem:[%s1 + $0xd8] sm:$0xff]
      %v239 = vld [vmem:[%s1 + $0xe0] sm:$0xff]
      %v240 = vld [vmem:[%s1 + $0xe8] sm:$0xff]
      %v241 = vld [vmem:[%s1 + $0xf0] sm:$0xff]
      %v242 = vld [vmem:[%s1 + $0xf8] sm:$0xff]
      %v243 = vld [vmem:[%s2] sm:$0x3]
      %v245 = vlaneseq
      %v246 = vshrl.u32 %v245, 7
      %v247 = vsub.s32 0, %v246
      %v248 = vrot.slane %v243, %v247
      %v249 = vlaneseq
      %v250 = vshrl.u32 %v249, 7
      %v251 = vsub.s32 1, %v250
      %v252 = vrot.slane %v243, %v251
      %v287 = vunpack.c.l.b16 %v179
      %v288 = vunpack.c.h.b16 %v179
      %v289 = vunpack.c.l.b16 %v180
      %v290 = vunpack.c.h.b16 %v180
      %v291 = vunpack.c.l.b16 %v181
      %v292 = vunpack.c.h.b16 %v181
      %v293 = vunpack.c.l.b16 %v182
      %v294 = vunpack.c.h.b16 %v182
      %v295 = vunpack.c.l.b16 %v183
      %v296 = vunpack.c.h.b16 %v183
      %v297 = vunpack.c.l.b16 %v184
      %v298 = vunpack.c.h.b16 %v184
      %v299 = vunpack.c.l.b16 %v185
      %v300 = vunpack.c.h.b16 %v185
      %v301 = vunpack.c.l.b16 %v186
      %v302 = vunpack.c.h.b16 %v186
      %v303 = vunpack.c.l.b16 %v187
      %v304 = vunpack.c.h.b16 %v187
      %v305 = vunpack.c.l.b16 %v188
      %v306 = vunpack.c.h.b16 %v188
      %v307 = vunpack.c.l.b16 %v189
      %v308 = vunpack.c.h.b16 %v189
      %v309 = vunpack.c.l.b16 %v190
      %v310 = vunpack.c.h.b16 %v190
      %v311 = vunpack.c.l.b16 %v191
      %v312 = vunpack.c.h.b16 %v191
      %v313 = vunpack.c.l.b16 %v192
      %v314 = vunpack.c.h.b16 %v192
      %v315 = vunpack.c.l.b16 %v193
      %v316 = vunpack.c.h.b16 %v193
      %v317 = vunpack.c.l.b16 %v194
      %v318 = vunpack.c.h.b16 %v194
      %v319 = vunpack.c.l.b16 %v195
      %v320 = vunpack.c.h.b16 %v195
      %v321 = vunpack.c.l.b16 %v196
      %v322 = vunpack.c.h.b16 %v196
      %v323 = vunpack.c.l.b16 %v197
      %v324 = vunpack.c.h.b16 %v197
      %v325 = vunpack.c.l.b16 %v198
      %v326 = vunpack.c.h.b16 %v198
      %v327 = vunpack.c.l.b16 %v199
      %v328 = vunpack.c.h.b16 %v199
      %v329 = vunpack.c.l.b16 %v200
      %v330 = vunpack.c.h.b16 %v200
      %v331 = vunpack.c.l.b16 %v201
      %v332 = vunpack.c.h.b16 %v201
      %v333 = vunpack.c.l.b16 %v202
      %v334 = vunpack.c.h.b16 %v202
      %v335 = vunpack.c.l.b16 %v203
      %v336 = vunpack.c.h.b16 %v203
      %v337 = vunpack.c.l.b16 %v204
      %v338 = vunpack.c.h.b16 %v204
      %v339 = vunpack.c.l.b16 %v205
      %v340 = vunpack.c.h.b16 %v205
      %v341 = vunpack.c.l.b16 %v206
      %v342 = vunpack.c.h.b16 %v206
      %v343 = vunpack.c.l.b16 %v207
      %v344 = vunpack.c.h.b16 %v207
      %v345 = vunpack.c.l.b16 %v208
      %v346 = vunpack.c.h.b16 %v208
      %v347 = vunpack.c.l.b16 %v209
      %v348 = vunpack.c.h.b16 %v209
      %v349 = vunpack.c.l.b16 %v210
      %v350 = vunpack.c.h.b16 %v210
      %v351 = vpack.c.b16 %v289, %v287
      %v352 = vpack.c.b16 %v290, %v288
      %v353 = vpack.c.b16 %v293, %v291
      %v354 = vpack.c.b16 %v294, %v292
      %v355 = vpack.c.b16 %v297, %v295
      %v356 = vpack.c.b16 %v298, %v296
      %v357 = vpack.c.b16 %v301, %v299
      %v358 = vpack.c.b16 %v302, %v300
      %v359 = vpack.c.b16 %v305, %v303
      %v360 = vpack.c.b16 %v306, %v304
      %v361 = vpack.c.b16 %v309, %v307
      %v362 = vpack.c.b16 %v310, %v308
      %v363 = vpack.c.b16 %v313, %v311
      %v364 = vpack.c.b16 %v314, %v312
      %v365 = vpack.c.b16 %v317, %v315
      %v366 = vpack.c.b16 %v318, %v316
      %v367 = vpack.c.b16 %v321, %v319
      %v368 = vpack.c.b16 %v322, %v320
      %v369 = vpack.c.b16 %v325, %v323
      %v370 = vpack.c.b16 %v326, %v324
      %v371 = vpack.c.b16 %v329, %v327
      %v372 = vpack.c.b16 %v330, %v328
      %v373 = vpack.c.b16 %v333, %v331
      %v374 = vpack.c.b16 %v334, %v332
      %v375 = vpack.c.b16 %v337, %v335
      %v376 = vpack.c.b16 %v338, %v336
      %v377 = vpack.c.b16 %v341, %v339
      %v378 = vpack.c.b16 %v342, %v340
      %v379 = vpack.c.b16 %v345, %v343
      %v380 = vpack.c.b16 %v346, %v344
      %v381 = vpack.c.b16 %v349, %v347
      %v382 = vpack.c.b16 %v350, %v348
      %v447 = vunpack.c.l.b16 %v211
      %v448 = vunpack.c.h.b16 %v211
      %v449 = vunpack.c.l.b16 %v212
      %v450 = vunpack.c.h.b16 %v212
      %v451 = vunpack.c.l.b16 %v213
      %v452 = vunpack.c.h.b16 %v213
      %v453 = vunpack.c.l.b16 %v214
      %v454 = vunpack.c.h.b16 %v214
      %v455 = vunpack.c.l.b16 %v215
      %v456 = vunpack.c.h.b16 %v215
      %v457 = vunpack.c.l.b16 %v216
      %v458 = vunpack.c.h.b16 %v216
      %v459 = vunpack.c.l.b16 %v217
      %v460 = vunpack.c.h.b16 %v217
      %v461 = vunpack.c.l.b16 %v218
      %v462 = vunpack.c.h.b16 %v218
      %v463 = vunpack.c.l.b16 %v219
      %v464 = vunpack.c.h.b16 %v219
      %v465 = vunpack.c.l.b16 %v220
      %v466 = vunpack.c.h.b16 %v220
      %v467 = vunpack.c.l.b16 %v221
      %v468 = vunpack.c.h.b16 %v221
      %v469 = vunpack.c.l.b16 %v222
      %v470 = vunpack.c.h.b16 %v222
      %v471 = vunpack.c.l.b16 %v223
      %v472 = vunpack.c.h.b16 %v223
      %v473 = vunpack.c.l.b16 %v224
      %v474 = vunpack.c.h.b16 %v224
      %v475 = vunpack.c.l.b16 %v225
      %v476 = vunpack.c.h.b16 %v225
      %v477 = vunpack.c.l.b16 %v226
      %v478 = vunpack.c.h.b16 %v226
      %v479 = vunpack.c.l.b16 %v227
      %v480 = vunpack.c.h.b16 %v227
      %v481 = vunpack.c.l.b16 %v228
      %v482 = vunpack.c.h.b16 %v228
      %v483 = vunpack.c.l.b16 %v229
      %v484 = vunpack.c.h.b16 %v229
      %v485 = vunpack.c.l.b16 %v230
      %v486 = vunpack.c.h.b16 %v230
      %v487 = vunpack.c.l.b16 %v231
      %v488 = vunpack.c.h.b16 %v231
      %v489 = vunpack.c.l.b16 %v232
      %v490 = vunpack.c.h.b16 %v232
      %v491 = vunpack.c.l.b16 %v233
      %v492 = vunpack.c.h.b16 %v233
      %v493 = vunpack.c.l.b16 %v234
      %v494 = vunpack.c.h.b16 %v234
      %v495 = vunpack.c.l.b16 %v235
      %v496 = vunpack.c.h.b16 %v235
      %v497 = vunpack.c.l.b16 %v236
      %v498 = vunpack.c.h.b16 %v236
      %v499 = vunpack.c.l.b16 %v237
      %v500 = vunpack.c.h.b16 %v237
      %v501 = vunpack.c.l.b16 %v238
      %v502 = vunpack.c.h.b16 %v238
      %v503 = vunpack.c.l.b16 %v239
      %v504 = vunpack.c.h.b16 %v239
      %v505 = vunpack.c.l.b16 %v240
      %v506 = vunpack.c.h.b16 %v240
      %v507 = vunpack.c.l.b16 %v241
      %v508 = vunpack.c.h.b16 %v241
      %v509 = vunpack.c.l.b16 %v242
      %v510 = vunpack.c.h.b16 %v242
      %v511 = vpack.c.b16 %v449, %v447
      %v512 = vpack.c.b16 %v450, %v448
      %v513 = vpack.c.b16 %v453, %v451
      %v514 = vpack.c.b16 %v454, %v452
      %v515 = vpack.c.b16 %v457, %v455
      %v516 = vpack.c.b16 %v458, %v456
      %v517 = vpack.c.b16 %v461, %v459
      %v518 = vpack.c.b16 %v462, %v460
      %v519 = vpack.c.b16 %v465, %v463
      %v520 = vpack.c.b16 %v466, %v464
      %v521 = vpack.c.b16 %v469, %v467
      %v522 = vpack.c.b16 %v470, %v468
      %v523 = vpack.c.b16 %v473, %v471
      %v524 = vpack.c.b16 %v474, %v472
      %v525 = vpack.c.b16 %v477, %v475
      %v526 = vpack.c.b16 %v478, %v476
      %v527 = vpack.c.b16 %v481, %v479
      %v528 = vpack.c.b16 %v482, %v480
      %v529 = vpack.c.b16 %v485, %v483
      %v530 = vpack.c.b16 %v486, %v484
      %v531 = vpack.c.b16 %v489, %v487
      %v532 = vpack.c.b16 %v490, %v488
      %v533 = vpack.c.b16 %v493, %v491
      %v534 = vpack.c.b16 %v494, %v492
      %v535 = vpack.c.b16 %v497, %v495
      %v536 = vpack.c.b16 %v498, %v496
      %v537 = vpack.c.b16 %v501, %v499
      %v538 = vpack.c.b16 %v502, %v500
      %v539 = vpack.c.b16 %v505, %v503
      %v540 = vpack.c.b16 %v506, %v504
      %v541 = vpack.c.b16 %v509, %v507
      %v542 = vpack.c.b16 %v510, %v508
      %575 = vmatprep.subr.bf16.mxu0 %v526
      %576 = vmatpush1.bf16.msra.mxu0 %v525
      %577 = vmatprep.subr.bf16.mxu0 %v524
      %578 = vmatpush1.bf16.msra.mxu0 %v523
      %579 = vmatprep.subr.bf16.mxu0 %v522
      %580 = vmatpush1.bf16.msra.mxu0 %v521
      %581 = vmatprep.subr.bf16.mxu0 %v520
      %582 = vmatpush1.bf16.msra.mxu0 %v519
      %583 = vmatprep.subr.bf16.mxu0 %v518
      %584 = vmatpush1.bf16.msra.mxu0 %v517
      %585 = vmatprep.subr.bf16.mxu0 %v516
      %586 = vmatpush1.bf16.msra.mxu0 %v515
      %587 = vmatprep.subr.bf16.mxu0 %v514
      %588 = vmatpush1.bf16.msra.mxu0 %v513
      %589 = vmatprep.subr.bf16.mxu0 %v512
      %590 = vmatpush1.bf16.msra.mxu0 %v511
      %591 = vmatprep.subr.bf16.mxu0 %v542
      %592 = vmatpush2.bf16.msra.mxu0 %v541
      %593 = vmatprep.subr.bf16.mxu0 %v540
      %594 = vmatpush2.bf16.msra.mxu0 %v539
      %595 = vmatprep.subr.bf16.mxu0 %v538
      %596 = vmatpush2.bf16.msra.mxu0 %v537
      %597 = vmatprep.subr.bf16.mxu0 %v536
      %598 = vmatpush2.bf16.msra.mxu0 %v535
      %599 = vmatprep.subr.bf16.mxu0 %v534
      %600 = vmatpush2.bf16.msra.mxu0 %v533
      %601 = vmatprep.subr.bf16.mxu0 %v532
      %602 = vmatpush2.bf16.msra.mxu0 %v531
      %603 = vmatprep.subr.bf16.mxu0 %v530
      %604 = vmatpush2.bf16.msra.mxu0 %v529
      %605 = vmatprep.subr.bf16.mxu0 %v528
      %606 = vmatpush2.bf16.msra.mxu0 %v527
      %607 = vmatprep.mubr.bf16.mxu0 %v352
      %608 = vmatmul.mubr.bf16.gmra.mxu0 %v351
      %v609 = vpop.f32.mrf.mxu0
      %v610 = vadd.f32 %v248, %v609
      %v611 = vpop.f32.mrf.mxu0
      %v612 = vadd.f32 %v252, %v611
      %v613 = vpop.f32.mrf.mxu0
      %v614 = vadd.f32 %v248, %v613
      %v615 = vpop.f32.mrf.mxu0
      %v616 = vadd.f32 %v252, %v615
      %617 = vmatprep.mubr.bf16.mxu0 %v354
      %618 = vmatmul.mubr.bf16.gmra.mxu0 %v353
      %v619 = vpop.f32.mrf.mxu0
      %v620 = vadd.f32 %v248, %v619
      %v621 = vpop.f32.mrf.mxu0
      %v622 = vadd.f32 %v252, %v621
      %v623 = vpop.f32.mrf.mxu0
      %v624 = vadd.f32 %v248, %v623
      %v625 = vpop.f32.mrf.mxu0
      %v626 = vadd.f32 %v252, %v625
      %627 = vmatprep.mubr.bf16.mxu0 %v356
      %628 = vmatmul.mubr.bf16.gmra.mxu0 %v355
      %v629 = vpop.f32.mrf.mxu0
      %v630 = vadd.f32 %v248, %v629
      %v631 = vpop.f32.mrf.mxu0
      %v632 = vadd.f32 %v252, %v631
      %v633 = vpop.f32.mrf.mxu0
      %v634 = vadd.f32 %v248, %v633
      %v635 = vpop.f32.mrf.mxu0
      %v636 = vadd.f32 %v252, %v635
      %637 = vmatprep.mubr.bf16.mxu0 %v358
      %638 = vmatmul.mubr.bf16.gmra.mxu0 %v357
      %v639 = vpop.f32.mrf.mxu0
      %v640 = vadd.f32 %v248, %v639
      %v641 = vpop.f32.mrf.mxu0
      %v642 = vadd.f32 %v252, %v641
      %v643 = vpop.f32.mrf.mxu0
      %v644 = vadd.f32 %v248, %v643
      %v645 = vpop.f32.mrf.mxu0
      %v646 = vadd.f32 %v252, %v645
      %647 = vmatprep.mubr.bf16.mxu0 %v360
      %648 = vmatmul.mubr.bf16.gmra.mxu0 %v359
      %v649 = vpop.f32.mrf.mxu0
      %v650 = vadd.f32 %v248, %v649
      %v651 = vpop.f32.mrf.mxu0
      %v652 = vadd.f32 %v252, %v651
      %v653 = vpop.f32.mrf.mxu0
      %v654 = vadd.f32 %v248, %v653
      %v655 = vpop.f32.mrf.mxu0
      %v656 = vadd.f32 %v252, %v655
      %657 = vmatprep.mubr.bf16.mxu0 %v362
      %658 = vmatmul.mubr.bf16.gmra.mxu0 %v361
      %v659 = vpop.f32.mrf.mxu0
      %v660 = vadd.f32 %v248, %v659
      %v661 = vpop.f32.mrf.mxu0
      %v662 = vadd.f32 %v252, %v661
      %v663 = vpop.f32.mrf.mxu0
      %v664 = vadd.f32 %v248, %v663
      %v665 = vpop.f32.mrf.mxu0
      %v666 = vadd.f32 %v252, %v665
      %667 = vmatprep.mubr.bf16.mxu0 %v364
      %668 = vmatmul.mubr.bf16.gmra.mxu0 %v363
      %v669 = vpop.f32.mrf.mxu0
      %v670 = vadd.f32 %v248, %v669
      %v671 = vpop.f32.mrf.mxu0
      %v672 = vadd.f32 %v252, %v671
      %v673 = vpop.f32.mrf.mxu0
      %v674 = vadd.f32 %v248, %v673
      %v675 = vpop.f32.mrf.mxu0
      %v676 = vadd.f32 %v252, %v675
      %677 = vmatprep.mubr.bf16.mxu0 %v366
      %678 = vmatmul.mubr.bf16.gmra.mxu0 %v365
      %v679 = vpop.f32.mrf.mxu0
      %v680 = vadd.f32 %v248, %v679
      %v681 = vpop.f32.mrf.mxu0
      %v682 = vadd.f32 %v252, %v681
      %v683 = vpop.f32.mrf.mxu0
      %v684 = vadd.f32 %v248, %v683
      %v685 = vpop.f32.mrf.mxu0
      %v686 = vadd.f32 %v252, %v685
      %687 = vmatprep.mubr.bf16.mxu0 %v368
      %688 = vmatmul.mubr.bf16.gmra.mxu0 %v367
      %v689 = vpop.f32.mrf.mxu0
      %v690 = vadd.f32 %v248, %v689
      %v691 = vpop.f32.mrf.mxu0
      %v692 = vadd.f32 %v252, %v691
      %v693 = vpop.f32.mrf.mxu0
      %v694 = vadd.f32 %v248, %v693
      %v695 = vpop.f32.mrf.mxu0
      %v696 = vadd.f32 %v252, %v695
      %697 = vmatprep.mubr.bf16.mxu0 %v370
      %698 = vmatmul.mubr.bf16.gmra.mxu0 %v369
      %v699 = vpop.f32.mrf.mxu0
      %v700 = vadd.f32 %v248, %v699
      %v701 = vpop.f32.mrf.mxu0
      %v702 = vadd.f32 %v252, %v701
      %v703 = vpop.f32.mrf.mxu0
      %v704 = vadd.f32 %v248, %v703
      %v705 = vpop.f32.mrf.mxu0
      %v706 = vadd.f32 %v252, %v705
      %707 = vmatprep.mubr.bf16.mxu0 %v372
      %708 = vmatmul.mubr.bf16.gmra.mxu0 %v371
      %v709 = vpop.f32.mrf.mxu0
      %v710 = vadd.f32 %v248, %v709
      %v711 = vpop.f32.mrf.mxu0
      %v712 = vadd.f32 %v252, %v711
      %v713 = vpop.f32.mrf.mxu0
      %v714 = vadd.f32 %v248, %v713
      %v715 = vpop.f32.mrf.mxu0
      %v716 = vadd.f32 %v252, %v715
      %717 = vmatprep.mubr.bf16.mxu0 %v374
      %718 = vmatmul.mubr.bf16.gmra.mxu0 %v373
      %v719 = vpop.f32.mrf.mxu0
      %v720 = vadd.f32 %v248, %v719
      %v721 = vpop.f32.mrf.mxu0
      %v722 = vadd.f32 %v252, %v721
      %v723 = vpop.f32.mrf.mxu0
      %v724 = vadd.f32 %v248, %v723
      %v725 = vpop.f32.mrf.mxu0
      %v726 = vadd.f32 %v252, %v725
      %727 = vmatprep.mubr.bf16.mxu0 %v376
      %728 = vmatmul.mubr.bf16.gmra.mxu0 %v375
      %v729 = vpop.f32.mrf.mxu0
      %v730 = vadd.f32 %v248, %v729
      %v731 = vpop.f32.mrf.mxu0
      %v732 = vadd.f32 %v252, %v731
      %v733 = vpop.f32.mrf.mxu0
      %v734 = vadd.f32 %v248, %v733
      %v735 = vpop.f32.mrf.mxu0
      %v736 = vadd.f32 %v252, %v735
      %737 = vmatprep.mubr.bf16.mxu0 %v378
      %738 = vmatmul.mubr.bf16.gmra.mxu0 %v377
      %v739 = vpop.f32.mrf.mxu0
      %v740 = vadd.f32 %v248, %v739
      %v741 = vpop.f32.mrf.mxu0
      %v742 = vadd.f32 %v252, %v741
      %v743 = vpop.f32.mrf.mxu0
      %v744 = vadd.f32 %v248, %v743
      %v745 = vpop.f32.mrf.mxu0
      %v746 = vadd.f32 %v252, %v745
      %747 = vmatprep.mubr.bf16.mxu0 %v380
      %748 = vmatmul.mubr.bf16.gmra.mxu0 %v379
      %v749 = vpop.f32.mrf.mxu0
      %v750 = vadd.f32 %v248, %v749
      %v751 = vpop.f32.mrf.mxu0
      %v752 = vadd.f32 %v252, %v751
      %v753 = vpop.f32.mrf.mxu0
      %v754 = vadd.f32 %v248, %v753
      %v755 = vpop.f32.mrf.mxu0
      %v756 = vadd.f32 %v252, %v755
      %757 = vmatprep.mubr.bf16.mxu0 %v382
      %758 = vmatmul.mubr.bf16.gmra.mxu0 %v381
      %v759 = vpop.f32.mrf.mxu0
      %v760 = vadd.f32 %v248, %v759
      %v761 = vpop.f32.mrf.mxu0
      %v762 = vadd.f32 %v252, %v761
      %v763 = vpop.f32.mrf.mxu0
      %v764 = vadd.f32 %v248, %v763
      %v765 = vpop.f32.mrf.mxu0
      %v766 = vadd.f32 %v252, %v765
      %767 = vdwg.mxu0
      %v768 = vpack.c.bf16 %v614, %v610
      %v769 = vpack.c.bf16 %v616, %v612
      %v770 = vpack.c.bf16 %v624, %v620
      %v771 = vpack.c.bf16 %v626, %v622
      %v772 = vpack.c.bf16 %v634, %v630
      %v773 = vpack.c.bf16 %v636, %v632
      %v774 = vpack.c.bf16 %v644, %v640
      %v775 = vpack.c.bf16 %v646, %v642
      %v776 = vpack.c.bf16 %v654, %v650
      %v777 = vpack.c.bf16 %v656, %v652
      %v778 = vpack.c.bf16 %v664, %v660
      %v779 = vpack.c.bf16 %v666, %v662
      %v780 = vpack.c.bf16 %v674, %v670
      %v781 = vpack.c.bf16 %v676, %v672
      %v782 = vpack.c.bf16 %v684, %v680
      %v783 = vpack.c.bf16 %v686, %v682
      %v784 = vpack.c.bf16 %v694, %v690
      %v785 = vpack.c.bf16 %v696, %v692
      %v786 = vpack.c.bf16 %v704, %v700
      %v787 = vpack.c.bf16 %v706, %v702
      %v788 = vpack.c.bf16 %v714, %v710
      %v789 = vpack.c.bf16 %v716, %v712
      %v790 = vpack.c.bf16 %v724, %v720
      %v791 = vpack.c.bf16 %v726, %v722
      %v792 = vpack.c.bf16 %v734, %v730
      %v793 = vpack.c.bf16 %v736, %v732
      %v794 = vpack.c.bf16 %v744, %v740
      %v795 = vpack.c.bf16 %v746, %v742
      %v796 = vpack.c.bf16 %v754, %v750
      %v797 = vpack.c.bf16 %v756, %v752
      %v798 = vpack.c.bf16 %v764, %v760
      %v799 = vpack.c.bf16 %v766, %v762
      %v832 = vunpack.c.l.b16 %v768
      %v833 = vunpack.c.l.b16 %v769
      %v834 = vunpack.c.h.b16 %v768
      %v835 = vunpack.c.h.b16 %v769
      %v836 = vunpack.c.l.b16 %v770
      %v837 = vunpack.c.l.b16 %v771
      %v838 = vunpack.c.h.b16 %v770
      %v839 = vunpack.c.h.b16 %v771
      %v840 = vunpack.c.l.b16 %v772
      %v841 = vunpack.c.l.b16 %v773
      %v842 = vunpack.c.h.b16 %v772
      %v843 = vunpack.c.h.b16 %v773
      %v844 = vunpack.c.l.b16 %v774
      %v845 = vunpack.c.l.b16 %v775
      %v846 = vunpack.c.h.b16 %v774
      %v847 = vunpack.c.h.b16 %v775
      %v848 = vunpack.c.l.b16 %v776
      %v849 = vunpack.c.l.b16 %v777
      %v850 = vunpack.c.h.b16 %v776
      %v851 = vunpack.c.h.b16 %v777
      %v852 = vunpack.c.l.b16 %v778
      %v853 = vunpack.c.l.b16 %v779
      %v854 = vunpack.c.h.b16 %v778
      %v855 = vunpack.c.h.b16 %v779
      %v856 = vunpack.c.l.b16 %v780
      %v857 = vunpack.c.l.b16 %v781
      %v858 = vunpack.c.h.b16 %v780
      %v859 = vunpack.c.h.b16 %v781
      %v860 = vunpack.c.l.b16 %v782
      %v861 = vunpack.c.l.b16 %v783
      %v862 = vunpack.c.h.b16 %v782
      %v863 = vunpack.c.h.b16 %v783
      %v864 = vunpack.c.l.b16 %v784
      %v865 = vunpack.c.l.b16 %v785
      %v866 = vunpack.c.h.b16 %v784
      %v867 = vunpack.c.h.b16 %v785
      %v868 = vunpack.c.l.b16 %v786
      %v869 = vunpack.c.l.b16 %v787
      %v870 = vunpack.c.h.b16 %v786
      %v871 = vunpack.c.h.b16 %v787
      %v872 = vunpack.c.l.b16 %v788
      %v873 = vunpack.c.l.b16 %v789
      %v874 = vunpack.c.h.b16 %v788
      %v875 = vunpack.c.h.b16 %v789
      %v876 = vunpack.c.l.b16 %v790
      %v877 = vunpack.c.l.b16 %v791
      %v878 = vunpack.c.h.b16 %v790
      %v879 = vunpack.c.h.b16 %v791
      %v880 = vunpack.c.l.b16 %v792
      %v881 = vunpack.c.l.b16 %v793
      %v882 = vunpack.c.h.b16 %v792
      %v883 = vunpack.c.h.b16 %v793
      %v884 = vunpack.c.l.b16 %v794
      %v885 = vunpack.c.l.b16 %v795
      %v886 = vunpack.c.h.b16 %v794
      %v887 = vunpack.c.h.b16 %v795
      %v888 = vunpack.c.l.b16 %v796
      %v889 = vunpack.c.l.b16 %v797
      %v890 = vunpack.c.h.b16 %v796
      %v891 = vunpack.c.h.b16 %v797
      %v892 = vunpack.c.l.b16 %v798
      %v893 = vunpack.c.l.b16 %v799
      %v894 = vunpack.c.h.b16 %v798
      %v895 = vunpack.c.h.b16 %v799
      %v896 = vpack.c.b16 %v833, %v832
      %v897 = vpack.c.b16 %v835, %v834
      %v898 = vpack.c.b16 %v837, %v836
      %v899 = vpack.c.b16 %v839, %v838
      %v900 = vpack.c.b16 %v841, %v840
      %v901 = vpack.c.b16 %v843, %v842
      %v902 = vpack.c.b16 %v845, %v844
      %v903 = vpack.c.b16 %v847, %v846
      %v904 = vpack.c.b16 %v849, %v848
      %v905 = vpack.c.b16 %v851, %v850
      %v906 = vpack.c.b16 %v853, %v852
      %v907 = vpack.c.b16 %v855, %v854
      %v908 = vpack.c.b16 %v857, %v856
      %v909 = vpack.c.b16 %v859, %v858
      %v910 = vpack.c.b16 %v861, %v860
      %v911 = vpack.c.b16 %v863, %v862
      %v912 = vpack.c.b16 %v865, %v864
      %v913 = vpack.c.b16 %v867, %v866
      %v914 = vpack.c.b16 %v869, %v868
      %v915 = vpack.c.b16 %v871, %v870
      %v916 = vpack.c.b16 %v873, %v872
      %v917 = vpack.c.b16 %v875, %v874
      %v918 = vpack.c.b16 %v877, %v876
      %v919 = vpack.c.b16 %v879, %v878
      %v920 = vpack.c.b16 %v881, %v880
      %v921 = vpack.c.b16 %v883, %v882
      %v922 = vpack.c.b16 %v885, %v884
      %v923 = vpack.c.b16 %v887, %v886
      %v924 = vpack.c.b16 %v889, %v888
      %v925 = vpack.c.b16 %v891, %v890
      %v926 = vpack.c.b16 %v893, %v892
      %v927 = vpack.c.b16 %v895, %v894
      %960 = vst [vmem:[%s177] sm:$0xff] %v896
      %961 = vst [vmem:[%s177 + $0x8] sm:$0xff] %v897
      %962 = vst [vmem:[%s177 + $0x10] sm:$0xff] %v898
      %963 = vst [vmem:[%s177 + $0x18] sm:$0xff] %v899
      %964 = vst [vmem:[%s177 + $0x20] sm:$0xff] %v900
      %965 = vst [vmem:[%s177 + $0x28] sm:$0xff] %v901
      %966 = vst [vmem:[%s177 + $0x30] sm:$0xff] %v902
      %967 = vst [vmem:[%s177 + $0x38] sm:$0xff] %v903
      %968 = vst [vmem:[%s177 + $0x40] sm:$0xff] %v904
      %969 = vst [vmem:[%s177 + $0x48] sm:$0xff] %v905
      %970 = vst [vmem:[%s177 + $0x50] sm:$0xff] %v906
      %971 = vst [vmem:[%s177 + $0x58] sm:$0xff] %v907
      %972 = vst [vmem:[%s177 + $0x60] sm:$0xff] %v908
      %973 = vst [vmem:[%s177 + $0x68] sm:$0xff] %v909
      %974 = vst [vmem:[%s177 + $0x70] sm:$0xff] %v910
      %975 = vst [vmem:[%s177 + $0x78] sm:$0xff] %v911
      %976 = vst [vmem:[%s177 + $0x80] sm:$0xff] %v912
      %977 = vst [vmem:[%s177 + $0x88] sm:$0xff] %v913
      %978 = vst [vmem:[%s177 + $0x90] sm:$0xff] %v914
      %979 = vst [vmem:[%s177 + $0x98] sm:$0xff] %v915
      %980 = vst [vmem:[%s177 + $0xa0] sm:$0xff] %v916
      %981 = vst [vmem:[%s177 + $0xa8] sm:$0xff] %v917
      %982 = vst [vmem:[%s177 + $0xb0] sm:$0xff] %v918
      %983 = vst [vmem:[%s177 + $0xb8] sm:$0xff] %v919
      %984 = vst [vmem:[%s177 + $0xc0] sm:$0xff] %v920
      %985 = vst [vmem:[%s177 + $0xc8] sm:$0xff] %v921
      %986 = vst [vmem:[%s177 + $0xd0] sm:$0xff] %v922
      %987 = vst [vmem:[%s177 + $0xd8] sm:$0xff] %v923
      %988 = vst [vmem:[%s177 + $0xe0] sm:$0xff] %v924
      %989 = vst [vmem:[%s177 + $0xe8] sm:$0xff] %v925
      %990 = vst [vmem:[%s177 + $0xf0] sm:$0xff] %v926
      %991 = vst [vmem:[%s177 + $0xf8] sm:$0xff] %v927
      %s992 = smul.u32 32, %s14
      %p993 = scmp.lt.s32.totalorder %s992, 63
      %s994 = scalar_select %p993, %s992, 63
      %s995 = smul.addr %s994, 2
      %s996 = smul.addr %s995, 4
      %s997 = scalar_lea.vmem %s3, %s996
      // Predicated region
      $region33: #{fpn_image_encoder_forward.4} parent=31 // pred_check
        %p998 = pneg %p100
      $region34: #{fpn_image_encoder_forward.4} parent=31 // pred_check_branch
        %1000 = sbr.rel (%p998) target = $region36
      $region35: #{fpn_image_encoder_forward.4} parent=31 // pred_region
        %s1001 = smul.u32 32, %s14
      $region36: #{fpn_image_encoder_forward.4} parent=31 // pred_fallthru
        _
    $region32: #{fpn_image_encoder_forward.4} parent=5 // pred_fallthru
      _
    %p1002 = scmp.le.s32.totalorder 2, %s9
    // Predicated region
    $region37: #{fpn_image_encoder_forward.4} parent=5 // pred_check
      %p1003 = pneg %p1002
    $region38: #{fpn_image_encoder_forward.4} parent=5 // pred_check_branch
      %1005 = sbr.rel (%p1003) target = $region40
    $region39: #{fpn_image_encoder_forward.4} parent=5 // pred_region
      %s1006 = ssub.s32 %s9, 2
      // Predicated region
      $region41: #{fpn_image_encoder_forward.4} parent=39 // pred_check
        %p1007 = pneg %p106
      $region42: #{fpn_image_encoder_forward.4} parent=39 // pred_check_branch
        %1009 = sbr.rel (%p1007) target = $region44
      $region43: #{fpn_image_encoder_forward.4} parent=39 // pred_region
        %s1010 = smul.u32 32, %s15
        %p1011 = scmp.lt.s32.totalorder %s1010, 63
        %s1012 = scalar_select %p1011, %s1010, 63
        %s1013 = smul.addr %s1012, 2
        %s1014 = smul.addr %s1013, 4
        %s1015 = scalar_lea.vmem %s3, %s1014
      $region44: #{fpn_image_encoder_forward.4} parent=39 // pred_fallthru
        _
    $region40: #{fpn_image_encoder_forward.4} parent=5 // pred_fallthru
      _
  $region6: #{fpn_image_encoder_forward.4} parent=0 // loop_footer
    %s13 = sadd.s32 1, %s9
  $region7: #{fpn_image_encoder_forward.4} parent=0 // loop_footer_branch
    %8 = sbr.rel target = $region3
  $region8: #{fpn_image_encoder_forward.4} parent=0 // loop_exit
    _

// kernel: fpn_image_encoder_forward.5
$region0: #{fpn_image_encoder_forward.5}
  #allocation0 [shape = 'u32[]', space=smem, size = 0x4, offset = 0x4, fixed_abs, tag = 'smem constant byte address 0x4 - core index']
  #allocation1 [shape = 'u32[144,128]{1,0:T(1,128)}', space=vmem, size = 0x12000, scoped, tag = 'internal scratch']
  %s0 = inlined_call_operand.vmem [shape: bf16[2,256,256], index: 0, kind: input, shape index: {}]
  %s1 = inlined_call_operand.vmem [shape: bf16[256,8], index: 1, kind: input, shape index: {}]
  %s2 = inlined_call_operand.vmem [shape: bf16[256,256], index: 2, kind: input, shape index: {}]
  %s3 = inlined_call_operand.vmem [shape: bf16[8,256], index: 3, kind: input, shape index: {}]
  %s4 = inlined_call_operand.vmem [shape: f32[2,1,256], index: 4, kind: output, shape index: {0}]
  %s5 = inlined_call_operand.vmem [shape: f32[2,1,256], index: 5, kind: output, shape index: {1}]
  %6 = xla_tuple %s4, %s5
  %s7 = sld [smem:[#allocation0]]
  $region61: #{fpn_image_encoder_forward.5} parent=0
    _
  %s9 = ssub.s32 1, %s7
  %s10 = scalar_select 0, %s9, %s7
  loop: start=0, step=1, limit=4
  $region2: #{fpn_image_encoder_forward.5} parent=0 // loop_pre_header
    _
  $region3: #{fpn_image_encoder_forward.5} parent=0 // loop_header
    %s12 = sphi 0, %s16
    %p13 = scmp.ge.s32.totalorder %s12, 4
    %s19 = sphi 0, %s31
    %s20 = sphi 0, %s27
    %s21 = sphi 0, %s19
    %s22 = sphi 0, %s20
    %s23 = sphi 0, %s21
    %s24 = sphi 0, %s22
    %s36 = sphi 0, %s38
    %s39 = sphi 0, %s36
    %s40 = sphi 0, %s39
    %s56 = sphi 0, %s40
    %s62 = sphi 0, %s64
    %s65 = sphi 0, %s62
    %s66 = sphi 0, %s65
    %s82 = sphi 0, %s66
    %s86 = sphi 0, %s86
    %s88 = sphi 0, %s86
    %s89 = sphi 0, %s88
    %s103 = sphi 0, %s89
    %s107 = sphi 0, %s107
    %s109 = sphi 0, %s107
    %s110 = sphi 0, %s109
    %s124 = sphi 0, %s110
    %s130 = sphi 0, %s132
    %s133 = sphi 0, %s130
    %s134 = sphi 0, %s133
    %s150 = sphi 0, %s134
    %s156 = sphi 0, %s158
    %s159 = sphi 0, %s156
    %s160 = sphi 0, %s159
    %s176 = sphi 0, %s160
  $region4: #{fpn_image_encoder_forward.5} parent=0 // loop_header_branch
    %15 = sbr.rel (%p13) target = $region8
  $region5: #{fpn_image_encoder_forward.5} parent=0 // loop_body
    %s17 = ssub.s32 %s12, 1
    %s18 = ssub.s32 %s12, 2
    %s25 = sadd.s32 1, %s20
    %p26 = scmp.ge.s32.totalorder %s25, 1
    %s27 = scalar_select %p26, 0, %s25
    %s28 = sadd.s32 1, %s19
    %s29 = scalar_select %p26, %s28, %s19
    %p30 = scmp.ge.s32.totalorder %s29, 2
    %s31 = scalar_select %p30, 0, %s29
    %s32 = ssub.s32 %s19, %s31
    %s33 = ssub.s32 %s20, %s27
    %s34 = sor.u32 %s32, %s33
    %p35 = scmp.eq.s32.totalorder %s34, 0
    %s37 = sadd.s32 %s36, 1
    %s38 = scalar_select %p35, %s36, %s37
    %p41 = pneg %p35
    %p42 = scmp.eq.s32.totalorder %s12, 1
    %p43 = por %p41, %p42
    %p44 = scmp.ne.s32.totalorder %s36, %s39
    %p45 = scmp.eq.s32.totalorder %s12, 0
    %p46 = por %p44, %p45
    %p47 = scmp.ne.s32.totalorder %s36, %s39
    %p48 = scmp.eq.s32.totalorder %s17, 1
    %p49 = por %p47, %p48
    %p50 = scmp.ne.s32.totalorder %s39, %s40
    %p51 = scmp.eq.s32.totalorder %s17, 0
    %p52 = por %p50, %p51
    %p53 = scmp.ne.s32.totalorder %s39, %s40
    %p54 = scmp.eq.s32.totalorder %s18, 1
    %p55 = por %p53, %p54
    %p57 = scmp.ne.s32.totalorder %s40, %s56
    %p58 = scmp.eq.s32.totalorder %s18, 0
    %p59 = por %p57, %p58
    %s60 = ssub.s32 %s20, %s27
    %p61 = scmp.eq.s32.totalorder %s60, 0
    %s63 = sadd.s32 %s62, 1
    %s64 = scalar_select %p61, %s62, %s63
    %p67 = pneg %p61
    %p68 = scmp.eq.s32.totalorder %s12, 1
    %p69 = por %p67, %p68
    %p70 = scmp.ne.s32.totalorder %s62, %s65
    %p71 = scmp.eq.s32.totalorder %s12, 0
    %p72 = por %p70, %p71
    %p73 = scmp.ne.s32.totalorder %s62, %s65
    %p74 = scmp.eq.s32.totalorder %s17, 1
    %p75 = por %p73, %p74
    %p76 = scmp.ne.s32.totalorder %s65, %s66
    %p77 = scmp.eq.s32.totalorder %s17, 0
    %p78 = por %p76, %p77
    %p79 = scmp.ne.s32.totalorder %s65, %s66
    %p80 = scmp.eq.s32.totalorder %s18, 1
    %p81 = por %p79, %p80
    %p83 = scmp.ne.s32.totalorder %s66, %s82
    %p84 = scmp.eq.s32.totalorder %s18, 0
    %p85 = por %p83, %p84
    %s87 = sadd.s32 %s86, 1
    %p90 = scmp.eq.s32.totalorder %s12, 1
    %p91 = scmp.ne.s32.totalorder %s86, %s88
    %p92 = scmp.eq.s32.totalorder %s12, 0
    %p93 = por %p91, %p92
    %p94 = scmp.ne.s32.totalorder %s86, %s88
    %p95 = scmp.eq.s32.totalorder %s17, 1
    %p96 = por %p94, %p95
    %p97 = scmp.ne.s32.totalorder %s88, %s89
    %p98 = scmp.eq.s32.totalorder %s17, 0
    %p99 = por %p97, %p98
    %p100 = scmp.ne.s32.totalorder %s88, %s89
    %p101 = scmp.eq.s32.totalorder %s18, 1
    %p102 = por %p100, %p101
    %p104 = scmp.ne.s32.totalorder %s89, %s103
    %p105 = scmp.eq.s32.totalorder %s18, 0
    %p106 = por %p104, %p105
    %s108 = sadd.s32 %s107, 1
    %p111 = scmp.eq.s32.totalorder %s12, 1
    %p112 = scmp.ne.s32.totalorder %s107, %s109
    %p113 = scmp.eq.s32.totalorder %s12, 0
    %p114 = por %p112, %p113
    %p115 = scmp.ne.s32.totalorder %s107, %s109
    %p116 = scmp.eq.s32.totalorder %s17, 1
    %p117 = por %p115, %p116
    %p118 = scmp.ne.s32.totalorder %s109, %s110
    %p119 = scmp.eq.s32.totalorder %s17, 0
    %p120 = por %p118, %p119
    %p121 = scmp.ne.s32.totalorder %s109, %s110
    %p122 = scmp.eq.s32.totalorder %s18, 1
    %p123 = por %p121, %p122
    %p125 = scmp.ne.s32.totalorder %s110, %s124
    %p126 = scmp.eq.s32.totalorder %s18, 0
    %p127 = por %p125, %p126
    %s128 = ssub.s32 %s19, %s31
    %p129 = scmp.eq.s32.totalorder %s128, 0
    %s131 = sadd.s32 %s130, 1
    %s132 = scalar_select %p129, %s130, %s131
    %p135 = pneg %p129
    %p136 = scmp.eq.s32.totalorder %s12, 1
    %p137 = por %p135, %p136
    %p138 = scmp.ne.s32.totalorder %s130, %s133
    %p139 = scmp.eq.s32.totalorder %s12, 0
    %p140 = por %p138, %p139
    %p141 = scmp.ne.s32.totalorder %s130, %s133
    %p142 = scmp.eq.s32.totalorder %s17, 1
    %p143 = por %p141, %p142
    %p144 = scmp.ne.s32.totalorder %s133, %s134
    %p145 = scmp.eq.s32.totalorder %s17, 0
    %p146 = por %p144, %p145
    %p147 = scmp.ne.s32.totalorder %s133, %s134
    %p148 = scmp.eq.s32.totalorder %s18, 1
    %p149 = por %p147, %p148
    %p151 = scmp.ne.s32.totalorder %s134, %s150
    %p152 = scmp.eq.s32.totalorder %s18, 0
    %p153 = por %p151, %p152
    %s154 = ssub.s32 %s19, %s31
    %p155 = scmp.eq.s32.totalorder %s154, 0
    %s157 = sadd.s32 %s156, 1
    %s158 = scalar_select %p155, %s156, %s157
    %p161 = pneg %p155
    %p162 = scmp.eq.s32.totalorder %s12, 1
    %p163 = por %p161, %p162
    %p164 = scmp.ne.s32.totalorder %s156, %s159
    %p165 = scmp.eq.s32.totalorder %s12, 0
    %p166 = por %p164, %p165
    %p167 = scmp.ne.s32.totalorder %s156, %s159
    %p168 = scmp.eq.s32.totalorder %s17, 1
    %p169 = por %p167, %p168
    %p170 = scmp.ne.s32.totalorder %s159, %s160
    %p171 = scmp.eq.s32.totalorder %s17, 0
    %p172 = por %p170, %p171
    %p173 = scmp.ne.s32.totalorder %s159, %s160
    %p174 = scmp.eq.s32.totalorder %s18, 1
    %p175 = por %p173, %p174
    %p177 = scmp.ne.s32.totalorder %s160, %s176
    %p178 = scmp.eq.s32.totalorder %s18, 0
    %p179 = por %p177, %p178
    %p180 = scmp.le.s32.totalorder 1, %s12
    %p181 = scmp.lt.s32.totalorder %s12, 3
    %p182 = pnand %p180, %p181
    %p183 = pneg %p182
    // Predicated region
    $region9: #{fpn_image_encoder_forward.5} parent=5 // pred_check
      _
    $region10: #{fpn_image_encoder_forward.5} parent=5 // pred_check_branch
      %185 = sbr.rel (%p182) target = $region12
    $region11: #{fpn_image_encoder_forward.5} parent=5 // pred_region
      %s186 = ssub.s32 %s12, 1
      // Predicated region
      $region13: #{fpn_image_encoder_forward.5} parent=11 // pred_check
        %p187 = pneg %p78
      $region14: #{fpn_image_encoder_forward.5} parent=11 // pred_check_branch
        %189 = sbr.rel (%p187) target = $region16
      $region15: #{fpn_image_encoder_forward.5} parent=11 // pred_region
        %s190 = smul.u32 32, %s22
        %p191 = scmp.lt.s32.totalorder %s190, 31
        %s192 = scalar_select %p191, %s190, 31
        %s193 = smul.addr %s192, 4
        %s194 = scalar_lea.vmem %s1, %s193
        %s195 = smul.u32 32, %s22
      $region16: #{fpn_image_encoder_forward.5} parent=11 // pred_fallthru
        _
      // Predicated region
      $region17: #{fpn_image_encoder_forward.5} parent=11 // pred_check
        %p196 = pneg %p99
      $region18: #{fpn_image_encoder_forward.5} parent=11 // pred_check_branch
        %198 = sbr.rel (%p196) target = $region20
      $region19: #{fpn_image_encoder_forward.5} parent=11 // pred_region
        _
      $region20: #{fpn_image_encoder_forward.5} parent=11 // pred_fallthru
        _
      // Predicated region
      $region21: #{fpn_image_encoder_forward.5} parent=11 // pred_check
        %p199 = pneg %p120
      $region22: #{fpn_image_encoder_forward.5} parent=11 // pred_check_branch
        %201 = sbr.rel (%p199) target = $region24
      $region23: #{fpn_image_encoder_forward.5} parent=11 // pred_region
        _
      $region24: #{fpn_image_encoder_forward.5} parent=11 // pred_fallthru
        _
    $region12: #{fpn_image_encoder_forward.5} parent=5 // pred_fallthru
      _
    %p202 = scmp.lt.s32.totalorder %s12, 2
    // Predicated region
    $region25: #{fpn_image_encoder_forward.5} parent=5 // pred_check
      %p203 = pneg %p202
    $region26: #{fpn_image_encoder_forward.5} parent=5 // pred_check_branch
      %205 = sbr.rel (%p203) target = $region28
    $region27: #{fpn_image_encoder_forward.5} parent=5 // pred_region
      // Predicated region
      $region29: #{fpn_image_encoder_forward.5} parent=27 // pred_check
        %p206 = pneg %p46
      $region30: #{fpn_image_encoder_forward.5} parent=27 // pred_check_branch
        %208 = sbr.rel (%p206) target = $region32
      $region31: #{fpn_image_encoder_forward.5} parent=27 // pred_region
        %s209 = smul.u32 32, %s20
        %p210 = scmp.lt.s32.totalorder %s19, 1
        %s211 = scalar_select %p210, %s19, 1
        %p212 = scmp.lt.s32.totalorder %s209, 31
        %s213 = scalar_select %p212, %s209, 31
        %s214 = smul.addr %s213, 2
        %s215 = smul.addr %s211, 64
        %s216 = sadd.s32 %s214, %s215
        %s217 = smul.addr %s216, 4
        %s218 = scalar_lea.vmem %s0, %s217
        %s219 = smul.u32 32, %s20
      $region32: #{fpn_image_encoder_forward.5} parent=27 // pred_fallthru
        _
    $region28: #{fpn_image_encoder_forward.5} parent=5 // pred_fallthru
      _
    %p220 = scmp.le.s32.totalorder 1, %s12
    %p221 = scmp.lt.s32.totalorder %s12, 3
    %p222 = pnand %p220, %p221
    %p223 = pneg %p222
    // Predicated region
    $region33: #{fpn_image_encoder_forward.5} parent=5 // pred_check
      _
    $region34: #{fpn_image_encoder_forward.5} parent=5 // pred_check_branch
      %225 = sbr.rel (%p222) target = $region36
    $region35: #{fpn_image_encoder_forward.5} parent=5 // pred_region
      %s226 = ssub.s32 %s12, 1
      %s227 = smul.u32 32, %s22
      %p228 = scmp.lt.s32.totalorder %s21, 1
      %s229 = scalar_select %p228, %s21, 1
      %p230 = scmp.lt.s32.totalorder %s227, 31
      %s231 = scalar_select %p230, %s227, 31
      %s232 = smul.addr %s231, 2
      %s233 = smul.addr %s229, 64
      %s234 = sadd.s32 %s232, %s233
      %s235 = smul.addr %s234, 4
      %s236 = scalar_lea.vmem %s0, %s235
      %p237 = pneg %p52
      %p238 = pneg %p49
      %s239 = smul.u32 32, %s22
      %p240 = scmp.lt.s32.totalorder %s239, 31
      %s241 = scalar_select %p240, %s239, 31
      %s242 = smul.addr %s241, 4
      %s243 = scalar_lea.vmem %s1, %s242
      %p244 = pneg %p78
      %p245 = pneg %p75
      %p246 = pneg %p99
      %p247 = pneg %p96
      %p248 = pneg %p120
      %p249 = pneg %p117
      %p250 = pneg %p146
      %p251 = pneg %p143
      %p252 = scmp.lt.s32.totalorder %s21, 1
      %s253 = scalar_select %p252, %s21, 1
      %s254 = smul.addr %s253, 2
      %s255 = scalar_lea.vmem %s4, %s254
      %p256 = pneg %p172
      %p257 = pneg %p169
      %p258 = scmp.lt.s32.totalorder %s21, 1
      %s259 = scalar_select %p258, %s21, 1
      %s260 = smul.addr %s259, 2
      %s261 = scalar_lea.vmem %s5, %s260
      %s262 = smul.u32 32, %s22
      %p263 = scmp.lt.s32.totalorder %s21, 1
      %s264 = scalar_select %p263, %s21, 1
      %p265 = scmp.lt.s32.totalorder %s262, 31
      %s266 = scalar_select %p265, %s262, 31
      %s267 = smul.addr %s266, 2
      %s268 = smul.addr %s264, 64
      %s269 = sadd.s32 %s267, %s268
      %s270 = smul.addr %s269, 4
      %s271 = scalar_lea.vmem %s0, %s270
      %s272 = smul.u32 32, %s22
      %s273 = smul.u32 32, %s22
      %p274 = scmp.lt.s32.totalorder %s273, 31
      %s275 = scalar_select %p274, %s273, 31
      %s276 = smul.addr %s275, 4
      %s277 = scalar_lea.vmem %s1, %s276
      %s278 = smul.u32 32, %s22
      %p279 = scmp.lt.s32.totalorder %s21, 1
      %s280 = scalar_select %p279, %s21, 1
      %s281 = smul.addr %s280, 2
      %s282 = scalar_lea.vmem %s4, %s281
      %p283 = scmp.lt.s32.totalorder %s21, 1
      %s284 = scalar_select %p283, %s21, 1
      %s285 = smul.addr %s284, 2
      %s286 = scalar_lea.vmem %s5, %s285
      %p288 = scmp.eq.s32.totalorder %s22, 0
      // Predicated region
      $region37: #{fpn_image_encoder_forward.5} parent=35 // pred_check
        %p289 = pneg %p288
      $region38: #{fpn_image_encoder_forward.5} parent=35 // pred_check_branch
        %291 = sbr.rel (%p289) target = $region40
      $region39: #{fpn_image_encoder_forward.5} parent=35 // pred_region
        %v292 = vlaneseq
        %vm293 = vcmp.ge.s32.totalorder %v292, 0
        %vm294 = vcmp.lt.s32.totalorder %v292, 256
        %vm295 = vmand %vm293, %vm294
        %296 = vst.msk [vmem:[%s282] sm:$0x3] %vm295, 0.0
        %297 = vst.msk [vmem:[%s286] sm:$0x3] %vm295, 0.0
      $region40: #{fpn_image_encoder_forward.5} parent=35 // pred_fallthru
        _
      %v298 = vld [vmem:[%s271] sm:$0xff]
      %v299 = vld [vmem:[%s271 + $0x8] sm:$0xff]
      %v300 = vld [vmem:[%s271 + $0x10] sm:$0xff]
      %v301 = vld [vmem:[%s271 + $0x18] sm:$0xff]
      %v302 = vld [vmem:[%s271 + $0x20] sm:$0xff]
      %v303 = vld [vmem:[%s271 + $0x28] sm:$0xff]
      %v304 = vld [vmem:[%s271 + $0x30] sm:$0xff]
      %v305 = vld [vmem:[%s271 + $0x38] sm:$0xff]
      %v306 = vld [vmem:[%s271 + $0x40] sm:$0xff]
      %v307 = vld [vmem:[%s271 + $0x48] sm:$0xff]
      %v308 = vld [vmem:[%s271 + $0x50] sm:$0xff]
      %v309 = vld [vmem:[%s271 + $0x58] sm:$0xff]
      %v310 = vld [vmem:[%s271 + $0x60] sm:$0xff]
      %v311 = vld [vmem:[%s271 + $0x68] sm:$0xff]
      %v312 = vld [vmem:[%s271 + $0x70] sm:$0xff]
      %v313 = vld [vmem:[%s271 + $0x78] sm:$0xff]
      %v314 = vld [vmem:[%s271 + $0x80] sm:$0xff]
      %v315 = vld [vmem:[%s271 + $0x88] sm:$0xff]
      %v316 = vld [vmem:[%s271 + $0x90] sm:$0xff]
      %v317 = vld [vmem:[%s271 + $0x98] sm:$0xff]
      %v318 = vld [vmem:[%s271 + $0xa0] sm:$0xff]
      %v319 = vld [vmem:[%s271 + $0xa8] sm:$0xff]
      %v320 = vld [vmem:[%s271 + $0xb0] sm:$0xff]
      %v321 = vld [vmem:[%s271 + $0xb8] sm:$0xff]
      %v322 = vld [vmem:[%s271 + $0xc0] sm:$0xff]
      %v323 = vld [vmem:[%s271 + $0xc8] sm:$0xff]
      %v324 = vld [vmem:[%s271 + $0xd0] sm:$0xff]
      %v325 = vld [vmem:[%s271 + $0xd8] sm:$0xff]
      %v326 = vld [vmem:[%s271 + $0xe0] sm:$0xff]
      %v327 = vld [vmem:[%s271 + $0xe8] sm:$0xff]
      %v328 = vld [vmem:[%s271 + $0xf0] sm:$0xff]
      %v329 = vld [vmem:[%s271 + $0xf8] sm:$0xff]
      %v330 = vld [vmem:[%s2] sm:$0xff]
      %v331 = vld [vmem:[%s2 + $0x8] sm:$0xff]
      %v332 = vld [vmem:[%s2 + $0x10] sm:$0xff]
      %v333 = vld [vmem:[%s2 + $0x18] sm:$0xff]
      %v334 = vld [vmem:[%s2 + $0x20] sm:$0xff]
      %v335 = vld [vmem:[%s2 + $0x28] sm:$0xff]
      %v336 = vld [vmem:[%s2 + $0x30] sm:$0xff]
      %v337 = vld [vmem:[%s2 + $0x38] sm:$0xff]
      %v338 = vld [vmem:[%s2 + $0x40] sm:$0xff]
      %v339 = vld [vmem:[%s2 + $0x48] sm:$0xff]
      %v340 = vld [vmem:[%s2 + $0x50] sm:$0xff]
      %v341 = vld [vmem:[%s2 + $0x58] sm:$0xff]
      %v342 = vld [vmem:[%s2 + $0x60] sm:$0xff]
      %v343 = vld [vmem:[%s2 + $0x68] sm:$0xff]
      %v344 = vld [vmem:[%s2 + $0x70] sm:$0xff]
      %v345 = vld [vmem:[%s2 + $0x78] sm:$0xff]
      %v346 = vld [vmem:[%s2 + $0x80] sm:$0xff]
      %v347 = vld [vmem:[%s2 + $0x88] sm:$0xff]
      %v348 = vld [vmem:[%s2 + $0x90] sm:$0xff]
      %v349 = vld [vmem:[%s2 + $0x98] sm:$0xff]
      %v350 = vld [vmem:[%s2 + $0xa0] sm:$0xff]
      %v351 = vld [vmem:[%s2 + $0xa8] sm:$0xff]
      %v352 = vld [vmem:[%s2 + $0xb0] sm:$0xff]
      %v353 = vld [vmem:[%s2 + $0xb8] sm:$0xff]
      %v354 = vld [vmem:[%s2 + $0xc0] sm:$0xff]
      %v355 = vld [vmem:[%s2 + $0xc8] sm:$0xff]
      %v356 = vld [vmem:[%s2 + $0xd0] sm:$0xff]
      %v357 = vld [vmem:[%s2 + $0xd8] sm:$0xff]
      %v358 = vld [vmem:[%s2 + $0xe0] sm:$0xff]
      %v359 = vld [vmem:[%s2 + $0xe8] sm:$0xff]
      %v360 = vld [vmem:[%s2 + $0xf0] sm:$0xff]
      %v361 = vld [vmem:[%s2 + $0xf8] sm:$0xff]
      %v362 = vld [vmem:[%s277] sm:$0xf]
      %v363 = vld [vmem:[%s277 + $0x4] sm:$0xf]
      %v364 = vld [vmem:[%s277 + $0x8] sm:$0xf]
      %v365 = vld [vmem:[%s277 + $0xc] sm:$0xf]
      %v366 = vld [vmem:[%s277 + $0x10] sm:$0xf]
      %v367 = vld [vmem:[%s277 + $0x14] sm:$0xf]
      %v368 = vld [vmem:[%s277 + $0x18] sm:$0xf]
      %v369 = vld [vmem:[%s277 + $0x1c] sm:$0xf]
      %v370 = vld [vmem:[%s277 + $0x20] sm:$0xf]
      %v371 = vld [vmem:[%s277 + $0x24] sm:$0xf]
      %v372 = vld [vmem:[%s277 + $0x28] sm:$0xf]
      %v373 = vld [vmem:[%s277 + $0x2c] sm:$0xf]
      %v374 = vld [vmem:[%s277 + $0x30] sm:$0xf]
      %v375 = vld [vmem:[%s277 + $0x34] sm:$0xf]
      %v376 = vld [vmem:[%s277 + $0x38] sm:$0xf]
      %v377 = vld [vmem:[%s277 + $0x3c] sm:$0xf]
      %v378 = vld [vmem:[%s277 + $0x40] sm:$0xf]
      %v379 = vld [vmem:[%s277 + $0x44] sm:$0xf]
      %v380 = vld [vmem:[%s277 + $0x48] sm:$0xf]
      %v381 = vld [vmem:[%s277 + $0x4c] sm:$0xf]
      %v382 = vld [vmem:[%s277 + $0x50] sm:$0xf]
      %v383 = vld [vmem:[%s277 + $0x54] sm:$0xf]
      %v384 = vld [vmem:[%s277 + $0x58] sm:$0xf]
      %v385 = vld [vmem:[%s277 + $0x5c] sm:$0xf]
      %v386 = vld [vmem:[%s277 + $0x60] sm:$0xf]
      %v387 = vld [vmem:[%s277 + $0x64] sm:$0xf]
      %v388 = vld [vmem:[%s277 + $0x68] sm:$0xf]
      %v389 = vld [vmem:[%s277 + $0x6c] sm:$0xf]
      %v390 = vld [vmem:[%s277 + $0x70] sm:$0xf]
      %v391 = vld [vmem:[%s277 + $0x74] sm:$0xf]
      %v392 = vld [vmem:[%s277 + $0x78] sm:$0xf]
      %v393 = vld [vmem:[%s277 + $0x7c] sm:$0xf]
      %v394 = vld [vmem:[%s3] sm:$0xff]
      %v427 = vunpack.c.l.b16 %v362
      %v428 = vunpack.c.l.b16 %v363
      %v429 = vunpack.c.l.b16 %v364
      %v430 = vunpack.c.l.b16 %v365
      %v431 = vunpack.c.l.b16 %v366
      %v432 = vunpack.c.l.b16 %v367
      %v433 = vunpack.c.l.b16 %v368
      %v434 = vunpack.c.l.b16 %v369
      %v435 = vunpack.c.l.b16 %v370
      %v436 = vunpack.c.l.b16 %v371
      %v437 = vunpack.c.l.b16 %v372
      %v438 = vunpack.c.l.b16 %v373
      %v439 = vunpack.c.l.b16 %v374
      %v440 = vunpack.c.l.b16 %v375
      %v441 = vunpack.c.l.b16 %v376
      %v442 = vunpack.c.l.b16 %v377
      %v443 = vunpack.c.l.b16 %v378
      %v444 = vunpack.c.l.b16 %v379
      %v445 = vunpack.c.l.b16 %v380
      %v446 = vunpack.c.l.b16 %v381
      %v447 = vunpack.c.l.b16 %v382
      %v448 = vunpack.c.l.b16 %v383
      %v449 = vunpack.c.l.b16 %v384
      %v450 = vunpack.c.l.b16 %v385
      %v451 = vunpack.c.l.b16 %v386
      %v452 = vunpack.c.l.b16 %v387
      %v453 = vunpack.c.l.b16 %v388
      %v454 = vunpack.c.l.b16 %v389
      %v455 = vunpack.c.l.b16 %v390
      %v456 = vunpack.c.l.b16 %v391
      %v457 = vunpack.c.l.b16 %v392
      %v458 = vunpack.c.l.b16 %v393
      %v459 = vpack.c.b16 %v428, %v427
      %v460 = vpack.c.b16 %v430, %v429
      %v461 = vpack.c.b16 %v432, %v431
      %v462 = vpack.c.b16 %v434, %v433
      %v463 = vpack.c.b16 %v436, %v435
      %v464 = vpack.c.b16 %v438, %v437
      %v465 = vpack.c.b16 %v440, %v439
      %v466 = vpack.c.b16 %v442, %v441
      %v467 = vpack.c.b16 %v444, %v443
      %v468 = vpack.c.b16 %v446, %v445
      %v469 = vpack.c.b16 %v448, %v447
      %v470 = vpack.c.b16 %v450, %v449
      %v471 = vpack.c.b16 %v452, %v451
      %v472 = vpack.c.b16 %v454, %v453
      %v473 = vpack.c.b16 %v456, %v455
      %v474 = vpack.c.b16 %v458, %v457
      %v476 = vunpack.c.l.b16 %v394
      %v477 = vunpack.c.h.b16 %v394
      %v478 = vpack.c.b16 %v476, %v476
      %v479 = vpack.c.b16 %v477, %v477
      %vm480 = vcmask 64512
      %v482 = vsel %vm480, %v459, 0
      %v485 = vsel %vm480, %v460, 0
      %v488 = vsel %vm480, %v461, 0
      %v491 = vsel %vm480, %v462, 0
      %v494 = vsel %vm480, %v463, 0
      %v497 = vsel %vm480, %v464, 0
      %v500 = vsel %vm480, %v465, 0
      %v503 = vsel %vm480, %v466, 0
      %v506 = vsel %vm480, %v467, 0
      %v509 = vsel %vm480, %v468, 0
      %v512 = vsel %vm480, %v469, 0
      %v515 = vsel %vm480, %v470, 0
      %v518 = vsel %vm480, %v471, 0
      %v521 = vsel %vm480, %v472, 0
      %v524 = vsel %vm480, %v473, 0
      %v527 = vsel %vm480, %v474, 0
      %vm529 = vcmask 1043456
      %v531 = vsel %vm529, %v478, 0
      %v534 = vsel %vm529, %v479, 0
      %536 = vmatprep.subr.bf16.mxu0 0
      %537 = vmatpush1.bf16.msra.mxu0 0
      %538 = vmatprep.subr.bf16.mxu0 0
      %539 = vmatpush1.bf16.msra.mxu0 0
      %540 = vmatprep.subr.bf16.mxu0 0
      %541 = vmatpush1.bf16.msra.mxu0 0
      %542 = vmatprep.subr.bf16.mxu0 0
      %543 = vmatpush1.bf16.msra.mxu0 0
      %544 = vmatprep.subr.bf16.mxu0 0
      %545 = vmatpush1.bf16.msra.mxu0 0
      %546 = vmatprep.subr.bf16.mxu0 0
      %547 = vmatpush1.bf16.msra.mxu0 0
      %548 = vmatprep.subr.bf16.mxu0 0
      %549 = vmatpush1.bf16.msra.mxu0 0
      %550 = vmatprep.subr.bf16.mxu0 %v534
      %551 = vmatpush1.bf16.msra.mxu0 %v531
      %552 = vmatprep.subr.bf16.mxu0 0
      %553 = vmatpush2.bf16.msra.mxu0 0
      %554 = vmatprep.subr.bf16.mxu0 0
      %555 = vmatpush2.bf16.msra.mxu0 0
      %556 = vmatprep.subr.bf16.mxu0 0
      %557 = vmatpush2.bf16.msra.mxu0 0
      %558 = vmatprep.subr.bf16.mxu0 0
      %559 = vmatpush2.bf16.msra.mxu0 0
      %560 = vmatprep.subr.bf16.mxu0 0
      %561 = vmatpush2.bf16.msra.mxu0 0
      %562 = vmatprep.subr.bf16.mxu0 0
      %563 = vmatpush2.bf16.msra.mxu0 0
      %564 = vmatprep.subr.bf16.mxu0 0
      %565 = vmatpush2.bf16.msra.mxu0 0
      %566 = vmatprep.subr.bf16.mxu0 0
      %567 = vmatpush2.bf16.msra.mxu0 0
      %568 = vmatprep.mubr.bf16.mxu0 0
      %569 = vmatmul.mubr.bf16.gmra.mxu0 %v482
      %v570 = vpop.f32.mrf.mxu0
      %v571 = vadd.f32 0.0, %v570
      %v572 = vpop.f32.mrf.mxu0
      %v573 = vadd.f32 0.0, %v572
      %v574 = vpop.f32.mrf.mxu0
      %v575 = vadd.f32 0.0, %v574
      %v576 = vpop.f32.mrf.mxu0
      %v577 = vadd.f32 0.0, %v576
      %578 = vmatprep.mubr.bf16.mxu0 0
      %579 = vmatmul.mubr.bf16.gmra.mxu0 %v485
      %v580 = vpop.f32.mrf.mxu0
      %v581 = vadd.f32 0.0, %v580
      %v582 = vpop.f32.mrf.mxu0
      %v583 = vadd.f32 0.0, %v582
      %v584 = vpop.f32.mrf.mxu0
      %v585 = vadd.f32 0.0, %v584
      %v586 = vpop.f32.mrf.mxu0
      %v587 = vadd.f32 0.0, %v586
      %588 = vmatprep.mubr.bf16.mxu0 0
      %589 = vmatmul.mubr.bf16.gmra.mxu0 %v488
      %v590 = vpop.f32.mrf.mxu0
      %v591 = vadd.f32 0.0, %v590
      %v592 = vpop.f32.mrf.mxu0
      %v593 = vadd.f32 0.0, %v592
      %v594 = vpop.f32.mrf.mxu0
      %v595 = vadd.f32 0.0, %v594
      %v596 = vpop.f32.mrf.mxu0
      %v597 = vadd.f32 0.0, %v596
      %598 = vmatprep.mubr.bf16.mxu0 0
      %599 = vmatmul.mubr.bf16.gmra.mxu0 %v491
      %v600 = vpop.f32.mrf.mxu0
      %v601 = vadd.f32 0.0, %v600
      %v602 = vpop.f32.mrf.mxu0
      %v603 = vadd.f32 0.0, %v602
      %v604 = vpop.f32.mrf.mxu0
      %v605 = vadd.f32 0.0, %v604
      %v606 = vpop.f32.mrf.mxu0
      %v607 = vadd.f32 0.0, %v606
      %608 = vmatprep.mubr.bf16.mxu0 0
      %609 = vmatmul.mubr.bf16.gmra.mxu0 %v494
      %v610 = vpop.f32.mrf.mxu0
      %v611 = vadd.f32 0.0, %v610
      %v612 = vpop.f32.mrf.mxu0
      %v613 = vadd.f32 0.0, %v612
      %v614 = vpop.f32.mrf.mxu0
      %v615 = vadd.f32 0.0, %v614
      %v616 = vpop.f32.mrf.mxu0
      %v617 = vadd.f32 0.0, %v616
      %618 = vmatprep.mubr.bf16.mxu0 0
      %619 = vmatmul.mubr.bf16.gmra.mxu0 %v497
      %v620 = vpop.f32.mrf.mxu0
      %v621 = vadd.f32 0.0, %v620
      %v622 = vpop.f32.mrf.mxu0
      %v623 = vadd.f32 0.0, %v622
      %v624 = vpop.f32.mrf.mxu0
      %v625 = vadd.f32 0.0, %v624
      %v626 = vpop.f32.mrf.mxu0
      %v627 = vadd.f32 0.0, %v626
      %628 = vmatprep.mubr.bf16.mxu0 0
      %629 = vmatmul.mubr.bf16.gmra.mxu0 %v500
      %v630 = vpop.f32.mrf.mxu0
      %v631 = vadd.f32 0.0, %v630
      %v632 = vpop.f32.mrf.mxu0
      %v633 = vadd.f32 0.0, %v632
      %v634 = vpop.f32.mrf.mxu0
      %v635 = vadd.f32 0.0, %v634
      %v636 = vpop.f32.mrf.mxu0
      %v637 = vadd.f32 0.0, %v636
      %638 = vmatprep.mubr.bf16.mxu0 0
      %639 = vmatmul.mubr.bf16.gmra.mxu0 %v503
      %v640 = vpop.f32.mrf.mxu0
      %v641 = vadd.f32 0.0, %v640
      %v642 = vpop.f32.mrf.mxu0
      %v643 = vadd.f32 0.0, %v642
      %v644 = vpop.f32.mrf.mxu0
      %v645 = vadd.f32 0.0, %v644
      %v646 = vpop.f32.mrf.mxu0
      %v647 = vadd.f32 0.0, %v646
      %648 = vmatprep.mubr.bf16.mxu0 0
      %649 = vmatmul.mubr.bf16.gmra.mxu0 %v506
      %v650 = vpop.f32.mrf.mxu0
      %v651 = vadd.f32 0.0, %v650
      %v652 = vpop.f32.mrf.mxu0
      %v653 = vadd.f32 0.0, %v652
      %v654 = vpop.f32.mrf.mxu0
      %v655 = vadd.f32 0.0, %v654
      %v656 = vpop.f32.mrf.mxu0
      %v657 = vadd.f32 0.0, %v656
      %658 = vmatprep.mubr.bf16.mxu0 0
      %659 = vmatmul.mubr.bf16.gmra.mxu0 %v509
      %v660 = vpop.f32.mrf.mxu0
      %v661 = vadd.f32 0.0, %v660
      %v662 = vpop.f32.mrf.mxu0
      %v663 = vadd.f32 0.0, %v662
      %v664 = vpop.f32.mrf.mxu0
      %v665 = vadd.f32 0.0, %v664
      %v666 = vpop.f32.mrf.mxu0
      %v667 = vadd.f32 0.0, %v666
      %668 = vmatprep.mubr.bf16.mxu0 0
      %669 = vmatmul.mubr.bf16.gmra.mxu0 %v512
      %v670 = vpop.f32.mrf.mxu0
      %v671 = vadd.f32 0.0, %v670
      %v672 = vpop.f32.mrf.mxu0
      %v673 = vadd.f32 0.0, %v672
      %v674 = vpop.f32.mrf.mxu0
      %v675 = vadd.f32 0.0, %v674
      %v676 = vpop.f32.mrf.mxu0
      %v677 = vadd.f32 0.0, %v676
      %678 = vmatprep.mubr.bf16.mxu0 0
      %679 = vmatmul.mubr.bf16.gmra.mxu0 %v515
      %v680 = vpop.f32.mrf.mxu0
      %v681 = vadd.f32 0.0, %v680
      %v682 = vpop.f32.mrf.mxu0
      %v683 = vadd.f32 0.0, %v682
      %v684 = vpop.f32.mrf.mxu0
      %v685 = vadd.f32 0.0, %v684
      %v686 = vpop.f32.mrf.mxu0
      %v687 = vadd.f32 0.0, %v686
      %688 = vmatprep.mubr.bf16.mxu0 0
      %689 = vmatmul.mubr.bf16.gmra.mxu0 %v518
      %v690 = vpop.f32.mrf.mxu0
      %v691 = vadd.f32 0.0, %v690
      %v692 = vpop.f32.mrf.mxu0
      %v693 = vadd.f32 0.0, %v692
      %v694 = vpop.f32.mrf.mxu0
      %v695 = vadd.f32 0.0, %v694
      %v696 = vpop.f32.mrf.mxu0
      %v697 = vadd.f32 0.0, %v696
      %698 = vmatprep.mubr.bf16.mxu0 0
      %699 = vmatmul.mubr.bf16.gmra.mxu0 %v521
      %v700 = vpop.f32.mrf.mxu0
      %v701 = vadd.f32 0.0, %v700
      %v702 = vpop.f32.mrf.mxu0
      %v703 = vadd.f32 0.0, %v702
      %v704 = vpop.f32.mrf.mxu0
      %v705 = vadd.f32 0.0, %v704
      %v706 = vpop.f32.mrf.mxu0
      %v707 = vadd.f32 0.0, %v706
      %708 = vmatprep.mubr.bf16.mxu0 0
      %709 = vmatmul.mubr.bf16.gmra.mxu0 %v524
      %v710 = vpop.f32.mrf.mxu0
      %v711 = vadd.f32 0.0, %v710
      %v712 = vpop.f32.mrf.mxu0
      %v713 = vadd.f32 0.0, %v712
      %v714 = vpop.f32.mrf.mxu0
      %v715 = vadd.f32 0.0, %v714
      %v716 = vpop.f32.mrf.mxu0
      %v717 = vadd.f32 0.0, %v716
      %718 = vmatprep.mubr.bf16.mxu0 0
      %719 = vmatmul.mubr.bf16.gmra.mxu0 %v527
      %v720 = vpop.f32.mrf.mxu0
      %v721 = vadd.f32 0.0, %v720
      %v722 = vpop.f32.mrf.mxu0
      %v723 = vadd.f32 0.0, %v722
      %v724 = vpop.f32.mrf.mxu0
      %v725 = vadd.f32 0.0, %v724
      %v726 = vpop.f32.mrf.mxu0
      %v727 = vadd.f32 0.0, %v726
      %728 = vdwg.mxu0
      %v761 = vunpack.c.l.b16 %v298
      %v762 = vunpack.c.h.b16 %v298
      %v763 = vunpack.c.l.b16 %v299
      %v764 = vunpack.c.h.b16 %v299
      %v765 = vunpack.c.l.b16 %v300
      %v766 = vunpack.c.h.b16 %v300
      %v767 = vunpack.c.l.b16 %v301
      %v768 = vunpack.c.h.b16 %v301
      %v769 = vunpack.c.l.b16 %v302
      %v770 = vunpack.c.h.b16 %v302
      %v771 = vunpack.c.l.b16 %v303
      %v772 = vunpack.c.h.b16 %v303
      %v773 = vunpack.c.l.b16 %v304
      %v774 = vunpack.c.h.b16 %v304
      %v775 = vunpack.c.l.b16 %v305
      %v776 = vunpack.c.h.b16 %v305
      %v777 = vunpack.c.l.b16 %v306
      %v778 = vunpack.c.h.b16 %v306
      %v779 = vunpack.c.l.b16 %v307
      %v780 = vunpack.c.h.b16 %v307
      %v781 = vunpack.c.l.b16 %v308
      %v782 = vunpack.c.h.b16 %v308
      %v783 = vunpack.c.l.b16 %v309
      %v784 = vunpack.c.h.b16 %v309
      %v785 = vunpack.c.l.b16 %v310
      %v786 = vunpack.c.h.b16 %v310
      %v787 = vunpack.c.l.b16 %v311
      %v788 = vunpack.c.h.b16 %v311
      %v789 = vunpack.c.l.b16 %v312
      %v790 = vunpack.c.h.b16 %v312
      %v791 = vunpack.c.l.b16 %v313
      %v792 = vunpack.c.h.b16 %v313
      %v793 = vunpack.c.l.b16 %v314
      %v794 = vunpack.c.h.b16 %v314
      %v795 = vunpack.c.l.b16 %v315
      %v796 = vunpack.c.h.b16 %v315
      %v797 = vunpack.c.l.b16 %v316
      %v798 = vunpack.c.h.b16 %v316
      %v799 = vunpack.c.l.b16 %v317
      %v800 = vunpack.c.h.b16 %v317
      %v801 = vunpack.c.l.b16 %v318
      %v802 = vunpack.c.h.b16 %v318
      %v803 = vunpack.c.l.b16 %v319
      %v804 = vunpack.c.h.b16 %v319
      %v805 = vunpack.c.l.b16 %v320
      %v806 = vunpack.c.h.b16 %v320
      %v807 = vunpack.c.l.b16 %v321
      %v808 = vunpack.c.h.b16 %v321
      %v809 = vunpack.c.l.b16 %v322
      %v810 = vunpack.c.h.b16 %v322
      %v811 = vunpack.c.l.b16 %v323
      %v812 = vunpack.c.h.b16 %v323
      %v813 = vunpack.c.l.b16 %v324
      %v814 = vunpack.c.h.b16 %v324
      %v815 = vunpack.c.l.b16 %v325
      %v816 = vunpack.c.h.b16 %v325
      %v817 = vunpack.c.l.b16 %v326
      %v818 = vunpack.c.h.b16 %v326
      %v819 = vunpack.c.l.b16 %v327
      %v820 = vunpack.c.h.b16 %v327
      %v821 = vunpack.c.l.b16 %v328
      %v822 = vunpack.c.h.b16 %v328
      %v823 = vunpack.c.l.b16 %v329
      %v824 = vunpack.c.h.b16 %v329
      %v825 = vpack.c.b16 %v763, %v761
      %v826 = vpack.c.b16 %v764, %v762
      %v827 = vpack.c.b16 %v767, %v765
      %v828 = vpack.c.b16 %v768, %v766
      %v829 = vpack.c.b16 %v771, %v769
      %v830 = vpack.c.b16 %v772, %v770
      %v831 = vpack.c.b16 %v775, %v773
      %v832 = vpack.c.b16 %v776, %v774
      %v833 = vpack.c.b16 %v779, %v777
      %v834 = vpack.c.b16 %v780, %v778
      %v835 = vpack.c.b16 %v783, %v781
      %v836 = vpack.c.b16 %v784, %v782
      %v837 = vpack.c.b16 %v787, %v785
      %v838 = vpack.c.b16 %v788, %v786
      %v839 = vpack.c.b16 %v791, %v789
      %v840 = vpack.c.b16 %v792, %v790
      %v841 = vpack.c.b16 %v795, %v793
      %v842 = vpack.c.b16 %v796, %v794
      %v843 = vpack.c.b16 %v799, %v797
      %v844 = vpack.c.b16 %v800, %v798
      %v845 = vpack.c.b16 %v803, %v801
      %v846 = vpack.c.b16 %v804, %v802
      %v847 = vpack.c.b16 %v807, %v805
      %v848 = vpack.c.b16 %v808, %v806
      %v849 = vpack.c.b16 %v811, %v809
      %v850 = vpack.c.b16 %v812, %v810
      %v851 = vpack.c.b16 %v815, %v813
      %v852 = vpack.c.b16 %v816, %v814
      %v853 = vpack.c.b16 %v819, %v817
      %v854 = vpack.c.b16 %v820, %v818
      %v855 = vpack.c.b16 %v823, %v821
      %v856 = vpack.c.b16 %v824, %v822
      %v921 = vunpack.c.l.b16 %v330
      %v922 = vunpack.c.h.b16 %v330
      %v923 = vunpack.c.l.b16 %v331
      %v924 = vunpack.c.h.b16 %v331
      %v925 = vunpack.c.l.b16 %v332
      %v926 = vunpack.c.h.b16 %v332
      %v927 = vunpack.c.l.b16 %v333
      %v928 = vunpack.c.h.b16 %v333
      %v929 = vunpack.c.l.b16 %v334
      %v930 = vunpack.c.h.b16 %v334
      %v931 = vunpack.c.l.b16 %v335
      %v932 = vunpack.c.h.b16 %v335
      %v933 = vunpack.c.l.b16 %v336
      %v934 = vunpack.c.h.b16 %v336
      %v935 = vunpack.c.l.b16 %v337
      %v936 = vunpack.c.h.b16 %v337
      %v937 = vunpack.c.l.b16 %v338
      %v938 = vunpack.c.h.b16 %v338
      %v939 = vunpack.c.l.b16 %v339
      %v940 = vunpack.c.h.b16 %v339
      %v941 = vunpack.c.l.b16 %v340
      %v942 = vunpack.c.h.b16 %v340
      %v943 = vunpack.c.l.b16 %v341
      %v944 = vunpack.c.h.b16 %v341
      %v945 = vunpack.c.l.b16 %v342
      %v946 = vunpack.c.h.b16 %v342
      %v947 = vunpack.c.l.b16 %v343
      %v948 = vunpack.c.h.b16 %v343
      %v949 = vunpack.c.l.b16 %v344
      %v950 = vunpack.c.h.b16 %v344
      %v951 = vunpack.c.l.b16 %v345
      %v952 = vunpack.c.h.b16 %v345
      %v953 = vunpack.c.l.b16 %v346
      %v954 = vunpack.c.h.b16 %v346
      %v955 = vunpack.c.l.b16 %v347
      %v956 = vunpack.c.h.b16 %v347
      %v957 = vunpack.c.l.b16 %v348
      %v958 = vunpack.c.h.b16 %v348
      %v959 = vunpack.c.l.b16 %v349
      %v960 = vunpack.c.h.b16 %v349
      %v961 = vunpack.c.l.b16 %v350
      %v962 = vunpack.c.h.b16 %v350
      %v963 = vunpack.c.l.b16 %v351
      %v964 = vunpack.c.h.b16 %v351
      %v965 = vunpack.c.l.b16 %v352
      %v966 = vunpack.c.h.b16 %v352
      %v967 = vunpack.c.l.b16 %v353
      %v968 = vunpack.c.h.b16 %v353
      %v969 = vunpack.c.l.b16 %v354
      %v970 = vunpack.c.h.b16 %v354
      %v971 = vunpack.c.l.b16 %v355
      %v972 = vunpack.c.h.b16 %v355
      %v973 = vunpack.c.l.b16 %v356
      %v974 = vunpack.c.h.b16 %v356
      %v975 = vunpack.c.l.b16 %v357
      %v976 = vunpack.c.h.b16 %v357
      %v977 = vunpack.c.l.b16 %v358
      %v978 = vunpack.c.h.b16 %v358
      %v979 = vunpack.c.l.b16 %v359
      %v980 = vunpack.c.h.b16 %v359
      %v981 = vunpack.c.l.b16 %v360
      %v982 = vunpack.c.h.b16 %v360
      %v983 = vunpack.c.l.b16 %v361
      %v984 = vunpack.c.h.b16 %v361
      %v985 = vpack.c.b16 %v923, %v921
      %v986 = vpack.c.b16 %v924, %v922
      %v987 = vpack.c.b16 %v927, %v925
      %v988 = vpack.c.b16 %v928, %v926
      %v989 = vpack.c.b16 %v931, %v929
      %v990 = vpack.c.b16 %v932, %v930
      %v991 = vpack.c.b16 %v935, %v933
      %v992 = vpack.c.b16 %v936, %v934
      %v993 = vpack.c.b16 %v939, %v937
      %v994 = vpack.c.b16 %v940, %v938
      %v995 = vpack.c.b16 %v943, %v941
      %v996 = vpack.c.b16 %v944, %v942
      %v997 = vpack.c.b16 %v947, %v945
      %v998 = vpack.c.b16 %v948, %v946
      %v999 = vpack.c.b16 %v951, %v949
      %v1000 = vpack.c.b16 %v952, %v950
      %v1001 = vpack.c.b16 %v955, %v953
      %v1002 = vpack.c.b16 %v956, %v954
      %v1003 = vpack.c.b16 %v959, %v957
      %v1004 = vpack.c.b16 %v960, %v958
      %v1005 = vpack.c.b16 %v963, %v961
      %v1006 = vpack.c.b16 %v964, %v962
      %v1007 = vpack.c.b16 %v967, %v965
      %v1008 = vpack.c.b16 %v968, %v966
      %v1009 = vpack.c.b16 %v971, %v969
      %v1010 = vpack.c.b16 %v972, %v970
      %v1011 = vpack.c.b16 %v975, %v973
      %v1012 = vpack.c.b16 %v976, %v974
      %v1013 = vpack.c.b16 %v979, %v977
      %v1014 = vpack.c.b16 %v980, %v978
      %v1015 = vpack.c.b16 %v983, %v981
      %v1016 = vpack.c.b16 %v984, %v982
      %1049 = vmatprep.subr.bf16.mxu0 %v1000
      %1050 = vmatpush1.bf16.msra.mxu0 %v999
      %1051 = vmatprep.subr.bf16.mxu0 %v998
      %1052 = vmatpush1.bf16.msra.mxu0 %v997
      %1053 = vmatprep.subr.bf16.mxu0 %v996
      %1054 = vmatpush1.bf16.msra.mxu0 %v995
      %1055 = vmatprep.subr.bf16.mxu0 %v994
      %1056 = vmatpush1.bf16.msra.mxu0 %v993
      %1057 = vmatprep.subr.bf16.mxu0 %v992
      %1058 = vmatpush1.bf16.msra.mxu0 %v991
      %1059 = vmatprep.subr.bf16.mxu0 %v990
      %1060 = vmatpush1.bf16.msra.mxu0 %v989
      %1061 = vmatprep.subr.bf16.mxu0 %v988
      %1062 = vmatpush1.bf16.msra.mxu0 %v987
      %1063 = vmatprep.subr.bf16.mxu0 %v986
      %1064 = vmatpush1.bf16.msra.mxu0 %v985
      %1065 = vmatprep.subr.bf16.mxu0 %v1016
      %1066 = vmatpush2.bf16.msra.mxu0 %v1015
      %1067 = vmatprep.subr.bf16.mxu0 %v1014
      %1068 = vmatpush2.bf16.msra.mxu0 %v1013
      %1069 = vmatprep.subr.bf16.mxu0 %v1012
      %1070 = vmatpush2.bf16.msra.mxu0 %v1011
      %1071 = vmatprep.subr.bf16.mxu0 %v1010
      %1072 = vmatpush2.bf16.msra.mxu0 %v1009
      %1073 = vmatprep.subr.bf16.mxu0 %v1008
      %1074 = vmatpush2.bf16.msra.mxu0 %v1007
      %1075 = vmatprep.subr.bf16.mxu0 %v1006
      %1076 = vmatpush2.bf16.msra.mxu0 %v1005
      %1077 = vmatprep.subr.bf16.mxu0 %v1004
      %1078 = vmatpush2.bf16.msra.mxu0 %v1003
      %1079 = vmatprep.subr.bf16.mxu0 %v1002
      %1080 = vmatpush2.bf16.msra.mxu0 %v1001
      %1081 = vmatprep.mubr.bf16.mxu0 %v826
      %1082 = vmatmul.mubr.bf16.gmra.mxu0 %v825
      %v1083 = vpop.f32.mrf.mxu0
      %v1084 = vadd.f32 %v571, %v1083
      %v1085 = vpop.f32.mrf.mxu0
      %v1086 = vadd.f32 %v573, %v1085
      %v1087 = vpop.f32.mrf.mxu0
      %v1088 = vadd.f32 %v575, %v1087
      %v1089 = vpop.f32.mrf.mxu0
      %v1090 = vadd.f32 %v577, %v1089
      %1091 = vmatprep.mubr.bf16.mxu0 %v828
      %1092 = vmatmul.mubr.bf16.gmra.mxu0 %v827
      %v1093 = vpop.f32.mrf.mxu0
      %v1094 = vadd.f32 %v581, %v1093
      %v1095 = vpop.f32.mrf.mxu0
      %v1096 = vadd.f32 %v583, %v1095
      %v1097 = vpop.f32.mrf.mxu0
      %v1098 = vadd.f32 %v585, %v1097
      %v1099 = vpop.f32.mrf.mxu0
      %v1100 = vadd.f32 %v587, %v1099
      %1101 = vmatprep.mubr.bf16.mxu0 %v830
      %1102 = vmatmul.mubr.bf16.gmra.mxu0 %v829
      %v1103 = vpop.f32.mrf.mxu0
      %v1104 = vadd.f32 %v591, %v1103
      %v1105 = vpop.f32.mrf.mxu0
      %v1106 = vadd.f32 %v593, %v1105
      %v1107 = vpop.f32.mrf.mxu0
      %v1108 = vadd.f32 %v595, %v1107
      %v1109 = vpop.f32.mrf.mxu0
      %v1110 = vadd.f32 %v597, %v1109
      %1111 = vmatprep.mubr.bf16.mxu0 %v832
      %1112 = vmatmul.mubr.bf16.gmra.mxu0 %v831
      %v1113 = vpop.f32.mrf.mxu0
      %v1114 = vadd.f32 %v601, %v1113
      %v1115 = vpop.f32.mrf.mxu0
      %v1116 = vadd.f32 %v603, %v1115
      %v1117 = vpop.f32.mrf.mxu0
      %v1118 = vadd.f32 %v605, %v1117
      %v1119 = vpop.f32.mrf.mxu0
      %v1120 = vadd.f32 %v607, %v1119
      %1121 = vmatprep.mubr.bf16.mxu0 %v834
      %1122 = vmatmul.mubr.bf16.gmra.mxu0 %v833
      %v1123 = vpop.f32.mrf.mxu0
      %v1124 = vadd.f32 %v611, %v1123
      %v1125 = vpop.f32.mrf.mxu0
      %v1126 = vadd.f32 %v613, %v1125
      %v1127 = vpop.f32.mrf.mxu0
      %v1128 = vadd.f32 %v615, %v1127
      %v1129 = vpop.f32.mrf.mxu0
      %v1130 = vadd.f32 %v617, %v1129
      %1131 = vmatprep.mubr.bf16.mxu0 %v836
      %1132 = vmatmul.mubr.bf16.gmra.mxu0 %v835
      %v1133 = vpop.f32.mrf.mxu0
      %v1134 = vadd.f32 %v621, %v1133
      %v1135 = vpop.f32.mrf.mxu0
      %v1136 = vadd.f32 %v623, %v1135
      %v1137 = vpop.f32.mrf.mxu0
      %v1138 = vadd.f32 %v625, %v1137
      %v1139 = vpop.f32.mrf.mxu0
      %v1140 = vadd.f32 %v627, %v1139
      %1141 = vmatprep.mubr.bf16.mxu0 %v838
      %1142 = vmatmul.mubr.bf16.gmra.mxu0 %v837
      %v1143 = vpop.f32.mrf.mxu0
      %v1144 = vadd.f32 %v631, %v1143
      %v1145 = vpop.f32.mrf.mxu0
      %v1146 = vadd.f32 %v633, %v1145
      %v1147 = vpop.f32.mrf.mxu0
      %v1148 = vadd.f32 %v635, %v1147
      %v1149 = vpop.f32.mrf.mxu0
      %v1150 = vadd.f32 %v637, %v1149
      %1151 = vmatprep.mubr.bf16.mxu0 %v840
      %1152 = vmatmul.mubr.bf16.gmra.mxu0 %v839
      %v1153 = vpop.f32.mrf.mxu0
      %v1154 = vadd.f32 %v641, %v1153
      %v1155 = vpop.f32.mrf.mxu0
      %v1156 = vadd.f32 %v643, %v1155
      %v1157 = vpop.f32.mrf.mxu0
      %v1158 = vadd.f32 %v645, %v1157
      %v1159 = vpop.f32.mrf.mxu0
      %v1160 = vadd.f32 %v647, %v1159
      %1161 = vmatprep.mubr.bf16.mxu0 %v842
      %1162 = vmatmul.mubr.bf16.gmra.mxu0 %v841
      %v1163 = vpop.f32.mrf.mxu0
      %v1164 = vadd.f32 %v651, %v1163
      %v1165 = vpop.f32.mrf.mxu0
      %v1166 = vadd.f32 %v653, %v1165
      %v1167 = vpop.f32.mrf.mxu0
      %v1168 = vadd.f32 %v655, %v1167
      %v1169 = vpop.f32.mrf.mxu0
      %v1170 = vadd.f32 %v657, %v1169
      %1171 = vmatprep.mubr.bf16.mxu0 %v844
      %1172 = vmatmul.mubr.bf16.gmra.mxu0 %v843
      %v1173 = vpop.f32.mrf.mxu0
      %v1174 = vadd.f32 %v661, %v1173
      %v1175 = vpop.f32.mrf.mxu0
      %v1176 = vadd.f32 %v663, %v1175
      %v1177 = vpop.f32.mrf.mxu0
      %v1178 = vadd.f32 %v665, %v1177
      %v1179 = vpop.f32.mrf.mxu0
      %v1180 = vadd.f32 %v667, %v1179
      %1181 = vmatprep.mubr.bf16.mxu0 %v846
      %1182 = vmatmul.mubr.bf16.gmra.mxu0 %v845
      %v1183 = vpop.f32.mrf.mxu0
      %v1184 = vadd.f32 %v671, %v1183
      %v1185 = vpop.f32.mrf.mxu0
      %v1186 = vadd.f32 %v673, %v1185
      %v1187 = vpop.f32.mrf.mxu0
      %v1188 = vadd.f32 %v675, %v1187
      %v1189 = vpop.f32.mrf.mxu0
      %v1190 = vadd.f32 %v677, %v1189
      %1191 = vmatprep.mubr.bf16.mxu0 %v848
      %1192 = vmatmul.mubr.bf16.gmra.mxu0 %v847
      %v1193 = vpop.f32.mrf.mxu0
      %v1194 = vadd.f32 %v681, %v1193
      %v1195 = vpop.f32.mrf.mxu0
      %v1196 = vadd.f32 %v683, %v1195
      %v1197 = vpop.f32.mrf.mxu0
      %v1198 = vadd.f32 %v685, %v1197
      %v1199 = vpop.f32.mrf.mxu0
      %v1200 = vadd.f32 %v687, %v1199
      %1201 = vmatprep.mubr.bf16.mxu0 %v850
      %1202 = vmatmul.mubr.bf16.gmra.mxu0 %v849
      %v1203 = vpop.f32.mrf.mxu0
      %v1204 = vadd.f32 %v691, %v1203
      %v1205 = vpop.f32.mrf.mxu0
      %v1206 = vadd.f32 %v693, %v1205
      %v1207 = vpop.f32.mrf.mxu0
      %v1208 = vadd.f32 %v695, %v1207
      %v1209 = vpop.f32.mrf.mxu0
      %v1210 = vadd.f32 %v697, %v1209
      %1211 = vmatprep.mubr.bf16.mxu0 %v852
      %1212 = vmatmul.mubr.bf16.gmra.mxu0 %v851
      %v1213 = vpop.f32.mrf.mxu0
      %v1214 = vadd.f32 %v701, %v1213
      %v1215 = vpop.f32.mrf.mxu0
      %v1216 = vadd.f32 %v703, %v1215
      %v1217 = vpop.f32.mrf.mxu0
      %v1218 = vadd.f32 %v705, %v1217
      %v1219 = vpop.f32.mrf.mxu0
      %v1220 = vadd.f32 %v707, %v1219
      %1221 = vmatprep.mubr.bf16.mxu0 %v854
      %1222 = vmatmul.mubr.bf16.gmra.mxu0 %v853
      %v1223 = vpop.f32.mrf.mxu0
      %v1224 = vadd.f32 %v711, %v1223
      %v1225 = vpop.f32.mrf.mxu0
      %v1226 = vadd.f32 %v713, %v1225
      %v1227 = vpop.f32.mrf.mxu0
      %v1228 = vadd.f32 %v715, %v1227
      %v1229 = vpop.f32.mrf.mxu0
      %v1230 = vadd.f32 %v717, %v1229
      %1231 = vmatprep.mubr.bf16.mxu0 %v856
      %1232 = vmatmul.mubr.bf16.gmra.mxu0 %v855
      %v1233 = vpop.f32.mrf.mxu0
      %v1234 = vadd.f32 %v721, %v1233
      %v1235 = vpop.f32.mrf.mxu0
      %v1236 = vadd.f32 %v723, %v1235
      %v1237 = vpop.f32.mrf.mxu0
      %v1238 = vadd.f32 %v725, %v1237
      %v1239 = vpop.f32.mrf.mxu0
      %v1240 = vadd.f32 %v727, %v1239
      %1241 = vdwg.mxu0
      %v1242 = vld [vmem:[%s282] sm:$0x3]
      %v1243 = vadd.f32 %v1084, %v1088
      %v1244 = vadd.f32 %v1243, %v1094
      %v1245 = vadd.f32 %v1244, %v1098
      %v1246 = vadd.f32 %v1245, %v1104
      %v1247 = vadd.f32 %v1246, %v1108
      %v1248 = vadd.f32 %v1247, %v1114
      %v1249 = vadd.f32 %v1248, %v1118
      %v1250 = vadd.f32 %v1249, %v1124
      %v1251 = vadd.f32 %v1250, %v1128
      %v1252 = vadd.f32 %v1251, %v1134
      %v1253 = vadd.f32 %v1252, %v1138
      %v1254 = vadd.f32 %v1253, %v1144
      %v1255 = vadd.f32 %v1254, %v1148
      %v1256 = vadd.f32 %v1255, %v1154
      %v1257 = vadd.f32 %v1256, %v1158
      %v1258 = vadd.f32 %v1257, %v1164
      %v1259 = vadd.f32 %v1258, %v1168
      %v1260 = vadd.f32 %v1259, %v1174
      %v1261 = vadd.f32 %v1260, %v1178
      %v1262 = vadd.f32 %v1261, %v1184
      %v1263 = vadd.f32 %v1262, %v1188
      %v1264 = vadd.f32 %v1263, %v1194
      %v1265 = vadd.f32 %v1264, %v1198
      %v1266 = vadd.f32 %v1265, %v1204
      %v1267 = vadd.f32 %v1266, %v1208
      %v1268 = vadd.f32 %v1267, %v1214
      %v1269 = vadd.f32 %v1268, %v1218
      %v1270 = vadd.f32 %v1269, %v1224
      %v1271 = vadd.f32 %v1270, %v1228
      %v1272 = vadd.f32 %v1271, %v1234
      %v1273 = vadd.f32 %v1272, %v1238
      %v1274 = vrot.slane %v1273, 4
      %v1275 = vadd.f32 %v1273, %v1274
      %v1276 = vrot.slane %v1275, 2
      %v1277 = vadd.f32 %v1275, %v1276
      %v1278 = vrot.slane %v1277, 1
      %v1279 = vadd.f32 %v1277, %v1278
      %v1280 = vadd.f32 %v1086, %v1090
      %v1281 = vadd.f32 %v1280, %v1096
      %v1282 = vadd.f32 %v1281, %v1100
      %v1283 = vadd.f32 %v1282, %v1106
      %v1284 = vadd.f32 %v1283, %v1110
      %v1285 = vadd.f32 %v1284, %v1116
      %v1286 = vadd.f32 %v1285, %v1120
      %v1287 = vadd.f32 %v1286, %v1126
      %v1288 = vadd.f32 %v1287, %v1130
      %v1289 = vadd.f32 %v1288, %v1136
      %v1290 = vadd.f32 %v1289, %v1140
      %v1291 = vadd.f32 %v1290, %v1146
      %v1292 = vadd.f32 %v1291, %v1150
      %v1293 = vadd.f32 %v1292, %v1156
      %v1294 = vadd.f32 %v1293, %v1160
      %v1295 = vadd.f32 %v1294, %v1166
      %v1296 = vadd.f32 %v1295, %v1170
      %v1297 = vadd.f32 %v1296, %v1176
      %v1298 = vadd.f32 %v1297, %v1180
      %v1299 = vadd.f32 %v1298, %v1186
      %v1300 = vadd.f32 %v1299, %v1190
      %v1301 = vadd.f32 %v1300, %v1196
      %v1302 = vadd.f32 %v1301, %v1200
      %v1303 = vadd.f32 %v1302, %v1206
      %v1304 = vadd.f32 %v1303, %v1210
      %v1305 = vadd.f32 %v1304, %v1216
      %v1306 = vadd.f32 %v1305, %v1220
      %v1307 = vadd.f32 %v1306, %v1226
      %v1308 = vadd.f32 %v1307, %v1230
      %v1309 = vadd.f32 %v1308, %v1236
      %v1310 = vadd.f32 %v1309, %v1240
      %v1311 = vrot.slane %v1310, 4
      %v1312 = vadd.f32 %v1310, %v1311
      %v1313 = vrot.slane %v1312, 2
      %v1314 = vadd.f32 %v1312, %v1313
      %v1315 = vrot.slane %v1314, 1
      %v1316 = vadd.f32 %v1314, %v1315
      %v1319 = vcombine.low %v1279, %v1316
      %v1321 = vunpack.c.l.s4 1966171168
      %v1322 = vunpack.c.0.s8 %v1321
      %v1323 = vlaneseq
      %v1324 = vshrl.u32 %v1323, 7
      %v1325 = vsub.s32 %v1322, %v1324
      %v1326 = vrot.slane %v1319, %v1325
      %v1328 = vunpack.c.l.s4 1966171168
      %v1329 = vunpack.c.0.s8 %v1328
      %v1330 = vlaneseq
      %v1331 = vshrl.u32 %v1330, 7
      %v1332 = vsub.s32 %v1329, %v1331
      %v1333 = vrot.slane %v1326, %v1332
      %v1335 = vadd.f32 %v1242, %v1333
      %v1336 = vlaneseq
      %vm1337 = vcmp.ge.s32.totalorder %v1336, 0
      %vm1338 = vcmp.lt.s32.totalorder %v1336, 256
      %vm1339 = vmand %vm1337, %vm1338
      %1340 = vst.msk [vmem:[%s282] sm:$0x3] %vm1339, %v1335
      %v1341 = vld [vmem:[%s286] sm:$0x3]
      %v1342 = vmul.f32 %v1084, %v1084
      %v1343 = vmul.f32 %v1086, %v1086
      %v1344 = vmul.f32 %v1088, %v1088
      %v1345 = vmul.f32 %v1090, %v1090
      %v1346 = vmul.f32 %v1094, %v1094
      %v1347 = vmul.f32 %v1096, %v1096
      %v1348 = vmul.f32 %v1098, %v1098
      %v1349 = vmul.f32 %v1100, %v1100
      %v1350 = vmul.f32 %v1104, %v1104
      %v1351 = vmul.f32 %v1106, %v1106
      %v1352 = vmul.f32 %v1108, %v1108
      %v1353 = vmul.f32 %v1110, %v1110
      %v1354 = vmul.f32 %v1114, %v1114
      %v1355 = vmul.f32 %v1116, %v1116
      %v1356 = vmul.f32 %v1118, %v1118
      %v1357 = vmul.f32 %v1120, %v1120
      %v1358 = vmul.f32 %v1124, %v1124
      %v1359 = vmul.f32 %v1126, %v1126
      %v1360 = vmul.f32 %v1128, %v1128
      %v1361 = vmul.f32 %v1130, %v1130
      %v1362 = vmul.f32 %v1134, %v1134
      %v1363 = vmul.f32 %v1136, %v1136
      %v1364 = vmul.f32 %v1138, %v1138
      %v1365 = vmul.f32 %v1140, %v1140
      %v1366 = vmul.f32 %v1144, %v1144
      %v1367 = vmul.f32 %v1146, %v1146
      %v1368 = vmul.f32 %v1148, %v1148
      %v1369 = vmul.f32 %v1150, %v1150
      %v1370 = vmul.f32 %v1154, %v1154
      %v1371 = vmul.f32 %v1156, %v1156
      %v1372 = vmul.f32 %v1158, %v1158
      %v1373 = vmul.f32 %v1160, %v1160
      %v1374 = vmul.f32 %v1164, %v1164
      %v1375 = vmul.f32 %v1166, %v1166
      %v1376 = vmul.f32 %v1168, %v1168
      %v1377 = vmul.f32 %v1170, %v1170
      %v1378 = vmul.f32 %v1174, %v1174
      %v1379 = vmul.f32 %v1176, %v1176
      %v1380 = vmul.f32 %v1178, %v1178
      %v1381 = vmul.f32 %v1180, %v1180
      %v1382 = vmul.f32 %v1184, %v1184
      %v1383 = vmul.f32 %v1186, %v1186
      %v1384 = vmul.f32 %v1188, %v1188
      %v1385 = vmul.f32 %v1190, %v1190
      %v1386 = vmul.f32 %v1194, %v1194
      %v1387 = vmul.f32 %v1196, %v1196
      %v1388 = vmul.f32 %v1198, %v1198
      %v1389 = vmul.f32 %v1200, %v1200
      %v1390 = vmul.f32 %v1204, %v1204
      %v1391 = vmul.f32 %v1206, %v1206
      %v1392 = vmul.f32 %v1208, %v1208
      %v1393 = vmul.f32 %v1210, %v1210
      %v1394 = vmul.f32 %v1214, %v1214
      %v1395 = vmul.f32 %v1216, %v1216
      %v1396 = vmul.f32 %v1218, %v1218
      %v1397 = vmul.f32 %v1220, %v1220
      %v1398 = vmul.f32 %v1224, %v1224
      %v1399 = vmul.f32 %v1226, %v1226
      %v1400 = vmul.f32 %v1228, %v1228
      %v1401 = vmul.f32 %v1230, %v1230
      %v1402 = vmul.f32 %v1234, %v1234
      %v1403 = vmul.f32 %v1236, %v1236
      %v1404 = vmul.f32 %v1238, %v1238
      %v1405 = vmul.f32 %v1240, %v1240
      %v1406 = vadd.f32 %v1342, %v1344
      %v1407 = vadd.f32 %v1406, %v1346
      %v1408 = vadd.f32 %v1407, %v1348
      %v1409 = vadd.f32 %v1408, %v1350
      %v1410 = vadd.f32 %v1409, %v1352
      %v1411 = vadd.f32 %v1410, %v1354
      %v1412 = vadd.f32 %v1411, %v1356
      %v1413 = vadd.f32 %v1412, %v1358
      %v1414 = vadd.f32 %v1413, %v1360
      %v1415 = vadd.f32 %v1414, %v1362
      %v1416 = vadd.f32 %v1415, %v1364
      %v1417 = vadd.f32 %v1416, %v1366
      %v1418 = vadd.f32 %v1417, %v1368
      %v1419 = vadd.f32 %v1418, %v1370
      %v1420 = vadd.f32 %v1419, %v1372
      %v1421 = vadd.f32 %v1420, %v1374
      %v1422 = vadd.f32 %v1421, %v1376
      %v1423 = vadd.f32 %v1422, %v1378
      %v1424 = vadd.f32 %v1423, %v1380
      %v1425 = vadd.f32 %v1424, %v1382
      %v1426 = vadd.f32 %v1425, %v1384
      %v1427 = vadd.f32 %v1426, %v1386
      %v1428 = vadd.f32 %v1427, %v1388
      %v1429 = vadd.f32 %v1428, %v1390
      %v1430 = vadd.f32 %v1429, %v1392
      %v1431 = vadd.f32 %v1430, %v1394
      %v1432 = vadd.f32 %v1431, %v1396
      %v1433 = vadd.f32 %v1432, %v1398
      %v1434 = vadd.f32 %v1433, %v1400
      %v1435 = vadd.f32 %v1434, %v1402
      %v1436 = vadd.f32 %v1435, %v1404
      %v1437 = vrot.slane %v1436, 4
      %v1438 = vadd.f32 %v1436, %v1437
      %v1439 = vrot.slane %v1438, 2
      %v1440 = vadd.f32 %v1438, %v1439
      %v1441 = vrot.slane %v1440, 1
      %v1442 = vadd.f32 %v1440, %v1441
      %v1443 = vadd.f32 %v1343, %v1345
      %v1444 = vadd.f32 %v1443, %v1347
      %v1445 = vadd.f32 %v1444, %v1349
      %v1446 = vadd.f32 %v1445, %v1351
      %v1447 = vadd.f32 %v1446, %v1353
      %v1448 = vadd.f32 %v1447, %v1355
      %v1449 = vadd.f32 %v1448, %v1357
      %v1450 = vadd.f32 %v1449, %v1359
      %v1451 = vadd.f32 %v1450, %v1361
      %v1452 = vadd.f32 %v1451, %v1363
      %v1453 = vadd.f32 %v1452, %v1365
      %v1454 = vadd.f32 %v1453, %v1367
      %v1455 = vadd.f32 %v1454, %v1369
      %v1456 = vadd.f32 %v1455, %v1371
      %v1457 = vadd.f32 %v1456, %v1373
      %v1458 = vadd.f32 %v1457, %v1375
      %v1459 = vadd.f32 %v1458, %v1377
      %v1460 = vadd.f32 %v1459, %v1379
      %v1461 = vadd.f32 %v1460, %v1381
      %v1462 = vadd.f32 %v1461, %v1383
      %v1463 = vadd.f32 %v1462, %v1385
      %v1464 = vadd.f32 %v1463, %v1387
      %v1465 = vadd.f32 %v1464, %v1389
      %v1466 = vadd.f32 %v1465, %v1391
      %v1467 = vadd.f32 %v1466, %v1393
      %v1468 = vadd.f32 %v1467, %v1395
      %v1469 = vadd.f32 %v1468, %v1397
      %v1470 = vadd.f32 %v1469, %v1399
      %v1471 = vadd.f32 %v1470, %v1401
      %v1472 = vadd.f32 %v1471, %v1403
      %v1473 = vadd.f32 %v1472, %v1405
      %v1474 = vrot.slane %v1473, 4
      %v1475 = vadd.f32 %v1473, %v1474
      %v1476 = vrot.slane %v1475, 2
      %v1477 = vadd.f32 %v1475, %v1476
      %v1478 = vrot.slane %v1477, 1
      %v1479 = vadd.f32 %v1477, %v1478
      %v1482 = vcombine.low %v1442, %v1479
      %v1484 = vunpack.c.l.s4 1966171168
      %v1485 = vunpack.c.0.s8 %v1484
      %v1486 = vlaneseq
      %v1487 = vshrl.u32 %v1486, 7
      %v1488 = vsub.s32 %v1485, %v1487
      %v1489 = vrot.slane %v1482, %v1488
      %v1491 = vunpack.c.l.s4 1966171168
      %v1492 = vunpack.c.0.s8 %v1491
      %v1493 = vlaneseq
      %v1494 = vshrl.u32 %v1493, 7
      %v1495 = vsub.s32 %v1492, %v1494
      %v1496 = vrot.slane %v1489, %v1495
      %v1498 = vadd.f32 %v1341, %v1496
      %1499 = vst.msk [vmem:[%s286] sm:$0x3] %vm1339, %v1498
      %p1500 = scmp.lt.s32.totalorder %s21, 1
      %s1501 = scalar_select %p1500, %s21, 1
      %s1502 = smul.addr %s1501, 2
      %s1503 = scalar_lea.vmem %s4, %s1502
      %p1504 = scmp.lt.s32.totalorder %s21, 1
      %s1505 = scalar_select %p1504, %s21, 1
      %s1506 = smul.addr %s1505, 2
      %s1507 = scalar_lea.vmem %s5, %s1506
      // Predicated region
      $region41: #{fpn_image_encoder_forward.5} parent=35 // pred_check
        %p1508 = pneg %p143
      $region42: #{fpn_image_encoder_forward.5} parent=35 // pred_check_branch
        %1510 = sbr.rel (%p1508) target = $region44
      $region43: #{fpn_image_encoder_forward.5} parent=35 // pred_region
        _
      $region44: #{fpn_image_encoder_forward.5} parent=35 // pred_fallthru
        _
      // Predicated region
      $region45: #{fpn_image_encoder_forward.5} parent=35 // pred_check
        %p1511 = pneg %p169
      $region46: #{fpn_image_encoder_forward.5} parent=35 // pred_check_branch
        %1513 = sbr.rel (%p1511) target = $region48
      $region47: #{fpn_image_encoder_forward.5} parent=35 // pred_region
        _
      $region48: #{fpn_image_encoder_forward.5} parent=35 // pred_fallthru
        _
    $region36: #{fpn_image_encoder_forward.5} parent=5 // pred_fallthru
      _
    %p1514 = scmp.le.s32.totalorder 2, %s12
    // Predicated region
    $region49: #{fpn_image_encoder_forward.5} parent=5 // pred_check
      %p1515 = pneg %p1514
    $region50: #{fpn_image_encoder_forward.5} parent=5 // pred_check_branch
      %1517 = sbr.rel (%p1515) target = $region52
    $region51: #{fpn_image_encoder_forward.5} parent=5 // pred_region
      %s1518 = ssub.s32 %s12, 2
      // Predicated region
      $region53: #{fpn_image_encoder_forward.5} parent=51 // pred_check
        %p1519 = pneg %p149
      $region54: #{fpn_image_encoder_forward.5} parent=51 // pred_check_branch
        %1521 = sbr.rel (%p1519) target = $region56
      $region55: #{fpn_image_encoder_forward.5} parent=51 // pred_region
        %p1522 = scmp.lt.s32.totalorder %s23, 1
        %s1523 = scalar_select %p1522, %s23, 1
        %s1524 = smul.addr %s1523, 2
        %s1525 = scalar_lea.vmem %s4, %s1524
      $region56: #{fpn_image_encoder_forward.5} parent=51 // pred_fallthru
        _
      // Predicated region
      $region57: #{fpn_image_encoder_forward.5} parent=51 // pred_check
        %p1526 = pneg %p175
      $region58: #{fpn_image_encoder_forward.5} parent=51 // pred_check_branch
        %1528 = sbr.rel (%p1526) target = $region60
      $region59: #{fpn_image_encoder_forward.5} parent=51 // pred_region
        %p1529 = scmp.lt.s32.totalorder %s23, 1
        %s1530 = scalar_select %p1529, %s23, 1
        %s1531 = smul.addr %s1530, 2
        %s1532 = scalar_lea.vmem %s5, %s1531
      $region60: #{fpn_image_encoder_forward.5} parent=51 // pred_fallthru
        _
    $region52: #{fpn_image_encoder_forward.5} parent=5 // pred_fallthru
      _
  $region6: #{fpn_image_encoder_forward.5} parent=0 // loop_footer
    %s16 = sadd.s32 1, %s12
  $region7: #{fpn_image_encoder_forward.5} parent=0 // loop_footer_branch
    %11 = sbr.rel target = $region3
  $region8: #{fpn_image_encoder_forward.5} parent=0 // loop_exit
    _

</llo_original>
